<compile_context>
chip_gen: v7x
topology: tpu7x:2x2x1
jax: 0.10.0
libtpu: 0.0.40
codegen_flags: <defaults>
</compile_context>

<pallas_src>
import functools

import jax
import jax.numpy as jnp
from jax.experimental import pallas as pl
from jax.experimental.pallas import tpu as pltpu


# ------------------------------------------------------------------
# In-kernel helpers (traced inside Pallas kernels)
# ------------------------------------------------------------------
def _ln(x, g, b, eps):
    mu = jnp.mean(x, axis=-1, keepdims=True)
    var = jnp.mean(jnp.square(x - mu), axis=-1, keepdims=True)
    return (x - mu) * jax.lax.rsqrt(var + eps) * g + b


def _leaky_relu(x):
    # nn.LeakyReLU default negative_slope = 0.01
    return jnp.where(x > 0, x, 0.01 * x)


def _pick_block_batch(B, T, target_rows=256):
    """Largest Bb dividing B with Bb*T around >= target_rows MXU rows.

    At production B this naturally yields a grid of several steps (keep it
    >= 2x the TensorCore count so dimension_semantics=("parallel",) can
    shard); at the toy sizes here it simply uses the whole batch per step.
    """
    bb = max(1, min(B, -(-target_rows // T)))   # ceil(target/T), capped at B
    while B % bb:
        bb += 1
    return bb


# ------------------------------------------------------------------
# Fused transformer layer kernel
#   one grid step == a (Bb, T, d) slab of batch elements
#   fuses: [pos_emb add] + LN1 + fused-QKV + per-head softmax attention
#          + single out-projection + residual + LN2 + GELU MLP + residual
#          + [final LayerNorm]
# ------------------------------------------------------------------
def _vit_layer_kernel(*refs, heads, dh, eps, add_pos, final_ln):
    it = iter(refs)
    x_ref = next(it)
    pos_ref = next(it) if add_pos else None
    ln1g_ref, ln1b_ref = next(it), next(it)
    wqkv_ref, wo_ref, bo_ref = next(it), next(it), next(it)
    ln2g_ref, ln2b_ref = next(it), next(it)
    w1_ref, b1_ref, w2_ref, b2_ref = next(it), next(it), next(it), next(it)
    lnfg_ref, lnfb_ref = (next(it), next(it)) if final_ln else (None, None)
    o_ref = next(it)

    Bb, T, d = x_ref.shape
    inner = heads * dh

    x = x_ref[...]                                            # (Bb, T, d) f32
    if add_pos:
        x = x + pos_ref[...]                                  # broadcast (1, T, d)
    xt = x.reshape(Bb * T, d)                                 # fold batch into M

    # ---- attention block: LN1 -> fused QKV -> per-head softmax -> out proj + residual
    h = _ln(xt, ln1g_ref[...], ln1b_ref[...], eps).astype(jnp.bfloat16)
    qkv = jnp.dot(h, wqkv_ref[...],
                  preferred_element_type=jnp.float32)         # (Bb*T, 3*inner)
    qkv3 = qkv.reshape(Bb, T, 3 * inner)

    att_heads = []
    # TODO(synk): at production head counts (8-32) replace this static unroll
    # with a heads-batched dot_general / fori_loop to bound vreg pressure.
    for hd in range(heads):
        q = qkv3[:, :, hd * dh:(hd + 1) * dh].astype(jnp.bfloat16)
        k = qkv3[:, :, inner + hd * dh:inner + (hd + 1) * dh].astype(jnp.bfloat16)
        v = qkv3[:, :, 2 * inner + hd * dh:2 * inner + (hd + 1) * dh].astype(jnp.bfloat16)
        # softmax scale is folded into the Q columns of wqkv host-side.
        s = jnp.einsum('bqd,bkd->bqk', q, k,
                       preferred_element_type=jnp.float32)    # (Bb, T, T)
        m = jnp.max(s, axis=-1, keepdims=True)
        p = jnp.exp(s - m)
        p = p * pl.reciprocal(jnp.sum(p, axis=-1, keepdims=True), approx=True)
        att_heads.append(jnp.einsum('bqk,bkd->bqd', p.astype(jnp.bfloat16), v,
                                    preferred_element_type=jnp.float32))
    att = jnp.concatenate(att_heads, axis=-1).reshape(Bb * T, inner)
    o = jnp.dot(att.astype(jnp.bfloat16), wo_ref[...],
                preferred_element_type=jnp.float32) + bo_ref[...]
    xt = xt + o                                               # residual 1

    # ---- MLP block: LN2 -> GELU MLP -> residual (fused)
    h = _ln(xt, ln2g_ref[...], ln2b_ref[...], eps).astype(jnp.bfloat16)
    h1 = jnp.dot(h, w1_ref[...],
                 preferred_element_type=jnp.float32) + b1_ref[...]
    # TODO(synk): PyTorch nn.GELU is exact (erf); tanh approximation used here.
    h1 = jax.nn.gelu(h1, approximate=True)
    h2 = jnp.dot(h1.astype(jnp.bfloat16), w2_ref[...],
                 preferred_element_type=jnp.float32) + b2_ref[...]
    xt = xt + h2                                              # residual 2

    if final_ln:
        # LN is per-row, so applying it here and cls-pooling afterwards is
        # identical to pooling then LN; saves a separate pallas_call.
        xt = _ln(xt, lnfg_ref[...], lnfb_ref[...], eps)

    o_ref[...] = xt.reshape(Bb, T, d)


def pallas_vit_layer(x, layer, heads, dh, *, pos=None, final_ln=None, eps=1e-5):
    """x: (B, T, d) f32 -> (B, T, d) f32 ; one fused pre-norm transformer layer."""
    B, T, d = x.shape
    inner = heads * dh
    mlp_dim = layer["w1"].shape[1]
    Bb = _pick_block_batch(B, T)
    add_pos = pos is not None
    do_fln = final_ln is not None

    def wspec(shape):
        # Constant-index weight spec: DMA'd once, VMEM-resident across the grid.
        return pl.BlockSpec(shape, lambda b, _n=len(shape): (0,) * _n)

    tok_spec = pl.BlockSpec((Bb, T, d), lambda b: (b, 0, 0))

    in_specs = [tok_spec]
    args = [x]
    if add_pos:
        in_specs.append(pl.BlockSpec((1, T, d), lambda b: (0, 0, 0)))
        args.append(pos)
    in_specs += [
        wspec((1, d)), wspec((1, d)),                          # ln1 g, b
        wspec((d, 3 * inner)),                                 # fused wqkv
        wspec((inner, d)), wspec((1, d)),                      # wo, bo
        wspec((1, d)), wspec((1, d)),                          # ln2 g, b
        wspec((d, mlp_dim)), wspec((1, mlp_dim)),              # w1, b1
        wspec((mlp_dim, d)), wspec((1, d)),                    # w2, b2
    ]
    args += [layer["ln1_g"], layer["ln1_b"], layer["wqkv"],
             layer["wo"], layer["bo"],
             layer["ln2_g"], layer["ln2_b"],
             layer["w1"], layer["b1"], layer["w2"], layer["b2"]]
    if do_fln:
        in_specs += [wspec((1, d)), wspec((1, d))]             # final LN g, b
        args += [final_ln[0], final_ln[1]]

    return pl.pallas_call(
        functools.partial(_vit_layer_kernel, heads=heads, dh=dh, eps=eps,
                          add_pos=add_pos, final_ln=do_fln),
        out_shape=jax.ShapeDtypeStruct((B, T, d), jnp.float32),
        grid=(B // Bb,),
        in_specs=in_specs,
        out_specs=tok_spec,
        compiler_params=pltpu.CompilerParams(
            dimension_semantics=("parallel",),
            vmem_limit_bytes=32 * 1024 * 1024),
    )(*args)


# ------------------------------------------------------------------
# Fused head: inter_feat (Linear no-bias + LeakyReLU) + cls MLP (3 linears)
# ------------------------------------------------------------------
def _head_kernel(x_ref, wi_ref, w1_ref, b1_ref, w2_ref, b2_ref,
                 w3_ref, b3_ref, o_ref):
    h = jnp.dot(x_ref[...].astype(jnp.bfloat16), wi_ref[...],
                preferred_element_type=jnp.float32)
    h = _leaky_relu(h)                                        # inter_feat
    h = jnp.dot(h.astype(jnp.bfloat16), w1_ref[...],
                preferred_element_type=jnp.float32) + b1_ref[...]
    h = _leaky_relu(h)                                        # Dropout(0.5): no-op (eval)
    h = jnp.dot(h.astype(jnp.bfloat16), w2_ref[...],
                preferred_element_type=jnp.float32) + b2_ref[...]
    h = _leaky_relu(h)
    h = jnp.dot(h.astype(jnp.bfloat16), w3_ref[...],
                preferred_element_type=jnp.float32) + b3_ref[...]
    o_ref[...] = h


def pallas_head(x, p):
    # TODO(synk): at production d=2048 the inter_feat weight (d*(FRR+1), nf)
    # must be K-tiled (grid reduction axis + f32 accumulator) to fit VMEM.
    B, K = x.shape
    nf = p["inter_w"].shape[1]
    return pl.pallas_call(
        _head_kernel,
        out_shape=jax.ShapeDtypeStruct((B, 2), jnp.float32),
        grid=(1,),
        in_specs=[
            pl.BlockSpec((B, K), lambda i: (0, 0)),
            pl.BlockSpec((K, nf), lambda i: (0, 0)),
            pl.BlockSpec((nf, nf // 2), lambda i: (0, 0)),
            pl.BlockSpec((1, nf // 2), lambda i: (0, 0)),
            pl.BlockSpec((nf // 2, nf // 4), lambda i: (0, 0)),
            pl.BlockSpec((1, nf // 4), lambda i: (0, 0)),
            pl.BlockSpec((nf // 4, 2), lambda i: (0, 0)),
            pl.BlockSpec((1, 2), lambda i: (0, 0)),
        ],
        out_specs=pl.BlockSpec((B, 2), lambda i: (0, 0)),
        compiler_params=pltpu.CompilerParams(
            vmem_limit_bytes=32 * 1024 * 1024),
    )(x, p["inter_w"], p["cls_w1"], p["cls_b1"], p["cls_w2"], p["cls_b2"],
      p["cls_w3"], p["cls_b3"])


# ------------------------------------------------------------------
# ViT (pre-norm transformer, cls token + pos embedding, cls pooling)
# ------------------------------------------------------------------
def init_vit(key, dim, depth, heads, num_patches, mlp_dim):
    assert dim % heads == 0, "dim must be divisible by heads"
    dim_head = dim // heads
    inner = dim_head * heads
    keys = jax.random.split(key, 2 + depth)
    wdt = jnp.bfloat16
    scale = dim_head ** -0.5

    def w(k, shape):
        return 0.02 * jax.random.normal(k, shape, jnp.float32)

    p = {
        "cls_token": 0.02 * jax.random.normal(keys[0], (1, 1, dim), jnp.float32),
        "pos_emb": 0.02 * jax.random.normal(keys[1], (1, num_patches + 1, dim),
                                            jnp.float32),
        "lnf_g": jnp.ones((1, dim), jnp.float32),
        "lnf_b": jnp.zeros((1, dim), jnp.float32),
        "heads": heads,
        "dim_head": dim_head,
        "layers": [],
    }
    for l in range(depth):
        lk = jax.random.split(keys[2 + l], 6)
        wq = w(lk[0], (dim, inner)) * scale       # softmax scale folded into Q
        wk = w(lk[1], (dim, inner))
        wv = w(lk[2], (dim, inner))
        p["layers"].append({
            "ln1_g": jnp.ones((1, dim), jnp.float32),
            "ln1_b": jnp.zeros((1, dim), jnp.float32),
            "wqkv": jnp.concatenate([wq, wk, wv], axis=1).astype(wdt),
            "wo": w(lk[3], (inner, dim)).astype(wdt),
            "bo": jnp.zeros((1, dim), jnp.float32),
            "ln2_g": jnp.ones((1, dim), jnp.float32),
            "ln2_b": jnp.zeros((1, dim), jnp.float32),
            "w1": w(lk[4], (dim, mlp_dim)).astype(wdt),
            "b1": jnp.zeros((1, mlp_dim), jnp.float32),
            "w2": w(lk[5], (mlp_dim, dim)).astype(wdt),
            "b2": jnp.zeros((1, dim), jnp.float32),
        })
    return p


def vit_forward(p, x):
    """x: (B, num_patches, dim) -> pooled cls token (B, dim)."""
    B, N, d = x.shape
    cls = jnp.broadcast_to(p["cls_token"], (B, 1, d))
    # TODO(synk): the cls-token concat stays in XLA glue; pos_emb add and the
    # final LayerNorm are fused into the first / last layer kernels.
    x = jnp.concatenate([cls, x], axis=1)            # (B, T, d), T = N+1
    layers = p["layers"]
    n_layers = len(layers)
    for i, layer in enumerate(layers):
        x = pallas_vit_layer(
            x, layer, p["heads"], p["dim_head"],
            pos=p["pos_emb"] if i == 0 else None,             # emb_dropout: no-op (eval)
            final_ln=(p["lnf_g"], p["lnf_b"]) if i == n_layers - 1 else None)
    return x[:, 0]                                   # cls pooling (final LN already applied)


# ------------------------------------------------------------------
# SingleViT head (train-mode path, not twoStream)
# ------------------------------------------------------------------
def init_single_vit(key, cfg):
    d, nf = cfg["in_feat_dim"], cfg["n_features"]
    keys = jax.random.split(key, 6)
    num_patches = (cfg["crop_size"] // 28 - 1) ** 2
    wdt = jnp.bfloat16

    def w(k, shape):
        return (0.02 * jax.random.normal(k, shape, jnp.float32)).astype(wdt)

    return {
        "spatial_vit": init_vit(keys[0], d, cfg["L1_depth"], cfg["heads"],
                                num_patches, nf),
        "temporal_vit": init_vit(keys[1], d, cfg["L2_depth"], cfg["heads"],
                                 cfg["FRR"], nf),
        # inter_feat: Linear(d*FRR + d -> nf, bias=False) + LeakyReLU
        "inter_w": w(keys[2], (d * cfg["FRR"] + d, nf)),
        # cls: Linear(nf, nf//2) Drop LReLU Linear(nf//2, nf//4) Drop LReLU Linear(nf//4, 2)
        "cls_w1": w(keys[3], (nf, nf // 2)),
        "cls_b1": jnp.zeros((1, nf // 2), jnp.float32),
        "cls_w2": w(keys[4], (nf // 2, nf // 4)),
        "cls_b2": jnp.zeros((1, nf // 4), jnp.float32),
        "cls_w3": w(keys[5], (nf // 4, 2)),
        "cls_b3": jnp.zeros((1, 2), jnp.float32),
    }


def single_vit_forward(params, feat_maps):
    """feat_maps: (FRR, B, C, H, W) encoder outputs (NCHW per frame) -> (B, 2)."""
    FRR, B, C, H, W = feat_maps.shape
    # Rearrange('b c h w -> b (h w) c') per frame; FRR folded into the batch so
    # the spatial ViT runs ONCE over (FRR*B, H*W, C):
    tokens = jnp.transpose(feat_maps, (0, 1, 3, 4, 2)).reshape(FRR * B, H * W, C)
    sp = vit_forward(params["spatial_vit"], tokens)          # (FRR*B, d)
    sp = sp.reshape(FRR, B, C)                               # per-frame spatial feats
    feat_t = jnp.transpose(sp, (1, 0, 2))                    # permute(1,0,2) -> (B, FRR, d)
    feat = vit_forward(params["temporal_vit"], feat_t)       # (B, d)

    # torch.cat([x_frame0, ..., x_frame_{FRR-1}, feat], dim=-1)
    X = jnp.concatenate([feat_t.reshape(B, FRR * C), feat], axis=-1)
    return pallas_head(X, params)                            # (B, 2)


# ------------------------------------------------------------------
if __name__ == "__main__":
    # Small synthetic configuration consistent with the module:
    #   crop_size=112 -> num_patches = (112//28 - 1)^2 = 9  (3x3 feature map)
    #   in_feat_dim shrunk from 2048 -> 32 for a small runnable example.
    cfg = dict(in_feat_dim=32, n_features=32, FRR=4, heads=2,
               L1_depth=1, L2_depth=1, crop_size=112)
    H = W = cfg["crop_size"] // 28 - 1
    B = 2

    key = jax.random.PRNGKey(0)
    k_in, k_par = jax.random.split(key)
    feat_maps = jax.random.normal(
        k_in, (cfg["FRR"], B, cfg["in_feat_dim"], H, W), jnp.float32)
    params = init_single_vit(k_par, cfg)

    fwd = jax.jit(lambda fm: single_vit_forward(params, fm))
    out = fwd(feat_maps)
    out = jax.block_until_ready(out)
    assert out.shape == (B, 2), out.shape
    print("KERNEL_OK")
</pallas_src>

<mosaic_0001>
module attributes {stable_mosaic.version = 11 : i64} {
  func.func @_vit_layer_kernel(%arg0: i32, %arg1: memref<8x10x32xf32, #tpu.memory_space<vmem>>, %arg2: memref<1x10x32xf32, #tpu.memory_space<vmem>>, %arg3: memref<1x32xf32, #tpu.memory_space<vmem>>, %arg4: memref<1x32xf32, #tpu.memory_space<vmem>>, %arg5: memref<32x96xbf16, #tpu.memory_space<vmem>>, %arg6: memref<32x32xbf16, #tpu.memory_space<vmem>>, %arg7: memref<1x32xf32, #tpu.memory_space<vmem>>, %arg8: memref<1x32xf32, #tpu.memory_space<vmem>>, %arg9: memref<1x32xf32, #tpu.memory_space<vmem>>, %arg10: memref<32x32xbf16, #tpu.memory_space<vmem>>, %arg11: memref<1x32xf32, #tpu.memory_space<vmem>>, %arg12: memref<32x32xbf16, #tpu.memory_space<vmem>>, %arg13: memref<1x32xf32, #tpu.memory_space<vmem>>, %arg14: memref<1x32xf32, #tpu.memory_space<vmem>>, %arg15: memref<1x32xf32, #tpu.memory_space<vmem>>, %arg16: memref<8x10x32xf32, #tpu.memory_space<vmem>>) attributes {dimension_semantics = [#tpu.dimension_semantics<parallel>], iteration_bounds = array<i64: 1>, scalar_prefetch = 0 : i64, scratch_operands = 0 : i64, tpu.core_type = #tpu.core_type<tc>, window_params = [{transform_indices = @transform_0, window_bounds = array<i64: 8, 10, 32>}, {pipeline_mode = #tpu.pipeline_mode<synchronous>, transform_indices = @transform_1, window_bounds = array<i64: 1, 10, 32>}, {pipeline_mode = #tpu.pipeline_mode<synchronous>, transform_indices = @transform_2, window_bounds = array<i64: 1, 32>}, {pipeline_mode = #tpu.pipeline_mode<synchronous>, transform_indices = @transform_3, window_bounds = array<i64: 1, 32>}, {pipeline_mode = #tpu.pipeline_mode<synchronous>, transform_indices = @transform_4, window_bounds = array<i64: 32, 96>}, {pipeline_mode = #tpu.pipeline_mode<synchronous>, transform_indices = @transform_5, window_bounds = array<i64: 32, 32>}, {pipeline_mode = #tpu.pipeline_mode<synchronous>, transform_indices = @transform_6, window_bounds = array<i64: 1, 32>}, {pipeline_mode = #tpu.pipeline_mode<synchronous>, transform_indices = @transform_7, window_bounds = array<i64: 1, 32>}, {pipeline_mode = #tpu.pipeline_mode<synchronous>, transform_indices = @transform_8, window_bounds = array<i64: 1, 32>}, {pipeline_mode = #tpu.pipeline_mode<synchronous>, transform_indices = @transform_9, window_bounds = array<i64: 32, 32>}, {pipeline_mode = #tpu.pipeline_mode<synchronous>, transform_indices = @transform_10, window_bounds = array<i64: 1, 32>}, {pipeline_mode = #tpu.pipeline_mode<synchronous>, transform_indices = @transform_11, window_bounds = array<i64: 32, 32>}, {pipeline_mode = #tpu.pipeline_mode<synchronous>, transform_indices = @transform_12, window_bounds = array<i64: 1, 32>}, {pipeline_mode = #tpu.pipeline_mode<synchronous>, transform_indices = @transform_13, window_bounds = array<i64: 1, 32>}, {pipeline_mode = #tpu.pipeline_mode<synchronous>, transform_indices = @transform_14, window_bounds = array<i64: 1, 32>}, {transform_indices = @transform_15, window_bounds = array<i64: 8, 10, 32>}]} {
    %c0 = arith.constant 0 : index
    %c0_0 = arith.constant 0 : index
    %c0_1 = arith.constant 0 : index
    %0 = vector.load %arg1[%c0, %c0_0, %c0_1] : memref<8x10x32xf32, #tpu.memory_space<vmem>>, vector<8x10x32xf32>
    %c0_2 = arith.constant 0 : index
    %c0_3 = arith.constant 0 : index
    %c0_4 = arith.constant 0 : index
    %1 = vector.load %arg2[%c0_2, %c0_3, %c0_4] : memref<1x10x32xf32, #tpu.memory_space<vmem>>, vector<1x10x32xf32>
    %2 = vector.broadcast %1 : vector<1x10x32xf32> to vector<8x10x32xf32>
    %3 = arith.addf %0, %2 : vector<8x10x32xf32>
    %4 = vector.shape_cast %3 : vector<8x10x32xf32> to vector<80x32xf32>
    %c0_5 = arith.constant 0 : index
    %c0_6 = arith.constant 0 : index
    %5 = vector.load %arg3[%c0_5, %c0_6] : memref<1x32xf32, #tpu.memory_space<vmem>>, vector<1x32xf32>
    %c0_7 = arith.constant 0 : index
    %c0_8 = arith.constant 0 : index
    %6 = vector.load %arg4[%c0_7, %c0_8] : memref<1x32xf32, #tpu.memory_space<vmem>>, vector<1x32xf32>
    %cst = arith.constant dense<0.000000e+00> : vector<80xf32>
    %7 = vector.multi_reduction <add>, %4, %cst [1] : vector<80x32xf32> to vector<80xf32>
    %8 = vector.shape_cast %7 : vector<80xf32> to vector<80x1xf32>
    %cst_9 = arith.constant 3.200000e+01 : f32
    %9 = vector.broadcast %cst_9 : f32 to vector<80x1xf32>
    %10 = arith.divf %8, %9 : vector<80x1xf32>
    %11 = vector.broadcast %10 : vector<80x1xf32> to vector<80x32xf32>
    %12 = arith.subf %4, %11 : vector<80x32xf32>
    %13 = arith.mulf %12, %12 : vector<80x32xf32>
    %cst_10 = arith.constant dense<0.000000e+00> : vector<80xf32>
    %14 = vector.multi_reduction <add>, %13, %cst_10 [1] : vector<80x32xf32> to vector<80xf32>
    %15 = vector.shape_cast %14 : vector<80xf32> to vector<80x1xf32>
    %cst_11 = arith.constant 3.200000e+01 : f32
    %16 = vector.broadcast %cst_11 : f32 to vector<80x1xf32>
    %17 = arith.divf %15, %16 : vector<80x1xf32>
    %18 = vector.broadcast %10 : vector<80x1xf32> to vector<80x32xf32>
    %19 = arith.subf %4, %18 : vector<80x32xf32>
    %cst_12 = arith.constant 9.99999974E-6 : f32
    %20 = vector.broadcast %cst_12 : f32 to vector<80x1xf32>
    %21 = arith.addf %17, %20 : vector<80x1xf32>
    %22 = math.rsqrt %21 : vector<80x1xf32>
    %23 = vector.broadcast %22 : vector<80x1xf32> to vector<80x32xf32>
    %24 = arith.mulf %19, %23 : vector<80x32xf32>
    %25 = vector.broadcast %5 : vector<1x32xf32> to vector<80x32xf32>
    %26 = arith.mulf %24, %25 : vector<80x32xf32>
    %27 = vector.broadcast %6 : vector<1x32xf32> to vector<80x32xf32>
    %28 = arith.addf %26, %27 : vector<80x32xf32>
    %29 = arith.truncf %28 : vector<80x32xf32> to vector<80x32xbf16>
    %c0_13 = arith.constant 0 : index
    %c0_14 = arith.constant 0 : index
    %30 = vector.load %arg5[%c0_13, %c0_14] : memref<32x96xbf16, #tpu.memory_space<vmem>>, vector<32x96xbf16>
    %cst_15 = arith.constant dense<0.000000e+00> : vector<80x96xf32>
    %31 = tpu.matmul %29, %30, %cst_15 {dimension_numbers = #tpu.dot_dimension_numbers<[1], [0], [0], [1], [0, 0, 1, 1], [], []>} : vector<80x32xbf16>, vector<32x96xbf16>, vector<80x96xf32> -> vector<80x96xf32>
    %32 = vector.shape_cast %31 : vector<80x96xf32> to vector<8x10x96xf32>
    %33 = vector.extract_strided_slice %32 {offsets = [0, 0, 0], sizes = [8, 10, 16], strides = [1, 1, 1]} : vector<8x10x96xf32> to vector<8x10x16xf32>
    %34 = arith.truncf %33 : vector<8x10x16xf32> to vector<8x10x16xbf16>
    %35 = vector.extract_strided_slice %32 {offsets = [0, 0, 32], sizes = [8, 10, 16], strides = [1, 1, 1]} : vector<8x10x96xf32> to vector<8x10x16xf32>
    %36 = arith.truncf %35 : vector<8x10x16xf32> to vector<8x10x16xbf16>
    %37 = vector.extract_strided_slice %32 {offsets = [0, 0, 64], sizes = [8, 10, 16], strides = [1, 1, 1]} : vector<8x10x96xf32> to vector<8x10x16xf32>
    %38 = arith.truncf %37 : vector<8x10x16xf32> to vector<8x10x16xbf16>
    "tpu.trace_start"() <{level = 10 : i32, message = "bqd,bkd->bqk"}> : () -> ()
    %cst_16 = arith.constant dense<0.000000e+00> : vector<8x10x10xf32>
    %39 = tpu.matmul %34, %36, %cst_16 {dimension_numbers = #tpu.dot_dimension_numbers<[2], [2], [1], [1], [0, 0, 0, 1, 1, 1], [0], [0]>} : vector<8x10x16xbf16>, vector<8x10x16xbf16>, vector<8x10x10xf32> -> vector<8x10x10xf32>
    "tpu.trace_stop"() : () -> ()
    %cst_17 = arith.constant dense<0xFF800000> : vector<8x10xf32>
    %40 = vector.multi_reduction <maximumf>, %39, %cst_17 [2] : vector<8x10x10xf32> to vector<8x10xf32>
    %41 = vector.shape_cast %40 : vector<8x10xf32> to vector<8x10x1xf32>
    %42 = vector.broadcast %41 : vector<8x10x1xf32> to vector<8x10x10xf32>
    %43 = arith.subf %39, %42 : vector<8x10x10xf32>
    %44 = math.exp %43 : vector<8x10x10xf32>
    %cst_18 = arith.constant dense<0.000000e+00> : vector<8x10xf32>
    %45 = vector.multi_reduction <add>, %44, %cst_18 [2] : vector<8x10x10xf32> to vector<8x10xf32>
    %46 = vector.shape_cast %45 : vector<8x10xf32> to vector<8x10x1xf32>
    %47 = tpu.reciprocal %46 {approx = true} : vector<8x10x1xf32> -> vector<8x10x1xf32>
    %48 = vector.broadcast %47 : vector<8x10x1xf32> to vector<8x10x10xf32>
    %49 = arith.mulf %44, %48 : vector<8x10x10xf32>
    %50 = arith.truncf %49 : vector<8x10x10xf32> to vector<8x10x10xbf16>
    "tpu.trace_start"() <{level = 10 : i32, message = "bqk,bkd->bqd"}> : () -> ()
    %cst_19 = arith.constant dense<0.000000e+00> : vector<8x10x16xf32>
    %51 = tpu.matmul %50, %38, %cst_19 {dimension_numbers = #tpu.dot_dimension_numbers<[2], [1], [1], [2], [0, 0, 0, 1, 1, 2], [0], [0]>} : vector<8x10x10xbf16>, vector<8x10x16xbf16>, vector<8x10x16xf32> -> vector<8x10x16xf32>
    "tpu.trace_stop"() : () -> ()
    %52 = vector.extract_strided_slice %32 {offsets = [0, 0, 16], sizes = [8, 10, 16], strides = [1, 1, 1]} : vector<8x10x96xf32> to vector<8x10x16xf32>
    %53 = arith.truncf %52 : vector<8x10x16xf32> to vector<8x10x16xbf16>
    %54 = vector.extract_strided_slice %32 {offsets = [0, 0, 48], sizes = [8, 10, 16], strides = [1, 1, 1]} : vector<8x10x96xf32> to vector<8x10x16xf32>
    %55 = arith.truncf %54 : vector<8x10x16xf32> to vector<8x10x16xbf16>
    %56 = vector.extract_strided_slice %32 {offsets = [0, 0, 80], sizes = [8, 10, 16], strides = [1, 1, 1]} : vector<8x10x96xf32> to vector<8x10x16xf32>
    %57 = arith.truncf %56 : vector<8x10x16xf32> to vector<8x10x16xbf16>
    "tpu.trace_start"() <{level = 10 : i32, message = "bqd,bkd->bqk"}> : () -> ()
    %cst_20 = arith.constant dense<0.000000e+00> : vector<8x10x10xf32>
    %58 = tpu.matmul %53, %55, %cst_20 {dimension_numbers = #tpu.dot_dimension_numbers<[2], [2], [1], [1], [0, 0, 0, 1, 1, 1], [0], [0]>} : vector<8x10x16xbf16>, vector<8x10x16xbf16>, vector<8x10x10xf32> -> vector<8x10x10xf32>
    "tpu.trace_stop"() : () -> ()
    %cst_21 = arith.constant dense<0xFF800000> : vector<8x10xf32>
    %59 = vector.multi_reduction <maximumf>, %58, %cst_21 [2] : vector<8x10x10xf32> to vector<8x10xf32>
    %60 = vector.shape_cast %59 : vector<8x10xf32> to vector<8x10x1xf32>
    %61 = vector.broadcast %60 : vector<8x10x1xf32> to vector<8x10x10xf32>
    %62 = arith.subf %58, %61 : vector<8x10x10xf32>
    %63 = math.exp %62 : vector<8x10x10xf32>
    %cst_22 = arith.constant dense<0.000000e+00> : vector<8x10xf32>
    %64 = vector.multi_reduction <add>, %63, %cst_22 [2] : vector<8x10x10xf32> to vector<8x10xf32>
    %65 = vector.shape_cast %64 : vector<8x10xf32> to vector<8x10x1xf32>
    %66 = tpu.reciprocal %65 {approx = true} : vector<8x10x1xf32> -> vector<8x10x1xf32>
    %67 = vector.broadcast %66 : vector<8x10x1xf32> to vector<8x10x10xf32>
    %68 = arith.mulf %63, %67 : vector<8x10x10xf32>
    %69 = arith.truncf %68 : vector<8x10x10xf32> to vector<8x10x10xbf16>
    "tpu.trace_start"() <{level = 10 : i32, message = "bqk,bkd->bqd"}> : () -> ()
    %cst_23 = arith.constant dense<0.000000e+00> : vector<8x10x16xf32>
    %70 = tpu.matmul %69, %57, %cst_23 {dimension_numbers = #tpu.dot_dimension_numbers<[2], [1], [1], [2], [0, 0, 0, 1, 1, 2], [0], [0]>} : vector<8x10x10xbf16>, vector<8x10x16xbf16>, vector<8x10x16xf32> -> vector<8x10x16xf32>
    "tpu.trace_stop"() : () -> ()
    %71 = tpu.concatenate %51, %70 in 2 : vector<8x10x16xf32>, vector<8x10x16xf32> -> vector<8x10x32xf32>
    %72 = vector.shape_cast %71 : vector<8x10x32xf32> to vector<80x32xf32>
    %73 = arith.truncf %72 : vector<80x32xf32> to vector<80x32xbf16>
    %c0_24 = arith.constant 0 : index
    %c0_25 = arith.constant 0 : index
    %74 = vector.load %arg6[%c0_24, %c0_25] : memref<32x32xbf16, #tpu.memory_space<vmem>>, vector<32x32xbf16>
    %cst_26 = arith.constant dense<0.000000e+00> : vector<80x32xf32>
    %75 = tpu.matmul %73, %74, %cst_26 {dimension_numbers = #tpu.dot_dimension_numbers<[1], [0], [0], [1], [0, 0, 1, 1], [], []>} : vector<80x32xbf16>, vector<32x32xbf16>, vector<80x32xf32> -> vector<80x32xf32>
    %c0_27 = arith.constant 0 : index
    %c0_28 = arith.constant 0 : index
    %76 = vector.load %arg7[%c0_27, %c0_28] : memref<1x32xf32, #tpu.memory_space<vmem>>, vector<1x32xf32>
    %77 = vector.broadcast %76 : vector<1x32xf32> to vector<80x32xf32>
    %78 = arith.addf %75, %77 : vector<80x32xf32>
    %79 = arith.addf %4, %78 : vector<80x32xf32>
    %c0_29 = arith.constant 0 : index
    %c0_30 = arith.constant 0 : index
    %80 = vector.load %arg8[%c0_29, %c0_30] : memref<1x32xf32, #tpu.memory_space<vmem>>, vector<1x32xf32>
    %c0_31 = arith.constant 0 : index
    %c0_32 = arith.constant 0 : index
    %81 = vector.load %arg9[%c0_31, %c0_32] : memref<1x32xf32, #tpu.memory_space<vmem>>, vector<1x32xf32>
    %cst_33 = arith.constant dense<0.000000e+00> : vector<80xf32>
    %82 = vector.multi_reduction <add>, %79, %cst_33 [1] : vector<80x32xf32> to vector<80xf32>
    %83 = vector.shape_cast %82 : vector<80xf32> to vector<80x1xf32>
    %cst_34 = arith.constant 3.200000e+01 : f32
    %84 = vector.broadcast %cst_34 : f32 to vector<80x1xf32>
    %85 = arith.divf %83, %84 : vector<80x1xf32>
    %86 = vector.broadcast %85 : vector<80x1xf32> to vector<80x32xf32>
    %87 = arith.subf %79, %86 : vector<80x32xf32>
    %88 = arith.mulf %87, %87 : vector<80x32xf32>
    %cst_35 = arith.constant dense<0.000000e+00> : vector<80xf32>
    %89 = vector.multi_reduction <add>, %88, %cst_35 [1] : vector<80x32xf32> to vector<80xf32>
    %90 = vector.shape_cast %89 : vector<80xf32> to vector<80x1xf32>
    %cst_36 = arith.constant 3.200000e+01 : f32
    %91 = vector.broadcast %cst_36 : f32 to vector<80x1xf32>
    %92 = arith.divf %90, %91 : vector<80x1xf32>
    %93 = vector.broadcast %85 : vector<80x1xf32> to vector<80x32xf32>
    %94 = arith.subf %79, %93 : vector<80x32xf32>
    %cst_37 = arith.constant 9.99999974E-6 : f32
    %95 = vector.broadcast %cst_37 : f32 to vector<80x1xf32>
    %96 = arith.addf %92, %95 : vector<80x1xf32>
    %97 = math.rsqrt %96 : vector<80x1xf32>
    %98 = vector.broadcast %97 : vector<80x1xf32> to vector<80x32xf32>
    %99 = arith.mulf %94, %98 : vector<80x32xf32>
    %100 = vector.broadcast %80 : vector<1x32xf32> to vector<80x32xf32>
    %101 = arith.mulf %99, %100 : vector<80x32xf32>
    %102 = vector.broadcast %81 : vector<1x32xf32> to vector<80x32xf32>
    %103 = arith.addf %101, %102 : vector<80x32xf32>
    %104 = arith.truncf %103 : vector<80x32xf32> to vector<80x32xbf16>
    %c0_38 = arith.constant 0 : index
    %c0_39 = arith.constant 0 : index
    %105 = vector.load %arg10[%c0_38, %c0_39] : memref<32x32xbf16, #tpu.memory_space<vmem>>, vector<32x32xbf16>
    %cst_40 = arith.constant dense<0.000000e+00> : vector<80x32xf32>
    %106 = tpu.matmul %104, %105, %cst_40 {dimension_numbers = #tpu.dot_dimension_numbers<[1], [0], [0], [1], [0, 0, 1, 1], [], []>} : vector<80x32xbf16>, vector<32x32xbf16>, vector<80x32xf32> -> vector<80x32xf32>
    %c0_41 = arith.constant 0 : index
    %c0_42 = arith.constant 0 : index
    %107 = vector.load %arg11[%c0_41, %c0_42] : memref<1x32xf32, #tpu.memory_space<vmem>>, vector<1x32xf32>
    %108 = vector.broadcast %107 : vector<1x32xf32> to vector<80x32xf32>
    %109 = arith.addf %106, %108 : vector<80x32xf32>
    %110 = arith.mulf %109, %109 : vector<80x32xf32>
    %111 = arith.mulf %109, %110 : vector<80x32xf32>
    %cst_43 = arith.constant 4.471500e-02 : f32
    %112 = vector.broadcast %cst_43 : f32 to vector<80x32xf32>
    %113 = arith.mulf %112, %111 : vector<80x32xf32>
    %114 = arith.addf %109, %113 : vector<80x32xf32>
    %cst_44 = arith.constant 0.797884583 : f32
    %115 = vector.broadcast %cst_44 : f32 to vector<80x32xf32>
    %116 = arith.mulf %115, %114 : vector<80x32xf32>
    %117 = math.tanh %116 : vector<80x32xf32>
    %cst_45 = arith.constant 1.000000e+00 : f32
    %118 = vector.broadcast %cst_45 : f32 to vector<80x32xf32>
    %119 = arith.addf %118, %117 : vector<80x32xf32>
    %cst_46 = arith.constant 5.000000e-01 : f32
    %120 = vector.broadcast %cst_46 : f32 to vector<80x32xf32>
    %121 = arith.mulf %120, %119 : vector<80x32xf32>
    %122 = arith.mulf %109, %121 : vector<80x32xf32>
    %123 = arith.truncf %122 : vector<80x32xf32> to vector<80x32xbf16>
    %c0_47 = arith.constant 0 : index
    %c0_48 = arith.constant 0 : index
    %124 = vector.load %arg12[%c0_47, %c0_48] : memref<32x32xbf16, #tpu.memory_space<vmem>>, vector<32x32xbf16>
    %cst_49 = arith.constant dense<0.000000e+00> : vector<80x32xf32>
    %125 = tpu.matmul %123, %124, %cst_49 {dimension_numbers = #tpu.dot_dimension_numbers<[1], [0], [0], [1], [0, 0, 1, 1], [], []>} : vector<80x32xbf16>, vector<32x32xbf16>, vector<80x32xf32> -> vector<80x32xf32>
    %c0_50 = arith.constant 0 : index
    %c0_51 = arith.constant 0 : index
    %126 = vector.load %arg13[%c0_50, %c0_51] : memref<1x32xf32, #tpu.memory_space<vmem>>, vector<1x32xf32>
    %127 = vector.broadcast %126 : vector<1x32xf32> to vector<80x32xf32>
    %128 = arith.addf %125, %127 : vector<80x32xf32>
    %129 = arith.addf %79, %128 : vector<80x32xf32>
    %c0_52 = arith.constant 0 : index
    %c0_53 = arith.constant 0 : index
    %130 = vector.load %arg14[%c0_52, %c0_53] : memref<1x32xf32, #tpu.memory_space<vmem>>, vector<1x32xf32>
    %c0_54 = arith.constant 0 : index
    %c0_55 = arith.constant 0 : index
    %131 = vector.load %arg15[%c0_54, %c0_55] : memref<1x32xf32, #tpu.memory_space<vmem>>, vector<1x32xf32>
    %cst_56 = arith.constant dense<0.000000e+00> : vector<80xf32>
    %132 = vector.multi_reduction <add>, %129, %cst_56 [1] : vector<80x32xf32> to vector<80xf32>
    %133 = vector.shape_cast %132 : vector<80xf32> to vector<80x1xf32>
    %cst_57 = arith.constant 3.200000e+01 : f32
    %134 = vector.broadcast %cst_57 : f32 to vector<80x1xf32>
    %135 = arith.divf %133, %134 : vector<80x1xf32>
    %136 = vector.broadcast %135 : vector<80x1xf32> to vector<80x32xf32>
    %137 = arith.subf %129, %136 : vector<80x32xf32>
    %138 = arith.mulf %137, %137 : vector<80x32xf32>
    %cst_58 = arith.constant dense<0.000000e+00> : vector<80xf32>
    %139 = vector.multi_reduction <add>, %138, %cst_58 [1] : vector<80x32xf32> to vector<80xf32>
    %140 = vector.shape_cast %139 : vector<80xf32> to vector<80x1xf32>
    %cst_59 = arith.constant 3.200000e+01 : f32
    %141 = vector.broadcast %cst_59 : f32 to vector<80x1xf32>
    %142 = arith.divf %140, %141 : vector<80x1xf32>
    %143 = vector.broadcast %135 : vector<80x1xf32> to vector<80x32xf32>
    %144 = arith.subf %129, %143 : vector<80x32xf32>
    %cst_60 = arith.constant 9.99999974E-6 : f32
    %145 = vector.broadcast %cst_60 : f32 to vector<80x1xf32>
    %146 = arith.addf %142, %145 : vector<80x1xf32>
    %147 = math.rsqrt %146 : vector<80x1xf32>
    %148 = vector.broadcast %147 : vector<80x1xf32> to vector<80x32xf32>
    %149 = arith.mulf %144, %148 : vector<80x32xf32>
    %150 = vector.broadcast %130 : vector<1x32xf32> to vector<80x32xf32>
    %151 = arith.mulf %149, %150 : vector<80x32xf32>
    %152 = vector.broadcast %131 : vector<1x32xf32> to vector<80x32xf32>
    %153 = arith.addf %151, %152 : vector<80x32xf32>
    %154 = vector.shape_cast %153 : vector<80x32xf32> to vector<8x10x32xf32>
    %c0_61 = arith.constant 0 : index
    %c0_62 = arith.constant 0 : index
    %c0_63 = arith.constant 0 : index
    %155 = vector.load %arg16[%c0_61, %c0_62, %c0_63] : memref<8x10x32xf32, #tpu.memory_space<vmem>>, vector<8x10x32xf32>
    tpu.vector_store %arg16[%c0_61, %c0_62, %c0_63], %154 {strides = array<i32>} : memref<8x10x32xf32, #tpu.memory_space<vmem>>, vector<8x10x32xf32>,
    return
  }
  func.func @transform_0(%arg0: i32) -> (i32, i32, i32) {
    %c0_i32 = arith.constant 0 : i32
    %c0_i32_0 = arith.constant 0 : i32
    %c0_i32_1 = arith.constant 0 : i32
    return %arg0, %c0_i32, %c0_i32_0 : i32, i32, i32
  }
  func.func @transform_1(%arg0: i32) -> (i32, i32, i32) {
    %c0_i32 = arith.constant 0 : i32
    %c0_i32_0 = arith.constant 0 : i32
    %c0_i32_1 = arith.constant 0 : i32
    %c0_i32_2 = arith.constant 0 : i32
    return %c0_i32, %c0_i32_0, %c0_i32_1 : i32, i32, i32
  }
  func.func @transform_2(%arg0: i32) -> (i32, i32) {
    %c0_i32 = arith.constant 0 : i32
    %c0_i32_0 = arith.constant 0 : i32
    %c0_i32_1 = arith.constant 0 : i32
    return %c0_i32, %c0_i32_0 : i32, i32
  }
  func.func @transform_3(%arg0: i32) -> (i32, i32) {
    %c0_i32 = arith.constant 0 : i32
    %c0_i32_0 = arith.constant 0 : i32
    %c0_i32_1 = arith.constant 0 : i32
    return %c0_i32, %c0_i32_0 : i32, i32
  }
  func.func @transform_4(%arg0: i32) -> (i32, i32) {
    %c0_i32 = arith.constant 0 : i32
    %c0_i32_0 = arith.constant 0 : i32
    %c0_i32_1 = arith.constant 0 : i32
    return %c0_i32, %c0_i32_0 : i32, i32
  }
  func.func @transform_5(%arg0: i32) -> (i32, i32) {
    %c0_i32 = arith.constant 0 : i32
    %c0_i32_0 = arith.constant 0 : i32
    %c0_i32_1 = arith.constant 0 : i32
    return %c0_i32, %c0_i32_0 : i32, i32
  }
  func.func @transform_6(%arg0: i32) -> (i32, i32) {
    %c0_i32 = arith.constant 0 : i32
    %c0_i32_0 = arith.constant 0 : i32
    %c0_i32_1 = arith.constant 0 : i32
    return %c0_i32, %c0_i32_0 : i32, i32
  }
  func.func @transform_7(%arg0: i32) -> (i32, i32) {
    %c0_i32 = arith.constant 0 : i32
    %c0_i32_0 = arith.constant 0 : i32
    %c0_i32_1 = arith.constant 0 : i32
    return %c0_i32, %c0_i32_0 : i32, i32
  }
  func.func @transform_8(%arg0: i32) -> (i32, i32) {
    %c0_i32 = arith.constant 0 : i32
    %c0_i32_0 = arith.constant 0 : i32
    %c0_i32_1 = arith.constant 0 : i32
    return %c0_i32, %c0_i32_0 : i32, i32
  }
  func.func @transform_9(%arg0: i32) -> (i32, i32) {
    %c0_i32 = arith.constant 0 : i32
    %c0_i32_0 = arith.constant 0 : i32
    %c0_i32_1 = arith.constant 0 : i32
    return %c0_i32, %c0_i32_0 : i32, i32
  }
  func.func @transform_10(%arg0: i32) -> (i32, i32) {
    %c0_i32 = arith.constant 0 : i32
    %c0_i32_0 = arith.constant 0 : i32
    %c0_i32_1 = arith.constant 0 : i32
    return %c0_i32, %c0_i32_0 : i32, i32
  }
  func.func @transform_11(%arg0: i32) -> (i32, i32) {
    %c0_i32 = arith.constant 0 : i32
    %c0_i32_0 = arith.constant 0 : i32
    %c0_i32_1 = arith.constant 0 : i32
    return %c0_i32, %c0_i32_0 : i32, i32
  }
  func.func @transform_12(%arg0: i32) -> (i32, i32) {
    %c0_i32 = arith.constant 0 : i32
    %c0_i32_0 = arith.constant 0 : i32
    %c0_i32_1 = arith.constant 0 : i32
    return %c0_i32, %c0_i32_0 : i32, i32
  }
  func.func @transform_13(%arg0: i32) -> (i32, i32) {
    %c0_i32 = arith.constant 0 : i32
    %c0_i32_0 = arith.constant 0 : i32
    %c0_i32_1 = arith.constant 0 : i32
    return %c0_i32, %c0_i32_0 : i32, i32
  }
  func.func @transform_14(%arg0: i32) -> (i32, i32) {
    %c0_i32 = arith.constant 0 : i32
    %c0_i32_0 = arith.constant 0 : i32
    %c0_i32_1 = arith.constant 0 : i32
    return %c0_i32, %c0_i32_0 : i32, i32
  }
  func.func @transform_15(%arg0: i32) -> (i32, i32, i32) {
    %c0_i32 = arith.constant 0 : i32
    %c0_i32_0 = arith.constant 0 : i32
    %c0_i32_1 = arith.constant 0 : i32
    return %arg0, %c0_i32, %c0_i32_0 : i32, i32, i32
  }
}

module attributes {stable_mosaic.version = 11 : i64} {
  func.func @_head_kernel(%arg0: i32, %arg1: memref<2x160xf32, #tpu.memory_space<vmem>>, %arg2: memref<160x32xbf16, #tpu.memory_space<vmem>>, %arg3: memref<32x16xbf16, #tpu.memory_space<vmem>>, %arg4: memref<1x16xf32, #tpu.memory_space<vmem>>, %arg5: memref<16x8xbf16, #tpu.memory_space<vmem>>, %arg6: memref<1x8xf32, #tpu.memory_space<vmem>>, %arg7: memref<8x2xbf16, #tpu.memory_space<vmem>>, %arg8: memref<1x2xf32, #tpu.memory_space<vmem>>, %arg9: memref<2x2xf32, #tpu.memory_space<vmem>>) attributes {dimension_semantics = [#tpu.dimension_semantics<arbitrary>], iteration_bounds = array<i64: 1>, scalar_prefetch = 0 : i64, scratch_operands = 0 : i64, tpu.core_type = #tpu.core_type<tc>, window_params = [{pipeline_mode = #tpu.pipeline_mode<synchronous>, transform_indices = @transform_0, window_bounds = array<i64: 2, 160>}, {pipeline_mode = #tpu.pipeline_mode<synchronous>, transform_indices = @transform_1, window_bounds = array<i64: 160, 32>}, {pipeline_mode = #tpu.pipeline_mode<synchronous>, transform_indices = @transform_2, window_bounds = array<i64: 32, 16>}, {pipeline_mode = #tpu.pipeline_mode<synchronous>, transform_indices = @transform_3, window_bounds = array<i64: 1, 16>}, {pipeline_mode = #tpu.pipeline_mode<synchronous>, transform_indices = @transform_4, window_bounds = array<i64: 16, 8>}, {pipeline_mode = #tpu.pipeline_mode<synchronous>, transform_indices = @transform_5, window_bounds = array<i64: 1, 8>}, {pipeline_mode = #tpu.pipeline_mode<synchronous>, transform_indices = @transform_6, window_bounds = array<i64: 8, 2>}, {pipeline_mode = #tpu.pipeline_mode<synchronous>, transform_indices = @transform_7, window_bounds = array<i64: 1, 2>}, {pipeline_mode = #tpu.pipeline_mode<synchronous>, transform_indices = @transform_8, window_bounds = array<i64: 2, 2>}]} {
    %c0 = arith.constant 0 : index
    %c0_0 = arith.constant 0 : index
    %0 = vector.load %arg1[%c0, %c0_0] : memref<2x160xf32, #tpu.memory_space<vmem>>, vector<2x160xf32>
    %1 = arith.truncf %0 : vector<2x160xf32> to vector<2x160xbf16>
    %c0_1 = arith.constant 0 : index
    %c0_2 = arith.constant 0 : index
    %2 = vector.load %arg2[%c0_1, %c0_2] : memref<160x32xbf16, #tpu.memory_space<vmem>>, vector<160x32xbf16>
    %cst = arith.constant dense<0.000000e+00> : vector<2x32xf32>
    %3 = tpu.matmul %1, %2, %cst {dimension_numbers = #tpu.dot_dimension_numbers<[1], [0], [0], [1], [0, 0, 1, 1], [], []>} : vector<2x160xbf16>, vector<160x32xbf16>, vector<2x32xf32> -> vector<2x32xf32>
    %cst_3 = arith.constant 0.000000e+00 : f32
    %4 = vector.broadcast %cst_3 : f32 to vector<2x32xf32>
    %5 = arith.cmpf ogt, %3, %4 : vector<2x32xf32>
    %cst_4 = arith.constant 0.00999999977 : f32
    %6 = vector.broadcast %cst_4 : f32 to vector<2x32xf32>
    %7 = arith.mulf %6, %3 : vector<2x32xf32>
    %8 = arith.select %5, %3, %7 : vector<2x32xi1>, vector<2x32xf32>
    %9 = arith.truncf %8 : vector<2x32xf32> to vector<2x32xbf16>
    %c0_5 = arith.constant 0 : index
    %c0_6 = arith.constant 0 : index
    %10 = vector.load %arg3[%c0_5, %c0_6] : memref<32x16xbf16, #tpu.memory_space<vmem>>, vector<32x16xbf16>
    %cst_7 = arith.constant dense<0.000000e+00> : vector<2x16xf32>
    %11 = tpu.matmul %9, %10, %cst_7 {dimension_numbers = #tpu.dot_dimension_numbers<[1], [0], [0], [1], [0, 0, 1, 1], [], []>} : vector<2x32xbf16>, vector<32x16xbf16>, vector<2x16xf32> -> vector<2x16xf32>
    %c0_8 = arith.constant 0 : index
    %c0_9 = arith.constant 0 : index
    %12 = vector.load %arg4[%c0_8, %c0_9] : memref<1x16xf32, #tpu.memory_space<vmem>>, vector<1x16xf32>
    %13 = vector.broadcast %12 : vector<1x16xf32> to vector<2x16xf32>
    %14 = arith.addf %11, %13 : vector<2x16xf32>
    %cst_10 = arith.constant 0.000000e+00 : f32
    %15 = vector.broadcast %cst_10 : f32 to vector<2x16xf32>
    %16 = arith.cmpf ogt, %14, %15 : vector<2x16xf32>
    %cst_11 = arith.constant 0.00999999977 : f32
    %17 = vector.broadcast %cst_11 : f32 to vector<2x16xf32>
    %18 = arith.mulf %17, %14 : vector<2x16xf32>
    %19 = arith.select %16, %14, %18 : vector<2x16xi1>, vector<2x16xf32>
    %20 = arith.truncf %19 : vector<2x16xf32> to vector<2x16xbf16>
    %c0_12 = arith.constant 0 : index
    %c0_13 = arith.constant 0 : index
    %21 = vector.load %arg5[%c0_12, %c0_13] : memref<16x8xbf16, #tpu.memory_space<vmem>>, vector<16x8xbf16>
    %cst_14 = arith.constant dense<0.000000e+00> : vector<2x8xf32>
    %22 = tpu.matmul %20, %21, %cst_14 {dimension_numbers = #tpu.dot_dimension_numbers<[1], [0], [0], [1], [0, 0, 1, 1], [], []>} : vector<2x16xbf16>, vector<16x8xbf16>, vector<2x8xf32> -> vector<2x8xf32>
    %c0_15 = arith.constant 0 : index
    %c0_16 = arith.constant 0 : index
    %23 = vector.load %arg6[%c0_15, %c0_16] : memref<1x8xf32, #tpu.memory_space<vmem>>, vector<1x8xf32>
    %24 = vector.broadcast %23 : vector<1x8xf32> to vector<2x8xf32>
    %25 = arith.addf %22, %24 : vector<2x8xf32>
    %cst_17 = arith.constant 0.000000e+00 : f32
    %26 = vector.broadcast %cst_17 : f32 to vector<2x8xf32>
    %27 = arith.cmpf ogt, %25, %26 : vector<2x8xf32>
    %cst_18 = arith.constant 0.00999999977 : f32
    %28 = vector.broadcast %cst_18 : f32 to vector<2x8xf32>
    %29 = arith.mulf %28, %25 : vector<2x8xf32>
    %30 = arith.select %27, %25, %29 : vector<2x8xi1>, vector<2x8xf32>
    %31 = arith.truncf %30 : vector<2x8xf32> to vector<2x8xbf16>
    %c0_19 = arith.constant 0 : index
    %c0_20 = arith.constant 0 : index
    %32 = vector.load %arg7[%c0_19, %c0_20] : memref<8x2xbf16, #tpu.memory_space<vmem>>, vector<8x2xbf16>
    %cst_21 = arith.constant dense<0.000000e+00> : vector<2x2xf32>
    %33 = tpu.matmul %31, %32, %cst_21 {dimension_numbers = #tpu.dot_dimension_numbers<[1], [0], [0], [1], [0, 0, 1, 1], [], []>} : vector<2x8xbf16>, vector<8x2xbf16>, vector<2x2xf32> -> vector<2x2xf32>
    %c0_22 = arith.constant 0 : index
    %c0_23 = arith.constant 0 : index
    %34 = vector.load %arg8[%c0_22, %c0_23] : memref<1x2xf32, #tpu.memory_space<vmem>>, vector<1x2xf32>
    %35 = vector.broadcast %34 : vector<1x2xf32> to vector<2x2xf32>
    %36 = arith.addf %33, %35 : vector<2x2xf32>
    %c0_24 = arith.constant 0 : index
    %c0_25 = arith.constant 0 : index
    %37 = vector.load %arg9[%c0_24, %c0_25] : memref<2x2xf32, #tpu.memory_space<vmem>>, vector<2x2xf32>
    tpu.vector_store %arg9[%c0_24, %c0_25], %36 {strides = array<i32>} : memref<2x2xf32, #tpu.memory_space<vmem>>, vector<2x2xf32>,
    return
  }
  func.func @transform_0(%arg0: i32) -> (i32, i32) {
    %c0_i32 = arith.constant 0 : i32
    %c0_i32_0 = arith.constant 0 : i32
    %c0_i32_1 = arith.constant 0 : i32
    return %c0_i32, %c0_i32_0 : i32, i32
  }
  func.func @transform_1(%arg0: i32) -> (i32, i32) {
    %c0_i32 = arith.constant 0 : i32
    %c0_i32_0 = arith.constant 0 : i32
    %c0_i32_1 = arith.constant 0 : i32
    return %c0_i32, %c0_i32_0 : i32, i32
  }
  func.func @transform_2(%arg0: i32) -> (i32, i32) {
    %c0_i32 = arith.constant 0 : i32
    %c0_i32_0 = arith.constant 0 : i32
    %c0_i32_1 = arith.constant 0 : i32
    return %c0_i32, %c0_i32_0 : i32, i32
  }
  func.func @transform_3(%arg0: i32) -> (i32, i32) {
    %c0_i32 = arith.constant 0 : i32
    %c0_i32_0 = arith.constant 0 : i32
    %c0_i32_1 = arith.constant 0 : i32
    return %c0_i32, %c0_i32_0 : i32, i32
  }
  func.func @transform_4(%arg0: i32) -> (i32, i32) {
    %c0_i32 = arith.constant 0 : i32
    %c0_i32_0 = arith.constant 0 : i32
    %c0_i32_1 = arith.constant 0 : i32
    return %c0_i32, %c0_i32_0 : i32, i32
  }
  func.func @transform_5(%arg0: i32) -> (i32, i32) {
    %c0_i32 = arith.constant 0 : i32
    %c0_i32_0 = arith.constant 0 : i32
    %c0_i32_1 = arith.constant 0 : i32
    return %c0_i32, %c0_i32_0 : i32, i32
  }
  func.func @transform_6(%arg0: i32) -> (i32, i32) {
    %c0_i32 = arith.constant 0 : i32
    %c0_i32_0 = arith.constant 0 : i32
    %c0_i32_1 = arith.constant 0 : i32
    return %c0_i32, %c0_i32_0 : i32, i32
  }
  func.func @transform_7(%arg0: i32) -> (i32, i32) {
    %c0_i32 = arith.constant 0 : i32
    %c0_i32_0 = arith.constant 0 : i32
    %c0_i32_1 = arith.constant 0 : i32
    return %c0_i32, %c0_i32_0 : i32, i32
  }
  func.func @transform_8(%arg0: i32) -> (i32, i32) {
    %c0_i32 = arith.constant 0 : i32
    %c0_i32_0 = arith.constant 0 : i32
    %c0_i32_1 = arith.constant 0 : i32
    return %c0_i32, %c0_i32_0 : i32, i32
  }
}

module attributes {stable_mosaic.version = 11 : i64} {
  func.func @_vit_layer_kernel(%arg0: i32, %arg1: memref<2x5x32xf32, #tpu.memory_space<vmem>>, %arg2: memref<1x5x32xf32, #tpu.memory_space<vmem>>, %arg3: memref<1x32xf32, #tpu.memory_space<vmem>>, %arg4: memref<1x32xf32, #tpu.memory_space<vmem>>, %arg5: memref<32x96xbf16, #tpu.memory_space<vmem>>, %arg6: memref<32x32xbf16, #tpu.memory_space<vmem>>, %arg7: memref<1x32xf32, #tpu.memory_space<vmem>>, %arg8: memref<1x32xf32, #tpu.memory_space<vmem>>, %arg9: memref<1x32xf32, #tpu.memory_space<vmem>>, %arg10: memref<32x32xbf16, #tpu.memory_space<vmem>>, %arg11: memref<1x32xf32, #tpu.memory_space<vmem>>, %arg12: memref<32x32xbf16, #tpu.memory_space<vmem>>, %arg13: memref<1x32xf32, #tpu.memory_space<vmem>>, %arg14: memref<1x32xf32, #tpu.memory_space<vmem>>, %arg15: memref<1x32xf32, #tpu.memory_space<vmem>>, %arg16: memref<2x5x32xf32, #tpu.memory_space<vmem>>) attributes {dimension_semantics = [#tpu.dimension_semantics<parallel>], iteration_bounds = array<i64: 1>, scalar_prefetch = 0 : i64, scratch_operands = 0 : i64, tpu.core_type = #tpu.core_type<tc>, window_params = [{transform_indices = @transform_0, window_bounds = array<i64: 2, 5, 32>}, {pipeline_mode = #tpu.pipeline_mode<synchronous>, transform_indices = @transform_1, window_bounds = array<i64: 1, 5, 32>}, {pipeline_mode = #tpu.pipeline_mode<synchronous>, transform_indices = @transform_2, window_bounds = array<i64: 1, 32>}, {pipeline_mode = #tpu.pipeline_mode<synchronous>, transform_indices = @transform_3, window_bounds = array<i64: 1, 32>}, {pipeline_mode = #tpu.pipeline_mode<synchronous>, transform_indices = @transform_4, window_bounds = array<i64: 32, 96>}, {pipeline_mode = #tpu.pipeline_mode<synchronous>, transform_indices = @transform_5, window_bounds = array<i64: 32, 32>}, {pipeline_mode = #tpu.pipeline_mode<synchronous>, transform_indices = @transform_6, window_bounds = array<i64: 1, 32>}, {pipeline_mode = #tpu.pipeline_mode<synchronous>, transform_indices = @transform_7, window_bounds = array<i64: 1, 32>}, {pipeline_mode = #tpu.pipeline_mode<synchronous>, transform_indices = @transform_8, window_bounds = array<i64: 1, 32>}, {pipeline_mode = #tpu.pipeline_mode<synchronous>, transform_indices = @transform_9, window_bounds = array<i64: 32, 32>}, {pipeline_mode = #tpu.pipeline_mode<synchronous>, transform_indices = @transform_10, window_bounds = array<i64: 1, 32>}, {pipeline_mode = #tpu.pipeline_mode<synchronous>, transform_indices = @transform_11, window_bounds = array<i64: 32, 32>}, {pipeline_mode = #tpu.pipeline_mode<synchronous>, transform_indices = @transform_12, window_bounds = array<i64: 1, 32>}, {pipeline_mode = #tpu.pipeline_mode<synchronous>, transform_indices = @transform_13, window_bounds = array<i64: 1, 32>}, {pipeline_mode = #tpu.pipeline_mode<synchronous>, transform_indices = @transform_14, window_bounds = array<i64: 1, 32>}, {transform_indices = @transform_15, window_bounds = array<i64: 2, 5, 32>}]} {
    %c0 = arith.constant 0 : index
    %c0_0 = arith.constant 0 : index
    %c0_1 = arith.constant 0 : index
    %0 = vector.load %arg1[%c0, %c0_0, %c0_1] : memref<2x5x32xf32, #tpu.memory_space<vmem>>, vector<2x5x32xf32>
    %c0_2 = arith.constant 0 : index
    %c0_3 = arith.constant 0 : index
    %c0_4 = arith.constant 0 : index
    %1 = vector.load %arg2[%c0_2, %c0_3, %c0_4] : memref<1x5x32xf32, #tpu.memory_space<vmem>>, vector<1x5x32xf32>
    %2 = vector.broadcast %1 : vector<1x5x32xf32> to vector<2x5x32xf32>
    %3 = arith.addf %0, %2 : vector<2x5x32xf32>
    %4 = vector.shape_cast %3 : vector<2x5x32xf32> to vector<10x32xf32>
    %c0_5 = arith.constant 0 : index
    %c0_6 = arith.constant 0 : index
    %5 = vector.load %arg3[%c0_5, %c0_6] : memref<1x32xf32, #tpu.memory_space<vmem>>, vector<1x32xf32>
    %c0_7 = arith.constant 0 : index
    %c0_8 = arith.constant 0 : index
    %6 = vector.load %arg4[%c0_7, %c0_8] : memref<1x32xf32, #tpu.memory_space<vmem>>, vector<1x32xf32>
    %cst = arith.constant dense<0.000000e+00> : vector<10xf32>
    %7 = vector.multi_reduction <add>, %4, %cst [1] : vector<10x32xf32> to vector<10xf32>
    %8 = vector.shape_cast %7 : vector<10xf32> to vector<10x1xf32>
    %cst_9 = arith.constant 3.200000e+01 : f32
    %9 = vector.broadcast %cst_9 : f32 to vector<10x1xf32>
    %10 = arith.divf %8, %9 : vector<10x1xf32>
    %11 = vector.broadcast %10 : vector<10x1xf32> to vector<10x32xf32>
    %12 = arith.subf %4, %11 : vector<10x32xf32>
    %13 = arith.mulf %12, %12 : vector<10x32xf32>
    %cst_10 = arith.constant dense<0.000000e+00> : vector<10xf32>
    %14 = vector.multi_reduction <add>, %13, %cst_10 [1] : vector<10x32xf32> to vector<10xf32>
    %15 = vector.shape_cast %14 : vector<10xf32> to vector<10x1xf32>
    %cst_11 = arith.constant 3.200000e+01 : f32
    %16 = vector.broadcast %cst_11 : f32 to vector<10x1xf32>
    %17 = arith.divf %15, %16 : vector<10x1xf32>
    %18 = vector.broadcast %10 : vector<10x1xf32> to vector<10x32xf32>
    %19 = arith.subf %4, %18 : vector<10x32xf32>
    %cst_12 = arith.constant 9.99999974E-6 : f32
    %20 = vector.broadcast %cst_12 : f32 to vector<10x1xf32>
    %21 = arith.addf %17, %20 : vector<10x1xf32>
    %22 = math.rsqrt %21 : vector<10x1xf32>
    %23 = vector.broadcast %22 : vector<10x1xf32> to vector<10x32xf32>
    %24 = arith.mulf %19, %23 : vector<10x32xf32>
    %25 = vector.broadcast %5 : vector<1x32xf32> to vector<10x32xf32>
    %26 = arith.mulf %24, %25 : vector<10x32xf32>
    %27 = vector.broadcast %6 : vector<1x32xf32> to vector<10x32xf32>
    %28 = arith.addf %26, %27 : vector<10x32xf32>
    %29 = arith.truncf %28 : vector<10x32xf32> to vector<10x32xbf16>
    %c0_13 = arith.constant 0 : index
    %c0_14 = arith.constant 0 : index
    %30 = vector.load %arg5[%c0_13, %c0_14] : memref<32x96xbf16, #tpu.memory_space<vmem>>, vector<32x96xbf16>
    %cst_15 = arith.constant dense<0.000000e+00> : vector<10x96xf32>
    %31 = tpu.matmul %29, %30, %cst_15 {dimension_numbers = #tpu.dot_dimension_numbers<[1], [0], [0], [1], [0, 0, 1, 1], [], []>} : vector<10x32xbf16>, vector<32x96xbf16>, vector<10x96xf32> -> vector<10x96xf32>
    %32 = vector.shape_cast %31 : vector<10x96xf32> to vector<2x5x96xf32>
    %33 = vector.extract_strided_slice %32 {offsets = [0, 0, 0], sizes = [2, 5, 16], strides = [1, 1, 1]} : vector<2x5x96xf32> to vector<2x5x16xf32>
    %34 = arith.truncf %33 : vector<2x5x16xf32> to vector<2x5x16xbf16>
    %35 = vector.extract_strided_slice %32 {offsets = [0, 0, 32], sizes = [2, 5, 16], strides = [1, 1, 1]} : vector<2x5x96xf32> to vector<2x5x16xf32>
    %36 = arith.truncf %35 : vector<2x5x16xf32> to vector<2x5x16xbf16>
    %37 = vector.extract_strided_slice %32 {offsets = [0, 0, 64], sizes = [2, 5, 16], strides = [1, 1, 1]} : vector<2x5x96xf32> to vector<2x5x16xf32>
    %38 = arith.truncf %37 : vector<2x5x16xf32> to vector<2x5x16xbf16>
    "tpu.trace_start"() <{level = 10 : i32, message = "bqd,bkd->bqk"}> : () -> ()
    %cst_16 = arith.constant dense<0.000000e+00> : vector<2x5x5xf32>
    %39 = tpu.matmul %34, %36, %cst_16 {dimension_numbers = #tpu.dot_dimension_numbers<[2], [2], [1], [1], [0, 0, 0, 1, 1, 1], [0], [0]>} : vector<2x5x16xbf16>, vector<2x5x16xbf16>, vector<2x5x5xf32> -> vector<2x5x5xf32>
    "tpu.trace_stop"() : () -> ()
    %cst_17 = arith.constant dense<0xFF800000> : vector<2x5xf32>
    %40 = vector.multi_reduction <maximumf>, %39, %cst_17 [2] : vector<2x5x5xf32> to vector<2x5xf32>
    %41 = vector.shape_cast %40 : vector<2x5xf32> to vector<2x5x1xf32>
    %42 = vector.broadcast %41 : vector<2x5x1xf32> to vector<2x5x5xf32>
    %43 = arith.subf %39, %42 : vector<2x5x5xf32>
    %44 = math.exp %43 : vector<2x5x5xf32>
    %cst_18 = arith.constant dense<0.000000e+00> : vector<2x5xf32>
    %45 = vector.multi_reduction <add>, %44, %cst_18 [2] : vector<2x5x5xf32> to vector<2x5xf32>
    %46 = vector.shape_cast %45 : vector<2x5xf32> to vector<2x5x1xf32>
    %47 = tpu.reciprocal %46 {approx = true} : vector<2x5x1xf32> -> vector<2x5x1xf32>
    %48 = vector.broadcast %47 : vector<2x5x1xf32> to vector<2x5x5xf32>
    %49 = arith.mulf %44, %48 : vector<2x5x5xf32>
    %50 = arith.truncf %49 : vector<2x5x5xf32> to vector<2x5x5xbf16>
    "tpu.trace_start"() <{level = 10 : i32, message = "bqk,bkd->bqd"}> : () -> ()
    %cst_19 = arith.constant dense<0.000000e+00> : vector<2x5x16xf32>
    %51 = tpu.matmul %50, %38, %cst_19 {dimension_numbers = #tpu.dot_dimension_numbers<[2], [1], [1], [2], [0, 0, 0, 1, 1, 2], [0], [0]>} : vector<2x5x5xbf16>, vector<2x5x16xbf16>, vector<2x5x16xf32> -> vector<2x5x16xf32>
    "tpu.trace_stop"() : () -> ()
    %52 = vector.extract_strided_slice %32 {offsets = [0, 0, 16], sizes = [2, 5, 16], strides = [1, 1, 1]} : vector<2x5x96xf32> to vector<2x5x16xf32>
    %53 = arith.truncf %52 : vector<2x5x16xf32> to vector<2x5x16xbf16>
    %54 = vector.extract_strided_slice %32 {offsets = [0, 0, 48], sizes = [2, 5, 16], strides = [1, 1, 1]} : vector<2x5x96xf32> to vector<2x5x16xf32>
    %55 = arith.truncf %54 : vector<2x5x16xf32> to vector<2x5x16xbf16>
    %56 = vector.extract_strided_slice %32 {offsets = [0, 0, 80], sizes = [2, 5, 16], strides = [1, 1, 1]} : vector<2x5x96xf32> to vector<2x5x16xf32>
    %57 = arith.truncf %56 : vector<2x5x16xf32> to vector<2x5x16xbf16>
    "tpu.trace_start"() <{level = 10 : i32, message = "bqd,bkd->bqk"}> : () -> ()
    %cst_20 = arith.constant dense<0.000000e+00> : vector<2x5x5xf32>
    %58 = tpu.matmul %53, %55, %cst_20 {dimension_numbers = #tpu.dot_dimension_numbers<[2], [2], [1], [1], [0, 0, 0, 1, 1, 1], [0], [0]>} : vector<2x5x16xbf16>, vector<2x5x16xbf16>, vector<2x5x5xf32> -> vector<2x5x5xf32>
    "tpu.trace_stop"() : () -> ()
    %cst_21 = arith.constant dense<0xFF800000> : vector<2x5xf32>
    %59 = vector.multi_reduction <maximumf>, %58, %cst_21 [2] : vector<2x5x5xf32> to vector<2x5xf32>
    %60 = vector.shape_cast %59 : vector<2x5xf32> to vector<2x5x1xf32>
    %61 = vector.broadcast %60 : vector<2x5x1xf32> to vector<2x5x5xf32>
    %62 = arith.subf %58, %61 : vector<2x5x5xf32>
    %63 = math.exp %62 : vector<2x5x5xf32>
    %cst_22 = arith.constant dense<0.000000e+00> : vector<2x5xf32>
    %64 = vector.multi_reduction <add>, %63, %cst_22 [2] : vector<2x5x5xf32> to vector<2x5xf32>
    %65 = vector.shape_cast %64 : vector<2x5xf32> to vector<2x5x1xf32>
    %66 = tpu.reciprocal %65 {approx = true} : vector<2x5x1xf32> -> vector<2x5x1xf32>
    %67 = vector.broadcast %66 : vector<2x5x1xf32> to vector<2x5x5xf32>
    %68 = arith.mulf %63, %67 : vector<2x5x5xf32>
    %69 = arith.truncf %68 : vector<2x5x5xf32> to vector<2x5x5xbf16>
    "tpu.trace_start"() <{level = 10 : i32, message = "bqk,bkd->bqd"}> : () -> ()
    %cst_23 = arith.constant dense<0.000000e+00> : vector<2x5x16xf32>
    %70 = tpu.matmul %69, %57, %cst_23 {dimension_numbers = #tpu.dot_dimension_numbers<[2], [1], [1], [2], [0, 0, 0, 1, 1, 2], [0], [0]>} : vector<2x5x5xbf16>, vector<2x5x16xbf16>, vector<2x5x16xf32> -> vector<2x5x16xf32>
    "tpu.trace_stop"() : () -> ()
    %71 = tpu.concatenate %51, %70 in 2 : vector<2x5x16xf32>, vector<2x5x16xf32> -> vector<2x5x32xf32>
    %72 = vector.shape_cast %71 : vector<2x5x32xf32> to vector<10x32xf32>
    %73 = arith.truncf %72 : vector<10x32xf32> to vector<10x32xbf16>
    %c0_24 = arith.constant 0 : index
    %c0_25 = arith.constant 0 : index
    %74 = vector.load %arg6[%c0_24, %c0_25] : memref<32x32xbf16, #tpu.memory_space<vmem>>, vector<32x32xbf16>
    %cst_26 = arith.constant dense<0.000000e+00> : vector<10x32xf32>
    %75 = tpu.matmul %73, %74, %cst_26 {dimension_numbers = #tpu.dot_dimension_numbers<[1], [0], [0], [1], [0, 0, 1, 1], [], []>} : vector<10x32xbf16>, vector<32x32xbf16>, vector<10x32xf32> -> vector<10x32xf32>
    %c0_27 = arith.constant 0 : index
    %c0_28 = arith.constant 0 : index
    %76 = vector.load %arg7[%c0_27, %c0_28] : memref<1x32xf32, #tpu.memory_space<vmem>>, vector<1x32xf32>
    %77 = vector.broadcast %76 : vector<1x32xf32> to vector<10x32xf32>
    %78 = arith.addf %75, %77 : vector<10x32xf32>
    %79 = arith.addf %4, %78 : vector<10x32xf32>
    %c0_29 = arith.constant 0 : index
    %c0_30 = arith.constant 0 : index
    %80 = vector.load %arg8[%c0_29, %c0_30] : memref<1x32xf32, #tpu.memory_space<vmem>>, vector<1x32xf32>
    %c0_31 = arith.constant 0 : index
    %c0_32 = arith.constant 0 : index
    %81 = vector.load %arg9[%c0_31, %c0_32] : memref<1x32xf32, #tpu.memory_space<vmem>>, vector<1x32xf32>
    %cst_33 = arith.constant dense<0.000000e+00> : vector<10xf32>
    %82 = vector.multi_reduction <add>, %79, %cst_33 [1] : vector<10x32xf32> to vector<10xf32>
    %83 = vector.shape_cast %82 : vector<10xf32> to vector<10x1xf32>
    %cst_34 = arith.constant 3.200000e+01 : f32
    %84 = vector.broadcast %cst_34 : f32 to vector<10x1xf32>
    %85 = arith.divf %83, %84 : vector<10x1xf32>
    %86 = vector.broadcast %85 : vector<10x1xf32> to vector<10x32xf32>
    %87 = arith.subf %79, %86 : vector<10x32xf32>
    %88 = arith.mulf %87, %87 : vector<10x32xf32>
    %cst_35 = arith.constant dense<0.000000e+00> : vector<10xf32>
    %89 = vector.multi_reduction <add>, %88, %cst_35 [1] : vector<10x32xf32> to vector<10xf32>
    %90 = vector.shape_cast %89 : vector<10xf32> to vector<10x1xf32>
    %cst_36 = arith.constant 3.200000e+01 : f32
    %91 = vector.broadcast %cst_36 : f32 to vector<10x1xf32>
    %92 = arith.divf %90, %91 : vector<10x1xf32>
    %93 = vector.broadcast %85 : vector<10x1xf32> to vector<10x32xf32>
    %94 = arith.subf %79, %93 : vector<10x32xf32>
    %cst_37 = arith.constant 9.99999974E-6 : f32
    %95 = vector.broadcast %cst_37 : f32 to vector<10x1xf32>
    %96 = arith.addf %92, %95 : vector<10x1xf32>
    %97 = math.rsqrt %96 : vector<10x1xf32>
    %98 = vector.broadcast %97 : vector<10x1xf32> to vector<10x32xf32>
    %99 = arith.mulf %94, %98 : vector<10x32xf32>
    %100 = vector.broadcast %80 : vector<1x32xf32> to vector<10x32xf32>
    %101 = arith.mulf %99, %100 : vector<10x32xf32>
    %102 = vector.broadcast %81 : vector<1x32xf32> to vector<10x32xf32>
    %103 = arith.addf %101, %102 : vector<10x32xf32>
    %104 = arith.truncf %103 : vector<10x32xf32> to vector<10x32xbf16>
    %c0_38 = arith.constant 0 : index
    %c0_39 = arith.constant 0 : index
    %105 = vector.load %arg10[%c0_38, %c0_39] : memref<32x32xbf16, #tpu.memory_space<vmem>>, vector<32x32xbf16>
    %cst_40 = arith.constant dense<0.000000e+00> : vector<10x32xf32>
    %106 = tpu.matmul %104, %105, %cst_40 {dimension_numbers = #tpu.dot_dimension_numbers<[1], [0], [0], [1], [0, 0, 1, 1], [], []>} : vector<10x32xbf16>, vector<32x32xbf16>, vector<10x32xf32> -> vector<10x32xf32>
    %c0_41 = arith.constant 0 : index
    %c0_42 = arith.constant 0 : index
    %107 = vector.load %arg11[%c0_41, %c0_42] : memref<1x32xf32, #tpu.memory_space<vmem>>, vector<1x32xf32>
    %108 = vector.broadcast %107 : vector<1x32xf32> to vector<10x32xf32>
    %109 = arith.addf %106, %108 : vector<10x32xf32>
    %110 = arith.mulf %109, %109 : vector<10x32xf32>
    %111 = arith.mulf %109, %110 : vector<10x32xf32>
    %cst_43 = arith.constant 4.471500e-02 : f32
    %112 = vector.broadcast %cst_43 : f32 to vector<10x32xf32>
    %113 = arith.mulf %112, %111 : vector<10x32xf32>
    %114 = arith.addf %109, %113 : vector<10x32xf32>
    %cst_44 = arith.constant 0.797884583 : f32
    %115 = vector.broadcast %cst_44 : f32 to vector<10x32xf32>
    %116 = arith.mulf %115, %114 : vector<10x32xf32>
    %117 = math.tanh %116 : vector<10x32xf32>
    %cst_45 = arith.constant 1.000000e+00 : f32
    %118 = vector.broadcast %cst_45 : f32 to vector<10x32xf32>
    %119 = arith.addf %118, %117 : vector<10x32xf32>
    %cst_46 = arith.constant 5.000000e-01 : f32
    %120 = vector.broadcast %cst_46 : f32 to vector<10x32xf32>
    %121 = arith.mulf %120, %119 : vector<10x32xf32>
    %122 = arith.mulf %109, %121 : vector<10x32xf32>
    %123 = arith.truncf %122 : vector<10x32xf32> to vector<10x32xbf16>
    %c0_47 = arith.constant 0 : index
    %c0_48 = arith.constant 0 : index
    %124 = vector.load %arg12[%c0_47, %c0_48] : memref<32x32xbf16, #tpu.memory_space<vmem>>, vector<32x32xbf16>
    %cst_49 = arith.constant dense<0.000000e+00> : vector<10x32xf32>
    %125 = tpu.matmul %123, %124, %cst_49 {dimension_numbers = #tpu.dot_dimension_numbers<[1], [0], [0], [1], [0, 0, 1, 1], [], []>} : vector<10x32xbf16>, vector<32x32xbf16>, vector<10x32xf32> -> vector<10x32xf32>
    %c0_50 = arith.constant 0 : index
    %c0_51 = arith.constant 0 : index
    %126 = vector.load %arg13[%c0_50, %c0_51] : memref<1x32xf32, #tpu.memory_space<vmem>>, vector<1x32xf32>
    %127 = vector.broadcast %126 : vector<1x32xf32> to vector<10x32xf32>
    %128 = arith.addf %125, %127 : vector<10x32xf32>
    %129 = arith.addf %79, %128 : vector<10x32xf32>
    %c0_52 = arith.constant 0 : index
    %c0_53 = arith.constant 0 : index
    %130 = vector.load %arg14[%c0_52, %c0_53] : memref<1x32xf32, #tpu.memory_space<vmem>>, vector<1x32xf32>
    %c0_54 = arith.constant 0 : index
    %c0_55 = arith.constant 0 : index
    %131 = vector.load %arg15[%c0_54, %c0_55] : memref<1x32xf32, #tpu.memory_space<vmem>>, vector<1x32xf32>
    %cst_56 = arith.constant dense<0.000000e+00> : vector<10xf32>
    %132 = vector.multi_reduction <add>, %129, %cst_56 [1] : vector<10x32xf32> to vector<10xf32>
    %133 = vector.shape_cast %132 : vector<10xf32> to vector<10x1xf32>
    %cst_57 = arith.constant 3.200000e+01 : f32
    %134 = vector.broadcast %cst_57 : f32 to vector<10x1xf32>
    %135 = arith.divf %133, %134 : vector<10x1xf32>
    %136 = vector.broadcast %135 : vector<10x1xf32> to vector<10x32xf32>
    %137 = arith.subf %129, %136 : vector<10x32xf32>
    %138 = arith.mulf %137, %137 : vector<10x32xf32>
    %cst_58 = arith.constant dense<0.000000e+00> : vector<10xf32>
    %139 = vector.multi_reduction <add>, %138, %cst_58 [1] : vector<10x32xf32> to vector<10xf32>
    %140 = vector.shape_cast %139 : vector<10xf32> to vector<10x1xf32>
    %cst_59 = arith.constant 3.200000e+01 : f32
    %141 = vector.broadcast %cst_59 : f32 to vector<10x1xf32>
    %142 = arith.divf %140, %141 : vector<10x1xf32>
    %143 = vector.broadcast %135 : vector<10x1xf32> to vector<10x32xf32>
    %144 = arith.subf %129, %143 : vector<10x32xf32>
    %cst_60 = arith.constant 9.99999974E-6 : f32
    %145 = vector.broadcast %cst_60 : f32 to vector<10x1xf32>
    %146 = arith.addf %142, %145 : vector<10x1xf32>
    %147 = math.rsqrt %146 : vector<10x1xf32>
    %148 = vector.broadcast %147 : vector<10x1xf32> to vector<10x32xf32>
    %149 = arith.mulf %144, %148 : vector<10x32xf32>
    %150 = vector.broadcast %130 : vector<1x32xf32> to vector<10x32xf32>
    %151 = arith.mulf %149, %150 : vector<10x32xf32>
    %152 = vector.broadcast %131 : vector<1x32xf32> to vector<10x32xf32>
    %153 = arith.addf %151, %152 : vector<10x32xf32>
    %154 = vector.shape_cast %153 : vector<10x32xf32> to vector<2x5x32xf32>
    %c0_61 = arith.constant 0 : index
    %c0_62 = arith.constant 0 : index
    %c0_63 = arith.constant 0 : index
    %155 = vector.load %arg16[%c0_61, %c0_62, %c0_63] : memref<2x5x32xf32, #tpu.memory_space<vmem>>, vector<2x5x32xf32>
    tpu.vector_store %arg16[%c0_61, %c0_62, %c0_63], %154 {strides = array<i32>} : memref<2x5x32xf32, #tpu.memory_space<vmem>>, vector<2x5x32xf32>,
    return
  }
  func.func @transform_0(%arg0: i32) -> (i32, i32, i32) {
    %c0_i32 = arith.constant 0 : i32
    %c0_i32_0 = arith.constant 0 : i32
    %c0_i32_1 = arith.constant 0 : i32
    return %arg0, %c0_i32, %c0_i32_0 : i32, i32, i32
  }
  func.func @transform_1(%arg0: i32) -> (i32, i32, i32) {
    %c0_i32 = arith.constant 0 : i32
    %c0_i32_0 = arith.constant 0 : i32
    %c0_i32_1 = arith.constant 0 : i32
    %c0_i32_2 = arith.constant 0 : i32
    return %c0_i32, %c0_i32_0, %c0_i32_1 : i32, i32, i32
  }
  func.func @transform_2(%arg0: i32) -> (i32, i32) {
    %c0_i32 = arith.constant 0 : i32
    %c0_i32_0 = arith.constant 0 : i32
    %c0_i32_1 = arith.constant 0 : i32
    return %c0_i32, %c0_i32_0 : i32, i32
  }
  func.func @transform_3(%arg0: i32) -> (i32, i32) {
    %c0_i32 = arith.constant 0 : i32
    %c0_i32_0 = arith.constant 0 : i32
    %c0_i32_1 = arith.constant 0 : i32
    return %c0_i32, %c0_i32_0 : i32, i32
  }
  func.func @transform_4(%arg0: i32) -> (i32, i32) {
    %c0_i32 = arith.constant 0 : i32
    %c0_i32_0 = arith.constant 0 : i32
    %c0_i32_1 = arith.constant 0 : i32
    return %c0_i32, %c0_i32_0 : i32, i32
  }
  func.func @transform_5(%arg0: i32) -> (i32, i32) {
    %c0_i32 = arith.constant 0 : i32
    %c0_i32_0 = arith.constant 0 : i32
    %c0_i32_1 = arith.constant 0 : i32
    return %c0_i32, %c0_i32_0 : i32, i32
  }
  func.func @transform_6(%arg0: i32) -> (i32, i32) {
    %c0_i32 = arith.constant 0 : i32
    %c0_i32_0 = arith.constant 0 : i32
    %c0_i32_1 = arith.constant 0 : i32
    return %c0_i32, %c0_i32_0 : i32, i32
  }
  func.func @transform_7(%arg0: i32) -> (i32, i32) {
    %c0_i32 = arith.constant 0 : i32
    %c0_i32_0 = arith.constant 0 : i32
    %c0_i32_1 = arith.constant 0 : i32
    return %c0_i32, %c0_i32_0 : i32, i32
  }
  func.func @transform_8(%arg0: i32) -> (i32, i32) {
    %c0_i32 = arith.constant 0 : i32
    %c0_i32_0 = arith.constant 0 : i32
    %c0_i32_1 = arith.constant 0 : i32
    return %c0_i32, %c0_i32_0 : i32, i32
  }
  func.func @transform_9(%arg0: i32) -> (i32, i32) {
    %c0_i32 = arith.constant 0 : i32
    %c0_i32_0 = arith.constant 0 : i32
    %c0_i32_1 = arith.constant 0 : i32
    return %c0_i32, %c0_i32_0 : i32, i32
  }
  func.func @transform_10(%arg0: i32) -> (i32, i32) {
    %c0_i32 = arith.constant 0 : i32
    %c0_i32_0 = arith.constant 0 : i32
    %c0_i32_1 = arith.constant 0 : i32
    return %c0_i32, %c0_i32_0 : i32, i32
  }
  func.func @transform_11(%arg0: i32) -> (i32, i32) {
    %c0_i32 = arith.constant 0 : i32
    %c0_i32_0 = arith.constant 0 : i32
    %c0_i32_1 = arith.constant 0 : i32
    return %c0_i32, %c0_i32_0 : i32, i32
  }
  func.func @transform_12(%arg0: i32) -> (i32, i32) {
    %c0_i32 = arith.constant 0 : i32
    %c0_i32_0 = arith.constant 0 : i32
    %c0_i32_1 = arith.constant 0 : i32
    return %c0_i32, %c0_i32_0 : i32, i32
  }
  func.func @transform_13(%arg0: i32) -> (i32, i32) {
    %c0_i32 = arith.constant 0 : i32
    %c0_i32_0 = arith.constant 0 : i32
    %c0_i32_1 = arith.constant 0 : i32
    return %c0_i32, %c0_i32_0 : i32, i32
  }
  func.func @transform_14(%arg0: i32) -> (i32, i32) {
    %c0_i32 = arith.constant 0 : i32
    %c0_i32_0 = arith.constant 0 : i32
    %c0_i32_1 = arith.constant 0 : i32
    return %c0_i32, %c0_i32_0 : i32, i32
  }
  func.func @transform_15(%arg0: i32) -> (i32, i32, i32) {
    %c0_i32 = arith.constant 0 : i32
    %c0_i32_0 = arith.constant 0 : i32
    %c0_i32_1 = arith.constant 0 : i32
    return %arg0, %c0_i32, %c0_i32_0 : i32, i32, i32
  }
}

</mosaic_0001>

<llo_original>
// kernel: _lambda_.5
$region0: #{_lambda_.5}
  #allocation0 [shape = 'u32[]', space=smem, size = 0x4, offset = 0x4, fixed_abs, tag = 'smem constant byte address 0x4 - core index']
  #allocation1 [shape = 'u32[144,128]{1,0:T(1,128)}', space=vmem, size = 0x12000, scoped, tag = 'internal scratch']
  %s0 = inlined_call_operand.vmem [shape: f32[2,160], index: 0, kind: input, shape index: {}]
  %s1 = inlined_call_operand.vmem [shape: bf16[160,32], index: 1, kind: input, shape index: {}]
  %s2 = inlined_call_operand.vmem [shape: bf16[32,16], index: 2, kind: input, shape index: {}]
  %s3 = inlined_call_operand.vmem [shape: f32[1,16], index: 3, kind: input, shape index: {}]
  %s4 = inlined_call_operand.vmem [shape: bf16[16,8], index: 4, kind: input, shape index: {}]
  %s5 = inlined_call_operand.vmem [shape: f32[1,8], index: 5, kind: input, shape index: {}]
  %s6 = inlined_call_operand.vmem [shape: bf16[8,2], index: 6, kind: input, shape index: {}]
  %s7 = inlined_call_operand.vmem [shape: f32[1,2], index: 7, kind: input, shape index: {}]
  %s8 = inlined_call_operand.hbm [shape: f32[2,2], index: 8, kind: output, shape index: {}]
  %s9 = sld [smem:[#allocation0]]
  $region42: #{_lambda_.5} parent=0
    _
  %s11 = ssub.s32 1, %s9
  %s12 = scalar_select 0, %s11, %s9
  $region1: #{_lambda_.5} parent=0
    #allocation2 [shape = 'u8[1024]{0}', space=vmem, size = 0x400, scoped, tag = 'output window, operand 0, single buffered']
    #allocation3 [shape = 's32[1]{0}', space=sflag, size = 0x4, scoped, tag = 'scoped memory for _lambda_.5']
    %13 = vsyncpa [#allocation3], 0
    // Predicated region
    $region2: #{_lambda_.5} parent=1 // pred_check
      _
    $region3: #{_lambda_.5} parent=1 // pred_check_branch
      %15 = sbr.rel (0) target = $region5
    $region4: #{_lambda_.5} parent=1 // pred_region
      _
    $region5: #{_lambda_.5} parent=1 // pred_fallthru
      _
    // Predicated region
    $region6: #{_lambda_.5} parent=1 // pred_check
      _
    $region7: #{_lambda_.5} parent=1 // pred_check_branch
      %17 = sbr.rel (0) target = $region9
    $region8: #{_lambda_.5} parent=1 // pred_region
      _
    $region9: #{_lambda_.5} parent=1 // pred_fallthru
      _
    // Predicated region
    $region10: #{_lambda_.5} parent=1 // pred_check
      _
    $region11: #{_lambda_.5} parent=1 // pred_check_branch
      %19 = sbr.rel (0) target = $region13
    $region12: #{_lambda_.5} parent=1 // pred_region
      _
    $region13: #{_lambda_.5} parent=1 // pred_fallthru
      _
    // Predicated region
    $region14: #{_lambda_.5} parent=1 // pred_check
      _
    $region15: #{_lambda_.5} parent=1 // pred_check_branch
      %21 = sbr.rel (0) target = $region17
    $region16: #{_lambda_.5} parent=1 // pred_region
      _
    $region17: #{_lambda_.5} parent=1 // pred_fallthru
      _
    // Predicated region
    $region18: #{_lambda_.5} parent=1 // pred_check
      _
    $region19: #{_lambda_.5} parent=1 // pred_check_branch
      %23 = sbr.rel (0) target = $region21
    $region20: #{_lambda_.5} parent=1 // pred_region
      _
    $region21: #{_lambda_.5} parent=1 // pred_fallthru
      _
    // Predicated region
    $region22: #{_lambda_.5} parent=1 // pred_check
      _
    $region23: #{_lambda_.5} parent=1 // pred_check_branch
      %25 = sbr.rel (0) target = $region25
    $region24: #{_lambda_.5} parent=1 // pred_region
      _
    $region25: #{_lambda_.5} parent=1 // pred_fallthru
      _
    // Predicated region
    $region26: #{_lambda_.5} parent=1 // pred_check
      _
    $region27: #{_lambda_.5} parent=1 // pred_check_branch
      %27 = sbr.rel (0) target = $region29
    $region28: #{_lambda_.5} parent=1 // pred_region
      _
    $region29: #{_lambda_.5} parent=1 // pred_fallthru
      _
    // Predicated region
    $region30: #{_lambda_.5} parent=1 // pred_check
      _
    $region31: #{_lambda_.5} parent=1 // pred_check_branch
      %29 = sbr.rel (0) target = $region33
    $region32: #{_lambda_.5} parent=1 // pred_region
      _
    $region33: #{_lambda_.5} parent=1 // pred_fallthru
      _
    %v31 = vld [vmem:[%s0] sm:$0xf]
    %v34 = vunpack.c.l.s4 1983009808
    %v35 = vunpack.c.0.s8 %v34
    %v36 = vlaneseq
    %v37 = vshrl.u32 %v36, 7
    %v38 = vsub.s32 %v35, %v37
    %v39 = vrot.slane %v31, %v38
    %v40 = vcombine.high %v39, %v39
    %v43 = vpack.c.bf16 %v39, %v39
    %v44 = vpack.c.bf16 %v40, %v40
    %v45 = vld [vmem:[%s1] sm:$0xf]
    %v46 = vld [vmem:[%s1 + $0x4] sm:$0xf]
    %v47 = vld [vmem:[%s1 + $0x8] sm:$0xf]
    %v48 = vld [vmem:[%s1 + $0xc] sm:$0xf]
    %v49 = vld [vmem:[%s1 + $0x10] sm:$0xf]
    %v50 = vld [vmem:[%s1 + $0x14] sm:$0xf]
    %v51 = vld [vmem:[%s1 + $0x18] sm:$0xf]
    %v52 = vld [vmem:[%s1 + $0x1c] sm:$0xf]
    %v53 = vld [vmem:[%s1 + $0x20] sm:$0xf]
    %v54 = vld [vmem:[%s1 + $0x24] sm:$0xf]
    %v55 = vld [vmem:[%s1 + $0x28] sm:$0xf]
    %v56 = vld [vmem:[%s1 + $0x2c] sm:$0xf]
    %v57 = vld [vmem:[%s1 + $0x30] sm:$0xf]
    %v58 = vld [vmem:[%s1 + $0x34] sm:$0xf]
    %v59 = vld [vmem:[%s1 + $0x38] sm:$0xf]
    %v60 = vld [vmem:[%s1 + $0x3c] sm:$0xf]
    %v61 = vld [vmem:[%s1 + $0x40] sm:$0xf]
    %v62 = vld [vmem:[%s1 + $0x44] sm:$0xf]
    %v63 = vld [vmem:[%s1 + $0x48] sm:$0xf]
    %v64 = vld [vmem:[%s1 + $0x4c] sm:$0xf]
    %v85 = vunpack.c.l.b16 %v45
    %v86 = vunpack.c.l.b16 %v46
    %v87 = vunpack.c.l.b16 %v47
    %v88 = vunpack.c.l.b16 %v48
    %v89 = vunpack.c.l.b16 %v49
    %v90 = vunpack.c.l.b16 %v50
    %v91 = vunpack.c.l.b16 %v51
    %v92 = vunpack.c.l.b16 %v52
    %v93 = vunpack.c.l.b16 %v53
    %v94 = vunpack.c.l.b16 %v54
    %v95 = vunpack.c.l.b16 %v55
    %v96 = vunpack.c.l.b16 %v56
    %v97 = vunpack.c.l.b16 %v57
    %v98 = vunpack.c.l.b16 %v58
    %v99 = vunpack.c.l.b16 %v59
    %v100 = vunpack.c.l.b16 %v60
    %v101 = vunpack.c.l.b16 %v61
    %v102 = vunpack.c.l.b16 %v62
    %v103 = vunpack.c.l.b16 %v63
    %v104 = vunpack.c.l.b16 %v64
    %v105 = vpack.c.b16 %v86, %v85
    %v106 = vpack.c.b16 %v88, %v87
    %v107 = vpack.c.b16 %v90, %v89
    %v108 = vpack.c.b16 %v92, %v91
    %v109 = vpack.c.b16 %v94, %v93
    %v110 = vpack.c.b16 %v96, %v95
    %v111 = vpack.c.b16 %v98, %v97
    %v112 = vpack.c.b16 %v100, %v99
    %v113 = vpack.c.b16 %v102, %v101
    %v114 = vpack.c.b16 %v104, %v103
    %vm125 = vcmask 261120
    %v127 = vsel %vm125, %v44, 0
    %129 = vmatprep.subr.bf16.mxu0 0
    %130 = vmatpush1.bf16.msra.mxu0 %v105
    %131 = vmatprep.subr.bf16.mxu0 0
    %132 = vmatpush1.bf16.msra.mxu0 %v106
    %133 = vmatprep.subr.bf16.mxu0 0
    %134 = vmatpush1.bf16.msra.mxu0 %v107
    %135 = vmatprep.subr.bf16.mxu0 0
    %136 = vmatpush1.bf16.msra.mxu0 %v108
    %137 = vmatprep.subr.bf16.mxu0 0
    %138 = vmatpush1.bf16.msra.mxu0 %v109
    %139 = vmatprep.subr.bf16.mxu0 0
    %140 = vmatpush1.bf16.msra.mxu0 %v110
    %141 = vmatprep.subr.bf16.mxu0 0
    %142 = vmatpush1.bf16.msra.mxu0 %v111
    %143 = vmatprep.subr.bf16.mxu0 0
    %144 = vmatpush1.bf16.msra.mxu0 %v112
    %145 = vmatprep.subr.bf16.mxu0 0
    %146 = vmatpush1.bf16.msra.mxu0 %v113
    %147 = vmatprep.subr.bf16.mxu0 0
    %148 = vmatpush1.bf16.msra.mxu0 %v114
    %149 = vmatprep.subr.bf16.mxu0 0
    %150 = vmatpush1.bf16.msra.mxu0 0
    %151 = vmatprep.subr.bf16.mxu0 0
    %152 = vmatpush1.bf16.msra.mxu0 0
    %153 = vmatprep.subr.bf16.mxu0 0
    %154 = vmatpush1.bf16.msra.mxu0 0
    %155 = vmatprep.subr.bf16.mxu0 0
    %156 = vmatpush1.bf16.msra.mxu0 0
    %157 = vmatprep.subr.bf16.mxu0 0
    %158 = vmatpush1.bf16.msra.mxu0 0
    %159 = vmatprep.subr.bf16.mxu0 0
    %160 = vmatpush1.bf16.msra.mxu0 0
    %161 = vmatprep.mubr.bf16.mxu0 %v127
    %162 = vmatmul.mubr.bf16.gmra.mrb[0].mxu0 %v43
    %v163 = vpop.f32.mrb[0].mxu0
    %v164 = vadd.f32 0.0, %v163
    %v165 = vpop.f32.mrb[0].mxu0
    %v166 = vpop.f32.mrb[0].mxu0
    %v167 = vpop.f32.mrb[0].mxu0
    %168 = vdwg.mxu0
    %vm169 = vcmp.gt.f32.partialorder %v164, 0.0
    %v170 = vmul.f32 %v164, 0.01
    %v171 = vsel %vm169, %v164, %v170
    %v172 = vpack.c.bf16 %v171, %v171
    %v173 = vld [vmem:[%s2] sm:$0xf]
    %v174 = vld [vmem:[%s2 + $0x4] sm:$0xf]
    %v175 = vld [vmem:[%s2 + $0x8] sm:$0xf]
    %v176 = vld [vmem:[%s2 + $0xc] sm:$0xf]
    %v177 = vld [vmem:[%s3] sm:$0x1]
    %v179 = vlaneseq
    %v180 = vshrl.u32 %v179, 7
    %v181 = vsub.s32 0, %v180
    %v182 = vrot.slane %v177, %v181
    %v188 = vunpack.c.l.b16 %v173
    %v189 = vunpack.c.l.b16 %v174
    %v190 = vunpack.c.l.b16 %v175
    %v191 = vunpack.c.l.b16 %v176
    %v192 = vpack.c.b16 %v189, %v188
    %v193 = vpack.c.b16 %v191, %v190
    %v197 = vsel %vm125, %v172, 0
    %199 = vmatprep.subr.bf16.mxu0 0
    %200 = vmatpush1.bf16.msra.mxu0 %v192
    %201 = vmatprep.subr.bf16.mxu0 0
    %202 = vmatpush1.bf16.msra.mxu0 %v193
    %203 = vmatprep.subr.bf16.mxu0 0
    %204 = vmatpush1.bf16.msra.mxu0 0
    %205 = vmatprep.subr.bf16.mxu0 0
    %206 = vmatpush1.bf16.msra.mxu0 0
    %207 = vmatprep.subr.bf16.mxu0 0
    %208 = vmatpush1.bf16.msra.mxu0 0
    %209 = vmatprep.subr.bf16.mxu0 0
    %210 = vmatpush1.bf16.msra.mxu0 0
    %211 = vmatprep.subr.bf16.mxu0 0
    %212 = vmatpush1.bf16.msra.mxu0 0
    %213 = vmatprep.subr.bf16.mxu0 0
    %214 = vmatpush1.bf16.msra.mxu0 0
    %215 = vmatprep.subr.bf16.mxu0 0
    %216 = vmatpush1.bf16.msra.mxu0 0
    %217 = vmatprep.subr.bf16.mxu0 0
    %218 = vmatpush1.bf16.msra.mxu0 0
    %219 = vmatprep.subr.bf16.mxu0 0
    %220 = vmatpush1.bf16.msra.mxu0 0
    %221 = vmatprep.subr.bf16.mxu0 0
    %222 = vmatpush1.bf16.msra.mxu0 0
    %223 = vmatprep.subr.bf16.mxu0 0
    %224 = vmatpush1.bf16.msra.mxu0 0
    %225 = vmatprep.subr.bf16.mxu0 0
    %226 = vmatpush1.bf16.msra.mxu0 0
    %227 = vmatprep.subr.bf16.mxu0 0
    %228 = vmatpush1.bf16.msra.mxu0 0
    %229 = vmatprep.subr.bf16.mxu0 0
    %230 = vmatpush1.bf16.msra.mxu0 0
    %231 = vmatprep.mubr.bf16.mxu0 0
    %232 = vmatmul.mubr.bf16.gmra.mrb[0].mxu0 %v197
    %v233 = vpop.f32.mrb[0].mxu0
    %v234 = vadd.f32 %v182, %v233
    %v235 = vpop.f32.mrb[0].mxu0
    %v236 = vpop.f32.mrb[0].mxu0
    %v237 = vpop.f32.mrb[0].mxu0
    %238 = vdwg.mxu0
    %vm239 = vcmp.gt.f32.partialorder %v234, 0.0
    %v240 = vmul.f32 %v234, 0.01
    %v241 = vsel %vm239, %v234, %v240
    %v242 = vpack.c.bf16 %v241, %v241
    %v243 = vld [vmem:[%s4] sm:$0xf]
    %v244 = vld [vmem:[%s4 + $0x4] sm:$0xf]
    %v245 = vld [vmem:[%s5] sm:$0x1]
    %v247 = vlaneseq
    %v248 = vshrl.u32 %v247, 7
    %v249 = vsub.s32 0, %v248
    %v250 = vrot.slane %v245, %v249
    %v254 = vunpack.c.l.b16 %v243
    %v255 = vunpack.c.l.b16 %v244
    %v256 = vpack.c.b16 %v255, %v254
    %vm258 = vcmask 130048
    %v260 = vsel %vm258, %v242, 0
    %262 = vmatprep.subr.bf16.mxu0 0
    %263 = vmatpush1.bf16.msra.mxu0 %v256
    %264 = vmatprep.subr.bf16.mxu0 0
    %265 = vmatpush1.bf16.msra.mxu0 0
    %266 = vmatprep.subr.bf16.mxu0 0
    %267 = vmatpush1.bf16.msra.mxu0 0
    %268 = vmatprep.subr.bf16.mxu0 0
    %269 = vmatpush1.bf16.msra.mxu0 0
    %270 = vmatprep.subr.bf16.mxu0 0
    %271 = vmatpush1.bf16.msra.mxu0 0
    %272 = vmatprep.subr.bf16.mxu0 0
    %273 = vmatpush1.bf16.msra.mxu0 0
    %274 = vmatprep.subr.bf16.mxu0 0
    %275 = vmatpush1.bf16.msra.mxu0 0
    %276 = vmatprep.subr.bf16.mxu0 0
    %277 = vmatpush1.bf16.msra.mxu0 0
    %278 = vmatprep.subr.bf16.mxu0 0
    %279 = vmatpush1.bf16.msra.mxu0 0
    %280 = vmatprep.subr.bf16.mxu0 0
    %281 = vmatpush1.bf16.msra.mxu0 0
    %282 = vmatprep.subr.bf16.mxu0 0
    %283 = vmatpush1.bf16.msra.mxu0 0
    %284 = vmatprep.subr.bf16.mxu0 0
    %285 = vmatpush1.bf16.msra.mxu0 0
    %286 = vmatprep.subr.bf16.mxu0 0
    %287 = vmatpush1.bf16.msra.mxu0 0
    %288 = vmatprep.subr.bf16.mxu0 0
    %289 = vmatpush1.bf16.msra.mxu0 0
    %290 = vmatprep.subr.bf16.mxu0 0
    %291 = vmatpush1.bf16.msra.mxu0 0
    %292 = vmatprep.subr.bf16.mxu0 0
    %293 = vmatpush1.bf16.msra.mxu0 0
    %294 = vmatprep.mubr.bf16.mxu0 0
    %295 = vmatmul.mubr.bf16.gmra.mrb[0].mxu0 %v260
    %v296 = vpop.f32.mrb[0].mxu0
    %v297 = vadd.f32 %v250, %v296
    %v298 = vpop.f32.mrb[0].mxu0
    %v299 = vpop.f32.mrb[0].mxu0
    %v300 = vpop.f32.mrb[0].mxu0
    %301 = vdwg.mxu0
    %vm302 = vcmp.gt.f32.partialorder %v297, 0.0
    %v303 = vmul.f32 %v297, 0.01
    %v304 = vsel %vm302, %v297, %v303
    %v305 = vpack.c.bf16 %v304, %v304
    %v306 = vld [vmem:[%s6] sm:$0xf]
    %v307 = vld [vmem:[%s7] sm:$0x1]
    %v309 = vlaneseq
    %v310 = vshrl.u32 %v309, 7
    %v311 = vsub.s32 0, %v310
    %v312 = vrot.slane %v307, %v311
    %vm314 = vcmask 64512
    %v316 = vsel %vm314, %v305, 0
    %vm318 = vcmask 1043456
    %v320 = vsel %vm318, %v306, 0
    %322 = vmatprep.subr.bf16.mxu0 0
    %323 = vmatpush1.bf16.msra.mxu0 %v320
    %324 = vmatprep.subr.bf16.mxu0 0
    %325 = vmatpush1.bf16.msra.mxu0 0
    %326 = vmatprep.subr.bf16.mxu0 0
    %327 = vmatpush1.bf16.msra.mxu0 0
    %328 = vmatprep.subr.bf16.mxu0 0
    %329 = vmatpush1.bf16.msra.mxu0 0
    %330 = vmatprep.subr.bf16.mxu0 0
    %331 = vmatpush1.bf16.msra.mxu0 0
    %332 = vmatprep.subr.bf16.mxu0 0
    %333 = vmatpush1.bf16.msra.mxu0 0
    %334 = vmatprep.subr.bf16.mxu0 0
    %335 = vmatpush1.bf16.msra.mxu0 0
    %336 = vmatprep.subr.bf16.mxu0 0
    %337 = vmatpush1.bf16.msra.mxu0 0
    %338 = vmatprep.subr.bf16.mxu0 0
    %339 = vmatpush1.bf16.msra.mxu0 0
    %340 = vmatprep.subr.bf16.mxu0 0
    %341 = vmatpush1.bf16.msra.mxu0 0
    %342 = vmatprep.subr.bf16.mxu0 0
    %343 = vmatpush1.bf16.msra.mxu0 0
    %344 = vmatprep.subr.bf16.mxu0 0
    %345 = vmatpush1.bf16.msra.mxu0 0
    %346 = vmatprep.subr.bf16.mxu0 0
    %347 = vmatpush1.bf16.msra.mxu0 0
    %348 = vmatprep.subr.bf16.mxu0 0
    %349 = vmatpush1.bf16.msra.mxu0 0
    %350 = vmatprep.subr.bf16.mxu0 0
    %351 = vmatpush1.bf16.msra.mxu0 0
    %352 = vmatprep.subr.bf16.mxu0 0
    %353 = vmatpush1.bf16.msra.mxu0 0
    %354 = vmatprep.mubr.bf16.mxu0 0
    %355 = vmatmul.mubr.bf16.gmra.mrb[0].mxu0 %v316
    %v356 = vpop.f32.mrb[0].mxu0
    %v357 = vadd.f32 %v312, %v356
    %v358 = vpop.f32.mrb[0].mxu0
    %v359 = vpop.f32.mrb[0].mxu0
    %v360 = vpop.f32.mrb[0].mxu0
    %361 = vdwg.mxu0
    %vm362 = vcmask 9216
    %363 = vst.msk [vmem:[#allocation2] sm:$0x3] %vm362, %v357
    // Predicated region
    $region34: #{_lambda_.5} parent=1 // pred_check
      _
    $region35: #{_lambda_.5} parent=1 // pred_check_branch
      %365 = sbr.rel (0) target = $region37
    $region36: #{_lambda_.5} parent=1 // pred_region
      %s367 = ssub.s32 32, 32
      %368 = vsyncadd [#allocation3], %s367
      %s370 = sshll.u32 [#allocation2], 4
      %s371 = int_to_ptr.vmem [resolvable:$true] %s370
      %373 = dma.vmem_to_hbm [thread:$0]  %s371, 32, %s8, [#allocation3]
    $region37: #{_lambda_.5} parent=1 // pred_fallthru
      _
    // Predicated region
    $region38: #{_lambda_.5} parent=1 // pred_check
      _
    $region39: #{_lambda_.5} parent=1 // pred_check_branch
      %375 = sbr.rel (0) target = $region41
    $region40: #{_lambda_.5} parent=1 // pred_region
      %376 = dma.done [#allocation3], 32
    $region41: #{_lambda_.5} parent=1 // pred_fallthru
      _
    %377 = vsyncpa [#allocation3], 1

// kernel: _lambda_.4
$region0: #{_lambda_.4}
  #allocation0 [shape = 'u32[]', space=smem, size = 0x4, offset = 0x4, fixed_abs, tag = 'smem constant byte address 0x4 - core index']
  #allocation1 [shape = 'u32[144,128]{1,0:T(1,128)}', space=vmem, size = 0x12000, scoped, tag = 'internal scratch']
  %s0 = inlined_call_operand.vmem [shape: f32[2,5,32], index: 0, kind: input, shape index: {}]
  %s1 = inlined_call_operand.vmem [shape: f32[1,5,32], index: 1, kind: input, shape index: {}]
  %s2 = inlined_call_operand.vmem [shape: f32[1,32], index: 2, kind: input, shape index: {}, may-alias: {2,7,13}]
  %s3 = inlined_call_operand.vmem [shape: f32[1,32], index: 3, kind: input, shape index: {}, may-alias: {3,6,8,10,12,14}]
  %s4 = inlined_call_operand.vmem [shape: bf16[32,96], index: 4, kind: input, shape index: {}]
  %s5 = inlined_call_operand.vmem [shape: bf16[32,32], index: 5, kind: input, shape index: {}]
  %s6 = inlined_call_operand.vmem [shape: f32[1,32], index: 6, kind: input, shape index: {}, may-alias: {3,6,8,10,12,14}]
  %s7 = inlined_call_operand.vmem [shape: f32[1,32], index: 7, kind: input, shape index: {}, may-alias: {2,7,13}]
  %s8 = inlined_call_operand.vmem [shape: f32[1,32], index: 8, kind: input, shape index: {}, may-alias: {3,6,8,10,12,14}]
  %s9 = inlined_call_operand.vmem [shape: bf16[32,32], index: 9, kind: input, shape index: {}]
  %s10 = inlined_call_operand.vmem [shape: f32[1,32], index: 10, kind: input, shape index: {}, may-alias: {3,6,8,10,12,14}]
  %s11 = inlined_call_operand.vmem [shape: bf16[32,32], index: 11, kind: input, shape index: {}]
  %s12 = inlined_call_operand.vmem [shape: f32[1,32], index: 12, kind: input, shape index: {}, may-alias: {3,6,8,10,12,14}]
  %s13 = inlined_call_operand.vmem [shape: f32[1,32], index: 13, kind: input, shape index: {}, may-alias: {2,7,13}]
  %s14 = inlined_call_operand.vmem [shape: f32[1,32], index: 14, kind: input, shape index: {}, may-alias: {3,6,8,10,12,14}]
  %s15 = inlined_call_operand.vmem [shape: f32[2,5,32], index: 15, kind: output, shape index: {}]
  %s16 = sld [smem:[#allocation0]]
  $region70: #{_lambda_.4} parent=0
    _
  %s18 = ssub.s32 1, %s16
  %s19 = scalar_select 0, %s18, %s16
  // Predicated region
  $region2: #{_lambda_.4} parent=0 // pred_check
    _
  $region3: #{_lambda_.4} parent=0 // pred_check_branch
    %21 = sbr.rel (0) target = $region5
  $region4: #{_lambda_.4} parent=0 // pred_region
    _
  $region5: #{_lambda_.4} parent=0 // pred_fallthru
    _
  // Predicated region
  $region6: #{_lambda_.4} parent=0 // pred_check
    _
  $region7: #{_lambda_.4} parent=0 // pred_check_branch
    %23 = sbr.rel (0) target = $region9
  $region8: #{_lambda_.4} parent=0 // pred_region
    _
  $region9: #{_lambda_.4} parent=0 // pred_fallthru
    _
  // Predicated region
  $region10: #{_lambda_.4} parent=0 // pred_check
    _
  $region11: #{_lambda_.4} parent=0 // pred_check_branch
    %25 = sbr.rel (0) target = $region13
  $region12: #{_lambda_.4} parent=0 // pred_region
    _
  $region13: #{_lambda_.4} parent=0 // pred_fallthru
    _
  // Predicated region
  $region14: #{_lambda_.4} parent=0 // pred_check
    _
  $region15: #{_lambda_.4} parent=0 // pred_check_branch
    %27 = sbr.rel (0) target = $region17
  $region16: #{_lambda_.4} parent=0 // pred_region
    _
  $region17: #{_lambda_.4} parent=0 // pred_fallthru
    _
  // Predicated region
  $region18: #{_lambda_.4} parent=0 // pred_check
    _
  $region19: #{_lambda_.4} parent=0 // pred_check_branch
    %29 = sbr.rel (0) target = $region21
  $region20: #{_lambda_.4} parent=0 // pred_region
    _
  $region21: #{_lambda_.4} parent=0 // pred_fallthru
    _
  // Predicated region
  $region22: #{_lambda_.4} parent=0 // pred_check
    _
  $region23: #{_lambda_.4} parent=0 // pred_check_branch
    %31 = sbr.rel (0) target = $region25
  $region24: #{_lambda_.4} parent=0 // pred_region
    _
  $region25: #{_lambda_.4} parent=0 // pred_fallthru
    _
  // Predicated region
  $region26: #{_lambda_.4} parent=0 // pred_check
    _
  $region27: #{_lambda_.4} parent=0 // pred_check_branch
    %33 = sbr.rel (0) target = $region29
  $region28: #{_lambda_.4} parent=0 // pred_region
    _
  $region29: #{_lambda_.4} parent=0 // pred_fallthru
    _
  // Predicated region
  $region30: #{_lambda_.4} parent=0 // pred_check
    _
  $region31: #{_lambda_.4} parent=0 // pred_check_branch
    %35 = sbr.rel (0) target = $region33
  $region32: #{_lambda_.4} parent=0 // pred_region
    _
  $region33: #{_lambda_.4} parent=0 // pred_fallthru
    _
  // Predicated region
  $region34: #{_lambda_.4} parent=0 // pred_check
    _
  $region35: #{_lambda_.4} parent=0 // pred_check_branch
    %37 = sbr.rel (0) target = $region37
  $region36: #{_lambda_.4} parent=0 // pred_region
    _
  $region37: #{_lambda_.4} parent=0 // pred_fallthru
    _
  // Predicated region
  $region38: #{_lambda_.4} parent=0 // pred_check
    _
  $region39: #{_lambda_.4} parent=0 // pred_check_branch
    %39 = sbr.rel (0) target = $region41
  $region40: #{_lambda_.4} parent=0 // pred_region
    _
  $region41: #{_lambda_.4} parent=0 // pred_fallthru
    _
  // Predicated region
  $region42: #{_lambda_.4} parent=0 // pred_check
    _
  $region43: #{_lambda_.4} parent=0 // pred_check_branch
    %41 = sbr.rel (0) target = $region45
  $region44: #{_lambda_.4} parent=0 // pred_region
    _
  $region45: #{_lambda_.4} parent=0 // pred_fallthru
    _
  // Predicated region
  $region46: #{_lambda_.4} parent=0 // pred_check
    _
  $region47: #{_lambda_.4} parent=0 // pred_check_branch
    %43 = sbr.rel (0) target = $region49
  $region48: #{_lambda_.4} parent=0 // pred_region
    _
  $region49: #{_lambda_.4} parent=0 // pred_fallthru
    _
  // Predicated region
  $region50: #{_lambda_.4} parent=0 // pred_check
    _
  $region51: #{_lambda_.4} parent=0 // pred_check_branch
    %45 = sbr.rel (0) target = $region53
  $region52: #{_lambda_.4} parent=0 // pred_region
    _
  $region53: #{_lambda_.4} parent=0 // pred_fallthru
    _
  // Predicated region
  $region54: #{_lambda_.4} parent=0 // pred_check
    _
  $region55: #{_lambda_.4} parent=0 // pred_check_branch
    %47 = sbr.rel (0) target = $region57
  $region56: #{_lambda_.4} parent=0 // pred_region
    _
  $region57: #{_lambda_.4} parent=0 // pred_fallthru
    _
  // Predicated region
  $region58: #{_lambda_.4} parent=0 // pred_check
    _
  $region59: #{_lambda_.4} parent=0 // pred_check_branch
    %49 = sbr.rel (0) target = $region61
  $region60: #{_lambda_.4} parent=0 // pred_region
    _
  $region61: #{_lambda_.4} parent=0 // pred_fallthru
    _
  %v51 = vld [vmem:[%s0] sm:$0x1f]
  %v52 = vld [vmem:[%s0 + $0x8] sm:$0x1f]
  %v53 = vld [vmem:[%s1] sm:$0x1f]
  %v54 = vadd.f32 %v51, %v53
  %v55 = vadd.f32 %v52, %v53
  %v58 = vcombine.high %v54, %v54
  %v60 = vunpack.c.l.s4 1966171168
  %v61 = vunpack.c.0.s8 %v60
  %v62 = vlaneseq
  %v63 = vshrl.u32 %v62, 7
  %v64 = vsub.s32 %v61, %v63
  %v65 = vrot.slane %v54, %v64
  %v67 = vunpack.c.l.s4 1966171168
  %v68 = vunpack.c.0.s8 %v67
  %v69 = vlaneseq
  %v70 = vshrl.u32 %v69, 7
  %v71 = vsub.s32 %v68, %v70
  %v72 = vrot.slane %v58, %v71
  %v73 = vcombine.high %v65, %v65
  %v75 = vunpack.c.l.s4 1966171168
  %v76 = vunpack.c.0.s8 %v75
  %v77 = vlaneseq
  %v78 = vshrl.u32 %v77, 7
  %v79 = vsub.s32 %v76, %v78
  %v80 = vrot.slane %v65, %v79
  %v82 = vunpack.c.l.s4 1966171168
  %v83 = vunpack.c.0.s8 %v82
  %v84 = vlaneseq
  %v85 = vshrl.u32 %v84, 7
  %v86 = vsub.s32 %v83, %v85
  %v87 = vrot.slane %v72, %v86
  %v89 = vunpack.c.l.s4 1966171168
  %v90 = vunpack.c.0.s8 %v89
  %v91 = vlaneseq
  %v92 = vshrl.u32 %v91, 7
  %v93 = vsub.s32 %v90, %v92
  %v94 = vrot.slane %v73, %v93
  %v95 = vcombine.high %v80, %v80
  %v96 = vcombine.high %v94, %v94
  %v97 = vcombine.high %v55, %v55
  %v99 = vunpack.c.l.s4 1966171168
  %v100 = vunpack.c.0.s8 %v99
  %v101 = vlaneseq
  %v102 = vshrl.u32 %v101, 7
  %v103 = vsub.s32 %v100, %v102
  %v104 = vrot.slane %v55, %v103
  %v106 = vunpack.c.l.s4 1966171168
  %v107 = vunpack.c.0.s8 %v106
  %v108 = vlaneseq
  %v109 = vshrl.u32 %v108, 7
  %v110 = vsub.s32 %v107, %v109
  %v111 = vrot.slane %v97, %v110
  %v112 = vcombine.high %v104, %v104
  %v114 = vunpack.c.l.s4 1966171168
  %v115 = vunpack.c.0.s8 %v114
  %v116 = vlaneseq
  %v117 = vshrl.u32 %v116, 7
  %v118 = vsub.s32 %v115, %v117
  %v119 = vrot.slane %v104, %v118
  %v121 = vunpack.c.l.s4 1966171168
  %v122 = vunpack.c.0.s8 %v121
  %v123 = vlaneseq
  %v124 = vshrl.u32 %v123, 7
  %v125 = vsub.s32 %v122, %v124
  %v126 = vrot.slane %v111, %v125
  %v128 = vunpack.c.l.s4 1966171168
  %v129 = vunpack.c.0.s8 %v128
  %v130 = vlaneseq
  %v131 = vshrl.u32 %v130, 7
  %v132 = vsub.s32 %v129, %v131
  %v133 = vrot.slane %v112, %v132
  %v134 = vcombine.high %v119, %v119
  %v135 = vcombine.high %v133, %v133
  %v146 = vld [vmem:[%s2] sm:$0x1]
  %v147 = vld [vmem:[%s3] sm:$0x1]
  %v148 = vcombine.low %v80, %v94
  %v149 = vcombine.low %v95, %v96
  %v150 = vcombine.low %v87, %v119
  %v151 = vcombine.low %v133, %v134
  %v153 = vunpack.c.l.s4 1966171168
  %v154 = vunpack.c.0.s8 %v153
  %v155 = vlaneseq
  %v156 = vshrl.u32 %v155, 7
  %v157 = vsub.s32 %v154, %v156
  %v158 = vrot.slane %v148, %v157
  %v160 = vunpack.c.l.s4 1966171168
  %v161 = vunpack.c.0.s8 %v160
  %v162 = vlaneseq
  %v163 = vshrl.u32 %v162, 7
  %v164 = vsub.s32 %v161, %v163
  %v165 = vrot.slane %v149, %v164
  %v167 = vunpack.c.l.s4 1966171168
  %v168 = vunpack.c.0.s8 %v167
  %v169 = vlaneseq
  %v170 = vshrl.u32 %v169, 7
  %v171 = vsub.s32 %v168, %v170
  %v172 = vrot.slane %v150, %v171
  %v174 = vunpack.c.l.s4 1966171168
  %v175 = vunpack.c.0.s8 %v174
  %v176 = vlaneseq
  %v177 = vshrl.u32 %v176, 7
  %v178 = vsub.s32 %v175, %v177
  %v179 = vrot.slane %v151, %v178
  %v180 = vcombine.low %v158, %v165
  %v181 = vcombine.low %v172, %v179
  %v183 = vunpack.c.l.s4 1966171168
  %v184 = vunpack.c.0.s8 %v183
  %v185 = vlaneseq
  %v186 = vshrl.u32 %v185, 7
  %v187 = vsub.s32 %v184, %v186
  %v188 = vrot.slane %v180, %v187
  %v190 = vunpack.c.l.s4 1966171168
  %v191 = vunpack.c.0.s8 %v190
  %v192 = vlaneseq
  %v193 = vshrl.u32 %v192, 7
  %v194 = vsub.s32 %v191, %v193
  %v195 = vrot.slane %v181, %v194
  %v196 = vcombine.low %v188, %v195
  %v197 = vcombine.low %v135, %v126
  %v199 = vunpack.c.l.s4 1966171168
  %v200 = vunpack.c.0.s8 %v199
  %v201 = vlaneseq
  %v202 = vshrl.u32 %v201, 7
  %v203 = vsub.s32 %v200, %v202
  %v204 = vrot.slane %v197, %v203
  %v206 = vunpack.c.l.s4 1966171168
  %v207 = vunpack.c.0.s8 %v206
  %v208 = vlaneseq
  %v209 = vshrl.u32 %v208, 7
  %v210 = vsub.s32 %v207, %v209
  %v211 = vrot.slane %v204, %v210
  %vm214 = vcmask 261120
  %v215 = vsel %vm214, %v196, 0.0
  %216 = vadd.xlane.f32.xlu0 %v215
  %v217 = vpop.xlane.xlu0 %216
  %vm218 = vcmask 254976
  %v219 = vsel %vm218, %v211, 0.0
  %220 = vadd.xlane.f32.xlu0 %v219
  %v221 = vpop.xlane.xlu0 %220
  %v222 = vrcp.pop 32.0
  %v223 = vmul.f32 %v217, %v222
  %v224 = vmul.f32 %v221, %v222
  %v227 = vlaneseq
  %v228 = vshrl.u32 %v227, 7
  %v229 = vsub.s32 0, %v228
  %v230 = vrot.slane %v223, %v229
  %v231 = vlaneseq
  %v232 = vshrl.u32 %v231, 7
  %v233 = vsub.s32 1, %v232
  %v234 = vrot.slane %v223, %v233
  %v235 = vlaneseq
  %v236 = vshrl.u32 %v235, 7
  %v237 = vsub.s32 2, %v236
  %v238 = vrot.slane %v223, %v237
  %v239 = vlaneseq
  %v240 = vshrl.u32 %v239, 7
  %v241 = vsub.s32 3, %v240
  %v242 = vrot.slane %v223, %v241
  %v243 = vlaneseq
  %v244 = vshrl.u32 %v243, 7
  %v245 = vsub.s32 4, %v244
  %v246 = vrot.slane %v223, %v245
  %v247 = vlaneseq
  %v248 = vshrl.u32 %v247, 7
  %v249 = vsub.s32 5, %v248
  %v250 = vrot.slane %v223, %v249
  %v251 = vlaneseq
  %v252 = vshrl.u32 %v251, 7
  %v253 = vsub.s32 6, %v252
  %v254 = vrot.slane %v223, %v253
  %v255 = vlaneseq
  %v256 = vshrl.u32 %v255, 7
  %v257 = vsub.s32 7, %v256
  %v258 = vrot.slane %v223, %v257
  %v259 = vlaneseq
  %v260 = vshrl.u32 %v259, 7
  %v261 = vsub.s32 0, %v260
  %v262 = vrot.slane %v224, %v261
  %v263 = vlaneseq
  %v264 = vshrl.u32 %v263, 7
  %v265 = vsub.s32 1, %v264
  %v266 = vrot.slane %v224, %v265
  %v277 = vsub.f32 %v80, %v230
  %v278 = vsub.f32 %v94, %v234
  %v279 = vsub.f32 %v95, %v238
  %v280 = vsub.f32 %v96, %v242
  %v281 = vsub.f32 %v87, %v246
  %v282 = vsub.f32 %v119, %v250
  %v283 = vsub.f32 %v133, %v254
  %v284 = vsub.f32 %v134, %v258
  %v285 = vsub.f32 %v135, %v262
  %v286 = vsub.f32 %v126, %v266
  %v287 = vmul.f32 %v277, %v277
  %v288 = vmul.f32 %v278, %v278
  %v289 = vmul.f32 %v279, %v279
  %v290 = vmul.f32 %v280, %v280
  %v291 = vmul.f32 %v281, %v281
  %v292 = vmul.f32 %v282, %v282
  %v293 = vmul.f32 %v283, %v283
  %v294 = vmul.f32 %v284, %v284
  %v295 = vmul.f32 %v285, %v285
  %v296 = vmul.f32 %v286, %v286
  %v307 = vcombine.low %v287, %v288
  %v308 = vcombine.low %v289, %v290
  %v309 = vcombine.low %v291, %v292
  %v310 = vcombine.low %v293, %v294
  %v312 = vunpack.c.l.s4 1966171168
  %v313 = vunpack.c.0.s8 %v312
  %v314 = vlaneseq
  %v315 = vshrl.u32 %v314, 7
  %v316 = vsub.s32 %v313, %v315
  %v317 = vrot.slane %v307, %v316
  %v319 = vunpack.c.l.s4 1966171168
  %v320 = vunpack.c.0.s8 %v319
  %v321 = vlaneseq
  %v322 = vshrl.u32 %v321, 7
  %v323 = vsub.s32 %v320, %v322
  %v324 = vrot.slane %v308, %v323
  %v326 = vunpack.c.l.s4 1966171168
  %v327 = vunpack.c.0.s8 %v326
  %v328 = vlaneseq
  %v329 = vshrl.u32 %v328, 7
  %v330 = vsub.s32 %v327, %v329
  %v331 = vrot.slane %v309, %v330
  %v333 = vunpack.c.l.s4 1966171168
  %v334 = vunpack.c.0.s8 %v333
  %v335 = vlaneseq
  %v336 = vshrl.u32 %v335, 7
  %v337 = vsub.s32 %v334, %v336
  %v338 = vrot.slane %v310, %v337
  %v339 = vcombine.low %v317, %v324
  %v340 = vcombine.low %v331, %v338
  %v342 = vunpack.c.l.s4 1966171168
  %v343 = vunpack.c.0.s8 %v342
  %v344 = vlaneseq
  %v345 = vshrl.u32 %v344, 7
  %v346 = vsub.s32 %v343, %v345
  %v347 = vrot.slane %v339, %v346
  %v349 = vunpack.c.l.s4 1966171168
  %v350 = vunpack.c.0.s8 %v349
  %v351 = vlaneseq
  %v352 = vshrl.u32 %v351, 7
  %v353 = vsub.s32 %v350, %v352
  %v354 = vrot.slane %v340, %v353
  %v355 = vcombine.low %v347, %v354
  %v356 = vcombine.low %v295, %v296
  %v358 = vunpack.c.l.s4 1966171168
  %v359 = vunpack.c.0.s8 %v358
  %v360 = vlaneseq
  %v361 = vshrl.u32 %v360, 7
  %v362 = vsub.s32 %v359, %v361
  %v363 = vrot.slane %v356, %v362
  %v365 = vunpack.c.l.s4 1966171168
  %v366 = vunpack.c.0.s8 %v365
  %v367 = vlaneseq
  %v368 = vshrl.u32 %v367, 7
  %v369 = vsub.s32 %v366, %v368
  %v370 = vrot.slane %v363, %v369
  %v373 = vsel %vm214, %v355, 0.0
  %374 = vadd.xlane.f32.xlu0 %v373
  %v375 = vpop.xlane.xlu0 %374
  %v376 = vsel %vm218, %v370, 0.0
  %377 = vadd.xlane.f32.xlu0 %v376
  %v378 = vpop.xlane.xlu0 %377
  %v379 = vmul.f32 %v375, %v222
  %v380 = vmul.f32 %v378, %v222
  %v381 = vadd.f32 %v379, 1e-05
  %v382 = vadd.f32 %v380, 1e-05
  %v383 = vrsqrt.pop %v381
  %v384 = vrsqrt.pop %v382
  %v387 = vlaneseq
  %v388 = vshrl.u32 %v387, 7
  %v389 = vsub.s32 0, %v388
  %v390 = vrot.slane %v383, %v389
  %v391 = vlaneseq
  %v392 = vshrl.u32 %v391, 7
  %v393 = vsub.s32 1, %v392
  %v394 = vrot.slane %v383, %v393
  %v395 = vlaneseq
  %v396 = vshrl.u32 %v395, 7
  %v397 = vsub.s32 2, %v396
  %v398 = vrot.slane %v383, %v397
  %v399 = vlaneseq
  %v400 = vshrl.u32 %v399, 7
  %v401 = vsub.s32 3, %v400
  %v402 = vrot.slane %v383, %v401
  %v403 = vlaneseq
  %v404 = vshrl.u32 %v403, 7
  %v405 = vsub.s32 4, %v404
  %v406 = vrot.slane %v383, %v405
  %v407 = vlaneseq
  %v408 = vshrl.u32 %v407, 7
  %v409 = vsub.s32 5, %v408
  %v410 = vrot.slane %v383, %v409
  %v411 = vlaneseq
  %v412 = vshrl.u32 %v411, 7
  %v413 = vsub.s32 6, %v412
  %v414 = vrot.slane %v383, %v413
  %v415 = vlaneseq
  %v416 = vshrl.u32 %v415, 7
  %v417 = vsub.s32 7, %v416
  %v418 = vrot.slane %v383, %v417
  %v419 = vlaneseq
  %v420 = vshrl.u32 %v419, 7
  %v421 = vsub.s32 0, %v420
  %v422 = vrot.slane %v384, %v421
  %v423 = vlaneseq
  %v424 = vshrl.u32 %v423, 7
  %v425 = vsub.s32 1, %v424
  %v426 = vrot.slane %v384, %v425
  %v437 = vmul.f32 %v277, %v390
  %v438 = vmul.f32 %v278, %v394
  %v439 = vmul.f32 %v279, %v398
  %v440 = vmul.f32 %v280, %v402
  %v441 = vmul.f32 %v281, %v406
  %v442 = vmul.f32 %v282, %v410
  %v443 = vmul.f32 %v283, %v414
  %v444 = vmul.f32 %v284, %v418
  %v445 = vmul.f32 %v285, %v422
  %v446 = vmul.f32 %v286, %v426
  %v448 = vlaneseq
  %v449 = vshrl.u32 %v448, 7
  %v450 = vsub.s32 0, %v449
  %v451 = vrot.slane %v146, %v450
  %v452 = vcombine.high %v451, %v451
  %v454 = vunpack.c.l.s4 1966171168
  %v455 = vunpack.c.0.s8 %v454
  %v456 = vlaneseq
  %v457 = vshrl.u32 %v456, 7
  %v458 = vsub.s32 %v455, %v457
  %v459 = vrot.slane %v451, %v458
  %v461 = vunpack.c.l.s4 1966171168
  %v462 = vunpack.c.0.s8 %v461
  %v463 = vlaneseq
  %v464 = vshrl.u32 %v463, 7
  %v465 = vsub.s32 %v462, %v464
  %v466 = vrot.slane %v452, %v465
  %v467 = vcombine.high %v459, %v459
  %v468 = vcombine.high %v466, %v466
  %v470 = vunpack.c.l.s4 1966171168
  %v471 = vunpack.c.0.s8 %v470
  %v472 = vlaneseq
  %v473 = vshrl.u32 %v472, 7
  %v474 = vsub.s32 %v471, %v473
  %v475 = vrot.slane %v459, %v474
  %v477 = vunpack.c.l.s4 1966171168
  %v478 = vunpack.c.0.s8 %v477
  %v479 = vlaneseq
  %v480 = vshrl.u32 %v479, 7
  %v481 = vsub.s32 %v478, %v480
  %v482 = vrot.slane %v466, %v481
  %v484 = vunpack.c.l.s4 1966171168
  %v485 = vunpack.c.0.s8 %v484
  %v486 = vlaneseq
  %v487 = vshrl.u32 %v486, 7
  %v488 = vsub.s32 %v485, %v487
  %v489 = vrot.slane %v467, %v488
  %v491 = vunpack.c.l.s4 1966171168
  %v492 = vunpack.c.0.s8 %v491
  %v493 = vlaneseq
  %v494 = vshrl.u32 %v493, 7
  %v495 = vsub.s32 %v492, %v494
  %v496 = vrot.slane %v468, %v495
  %v497 = vcombine.high %v475, %v475
  %v498 = vcombine.high %v482, %v482
  %v499 = vcombine.high %v489, %v489
  %v500 = vcombine.high %v496, %v496
  %v509 = vmul.f32 %v437, %v475
  %v510 = vmul.f32 %v438, %v489
  %v511 = vmul.f32 %v439, %v497
  %v512 = vmul.f32 %v440, %v499
  %v513 = vmul.f32 %v441, %v482
  %v514 = vmul.f32 %v442, %v496
  %v515 = vmul.f32 %v443, %v498
  %v516 = vmul.f32 %v444, %v500
  %v517 = vmul.f32 %v445, %v475
  %v518 = vmul.f32 %v446, %v489
  %v520 = vlaneseq
  %v521 = vshrl.u32 %v520, 7
  %v522 = vsub.s32 0, %v521
  %v523 = vrot.slane %v147, %v522
  %v524 = vcombine.high %v523, %v523
  %v526 = vunpack.c.l.s4 1966171168
  %v527 = vunpack.c.0.s8 %v526
  %v528 = vlaneseq
  %v529 = vshrl.u32 %v528, 7
  %v530 = vsub.s32 %v527, %v529
  %v531 = vrot.slane %v523, %v530
  %v533 = vunpack.c.l.s4 1966171168
  %v534 = vunpack.c.0.s8 %v533
  %v535 = vlaneseq
  %v536 = vshrl.u32 %v535, 7
  %v537 = vsub.s32 %v534, %v536
  %v538 = vrot.slane %v524, %v537
  %v539 = vcombine.high %v531, %v531
  %v540 = vcombine.high %v538, %v538
  %v542 = vunpack.c.l.s4 1966171168
  %v543 = vunpack.c.0.s8 %v542
  %v544 = vlaneseq
  %v545 = vshrl.u32 %v544, 7
  %v546 = vsub.s32 %v543, %v545
  %v547 = vrot.slane %v531, %v546
  %v549 = vunpack.c.l.s4 1966171168
  %v550 = vunpack.c.0.s8 %v549
  %v551 = vlaneseq
  %v552 = vshrl.u32 %v551, 7
  %v553 = vsub.s32 %v550, %v552
  %v554 = vrot.slane %v538, %v553
  %v556 = vunpack.c.l.s4 1966171168
  %v557 = vunpack.c.0.s8 %v556
  %v558 = vlaneseq
  %v559 = vshrl.u32 %v558, 7
  %v560 = vsub.s32 %v557, %v559
  %v561 = vrot.slane %v539, %v560
  %v563 = vunpack.c.l.s4 1966171168
  %v564 = vunpack.c.0.s8 %v563
  %v565 = vlaneseq
  %v566 = vshrl.u32 %v565, 7
  %v567 = vsub.s32 %v564, %v566
  %v568 = vrot.slane %v540, %v567
  %v569 = vcombine.high %v547, %v547
  %v570 = vcombine.high %v554, %v554
  %v571 = vcombine.high %v561, %v561
  %v572 = vcombine.high %v568, %v568
  %v581 = vadd.f32 %v509, %v547
  %v582 = vadd.f32 %v510, %v561
  %v583 = vadd.f32 %v511, %v569
  %v584 = vadd.f32 %v512, %v571
  %v585 = vadd.f32 %v513, %v554
  %v586 = vadd.f32 %v514, %v568
  %v587 = vadd.f32 %v515, %v570
  %v588 = vadd.f32 %v516, %v572
  %v589 = vadd.f32 %v517, %v547
  %v590 = vadd.f32 %v518, %v561
  %v601 = vcombine.low %v581, %v582
  %v602 = vcombine.low %v583, %v584
  %v603 = vcombine.low %v585, %v586
  %v604 = vcombine.low %v587, %v588
  %v606 = vunpack.c.l.s4 1966171168
  %v607 = vunpack.c.0.s8 %v606
  %v608 = vlaneseq
  %v609 = vshrl.u32 %v608, 7
  %v610 = vsub.s32 %v607, %v609
  %v611 = vrot.slane %v601, %v610
  %v613 = vunpack.c.l.s4 1966171168
  %v614 = vunpack.c.0.s8 %v613
  %v615 = vlaneseq
  %v616 = vshrl.u32 %v615, 7
  %v617 = vsub.s32 %v614, %v616
  %v618 = vrot.slane %v602, %v617
  %v620 = vunpack.c.l.s4 1966171168
  %v621 = vunpack.c.0.s8 %v620
  %v622 = vlaneseq
  %v623 = vshrl.u32 %v622, 7
  %v624 = vsub.s32 %v621, %v623
  %v625 = vrot.slane %v603, %v624
  %v627 = vunpack.c.l.s4 1966171168
  %v628 = vunpack.c.0.s8 %v627
  %v629 = vlaneseq
  %v630 = vshrl.u32 %v629, 7
  %v631 = vsub.s32 %v628, %v630
  %v632 = vrot.slane %v604, %v631
  %v633 = vcombine.low %v611, %v618
  %v634 = vcombine.low %v625, %v632
  %v636 = vunpack.c.l.s4 1966171168
  %v637 = vunpack.c.0.s8 %v636
  %v638 = vlaneseq
  %v639 = vshrl.u32 %v638, 7
  %v640 = vsub.s32 %v637, %v639
  %v641 = vrot.slane %v633, %v640
  %v643 = vunpack.c.l.s4 1966171168
  %v644 = vunpack.c.0.s8 %v643
  %v645 = vlaneseq
  %v646 = vshrl.u32 %v645, 7
  %v647 = vsub.s32 %v644, %v646
  %v648 = vrot.slane %v634, %v647
  %v649 = vcombine.low %v641, %v648
  %v650 = vcombine.low %v589, %v590
  %v652 = vunpack.c.l.s4 1966171168
  %v653 = vunpack.c.0.s8 %v652
  %v654 = vlaneseq
  %v655 = vshrl.u32 %v654, 7
  %v656 = vsub.s32 %v653, %v655
  %v657 = vrot.slane %v650, %v656
  %v659 = vunpack.c.l.s4 1966171168
  %v660 = vunpack.c.0.s8 %v659
  %v661 = vlaneseq
  %v662 = vshrl.u32 %v661, 7
  %v663 = vsub.s32 %v660, %v662
  %v664 = vrot.slane %v657, %v663
  %v667 = vpack.c.bf16 %v664, %v649
  %v668 = vld [vmem:[%s4] sm:$0xf]
  %v669 = vld [vmem:[%s4 + $0x4] sm:$0xf]
  %v670 = vld [vmem:[%s4 + $0x8] sm:$0xf]
  %v671 = vld [vmem:[%s4 + $0xc] sm:$0xf]
  %v676 = vunpack.c.l.b16 %v668
  %v677 = vunpack.c.l.b16 %v669
  %v678 = vunpack.c.l.b16 %v670
  %v679 = vunpack.c.l.b16 %v671
  %v680 = vpack.c.b16 %v677, %v676
  %v681 = vpack.c.b16 %v679, %v678
  %v685 = vsel %vm214, %v667, 0
  %687 = vmatprep.subr.bf16.mxu0 0
  %688 = vmatpush1.bf16.msra.mxu0 %v680
  %689 = vmatprep.subr.bf16.mxu0 0
  %690 = vmatpush1.bf16.msra.mxu0 %v681
  %691 = vmatprep.subr.bf16.mxu0 0
  %692 = vmatpush1.bf16.msra.mxu0 0
  %693 = vmatprep.subr.bf16.mxu0 0
  %694 = vmatpush1.bf16.msra.mxu0 0
  %695 = vmatprep.subr.bf16.mxu0 0
  %696 = vmatpush1.bf16.msra.mxu0 0
  %697 = vmatprep.subr.bf16.mxu0 0
  %698 = vmatpush1.bf16.msra.mxu0 0
  %699 = vmatprep.subr.bf16.mxu0 0
  %700 = vmatpush1.bf16.msra.mxu0 0
  %701 = vmatprep.subr.bf16.mxu0 0
  %702 = vmatpush1.bf16.msra.mxu0 0
  %703 = vmatprep.subr.bf16.mxu0 0
  %704 = vmatpush1.bf16.msra.mxu0 0
  %705 = vmatprep.subr.bf16.mxu0 0
  %706 = vmatpush1.bf16.msra.mxu0 0
  %707 = vmatprep.subr.bf16.mxu0 0
  %708 = vmatpush1.bf16.msra.mxu0 0
  %709 = vmatprep.subr.bf16.mxu0 0
  %710 = vmatpush1.bf16.msra.mxu0 0
  %711 = vmatprep.subr.bf16.mxu0 0
  %712 = vmatpush1.bf16.msra.mxu0 0
  %713 = vmatprep.subr.bf16.mxu0 0
  %714 = vmatpush1.bf16.msra.mxu0 0
  %715 = vmatprep.subr.bf16.mxu0 0
  %716 = vmatpush1.bf16.msra.mxu0 0
  %717 = vmatprep.subr.bf16.mxu0 0
  %718 = vmatpush1.bf16.msra.mxu0 0
  %719 = vmatprep.mubr.bf16.mxu0 0
  %720 = vmatmul.mubr.bf16.gmra.mrb[0].mxu0 %v685
  %v721 = vpop.f32.mrb[0].mxu0
  %v722 = vadd.f32 0.0, %v721
  %v723 = vpop.f32.mrb[0].mxu0
  %v724 = vpop.f32.mrb[0].mxu0
  %v725 = vadd.f32 0.0, %v724
  %v726 = vpop.f32.mrb[0].mxu0
  %727 = vdwg.mxu0
  %v730 = vcombine.high %v722, %v722
  %v732 = vunpack.c.l.s4 1966171168
  %v733 = vunpack.c.0.s8 %v732
  %v734 = vlaneseq
  %v735 = vshrl.u32 %v734, 7
  %v736 = vsub.s32 %v733, %v735
  %v737 = vrot.slane %v722, %v736
  %v739 = vunpack.c.l.s4 1966171168
  %v740 = vunpack.c.0.s8 %v739
  %v741 = vlaneseq
  %v742 = vshrl.u32 %v741, 7
  %v743 = vsub.s32 %v740, %v742
  %v744 = vrot.slane %v730, %v743
  %v745 = vcombine.high %v737, %v737
  %v746 = vcombine.high %v744, %v744
  %v748 = vunpack.c.l.s4 1966171168
  %v749 = vunpack.c.0.s8 %v748
  %v750 = vlaneseq
  %v751 = vshrl.u32 %v750, 7
  %v752 = vsub.s32 %v749, %v751
  %v753 = vrot.slane %v737, %v752
  %v755 = vunpack.c.l.s4 1966171168
  %v756 = vunpack.c.0.s8 %v755
  %v757 = vlaneseq
  %v758 = vshrl.u32 %v757, 7
  %v759 = vsub.s32 %v756, %v758
  %v760 = vrot.slane %v744, %v759
  %v762 = vunpack.c.l.s4 1966171168
  %v763 = vunpack.c.0.s8 %v762
  %v764 = vlaneseq
  %v765 = vshrl.u32 %v764, 7
  %v766 = vsub.s32 %v763, %v765
  %v767 = vrot.slane %v745, %v766
  %v769 = vunpack.c.l.s4 1966171168
  %v770 = vunpack.c.0.s8 %v769
  %v771 = vlaneseq
  %v772 = vshrl.u32 %v771, 7
  %v773 = vsub.s32 %v770, %v772
  %v774 = vrot.slane %v746, %v773
  %v775 = vcombine.high %v753, %v753
  %v776 = vcombine.high %v760, %v760
  %v777 = vcombine.high %v767, %v767
  %v778 = vcombine.high %v774, %v774
  %v780 = vunpack.c.l.s4 1966171168
  %v781 = vunpack.c.0.s8 %v780
  %v782 = vlaneseq
  %v783 = vshrl.u32 %v782, 7
  %v784 = vsub.s32 %v781, %v783
  %v785 = vrot.slane %v725, %v784
  %v786 = vcombine.high %v785, %v785
  %v788 = vunpack.c.l.s4 1966171168
  %v789 = vunpack.c.0.s8 %v788
  %v790 = vlaneseq
  %v791 = vshrl.u32 %v790, 7
  %v792 = vsub.s32 %v789, %v791
  %v793 = vrot.slane %v785, %v792
  %v795 = vunpack.c.l.s4 1966171168
  %v796 = vunpack.c.0.s8 %v795
  %v797 = vlaneseq
  %v798 = vshrl.u32 %v797, 7
  %v799 = vsub.s32 %v796, %v798
  %v800 = vrot.slane %v786, %v799
  %v801 = vcombine.low %v753, %v767
  %v802 = vcombine.low %v775, %v777
  %v804 = vunpack.c.l.s4 1966171168
  %v805 = vunpack.c.0.s8 %v804
  %v806 = vlaneseq
  %v807 = vshrl.u32 %v806, 7
  %v808 = vsub.s32 %v805, %v807
  %v809 = vrot.slane %v801, %v808
  %v811 = vunpack.c.l.s4 1966171168
  %v812 = vunpack.c.0.s8 %v811
  %v813 = vlaneseq
  %v814 = vshrl.u32 %v813, 7
  %v815 = vsub.s32 %v812, %v814
  %v816 = vrot.slane %v802, %v815
  %v818 = vunpack.c.l.s4 1966171168
  %v819 = vunpack.c.0.s8 %v818
  %v820 = vlaneseq
  %v821 = vshrl.u32 %v820, 7
  %v822 = vsub.s32 %v819, %v821
  %v823 = vrot.slane %v760, %v822
  %v824 = vcombine.low %v809, %v816
  %v826 = vunpack.c.l.s4 1966171168
  %v827 = vunpack.c.0.s8 %v826
  %v828 = vlaneseq
  %v829 = vshrl.u32 %v828, 7
  %v830 = vsub.s32 %v827, %v829
  %v831 = vrot.slane %v824, %v830
  %v833 = vunpack.c.l.s4 1966171168
  %v834 = vunpack.c.0.s8 %v833
  %v835 = vlaneseq
  %v836 = vshrl.u32 %v835, 7
  %v837 = vsub.s32 %v834, %v836
  %v838 = vrot.slane %v823, %v837
  %v839 = vcombine.low %v831, %v838
  %v840 = vcombine.low %v774, %v776
  %v841 = vcombine.low %v778, %v793
  %v843 = vunpack.c.l.s4 1966171168
  %v844 = vunpack.c.0.s8 %v843
  %v845 = vlaneseq
  %v846 = vshrl.u32 %v845, 7
  %v847 = vsub.s32 %v844, %v846
  %v848 = vrot.slane %v840, %v847
  %v850 = vunpack.c.l.s4 1966171168
  %v851 = vunpack.c.0.s8 %v850
  %v852 = vlaneseq
  %v853 = vshrl.u32 %v852, 7
  %v854 = vsub.s32 %v851, %v853
  %v855 = vrot.slane %v841, %v854
  %v857 = vunpack.c.l.s4 1966171168
  %v858 = vunpack.c.0.s8 %v857
  %v859 = vlaneseq
  %v860 = vshrl.u32 %v859, 7
  %v861 = vsub.s32 %v858, %v860
  %v862 = vrot.slane %v800, %v861
  %v863 = vcombine.low %v848, %v855
  %v865 = vunpack.c.l.s4 1966171168
  %v866 = vunpack.c.0.s8 %v865
  %v867 = vlaneseq
  %v868 = vshrl.u32 %v867, 7
  %v869 = vsub.s32 %v866, %v868
  %v870 = vrot.slane %v863, %v869
  %v872 = vunpack.c.l.s4 1966171168
  %v873 = vunpack.c.0.s8 %v872
  %v874 = vlaneseq
  %v875 = vshrl.u32 %v874, 7
  %v876 = vsub.s32 %v873, %v875
  %v877 = vrot.slane %v862, %v876
  %v878 = vcombine.low %v870, %v877
  %v881 = vpack.c.bf16 %v839, %v839
  %v882 = vpack.c.bf16 %v878, %v878
  %884 = vrot.lane.b32.xlu0 %v881, 96
  %v885 = vpop.permute.xlu0 %884
  %vm886 = vcmask 130048
  %v888 = vsel %vm886, %v881, 0
  %v891 = vsel %vm886, %v885, 0
  %893 = vmatprep.subr.bf16.mxu0 0
  %894 = vmatpush1.bf16.xpose.msra.mxu0 %v891
  %895 = vmatprep.subr.bf16.mxu0 0
  %896 = vmatpush1.bf16.xpose.msra.mxu0 0
  %897 = vmatprep.subr.bf16.mxu0 0
  %898 = vmatpush1.bf16.xpose.msra.mxu0 0
  %899 = vmatprep.subr.bf16.mxu0 0
  %900 = vmatpush1.bf16.xpose.msra.mxu0 0
  %901 = vmatprep.subr.bf16.mxu0 0
  %902 = vmatpush1.bf16.xpose.msra.mxu0 0
  %903 = vmatprep.subr.bf16.mxu0 0
  %904 = vmatpush1.bf16.xpose.msra.mxu0 0
  %905 = vmatprep.subr.bf16.mxu0 0
  %906 = vmatpush1.bf16.xpose.msra.mxu0 0
  %907 = vmatprep.subr.bf16.mxu0 0
  %908 = vmatpush1.bf16.xpose.msra.mxu0 0
  %909 = vmatprep.subr.bf16.mxu0 0
  %910 = vmatpush1.bf16.xpose.msra.mxu0 0
  %911 = vmatprep.subr.bf16.mxu0 0
  %912 = vmatpush1.bf16.xpose.msra.mxu0 0
  %913 = vmatprep.subr.bf16.mxu0 0
  %914 = vmatpush1.bf16.xpose.msra.mxu0 0
  %915 = vmatprep.subr.bf16.mxu0 0
  %916 = vmatpush1.bf16.xpose.msra.mxu0 0
  %917 = vmatprep.subr.bf16.mxu0 0
  %918 = vmatpush1.bf16.xpose.msra.mxu0 0
  %919 = vmatprep.subr.bf16.mxu0 0
  %920 = vmatpush1.bf16.xpose.msra.mxu0 0
  %921 = vmatprep.subr.bf16.mxu0 0
  %922 = vmatpush1.bf16.xpose.msra.mxu0 0
  %923 = vmatprep.subr.bf16.mxu0 0
  %924 = vmatpush1.bf16.xpose.msra.mxu0 0
  %925 = vmatprep.mubr.bf16.mxu0 0
  %926 = vmatmul.mubr.bf16.gmra.mrb[0].mxu0 %v888
  %v927 = vpop.f32.mrb[0].mxu0
  %v928 = vadd.f32 0.0, %v927
  %v929 = vpop.f32.mrb[0].mxu0
  %v930 = vpop.f32.mrb[0].mxu0
  %v931 = vpop.f32.mrb[0].mxu0
  %932 = vdwg.mxu0
  %934 = vrot.lane.b32.xlu0 %v882, 96
  %v935 = vpop.permute.xlu0 %934
  %v937 = vsel %vm886, %v882, 0
  %v940 = vsel %vm886, %v935, 0
  %942 = vmatprep.subr.bf16.mxu0 0
  %943 = vmatpush1.bf16.xpose.msra.mxu0 %v940
  %944 = vmatprep.subr.bf16.mxu0 0
  %945 = vmatpush1.bf16.xpose.msra.mxu0 0
  %946 = vmatprep.subr.bf16.mxu0 0
  %947 = vmatpush1.bf16.xpose.msra.mxu0 0
  %948 = vmatprep.subr.bf16.mxu0 0
  %949 = vmatpush1.bf16.xpose.msra.mxu0 0
  %950 = vmatprep.subr.bf16.mxu0 0
  %951 = vmatpush1.bf16.xpose.msra.mxu0 0
  %952 = vmatprep.subr.bf16.mxu0 0
  %953 = vmatpush1.bf16.xpose.msra.mxu0 0
  %954 = vmatprep.subr.bf16.mxu0 0
  %955 = vmatpush1.bf16.xpose.msra.mxu0 0
  %956 = vmatprep.subr.bf16.mxu0 0
  %957 = vmatpush1.bf16.xpose.msra.mxu0 0
  %958 = vmatprep.subr.bf16.mxu0 0
  %959 = vmatpush1.bf16.xpose.msra.mxu0 0
  %960 = vmatprep.subr.bf16.mxu0 0
  %961 = vmatpush1.bf16.xpose.msra.mxu0 0
  %962 = vmatprep.subr.bf16.mxu0 0
  %963 = vmatpush1.bf16.xpose.msra.mxu0 0
  %964 = vmatprep.subr.bf16.mxu0 0
  %965 = vmatpush1.bf16.xpose.msra.mxu0 0
  %966 = vmatprep.subr.bf16.mxu0 0
  %967 = vmatpush1.bf16.xpose.msra.mxu0 0
  %968 = vmatprep.subr.bf16.mxu0 0
  %969 = vmatpush1.bf16.xpose.msra.mxu0 0
  %970 = vmatprep.subr.bf16.mxu0 0
  %971 = vmatpush1.bf16.xpose.msra.mxu0 0
  %972 = vmatprep.subr.bf16.mxu0 0
  %973 = vmatpush1.bf16.xpose.msra.mxu0 0
  %974 = vmatprep.mubr.bf16.mxu0 0
  %975 = vmatmul.mubr.bf16.gmra.mrb[0].mxu0 %v937
  %v976 = vpop.f32.mrb[0].mxu0
  %v977 = vadd.f32 0.0, %v976
  %v978 = vpop.f32.mrb[0].mxu0
  %v979 = vpop.f32.mrb[0].mxu0
  %v980 = vpop.f32.mrb[0].mxu0
  %981 = vdwg.mxu0
  %vm982 = vcmask 36864
  %v983 = vsel %vm982, %v928, -inf
  %984 = vmax.xlane.f32.xlu0 %v983
  %v985 = vpop.xlane.xlu0 %984
  %v986 = vsel %vm982, %v977, -inf
  %987 = vmax.xlane.f32.xlu0 %v986
  %v988 = vpop.xlane.xlu0 %987
  %v989 = vsub.f32 %v928, %v985
  %v990 = vsub.f32 %v977, %v988
  %v991 = vmul.f32 %v989, 1.442695
  %v992 = vpow.pop %v991
  %v993 = vmul.f32 %v990, 1.442695
  %v994 = vpow.pop %v993
  %v995 = vsel %vm982, %v992, 0.0
  %996 = vadd.xlane.f32.xlu0 %v995
  %v997 = vpop.xlane.xlu0 %996
  %v998 = vsel %vm982, %v994, 0.0
  %999 = vadd.xlane.f32.xlu0 %v998
  %v1000 = vpop.xlane.xlu0 %999
  %v1001 = vrcp.pop %v997
  %v1002 = vrcp.pop %v1000
  %v1003 = vmul.f32 %v992, %v1001
  %v1004 = vmul.f32 %v994, %v1002
  %v1005 = vpack.c.bf16 %v1003, %v1003
  %v1006 = vpack.c.bf16 %v1004, %v1004
  %1007 = vrot.lane.b32.xlu0 %v881, 64
  %v1008 = vpop.permute.xlu0 %1007
  %vm1009 = vcmask 39936
  %v1011 = vsel %vm1009, %v1005, 0
  %vm1013 = vcmask 1041408
  %vm1014 = vcmask 1042432
  %v1015 = vsel %vm1013, 4294967295, 65535
  %v1016 = vsel %vm1014, %v1015, 0
  %v1018 = vand.u32 %v1008, %v1016
  %1020 = vmatprep.subr.bf16.mxu0 0
  %1021 = vmatpush1.bf16.msra.mxu0 %v1018
  %1022 = vmatprep.subr.bf16.mxu0 0
  %1023 = vmatpush1.bf16.msra.mxu0 0
  %1024 = vmatprep.subr.bf16.mxu0 0
  %1025 = vmatpush1.bf16.msra.mxu0 0
  %1026 = vmatprep.subr.bf16.mxu0 0
  %1027 = vmatpush1.bf16.msra.mxu0 0
  %1028 = vmatprep.subr.bf16.mxu0 0
  %1029 = vmatpush1.bf16.msra.mxu0 0
  %1030 = vmatprep.subr.bf16.mxu0 0
  %1031 = vmatpush1.bf16.msra.mxu0 0
  %1032 = vmatprep.subr.bf16.mxu0 0
  %1033 = vmatpush1.bf16.msra.mxu0 0
  %1034 = vmatprep.subr.bf16.mxu0 0
  %1035 = vmatpush1.bf16.msra.mxu0 0
  %1036 = vmatprep.subr.bf16.mxu0 0
  %1037 = vmatpush1.bf16.msra.mxu0 0
  %1038 = vmatprep.subr.bf16.mxu0 0
  %1039 = vmatpush1.bf16.msra.mxu0 0
  %1040 = vmatprep.subr.bf16.mxu0 0
  %1041 = vmatpush1.bf16.msra.mxu0 0
  %1042 = vmatprep.subr.bf16.mxu0 0
  %1043 = vmatpush1.bf16.msra.mxu0 0
  %1044 = vmatprep.subr.bf16.mxu0 0
  %1045 = vmatpush1.bf16.msra.mxu0 0
  %1046 = vmatprep.subr.bf16.mxu0 0
  %1047 = vmatpush1.bf16.msra.mxu0 0
  %1048 = vmatprep.subr.bf16.mxu0 0
  %1049 = vmatpush1.bf16.msra.mxu0 0
  %1050 = vmatprep.subr.bf16.mxu0 0
  %1051 = vmatpush1.bf16.msra.mxu0 0
  %1052 = vmatprep.mubr.bf16.mxu0 0
  %1053 = vmatmul.mubr.bf16.gmra.mrb[0].mxu0 %v1011
  %v1054 = vpop.f32.mrb[0].mxu0
  %v1055 = vadd.f32 0.0, %v1054
  %v1056 = vpop.f32.mrb[0].mxu0
  %v1057 = vpop.f32.mrb[0].mxu0
  %v1058 = vpop.f32.mrb[0].mxu0
  %1059 = vdwg.mxu0
  %1060 = vrot.lane.b32.xlu0 %v882, 64
  %v1061 = vpop.permute.xlu0 %1060
  %v1063 = vsel %vm1009, %v1006, 0
  %v1066 = vand.u32 %v1061, %v1016
  %1068 = vmatprep.subr.bf16.mxu0 0
  %1069 = vmatpush1.bf16.msra.mxu0 %v1066
  %1070 = vmatprep.subr.bf16.mxu0 0
  %1071 = vmatpush1.bf16.msra.mxu0 0
  %1072 = vmatprep.subr.bf16.mxu0 0
  %1073 = vmatpush1.bf16.msra.mxu0 0
  %1074 = vmatprep.subr.bf16.mxu0 0
  %1075 = vmatpush1.bf16.msra.mxu0 0
  %1076 = vmatprep.subr.bf16.mxu0 0
  %1077 = vmatpush1.bf16.msra.mxu0 0
  %1078 = vmatprep.subr.bf16.mxu0 0
  %1079 = vmatpush1.bf16.msra.mxu0 0
  %1080 = vmatprep.subr.bf16.mxu0 0
  %1081 = vmatpush1.bf16.msra.mxu0 0
  %1082 = vmatprep.subr.bf16.mxu0 0
  %1083 = vmatpush1.bf16.msra.mxu0 0
  %1084 = vmatprep.subr.bf16.mxu0 0
  %1085 = vmatpush1.bf16.msra.mxu0 0
  %1086 = vmatprep.subr.bf16.mxu0 0
  %1087 = vmatpush1.bf16.msra.mxu0 0
  %1088 = vmatprep.subr.bf16.mxu0 0
  %1089 = vmatpush1.bf16.msra.mxu0 0
  %1090 = vmatprep.subr.bf16.mxu0 0
  %1091 = vmatpush1.bf16.msra.mxu0 0
  %1092 = vmatprep.subr.bf16.mxu0 0
  %1093 = vmatpush1.bf16.msra.mxu0 0
  %1094 = vmatprep.subr.bf16.mxu0 0
  %1095 = vmatpush1.bf16.msra.mxu0 0
  %1096 = vmatprep.subr.bf16.mxu0 0
  %1097 = vmatpush1.bf16.msra.mxu0 0
  %1098 = vmatprep.subr.bf16.mxu0 0
  %1099 = vmatpush1.bf16.msra.mxu0 0
  %1100 = vmatprep.mubr.bf16.mxu0 0
  %1101 = vmatmul.mubr.bf16.gmra.mrb[0].mxu0 %v1063
  %v1102 = vpop.f32.mrb[0].mxu0
  %v1103 = vadd.f32 0.0, %v1102
  %v1104 = vpop.f32.mrb[0].mxu0
  %v1105 = vpop.f32.mrb[0].mxu0
  %v1106 = vpop.f32.mrb[0].mxu0
  %1107 = vdwg.mxu0
  %1108 = vrot.lane.b32.xlu0 %v881, 112
  %v1109 = vpop.permute.xlu0 %1108
  %1110 = vrot.lane.b32.xlu0 %v881, 80
  %v1111 = vpop.permute.xlu0 %1110
  %v1113 = vsel %vm886, %v1109, 0
  %v1116 = vsel %vm886, %v1111, 0
  %1118 = vmatprep.subr.bf16.mxu0 0
  %1119 = vmatpush1.bf16.xpose.msra.mxu0 %v1116
  %1120 = vmatprep.subr.bf16.mxu0 0
  %1121 = vmatpush1.bf16.xpose.msra.mxu0 0
  %1122 = vmatprep.subr.bf16.mxu0 0
  %1123 = vmatpush1.bf16.xpose.msra.mxu0 0
  %1124 = vmatprep.subr.bf16.mxu0 0
  %1125 = vmatpush1.bf16.xpose.msra.mxu0 0
  %1126 = vmatprep.subr.bf16.mxu0 0
  %1127 = vmatpush1.bf16.xpose.msra.mxu0 0
  %1128 = vmatprep.subr.bf16.mxu0 0
  %1129 = vmatpush1.bf16.xpose.msra.mxu0 0
  %1130 = vmatprep.subr.bf16.mxu0 0
  %1131 = vmatpush1.bf16.xpose.msra.mxu0 0
  %1132 = vmatprep.subr.bf16.mxu0 0
  %1133 = vmatpush1.bf16.xpose.msra.mxu0 0
  %1134 = vmatprep.subr.bf16.mxu0 0
  %1135 = vmatpush1.bf16.xpose.msra.mxu0 0
  %1136 = vmatprep.subr.bf16.mxu0 0
  %1137 = vmatpush1.bf16.xpose.msra.mxu0 0
  %1138 = vmatprep.subr.bf16.mxu0 0
  %1139 = vmatpush1.bf16.xpose.msra.mxu0 0
  %1140 = vmatprep.subr.bf16.mxu0 0
  %1141 = vmatpush1.bf16.xpose.msra.mxu0 0
  %1142 = vmatprep.subr.bf16.mxu0 0
  %1143 = vmatpush1.bf16.xpose.msra.mxu0 0
  %1144 = vmatprep.subr.bf16.mxu0 0
  %1145 = vmatpush1.bf16.xpose.msra.mxu0 0
  %1146 = vmatprep.subr.bf16.mxu0 0
  %1147 = vmatpush1.bf16.xpose.msra.mxu0 0
  %1148 = vmatprep.subr.bf16.mxu0 0
  %1149 = vmatpush1.bf16.xpose.msra.mxu0 0
  %1150 = vmatprep.mubr.bf16.mxu0 0
  %1151 = vmatmul.mubr.bf16.gmra.mrb[0].mxu0 %v1113
  %v1152 = vpop.f32.mrb[0].mxu0
  %v1153 = vadd.f32 0.0, %v1152
  %v1154 = vpop.f32.mrb[0].mxu0
  %v1155 = vpop.f32.mrb[0].mxu0
  %v1156 = vpop.f32.mrb[0].mxu0
  %1157 = vdwg.mxu0
  %1158 = vrot.lane.b32.xlu0 %v882, 112
  %v1159 = vpop.permute.xlu0 %1158
  %1160 = vrot.lane.b32.xlu0 %v882, 80
  %v1161 = vpop.permute.xlu0 %1160
  %v1163 = vsel %vm886, %v1159, 0
  %v1166 = vsel %vm886, %v1161, 0
  %1168 = vmatprep.subr.bf16.mxu0 0
  %1169 = vmatpush1.bf16.xpose.msra.mxu0 %v1166
  %1170 = vmatprep.subr.bf16.mxu0 0
  %1171 = vmatpush1.bf16.xpose.msra.mxu0 0
  %1172 = vmatprep.subr.bf16.mxu0 0
  %1173 = vmatpush1.bf16.xpose.msra.mxu0 0
  %1174 = vmatprep.subr.bf16.mxu0 0
  %1175 = vmatpush1.bf16.xpose.msra.mxu0 0
  %1176 = vmatprep.subr.bf16.mxu0 0
  %1177 = vmatpush1.bf16.xpose.msra.mxu0 0
  %1178 = vmatprep.subr.bf16.mxu0 0
  %1179 = vmatpush1.bf16.xpose.msra.mxu0 0
  %1180 = vmatprep.subr.bf16.mxu0 0
  %1181 = vmatpush1.bf16.xpose.msra.mxu0 0
  %1182 = vmatprep.subr.bf16.mxu0 0
  %1183 = vmatpush1.bf16.xpose.msra.mxu0 0
  %1184 = vmatprep.subr.bf16.mxu0 0
  %1185 = vmatpush1.bf16.xpose.msra.mxu0 0
  %1186 = vmatprep.subr.bf16.mxu0 0
  %1187 = vmatpush1.bf16.xpose.msra.mxu0 0
  %1188 = vmatprep.subr.bf16.mxu0 0
  %1189 = vmatpush1.bf16.xpose.msra.mxu0 0
  %1190 = vmatprep.subr.bf16.mxu0 0
  %1191 = vmatpush1.bf16.xpose.msra.mxu0 0
  %1192 = vmatprep.subr.bf16.mxu0 0
  %1193 = vmatpush1.bf16.xpose.msra.mxu0 0
  %1194 = vmatprep.subr.bf16.mxu0 0
  %1195 = vmatpush1.bf16.xpose.msra.mxu0 0
  %1196 = vmatprep.subr.bf16.mxu0 0
  %1197 = vmatpush1.bf16.xpose.msra.mxu0 0
  %1198 = vmatprep.subr.bf16.mxu0 0
  %1199 = vmatpush1.bf16.xpose.msra.mxu0 0
  %1200 = vmatprep.mubr.bf16.mxu0 0
  %1201 = vmatmul.mubr.bf16.gmra.mrb[0].mxu0 %v1163
  %v1202 = vpop.f32.mrb[0].mxu0
  %v1203 = vadd.f32 0.0, %v1202
  %v1204 = vpop.f32.mrb[0].mxu0
  %v1205 = vpop.f32.mrb[0].mxu0
  %v1206 = vpop.f32.mrb[0].mxu0
  %1207 = vdwg.mxu0
  %v1208 = vsel %vm982, %v1153, -inf
  %1209 = vmax.xlane.f32.xlu0 %v1208
  %v1210 = vpop.xlane.xlu0 %1209
  %v1211 = vsel %vm982, %v1203, -inf
  %1212 = vmax.xlane.f32.xlu0 %v1211
  %v1213 = vpop.xlane.xlu0 %1212
  %v1214 = vsub.f32 %v1153, %v1210
  %v1215 = vsub.f32 %v1203, %v1213
  %v1216 = vmul.f32 %v1214, 1.442695
  %v1217 = vpow.pop %v1216
  %v1218 = vmul.f32 %v1215, 1.442695
  %v1219 = vpow.pop %v1218
  %v1220 = vsel %vm982, %v1217, 0.0
  %1221 = vadd.xlane.f32.xlu0 %v1220
  %v1222 = vpop.xlane.xlu0 %1221
  %v1223 = vsel %vm982, %v1219, 0.0
  %1224 = vadd.xlane.f32.xlu0 %v1223
  %v1225 = vpop.xlane.xlu0 %1224
  %v1226 = vrcp.pop %v1222
  %v1227 = vrcp.pop %v1225
  %v1228 = vmul.f32 %v1217, %v1226
  %v1229 = vmul.f32 %v1219, %v1227
  %v1230 = vpack.c.bf16 %v1228, %v1228
  %v1231 = vpack.c.bf16 %v1229, %v1229
  %1232 = vrot.lane.b32.xlu0 %v881, 48
  %v1233 = vpop.permute.xlu0 %1232
  %v1235 = vsel %vm1009, %v1230, 0
  %v1238 = vand.u32 %v1233, %v1016
  %1240 = vmatprep.subr.bf16.mxu0 0
  %1241 = vmatpush1.bf16.msra.mxu0 %v1238
  %1242 = vmatprep.subr.bf16.mxu0 0
  %1243 = vmatpush1.bf16.msra.mxu0 0
  %1244 = vmatprep.subr.bf16.mxu0 0
  %1245 = vmatpush1.bf16.msra.mxu0 0
  %1246 = vmatprep.subr.bf16.mxu0 0
  %1247 = vmatpush1.bf16.msra.mxu0 0
  %1248 = vmatprep.subr.bf16.mxu0 0
  %1249 = vmatpush1.bf16.msra.mxu0 0
  %1250 = vmatprep.subr.bf16.mxu0 0
  %1251 = vmatpush1.bf16.msra.mxu0 0
  %1252 = vmatprep.subr.bf16.mxu0 0
  %1253 = vmatpush1.bf16.msra.mxu0 0
  %1254 = vmatprep.subr.bf16.mxu0 0
  %1255 = vmatpush1.bf16.msra.mxu0 0
  %1256 = vmatprep.subr.bf16.mxu0 0
  %1257 = vmatpush1.bf16.msra.mxu0 0
  %1258 = vmatprep.subr.bf16.mxu0 0
  %1259 = vmatpush1.bf16.msra.mxu0 0
  %1260 = vmatprep.subr.bf16.mxu0 0
  %1261 = vmatpush1.bf16.msra.mxu0 0
  %1262 = vmatprep.subr.bf16.mxu0 0
  %1263 = vmatpush1.bf16.msra.mxu0 0
  %1264 = vmatprep.subr.bf16.mxu0 0
  %1265 = vmatpush1.bf16.msra.mxu0 0
  %1266 = vmatprep.subr.bf16.mxu0 0
  %1267 = vmatpush1.bf16.msra.mxu0 0
  %1268 = vmatprep.subr.bf16.mxu0 0
  %1269 = vmatpush1.bf16.msra.mxu0 0
  %1270 = vmatprep.subr.bf16.mxu0 0
  %1271 = vmatpush1.bf16.msra.mxu0 0
  %1272 = vmatprep.mubr.bf16.mxu0 0
  %1273 = vmatmul.mubr.bf16.gmra.mrb[0].mxu0 %v1235
  %v1274 = vpop.f32.mrb[0].mxu0
  %v1275 = vadd.f32 0.0, %v1274
  %v1276 = vpop.f32.mrb[0].mxu0
  %v1277 = vpop.f32.mrb[0].mxu0
  %v1278 = vpop.f32.mrb[0].mxu0
  %1279 = vdwg.mxu0
  %1280 = vrot.lane.b32.xlu0 %v882, 48
  %v1281 = vpop.permute.xlu0 %1280
  %v1283 = vsel %vm1009, %v1231, 0
  %v1286 = vand.u32 %v1281, %v1016
  %1288 = vmatprep.subr.bf16.mxu0 0
  %1289 = vmatpush1.bf16.msra.mxu0 %v1286
  %1290 = vmatprep.subr.bf16.mxu0 0
  %1291 = vmatpush1.bf16.msra.mxu0 0
  %1292 = vmatprep.subr.bf16.mxu0 0
  %1293 = vmatpush1.bf16.msra.mxu0 0
  %1294 = vmatprep.subr.bf16.mxu0 0
  %1295 = vmatpush1.bf16.msra.mxu0 0
  %1296 = vmatprep.subr.bf16.mxu0 0
  %1297 = vmatpush1.bf16.msra.mxu0 0
  %1298 = vmatprep.subr.bf16.mxu0 0
  %1299 = vmatpush1.bf16.msra.mxu0 0
  %1300 = vmatprep.subr.bf16.mxu0 0
  %1301 = vmatpush1.bf16.msra.mxu0 0
  %1302 = vmatprep.subr.bf16.mxu0 0
  %1303 = vmatpush1.bf16.msra.mxu0 0
  %1304 = vmatprep.subr.bf16.mxu0 0
  %1305 = vmatpush1.bf16.msra.mxu0 0
  %1306 = vmatprep.subr.bf16.mxu0 0
  %1307 = vmatpush1.bf16.msra.mxu0 0
  %1308 = vmatprep.subr.bf16.mxu0 0
  %1309 = vmatpush1.bf16.msra.mxu0 0
  %1310 = vmatprep.subr.bf16.mxu0 0
  %1311 = vmatpush1.bf16.msra.mxu0 0
  %1312 = vmatprep.subr.bf16.mxu0 0
  %1313 = vmatpush1.bf16.msra.mxu0 0
  %1314 = vmatprep.subr.bf16.mxu0 0
  %1315 = vmatpush1.bf16.msra.mxu0 0
  %1316 = vmatprep.subr.bf16.mxu0 0
  %1317 = vmatpush1.bf16.msra.mxu0 0
  %1318 = vmatprep.subr.bf16.mxu0 0
  %1319 = vmatpush1.bf16.msra.mxu0 0
  %1320 = vmatprep.mubr.bf16.mxu0 0
  %1321 = vmatmul.mubr.bf16.gmra.mrb[0].mxu0 %v1283
  %v1322 = vpop.f32.mrb[0].mxu0
  %v1323 = vadd.f32 0.0, %v1322
  %v1324 = vpop.f32.mrb[0].mxu0
  %v1325 = vpop.f32.mrb[0].mxu0
  %v1326 = vpop.f32.mrb[0].mxu0
  %1327 = vdwg.mxu0
  %1330 = vrot.lane.b32.xlu0 %v1275, 16
  %v1331 = vpop.permute.xlu0 %1330
  %1332 = vrot.lane.b32.xlu0 %v1323, 16
  %v1333 = vpop.permute.xlu0 %1332
  %v1336 = vsel %vm886, %v1055, %v1331
  %v1337 = vsel %vm886, %v1103, %v1333
  %v1340 = vcombine.high %v1336, %v1336
  %v1342 = vunpack.c.l.s4 1966171168
  %v1343 = vunpack.c.0.s8 %v1342
  %v1344 = vlaneseq
  %v1345 = vshrl.u32 %v1344, 7
  %v1346 = vsub.s32 %v1343, %v1345
  %v1347 = vrot.slane %v1336, %v1346
  %v1349 = vunpack.c.l.s4 1966171168
  %v1350 = vunpack.c.0.s8 %v1349
  %v1351 = vlaneseq
  %v1352 = vshrl.u32 %v1351, 7
  %v1353 = vsub.s32 %v1350, %v1352
  %v1354 = vrot.slane %v1340, %v1353
  %v1355 = vcombine.high %v1347, %v1347
  %v1357 = vunpack.c.l.s4 1966171168
  %v1358 = vunpack.c.0.s8 %v1357
  %v1359 = vlaneseq
  %v1360 = vshrl.u32 %v1359, 7
  %v1361 = vsub.s32 %v1358, %v1360
  %v1362 = vrot.slane %v1347, %v1361
  %v1364 = vunpack.c.l.s4 1966171168
  %v1365 = vunpack.c.0.s8 %v1364
  %v1366 = vlaneseq
  %v1367 = vshrl.u32 %v1366, 7
  %v1368 = vsub.s32 %v1365, %v1367
  %v1369 = vrot.slane %v1354, %v1368
  %v1371 = vunpack.c.l.s4 1966171168
  %v1372 = vunpack.c.0.s8 %v1371
  %v1373 = vlaneseq
  %v1374 = vshrl.u32 %v1373, 7
  %v1375 = vsub.s32 %v1372, %v1374
  %v1376 = vrot.slane %v1355, %v1375
  %v1377 = vcombine.high %v1362, %v1362
  %v1378 = vcombine.high %v1376, %v1376
  %v1379 = vcombine.high %v1337, %v1337
  %v1381 = vunpack.c.l.s4 1966171168
  %v1382 = vunpack.c.0.s8 %v1381
  %v1383 = vlaneseq
  %v1384 = vshrl.u32 %v1383, 7
  %v1385 = vsub.s32 %v1382, %v1384
  %v1386 = vrot.slane %v1337, %v1385
  %v1388 = vunpack.c.l.s4 1966171168
  %v1389 = vunpack.c.0.s8 %v1388
  %v1390 = vlaneseq
  %v1391 = vshrl.u32 %v1390, 7
  %v1392 = vsub.s32 %v1389, %v1391
  %v1393 = vrot.slane %v1379, %v1392
  %v1394 = vcombine.high %v1386, %v1386
  %v1396 = vunpack.c.l.s4 1966171168
  %v1397 = vunpack.c.0.s8 %v1396
  %v1398 = vlaneseq
  %v1399 = vshrl.u32 %v1398, 7
  %v1400 = vsub.s32 %v1397, %v1399
  %v1401 = vrot.slane %v1386, %v1400
  %v1403 = vunpack.c.l.s4 1966171168
  %v1404 = vunpack.c.0.s8 %v1403
  %v1405 = vlaneseq
  %v1406 = vshrl.u32 %v1405, 7
  %v1407 = vsub.s32 %v1404, %v1406
  %v1408 = vrot.slane %v1393, %v1407
  %v1410 = vunpack.c.l.s4 1966171168
  %v1411 = vunpack.c.0.s8 %v1410
  %v1412 = vlaneseq
  %v1413 = vshrl.u32 %v1412, 7
  %v1414 = vsub.s32 %v1411, %v1413
  %v1415 = vrot.slane %v1394, %v1414
  %v1416 = vcombine.high %v1401, %v1401
  %v1417 = vcombine.high %v1415, %v1415
  %v1418 = vcombine.low %v1362, %v1376
  %v1419 = vcombine.low %v1377, %v1378
  %v1420 = vcombine.low %v1369, %v1401
  %v1421 = vcombine.low %v1415, %v1416
  %v1423 = vunpack.c.l.s4 1966171168
  %v1424 = vunpack.c.0.s8 %v1423
  %v1425 = vlaneseq
  %v1426 = vshrl.u32 %v1425, 7
  %v1427 = vsub.s32 %v1424, %v1426
  %v1428 = vrot.slane %v1418, %v1427
  %v1430 = vunpack.c.l.s4 1966171168
  %v1431 = vunpack.c.0.s8 %v1430
  %v1432 = vlaneseq
  %v1433 = vshrl.u32 %v1432, 7
  %v1434 = vsub.s32 %v1431, %v1433
  %v1435 = vrot.slane %v1419, %v1434
  %v1437 = vunpack.c.l.s4 1966171168
  %v1438 = vunpack.c.0.s8 %v1437
  %v1439 = vlaneseq
  %v1440 = vshrl.u32 %v1439, 7
  %v1441 = vsub.s32 %v1438, %v1440
  %v1442 = vrot.slane %v1420, %v1441
  %v1444 = vunpack.c.l.s4 1966171168
  %v1445 = vunpack.c.0.s8 %v1444
  %v1446 = vlaneseq
  %v1447 = vshrl.u32 %v1446, 7
  %v1448 = vsub.s32 %v1445, %v1447
  %v1449 = vrot.slane %v1421, %v1448
  %v1450 = vcombine.low %v1428, %v1435
  %v1451 = vcombine.low %v1442, %v1449
  %v1453 = vunpack.c.l.s4 1966171168
  %v1454 = vunpack.c.0.s8 %v1453
  %v1455 = vlaneseq
  %v1456 = vshrl.u32 %v1455, 7
  %v1457 = vsub.s32 %v1454, %v1456
  %v1458 = vrot.slane %v1450, %v1457
  %v1460 = vunpack.c.l.s4 1966171168
  %v1461 = vunpack.c.0.s8 %v1460
  %v1462 = vlaneseq
  %v1463 = vshrl.u32 %v1462, 7
  %v1464 = vsub.s32 %v1461, %v1463
  %v1465 = vrot.slane %v1451, %v1464
  %v1466 = vcombine.low %v1458, %v1465
  %v1467 = vcombine.low %v1417, %v1408
  %v1469 = vunpack.c.l.s4 1966171168
  %v1470 = vunpack.c.0.s8 %v1469
  %v1471 = vlaneseq
  %v1472 = vshrl.u32 %v1471, 7
  %v1473 = vsub.s32 %v1470, %v1472
  %v1474 = vrot.slane %v1467, %v1473
  %v1476 = vunpack.c.l.s4 1966171168
  %v1477 = vunpack.c.0.s8 %v1476
  %v1478 = vlaneseq
  %v1479 = vshrl.u32 %v1478, 7
  %v1480 = vsub.s32 %v1477, %v1479
  %v1481 = vrot.slane %v1474, %v1480
  %v1484 = vpack.c.bf16 %v1481, %v1466
  %v1485 = vld [vmem:[%s5] sm:$0xf]
  %v1486 = vld [vmem:[%s5 + $0x4] sm:$0xf]
  %v1487 = vld [vmem:[%s5 + $0x8] sm:$0xf]
  %v1488 = vld [vmem:[%s5 + $0xc] sm:$0xf]
  %v1489 = vld [vmem:[%s6] sm:$0x1]
  %v1491 = vlaneseq
  %v1492 = vshrl.u32 %v1491, 7
  %v1493 = vsub.s32 0, %v1492
  %v1494 = vrot.slane %v1489, %v1493
  %v1500 = vunpack.c.l.b16 %v1485
  %v1501 = vunpack.c.l.b16 %v1486
  %v1502 = vunpack.c.l.b16 %v1487
  %v1503 = vunpack.c.l.b16 %v1488
  %v1504 = vpack.c.b16 %v1501, %v1500
  %v1505 = vpack.c.b16 %v1503, %v1502
  %v1509 = vsel %vm214, %v1484, 0
  %1511 = vmatprep.subr.bf16.mxu0 0
  %1512 = vmatpush1.bf16.msra.mxu0 %v1504
  %1513 = vmatprep.subr.bf16.mxu0 0
  %1514 = vmatpush1.bf16.msra.mxu0 %v1505
  %1515 = vmatprep.subr.bf16.mxu0 0
  %1516 = vmatpush1.bf16.msra.mxu0 0
  %1517 = vmatprep.subr.bf16.mxu0 0
  %1518 = vmatpush1.bf16.msra.mxu0 0
  %1519 = vmatprep.subr.bf16.mxu0 0
  %1520 = vmatpush1.bf16.msra.mxu0 0
  %1521 = vmatprep.subr.bf16.mxu0 0
  %1522 = vmatpush1.bf16.msra.mxu0 0
  %1523 = vmatprep.subr.bf16.mxu0 0
  %1524 = vmatpush1.bf16.msra.mxu0 0
  %1525 = vmatprep.subr.bf16.mxu0 0
  %1526 = vmatpush1.bf16.msra.mxu0 0
  %1527 = vmatprep.subr.bf16.mxu0 0
  %1528 = vmatpush1.bf16.msra.mxu0 0
  %1529 = vmatprep.subr.bf16.mxu0 0
  %1530 = vmatpush1.bf16.msra.mxu0 0
  %1531 = vmatprep.subr.bf16.mxu0 0
  %1532 = vmatpush1.bf16.msra.mxu0 0
  %1533 = vmatprep.subr.bf16.mxu0 0
  %1534 = vmatpush1.bf16.msra.mxu0 0
  %1535 = vmatprep.subr.bf16.mxu0 0
  %1536 = vmatpush1.bf16.msra.mxu0 0
  %1537 = vmatprep.subr.bf16.mxu0 0
  %1538 = vmatpush1.bf16.msra.mxu0 0
  %1539 = vmatprep.subr.bf16.mxu0 0
  %1540 = vmatpush1.bf16.msra.mxu0 0
  %1541 = vmatprep.subr.bf16.mxu0 0
  %1542 = vmatpush1.bf16.msra.mxu0 0
  %1543 = vmatprep.mubr.bf16.mxu0 0
  %1544 = vmatmul.mubr.bf16.gmra.mrb[0].mxu0 %v1509
  %v1545 = vpop.f32.mrb[0].mxu0
  %v1546 = vadd.f32 %v1494, %v1545
  %v1547 = vpop.f32.mrb[0].mxu0
  %v1548 = vpop.f32.mrb[0].mxu0
  %v1549 = vadd.f32 %v1494, %v1548
  %v1550 = vpop.f32.mrb[0].mxu0
  %1551 = vdwg.mxu0
  %v1554 = vcombine.high %v1546, %v1546
  %v1556 = vunpack.c.l.s4 1966171168
  %v1557 = vunpack.c.0.s8 %v1556
  %v1558 = vlaneseq
  %v1559 = vshrl.u32 %v1558, 7
  %v1560 = vsub.s32 %v1557, %v1559
  %v1561 = vrot.slane %v1546, %v1560
  %v1563 = vunpack.c.l.s4 1966171168
  %v1564 = vunpack.c.0.s8 %v1563
  %v1565 = vlaneseq
  %v1566 = vshrl.u32 %v1565, 7
  %v1567 = vsub.s32 %v1564, %v1566
  %v1568 = vrot.slane %v1554, %v1567
  %v1569 = vcombine.high %v1561, %v1561
  %v1570 = vcombine.high %v1568, %v1568
  %v1572 = vunpack.c.l.s4 1966171168
  %v1573 = vunpack.c.0.s8 %v1572
  %v1574 = vlaneseq
  %v1575 = vshrl.u32 %v1574, 7
  %v1576 = vsub.s32 %v1573, %v1575
  %v1577 = vrot.slane %v1561, %v1576
  %v1579 = vunpack.c.l.s4 1966171168
  %v1580 = vunpack.c.0.s8 %v1579
  %v1581 = vlaneseq
  %v1582 = vshrl.u32 %v1581, 7
  %v1583 = vsub.s32 %v1580, %v1582
  %v1584 = vrot.slane %v1568, %v1583
  %v1586 = vunpack.c.l.s4 1966171168
  %v1587 = vunpack.c.0.s8 %v1586
  %v1588 = vlaneseq
  %v1589 = vshrl.u32 %v1588, 7
  %v1590 = vsub.s32 %v1587, %v1589
  %v1591 = vrot.slane %v1569, %v1590
  %v1593 = vunpack.c.l.s4 1966171168
  %v1594 = vunpack.c.0.s8 %v1593
  %v1595 = vlaneseq
  %v1596 = vshrl.u32 %v1595, 7
  %v1597 = vsub.s32 %v1594, %v1596
  %v1598 = vrot.slane %v1570, %v1597
  %v1599 = vcombine.high %v1577, %v1577
  %v1600 = vcombine.high %v1584, %v1584
  %v1601 = vcombine.high %v1591, %v1591
  %v1602 = vcombine.high %v1598, %v1598
  %v1604 = vunpack.c.l.s4 1966171168
  %v1605 = vunpack.c.0.s8 %v1604
  %v1606 = vlaneseq
  %v1607 = vshrl.u32 %v1606, 7
  %v1608 = vsub.s32 %v1605, %v1607
  %v1609 = vrot.slane %v1549, %v1608
  %v1610 = vcombine.high %v1609, %v1609
  %v1612 = vunpack.c.l.s4 1966171168
  %v1613 = vunpack.c.0.s8 %v1612
  %v1614 = vlaneseq
  %v1615 = vshrl.u32 %v1614, 7
  %v1616 = vsub.s32 %v1613, %v1615
  %v1617 = vrot.slane %v1609, %v1616
  %v1619 = vunpack.c.l.s4 1966171168
  %v1620 = vunpack.c.0.s8 %v1619
  %v1621 = vlaneseq
  %v1622 = vshrl.u32 %v1621, 7
  %v1623 = vsub.s32 %v1620, %v1622
  %v1624 = vrot.slane %v1610, %v1623
  %v1635 = vadd.f32 %v80, %v1577
  %v1636 = vadd.f32 %v94, %v1591
  %v1637 = vadd.f32 %v95, %v1599
  %v1638 = vadd.f32 %v96, %v1601
  %v1639 = vadd.f32 %v87, %v1584
  %v1640 = vadd.f32 %v119, %v1598
  %v1641 = vadd.f32 %v133, %v1600
  %v1642 = vadd.f32 %v134, %v1602
  %v1643 = vadd.f32 %v135, %v1617
  %v1644 = vadd.f32 %v126, %v1624
  %v1645 = vld [vmem:[%s7] sm:$0x1]
  %v1646 = vld [vmem:[%s8] sm:$0x1]
  %v1657 = vcombine.low %v1635, %v1636
  %v1658 = vcombine.low %v1637, %v1638
  %v1659 = vcombine.low %v1639, %v1640
  %v1660 = vcombine.low %v1641, %v1642
  %v1662 = vunpack.c.l.s4 1966171168
  %v1663 = vunpack.c.0.s8 %v1662
  %v1664 = vlaneseq
  %v1665 = vshrl.u32 %v1664, 7
  %v1666 = vsub.s32 %v1663, %v1665
  %v1667 = vrot.slane %v1657, %v1666
  %v1669 = vunpack.c.l.s4 1966171168
  %v1670 = vunpack.c.0.s8 %v1669
  %v1671 = vlaneseq
  %v1672 = vshrl.u32 %v1671, 7
  %v1673 = vsub.s32 %v1670, %v1672
  %v1674 = vrot.slane %v1658, %v1673
  %v1676 = vunpack.c.l.s4 1966171168
  %v1677 = vunpack.c.0.s8 %v1676
  %v1678 = vlaneseq
  %v1679 = vshrl.u32 %v1678, 7
  %v1680 = vsub.s32 %v1677, %v1679
  %v1681 = vrot.slane %v1659, %v1680
  %v1683 = vunpack.c.l.s4 1966171168
  %v1684 = vunpack.c.0.s8 %v1683
  %v1685 = vlaneseq
  %v1686 = vshrl.u32 %v1685, 7
  %v1687 = vsub.s32 %v1684, %v1686
  %v1688 = vrot.slane %v1660, %v1687
  %v1689 = vcombine.low %v1667, %v1674
  %v1690 = vcombine.low %v1681, %v1688
  %v1692 = vunpack.c.l.s4 1966171168
  %v1693 = vunpack.c.0.s8 %v1692
  %v1694 = vlaneseq
  %v1695 = vshrl.u32 %v1694, 7
  %v1696 = vsub.s32 %v1693, %v1695
  %v1697 = vrot.slane %v1689, %v1696
  %v1699 = vunpack.c.l.s4 1966171168
  %v1700 = vunpack.c.0.s8 %v1699
  %v1701 = vlaneseq
  %v1702 = vshrl.u32 %v1701, 7
  %v1703 = vsub.s32 %v1700, %v1702
  %v1704 = vrot.slane %v1690, %v1703
  %v1705 = vcombine.low %v1697, %v1704
  %v1706 = vcombine.low %v1643, %v1644
  %v1708 = vunpack.c.l.s4 1966171168
  %v1709 = vunpack.c.0.s8 %v1708
  %v1710 = vlaneseq
  %v1711 = vshrl.u32 %v1710, 7
  %v1712 = vsub.s32 %v1709, %v1711
  %v1713 = vrot.slane %v1706, %v1712
  %v1715 = vunpack.c.l.s4 1966171168
  %v1716 = vunpack.c.0.s8 %v1715
  %v1717 = vlaneseq
  %v1718 = vshrl.u32 %v1717, 7
  %v1719 = vsub.s32 %v1716, %v1718
  %v1720 = vrot.slane %v1713, %v1719
  %v1723 = vsel %vm214, %v1705, 0.0
  %1724 = vadd.xlane.f32.xlu0 %v1723
  %v1725 = vpop.xlane.xlu0 %1724
  %v1726 = vsel %vm218, %v1720, 0.0
  %1727 = vadd.xlane.f32.xlu0 %v1726
  %v1728 = vpop.xlane.xlu0 %1727
  %v1729 = vmul.f32 %v1725, %v222
  %v1730 = vmul.f32 %v1728, %v222
  %v1733 = vlaneseq
  %v1734 = vshrl.u32 %v1733, 7
  %v1735 = vsub.s32 0, %v1734
  %v1736 = vrot.slane %v1729, %v1735
  %v1737 = vlaneseq
  %v1738 = vshrl.u32 %v1737, 7
  %v1739 = vsub.s32 1, %v1738
  %v1740 = vrot.slane %v1729, %v1739
  %v1741 = vlaneseq
  %v1742 = vshrl.u32 %v1741, 7
  %v1743 = vsub.s32 2, %v1742
  %v1744 = vrot.slane %v1729, %v1743
  %v1745 = vlaneseq
  %v1746 = vshrl.u32 %v1745, 7
  %v1747 = vsub.s32 3, %v1746
  %v1748 = vrot.slane %v1729, %v1747
  %v1749 = vlaneseq
  %v1750 = vshrl.u32 %v1749, 7
  %v1751 = vsub.s32 4, %v1750
  %v1752 = vrot.slane %v1729, %v1751
  %v1753 = vlaneseq
  %v1754 = vshrl.u32 %v1753, 7
  %v1755 = vsub.s32 5, %v1754
  %v1756 = vrot.slane %v1729, %v1755
  %v1757 = vlaneseq
  %v1758 = vshrl.u32 %v1757, 7
  %v1759 = vsub.s32 6, %v1758
  %v1760 = vrot.slane %v1729, %v1759
  %v1761 = vlaneseq
  %v1762 = vshrl.u32 %v1761, 7
  %v1763 = vsub.s32 7, %v1762
  %v1764 = vrot.slane %v1729, %v1763
  %v1765 = vlaneseq
  %v1766 = vshrl.u32 %v1765, 7
  %v1767 = vsub.s32 0, %v1766
  %v1768 = vrot.slane %v1730, %v1767
  %v1769 = vlaneseq
  %v1770 = vshrl.u32 %v1769, 7
  %v1771 = vsub.s32 1, %v1770
  %v1772 = vrot.slane %v1730, %v1771
  %v1783 = vsub.f32 %v1635, %v1736
  %v1784 = vsub.f32 %v1636, %v1740
  %v1785 = vsub.f32 %v1637, %v1744
  %v1786 = vsub.f32 %v1638, %v1748
  %v1787 = vsub.f32 %v1639, %v1752
  %v1788 = vsub.f32 %v1640, %v1756
  %v1789 = vsub.f32 %v1641, %v1760
  %v1790 = vsub.f32 %v1642, %v1764
  %v1791 = vsub.f32 %v1643, %v1768
  %v1792 = vsub.f32 %v1644, %v1772
  %v1793 = vmul.f32 %v1783, %v1783
  %v1794 = vmul.f32 %v1784, %v1784
  %v1795 = vmul.f32 %v1785, %v1785
  %v1796 = vmul.f32 %v1786, %v1786
  %v1797 = vmul.f32 %v1787, %v1787
  %v1798 = vmul.f32 %v1788, %v1788
  %v1799 = vmul.f32 %v1789, %v1789
  %v1800 = vmul.f32 %v1790, %v1790
  %v1801 = vmul.f32 %v1791, %v1791
  %v1802 = vmul.f32 %v1792, %v1792
  %v1813 = vcombine.low %v1793, %v1794
  %v1814 = vcombine.low %v1795, %v1796
  %v1815 = vcombine.low %v1797, %v1798
  %v1816 = vcombine.low %v1799, %v1800
  %v1818 = vunpack.c.l.s4 1966171168
  %v1819 = vunpack.c.0.s8 %v1818
  %v1820 = vlaneseq
  %v1821 = vshrl.u32 %v1820, 7
  %v1822 = vsub.s32 %v1819, %v1821
  %v1823 = vrot.slane %v1813, %v1822
  %v1825 = vunpack.c.l.s4 1966171168
  %v1826 = vunpack.c.0.s8 %v1825
  %v1827 = vlaneseq
  %v1828 = vshrl.u32 %v1827, 7
  %v1829 = vsub.s32 %v1826, %v1828
  %v1830 = vrot.slane %v1814, %v1829
  %v1832 = vunpack.c.l.s4 1966171168
  %v1833 = vunpack.c.0.s8 %v1832
  %v1834 = vlaneseq
  %v1835 = vshrl.u32 %v1834, 7
  %v1836 = vsub.s32 %v1833, %v1835
  %v1837 = vrot.slane %v1815, %v1836
  %v1839 = vunpack.c.l.s4 1966171168
  %v1840 = vunpack.c.0.s8 %v1839
  %v1841 = vlaneseq
  %v1842 = vshrl.u32 %v1841, 7
  %v1843 = vsub.s32 %v1840, %v1842
  %v1844 = vrot.slane %v1816, %v1843
  %v1845 = vcombine.low %v1823, %v1830
  %v1846 = vcombine.low %v1837, %v1844
  %v1848 = vunpack.c.l.s4 1966171168
  %v1849 = vunpack.c.0.s8 %v1848
  %v1850 = vlaneseq
  %v1851 = vshrl.u32 %v1850, 7
  %v1852 = vsub.s32 %v1849, %v1851
  %v1853 = vrot.slane %v1845, %v1852
  %v1855 = vunpack.c.l.s4 1966171168
  %v1856 = vunpack.c.0.s8 %v1855
  %v1857 = vlaneseq
  %v1858 = vshrl.u32 %v1857, 7
  %v1859 = vsub.s32 %v1856, %v1858
  %v1860 = vrot.slane %v1846, %v1859
  %v1861 = vcombine.low %v1853, %v1860
  %v1862 = vcombine.low %v1801, %v1802
  %v1864 = vunpack.c.l.s4 1966171168
  %v1865 = vunpack.c.0.s8 %v1864
  %v1866 = vlaneseq
  %v1867 = vshrl.u32 %v1866, 7
  %v1868 = vsub.s32 %v1865, %v1867
  %v1869 = vrot.slane %v1862, %v1868
  %v1871 = vunpack.c.l.s4 1966171168
  %v1872 = vunpack.c.0.s8 %v1871
  %v1873 = vlaneseq
  %v1874 = vshrl.u32 %v1873, 7
  %v1875 = vsub.s32 %v1872, %v1874
  %v1876 = vrot.slane %v1869, %v1875
  %v1879 = vsel %vm214, %v1861, 0.0
  %1880 = vadd.xlane.f32.xlu0 %v1879
  %v1881 = vpop.xlane.xlu0 %1880
  %v1882 = vsel %vm218, %v1876, 0.0
  %1883 = vadd.xlane.f32.xlu0 %v1882
  %v1884 = vpop.xlane.xlu0 %1883
  %v1885 = vmul.f32 %v1881, %v222
  %v1886 = vmul.f32 %v1884, %v222
  %v1887 = vadd.f32 %v1885, 1e-05
  %v1888 = vadd.f32 %v1886, 1e-05
  %v1889 = vrsqrt.pop %v1887
  %v1890 = vrsqrt.pop %v1888
  %v1893 = vlaneseq
  %v1894 = vshrl.u32 %v1893, 7
  %v1895 = vsub.s32 0, %v1894
  %v1896 = vrot.slane %v1889, %v1895
  %v1897 = vlaneseq
  %v1898 = vshrl.u32 %v1897, 7
  %v1899 = vsub.s32 1, %v1898
  %v1900 = vrot.slane %v1889, %v1899
  %v1901 = vlaneseq
  %v1902 = vshrl.u32 %v1901, 7
  %v1903 = vsub.s32 2, %v1902
  %v1904 = vrot.slane %v1889, %v1903
  %v1905 = vlaneseq
  %v1906 = vshrl.u32 %v1905, 7
  %v1907 = vsub.s32 3, %v1906
  %v1908 = vrot.slane %v1889, %v1907
  %v1909 = vlaneseq
  %v1910 = vshrl.u32 %v1909, 7
  %v1911 = vsub.s32 4, %v1910
  %v1912 = vrot.slane %v1889, %v1911
  %v1913 = vlaneseq
  %v1914 = vshrl.u32 %v1913, 7
  %v1915 = vsub.s32 5, %v1914
  %v1916 = vrot.slane %v1889, %v1915
  %v1917 = vlaneseq
  %v1918 = vshrl.u32 %v1917, 7
  %v1919 = vsub.s32 6, %v1918
  %v1920 = vrot.slane %v1889, %v1919
  %v1921 = vlaneseq
  %v1922 = vshrl.u32 %v1921, 7
  %v1923 = vsub.s32 7, %v1922
  %v1924 = vrot.slane %v1889, %v1923
  %v1925 = vlaneseq
  %v1926 = vshrl.u32 %v1925, 7
  %v1927 = vsub.s32 0, %v1926
  %v1928 = vrot.slane %v1890, %v1927
  %v1929 = vlaneseq
  %v1930 = vshrl.u32 %v1929, 7
  %v1931 = vsub.s32 1, %v1930
  %v1932 = vrot.slane %v1890, %v1931
  %v1943 = vmul.f32 %v1783, %v1896
  %v1944 = vmul.f32 %v1784, %v1900
  %v1945 = vmul.f32 %v1785, %v1904
  %v1946 = vmul.f32 %v1786, %v1908
  %v1947 = vmul.f32 %v1787, %v1912
  %v1948 = vmul.f32 %v1788, %v1916
  %v1949 = vmul.f32 %v1789, %v1920
  %v1950 = vmul.f32 %v1790, %v1924
  %v1951 = vmul.f32 %v1791, %v1928
  %v1952 = vmul.f32 %v1792, %v1932
  %v1954 = vlaneseq
  %v1955 = vshrl.u32 %v1954, 7
  %v1956 = vsub.s32 0, %v1955
  %v1957 = vrot.slane %v1645, %v1956
  %v1958 = vcombine.high %v1957, %v1957
  %v1960 = vunpack.c.l.s4 1966171168
  %v1961 = vunpack.c.0.s8 %v1960
  %v1962 = vlaneseq
  %v1963 = vshrl.u32 %v1962, 7
  %v1964 = vsub.s32 %v1961, %v1963
  %v1965 = vrot.slane %v1957, %v1964
  %v1967 = vunpack.c.l.s4 1966171168
  %v1968 = vunpack.c.0.s8 %v1967
  %v1969 = vlaneseq
  %v1970 = vshrl.u32 %v1969, 7
  %v1971 = vsub.s32 %v1968, %v1970
  %v1972 = vrot.slane %v1958, %v1971
  %v1973 = vcombine.high %v1965, %v1965
  %v1974 = vcombine.high %v1972, %v1972
  %v1976 = vunpack.c.l.s4 1966171168
  %v1977 = vunpack.c.0.s8 %v1976
  %v1978 = vlaneseq
  %v1979 = vshrl.u32 %v1978, 7
  %v1980 = vsub.s32 %v1977, %v1979
  %v1981 = vrot.slane %v1965, %v1980
  %v1983 = vunpack.c.l.s4 1966171168
  %v1984 = vunpack.c.0.s8 %v1983
  %v1985 = vlaneseq
  %v1986 = vshrl.u32 %v1985, 7
  %v1987 = vsub.s32 %v1984, %v1986
  %v1988 = vrot.slane %v1972, %v1987
  %v1990 = vunpack.c.l.s4 1966171168
  %v1991 = vunpack.c.0.s8 %v1990
  %v1992 = vlaneseq
  %v1993 = vshrl.u32 %v1992, 7
  %v1994 = vsub.s32 %v1991, %v1993
  %v1995 = vrot.slane %v1973, %v1994
  %v1997 = vunpack.c.l.s4 1966171168
  %v1998 = vunpack.c.0.s8 %v1997
  %v1999 = vlaneseq
  %v2000 = vshrl.u32 %v1999, 7
  %v2001 = vsub.s32 %v1998, %v2000
  %v2002 = vrot.slane %v1974, %v2001
  %v2003 = vcombine.high %v1981, %v1981
  %v2004 = vcombine.high %v1988, %v1988
  %v2005 = vcombine.high %v1995, %v1995
  %v2006 = vcombine.high %v2002, %v2002
  %v2015 = vmul.f32 %v1943, %v1981
  %v2016 = vmul.f32 %v1944, %v1995
  %v2017 = vmul.f32 %v1945, %v2003
  %v2018 = vmul.f32 %v1946, %v2005
  %v2019 = vmul.f32 %v1947, %v1988
  %v2020 = vmul.f32 %v1948, %v2002
  %v2021 = vmul.f32 %v1949, %v2004
  %v2022 = vmul.f32 %v1950, %v2006
  %v2023 = vmul.f32 %v1951, %v1981
  %v2024 = vmul.f32 %v1952, %v1995
  %v2026 = vlaneseq
  %v2027 = vshrl.u32 %v2026, 7
  %v2028 = vsub.s32 0, %v2027
  %v2029 = vrot.slane %v1646, %v2028
  %v2030 = vcombine.high %v2029, %v2029
  %v2032 = vunpack.c.l.s4 1966171168
  %v2033 = vunpack.c.0.s8 %v2032
  %v2034 = vlaneseq
  %v2035 = vshrl.u32 %v2034, 7
  %v2036 = vsub.s32 %v2033, %v2035
  %v2037 = vrot.slane %v2029, %v2036
  %v2039 = vunpack.c.l.s4 1966171168
  %v2040 = vunpack.c.0.s8 %v2039
  %v2041 = vlaneseq
  %v2042 = vshrl.u32 %v2041, 7
  %v2043 = vsub.s32 %v2040, %v2042
  %v2044 = vrot.slane %v2030, %v2043
  %v2045 = vcombine.high %v2037, %v2037
  %v2046 = vcombine.high %v2044, %v2044
  %v2048 = vunpack.c.l.s4 1966171168
  %v2049 = vunpack.c.0.s8 %v2048
  %v2050 = vlaneseq
  %v2051 = vshrl.u32 %v2050, 7
  %v2052 = vsub.s32 %v2049, %v2051
  %v2053 = vrot.slane %v2037, %v2052
  %v2055 = vunpack.c.l.s4 1966171168
  %v2056 = vunpack.c.0.s8 %v2055
  %v2057 = vlaneseq
  %v2058 = vshrl.u32 %v2057, 7
  %v2059 = vsub.s32 %v2056, %v2058
  %v2060 = vrot.slane %v2044, %v2059
  %v2062 = vunpack.c.l.s4 1966171168
  %v2063 = vunpack.c.0.s8 %v2062
  %v2064 = vlaneseq
  %v2065 = vshrl.u32 %v2064, 7
  %v2066 = vsub.s32 %v2063, %v2065
  %v2067 = vrot.slane %v2045, %v2066
  %v2069 = vunpack.c.l.s4 1966171168
  %v2070 = vunpack.c.0.s8 %v2069
  %v2071 = vlaneseq
  %v2072 = vshrl.u32 %v2071, 7
  %v2073 = vsub.s32 %v2070, %v2072
  %v2074 = vrot.slane %v2046, %v2073
  %v2075 = vcombine.high %v2053, %v2053
  %v2076 = vcombine.high %v2060, %v2060
  %v2077 = vcombine.high %v2067, %v2067
  %v2078 = vcombine.high %v2074, %v2074
  %v2087 = vadd.f32 %v2015, %v2053
  %v2088 = vadd.f32 %v2016, %v2067
  %v2089 = vadd.f32 %v2017, %v2075
  %v2090 = vadd.f32 %v2018, %v2077
  %v2091 = vadd.f32 %v2019, %v2060
  %v2092 = vadd.f32 %v2020, %v2074
  %v2093 = vadd.f32 %v2021, %v2076
  %v2094 = vadd.f32 %v2022, %v2078
  %v2095 = vadd.f32 %v2023, %v2053
  %v2096 = vadd.f32 %v2024, %v2067
  %v2107 = vcombine.low %v2087, %v2088
  %v2108 = vcombine.low %v2089, %v2090
  %v2109 = vcombine.low %v2091, %v2092
  %v2110 = vcombine.low %v2093, %v2094
  %v2112 = vunpack.c.l.s4 1966171168
  %v2113 = vunpack.c.0.s8 %v2112
  %v2114 = vlaneseq
  %v2115 = vshrl.u32 %v2114, 7
  %v2116 = vsub.s32 %v2113, %v2115
  %v2117 = vrot.slane %v2107, %v2116
  %v2119 = vunpack.c.l.s4 1966171168
  %v2120 = vunpack.c.0.s8 %v2119
  %v2121 = vlaneseq
  %v2122 = vshrl.u32 %v2121, 7
  %v2123 = vsub.s32 %v2120, %v2122
  %v2124 = vrot.slane %v2108, %v2123
  %v2126 = vunpack.c.l.s4 1966171168
  %v2127 = vunpack.c.0.s8 %v2126
  %v2128 = vlaneseq
  %v2129 = vshrl.u32 %v2128, 7
  %v2130 = vsub.s32 %v2127, %v2129
  %v2131 = vrot.slane %v2109, %v2130
  %v2133 = vunpack.c.l.s4 1966171168
  %v2134 = vunpack.c.0.s8 %v2133
  %v2135 = vlaneseq
  %v2136 = vshrl.u32 %v2135, 7
  %v2137 = vsub.s32 %v2134, %v2136
  %v2138 = vrot.slane %v2110, %v2137
  %v2139 = vcombine.low %v2117, %v2124
  %v2140 = vcombine.low %v2131, %v2138
  %v2142 = vunpack.c.l.s4 1966171168
  %v2143 = vunpack.c.0.s8 %v2142
  %v2144 = vlaneseq
  %v2145 = vshrl.u32 %v2144, 7
  %v2146 = vsub.s32 %v2143, %v2145
  %v2147 = vrot.slane %v2139, %v2146
  %v2149 = vunpack.c.l.s4 1966171168
  %v2150 = vunpack.c.0.s8 %v2149
  %v2151 = vlaneseq
  %v2152 = vshrl.u32 %v2151, 7
  %v2153 = vsub.s32 %v2150, %v2152
  %v2154 = vrot.slane %v2140, %v2153
  %v2155 = vcombine.low %v2147, %v2154
  %v2156 = vcombine.low %v2095, %v2096
  %v2158 = vunpack.c.l.s4 1966171168
  %v2159 = vunpack.c.0.s8 %v2158
  %v2160 = vlaneseq
  %v2161 = vshrl.u32 %v2160, 7
  %v2162 = vsub.s32 %v2159, %v2161
  %v2163 = vrot.slane %v2156, %v2162
  %v2165 = vunpack.c.l.s4 1966171168
  %v2166 = vunpack.c.0.s8 %v2165
  %v2167 = vlaneseq
  %v2168 = vshrl.u32 %v2167, 7
  %v2169 = vsub.s32 %v2166, %v2168
  %v2170 = vrot.slane %v2163, %v2169
  %v2173 = vpack.c.bf16 %v2170, %v2155
  %v2174 = vld [vmem:[%s9] sm:$0xf]
  %v2175 = vld [vmem:[%s9 + $0x4] sm:$0xf]
  %v2176 = vld [vmem:[%s9 + $0x8] sm:$0xf]
  %v2177 = vld [vmem:[%s9 + $0xc] sm:$0xf]
  %v2178 = vld [vmem:[%s10] sm:$0x1]
  %v2180 = vlaneseq
  %v2181 = vshrl.u32 %v2180, 7
  %v2182 = vsub.s32 0, %v2181
  %v2183 = vrot.slane %v2178, %v2182
  %v2189 = vunpack.c.l.b16 %v2174
  %v2190 = vunpack.c.l.b16 %v2175
  %v2191 = vunpack.c.l.b16 %v2176
  %v2192 = vunpack.c.l.b16 %v2177
  %v2193 = vpack.c.b16 %v2190, %v2189
  %v2194 = vpack.c.b16 %v2192, %v2191
  %v2198 = vsel %vm214, %v2173, 0
  %2200 = vmatprep.subr.bf16.mxu0 0
  %2201 = vmatpush1.bf16.msra.mxu0 %v2193
  %2202 = vmatprep.subr.bf16.mxu0 0
  %2203 = vmatpush1.bf16.msra.mxu0 %v2194
  %2204 = vmatprep.subr.bf16.mxu0 0
  %2205 = vmatpush1.bf16.msra.mxu0 0
  %2206 = vmatprep.subr.bf16.mxu0 0
  %2207 = vmatpush1.bf16.msra.mxu0 0
  %2208 = vmatprep.subr.bf16.mxu0 0
  %2209 = vmatpush1.bf16.msra.mxu0 0
  %2210 = vmatprep.subr.bf16.mxu0 0
  %2211 = vmatpush1.bf16.msra.mxu0 0
  %2212 = vmatprep.subr.bf16.mxu0 0
  %2213 = vmatpush1.bf16.msra.mxu0 0
  %2214 = vmatprep.subr.bf16.mxu0 0
  %2215 = vmatpush1.bf16.msra.mxu0 0
  %2216 = vmatprep.subr.bf16.mxu0 0
  %2217 = vmatpush1.bf16.msra.mxu0 0
  %2218 = vmatprep.subr.bf16.mxu0 0
  %2219 = vmatpush1.bf16.msra.mxu0 0
  %2220 = vmatprep.subr.bf16.mxu0 0
  %2221 = vmatpush1.bf16.msra.mxu0 0
  %2222 = vmatprep.subr.bf16.mxu0 0
  %2223 = vmatpush1.bf16.msra.mxu0 0
  %2224 = vmatprep.subr.bf16.mxu0 0
  %2225 = vmatpush1.bf16.msra.mxu0 0
  %2226 = vmatprep.subr.bf16.mxu0 0
  %2227 = vmatpush1.bf16.msra.mxu0 0
  %2228 = vmatprep.subr.bf16.mxu0 0
  %2229 = vmatpush1.bf16.msra.mxu0 0
  %2230 = vmatprep.subr.bf16.mxu0 0
  %2231 = vmatpush1.bf16.msra.mxu0 0
  %2232 = vmatprep.mubr.bf16.mxu0 0
  %2233 = vmatmul.mubr.bf16.gmra.mrb[0].mxu0 %v2198
  %v2234 = vpop.f32.mrb[0].mxu0
  %v2235 = vadd.f32 %v2183, %v2234
  %v2236 = vpop.f32.mrb[0].mxu0
  %v2237 = vpop.f32.mrb[0].mxu0
  %v2238 = vadd.f32 %v2183, %v2237
  %v2239 = vpop.f32.mrb[0].mxu0
  %2240 = vdwg.mxu0
  %v2241 = vmul.f32 %v2235, %v2235
  %v2242 = vmul.f32 %v2238, %v2238
  %v2243 = vmul.f32 %v2235, %v2241
  %v2244 = vmul.f32 %v2238, %v2242
  %v2245 = vmul.f32 %v2243, 0.044715
  %v2246 = vmul.f32 %v2244, 0.044715
  %v2247 = vadd.f32 %v2235, %v2245
  %v2248 = vadd.f32 %v2238, %v2246
  %v2249 = vmul.f32 %v2247, 0.7978846
  %v2250 = vmul.f32 %v2248, 0.7978846
  %v2251 = vtanh.pop %v2249
  %v2252 = vtanh.pop %v2250
  %v2253 = vadd.f32 %v2251, 1.0
  %v2254 = vadd.f32 %v2252, 1.0
  %v2255 = vmul.f32 %v2253, 0.5
  %v2256 = vmul.f32 %v2254, 0.5
  %v2257 = vmul.f32 %v2235, %v2255
  %v2258 = vmul.f32 %v2238, %v2256
  %v2259 = vpack.c.bf16 %v2258, %v2257
  %v2260 = vld [vmem:[%s11] sm:$0xf]
  %v2261 = vld [vmem:[%s11 + $0x4] sm:$0xf]
  %v2262 = vld [vmem:[%s11 + $0x8] sm:$0xf]
  %v2263 = vld [vmem:[%s11 + $0xc] sm:$0xf]
  %v2264 = vld [vmem:[%s12] sm:$0x1]
  %v2266 = vlaneseq
  %v2267 = vshrl.u32 %v2266, 7
  %v2268 = vsub.s32 0, %v2267
  %v2269 = vrot.slane %v2264, %v2268
  %v2275 = vunpack.c.l.b16 %v2260
  %v2276 = vunpack.c.l.b16 %v2261
  %v2277 = vunpack.c.l.b16 %v2262
  %v2278 = vunpack.c.l.b16 %v2263
  %v2279 = vpack.c.b16 %v2276, %v2275
  %v2280 = vpack.c.b16 %v2278, %v2277
  %v2284 = vsel %vm214, %v2259, 0
  %2286 = vmatprep.subr.bf16.mxu0 0
  %2287 = vmatpush1.bf16.msra.mxu0 %v2279
  %2288 = vmatprep.subr.bf16.mxu0 0
  %2289 = vmatpush1.bf16.msra.mxu0 %v2280
  %2290 = vmatprep.subr.bf16.mxu0 0
  %2291 = vmatpush1.bf16.msra.mxu0 0
  %2292 = vmatprep.subr.bf16.mxu0 0
  %2293 = vmatpush1.bf16.msra.mxu0 0
  %2294 = vmatprep.subr.bf16.mxu0 0
  %2295 = vmatpush1.bf16.msra.mxu0 0
  %2296 = vmatprep.subr.bf16.mxu0 0
  %2297 = vmatpush1.bf16.msra.mxu0 0
  %2298 = vmatprep.subr.bf16.mxu0 0
  %2299 = vmatpush1.bf16.msra.mxu0 0
  %2300 = vmatprep.subr.bf16.mxu0 0
  %2301 = vmatpush1.bf16.msra.mxu0 0
  %2302 = vmatprep.subr.bf16.mxu0 0
  %2303 = vmatpush1.bf16.msra.mxu0 0
  %2304 = vmatprep.subr.bf16.mxu0 0
  %2305 = vmatpush1.bf16.msra.mxu0 0
  %2306 = vmatprep.subr.bf16.mxu0 0
  %2307 = vmatpush1.bf16.msra.mxu0 0
  %2308 = vmatprep.subr.bf16.mxu0 0
  %2309 = vmatpush1.bf16.msra.mxu0 0
  %2310 = vmatprep.subr.bf16.mxu0 0
  %2311 = vmatpush1.bf16.msra.mxu0 0
  %2312 = vmatprep.subr.bf16.mxu0 0
  %2313 = vmatpush1.bf16.msra.mxu0 0
  %2314 = vmatprep.subr.bf16.mxu0 0
  %2315 = vmatpush1.bf16.msra.mxu0 0
  %2316 = vmatprep.subr.bf16.mxu0 0
  %2317 = vmatpush1.bf16.msra.mxu0 0
  %2318 = vmatprep.mubr.bf16.mxu0 0
  %2319 = vmatmul.mubr.bf16.gmra.mrb[0].mxu0 %v2284
  %v2320 = vpop.f32.mrb[0].mxu0
  %v2321 = vadd.f32 %v2269, %v2320
  %v2322 = vpop.f32.mrb[0].mxu0
  %v2323 = vpop.f32.mrb[0].mxu0
  %v2324 = vadd.f32 %v2269, %v2323
  %v2325 = vpop.f32.mrb[0].mxu0
  %2326 = vdwg.mxu0
  %v2329 = vcombine.high %v2321, %v2321
  %v2331 = vunpack.c.l.s4 1966171168
  %v2332 = vunpack.c.0.s8 %v2331
  %v2333 = vlaneseq
  %v2334 = vshrl.u32 %v2333, 7
  %v2335 = vsub.s32 %v2332, %v2334
  %v2336 = vrot.slane %v2321, %v2335
  %v2338 = vunpack.c.l.s4 1966171168
  %v2339 = vunpack.c.0.s8 %v2338
  %v2340 = vlaneseq
  %v2341 = vshrl.u32 %v2340, 7
  %v2342 = vsub.s32 %v2339, %v2341
  %v2343 = vrot.slane %v2329, %v2342
  %v2344 = vcombine.high %v2336, %v2336
  %v2345 = vcombine.high %v2343, %v2343
  %v2347 = vunpack.c.l.s4 1966171168
  %v2348 = vunpack.c.0.s8 %v2347
  %v2349 = vlaneseq
  %v2350 = vshrl.u32 %v2349, 7
  %v2351 = vsub.s32 %v2348, %v2350
  %v2352 = vrot.slane %v2336, %v2351
  %v2354 = vunpack.c.l.s4 1966171168
  %v2355 = vunpack.c.0.s8 %v2354
  %v2356 = vlaneseq
  %v2357 = vshrl.u32 %v2356, 7
  %v2358 = vsub.s32 %v2355, %v2357
  %v2359 = vrot.slane %v2343, %v2358
  %v2361 = vunpack.c.l.s4 1966171168
  %v2362 = vunpack.c.0.s8 %v2361
  %v2363 = vlaneseq
  %v2364 = vshrl.u32 %v2363, 7
  %v2365 = vsub.s32 %v2362, %v2364
  %v2366 = vrot.slane %v2344, %v2365
  %v2368 = vunpack.c.l.s4 1966171168
  %v2369 = vunpack.c.0.s8 %v2368
  %v2370 = vlaneseq
  %v2371 = vshrl.u32 %v2370, 7
  %v2372 = vsub.s32 %v2369, %v2371
  %v2373 = vrot.slane %v2345, %v2372
  %v2374 = vcombine.high %v2352, %v2352
  %v2375 = vcombine.high %v2359, %v2359
  %v2376 = vcombine.high %v2366, %v2366
  %v2377 = vcombine.high %v2373, %v2373
  %v2379 = vunpack.c.l.s4 1966171168
  %v2380 = vunpack.c.0.s8 %v2379
  %v2381 = vlaneseq
  %v2382 = vshrl.u32 %v2381, 7
  %v2383 = vsub.s32 %v2380, %v2382
  %v2384 = vrot.slane %v2324, %v2383
  %v2385 = vcombine.high %v2384, %v2384
  %v2387 = vunpack.c.l.s4 1966171168
  %v2388 = vunpack.c.0.s8 %v2387
  %v2389 = vlaneseq
  %v2390 = vshrl.u32 %v2389, 7
  %v2391 = vsub.s32 %v2388, %v2390
  %v2392 = vrot.slane %v2384, %v2391
  %v2394 = vunpack.c.l.s4 1966171168
  %v2395 = vunpack.c.0.s8 %v2394
  %v2396 = vlaneseq
  %v2397 = vshrl.u32 %v2396, 7
  %v2398 = vsub.s32 %v2395, %v2397
  %v2399 = vrot.slane %v2385, %v2398
  %v2410 = vadd.f32 %v1635, %v2352
  %v2411 = vadd.f32 %v1636, %v2366
  %v2412 = vadd.f32 %v1637, %v2374
  %v2413 = vadd.f32 %v1638, %v2376
  %v2414 = vadd.f32 %v1639, %v2359
  %v2415 = vadd.f32 %v1640, %v2373
  %v2416 = vadd.f32 %v1641, %v2375
  %v2417 = vadd.f32 %v1642, %v2377
  %v2418 = vadd.f32 %v1643, %v2392
  %v2419 = vadd.f32 %v1644, %v2399
  %v2420 = vld [vmem:[%s13] sm:$0x1]
  %v2421 = vld [vmem:[%s14] sm:$0x1]
  %v2432 = vcombine.low %v2410, %v2411
  %v2433 = vcombine.low %v2412, %v2413
  %v2434 = vcombine.low %v2414, %v2415
  %v2435 = vcombine.low %v2416, %v2417
  %v2437 = vunpack.c.l.s4 1966171168
  %v2438 = vunpack.c.0.s8 %v2437
  %v2439 = vlaneseq
  %v2440 = vshrl.u32 %v2439, 7
  %v2441 = vsub.s32 %v2438, %v2440
  %v2442 = vrot.slane %v2432, %v2441
  %v2444 = vunpack.c.l.s4 1966171168
  %v2445 = vunpack.c.0.s8 %v2444
  %v2446 = vlaneseq
  %v2447 = vshrl.u32 %v2446, 7
  %v2448 = vsub.s32 %v2445, %v2447
  %v2449 = vrot.slane %v2433, %v2448
  %v2451 = vunpack.c.l.s4 1966171168
  %v2452 = vunpack.c.0.s8 %v2451
  %v2453 = vlaneseq
  %v2454 = vshrl.u32 %v2453, 7
  %v2455 = vsub.s32 %v2452, %v2454
  %v2456 = vrot.slane %v2434, %v2455
  %v2458 = vunpack.c.l.s4 1966171168
  %v2459 = vunpack.c.0.s8 %v2458
  %v2460 = vlaneseq
  %v2461 = vshrl.u32 %v2460, 7
  %v2462 = vsub.s32 %v2459, %v2461
  %v2463 = vrot.slane %v2435, %v2462
  %v2464 = vcombine.low %v2442, %v2449
  %v2465 = vcombine.low %v2456, %v2463
  %v2467 = vunpack.c.l.s4 1966171168
  %v2468 = vunpack.c.0.s8 %v2467
  %v2469 = vlaneseq
  %v2470 = vshrl.u32 %v2469, 7
  %v2471 = vsub.s32 %v2468, %v2470
  %v2472 = vrot.slane %v2464, %v2471
  %v2474 = vunpack.c.l.s4 1966171168
  %v2475 = vunpack.c.0.s8 %v2474
  %v2476 = vlaneseq
  %v2477 = vshrl.u32 %v2476, 7
  %v2478 = vsub.s32 %v2475, %v2477
  %v2479 = vrot.slane %v2465, %v2478
  %v2480 = vcombine.low %v2472, %v2479
  %v2481 = vcombine.low %v2418, %v2419
  %v2483 = vunpack.c.l.s4 1966171168
  %v2484 = vunpack.c.0.s8 %v2483
  %v2485 = vlaneseq
  %v2486 = vshrl.u32 %v2485, 7
  %v2487 = vsub.s32 %v2484, %v2486
  %v2488 = vrot.slane %v2481, %v2487
  %v2490 = vunpack.c.l.s4 1966171168
  %v2491 = vunpack.c.0.s8 %v2490
  %v2492 = vlaneseq
  %v2493 = vshrl.u32 %v2492, 7
  %v2494 = vsub.s32 %v2491, %v2493
  %v2495 = vrot.slane %v2488, %v2494
  %v2498 = vsel %vm214, %v2480, 0.0
  %2499 = vadd.xlane.f32.xlu0 %v2498
  %v2500 = vpop.xlane.xlu0 %2499
  %v2501 = vsel %vm218, %v2495, 0.0
  %2502 = vadd.xlane.f32.xlu0 %v2501
  %v2503 = vpop.xlane.xlu0 %2502
  %v2504 = vmul.f32 %v2500, %v222
  %v2505 = vmul.f32 %v2503, %v222
  %v2508 = vlaneseq
  %v2509 = vshrl.u32 %v2508, 7
  %v2510 = vsub.s32 0, %v2509
  %v2511 = vrot.slane %v2504, %v2510
  %v2512 = vlaneseq
  %v2513 = vshrl.u32 %v2512, 7
  %v2514 = vsub.s32 1, %v2513
  %v2515 = vrot.slane %v2504, %v2514
  %v2516 = vlaneseq
  %v2517 = vshrl.u32 %v2516, 7
  %v2518 = vsub.s32 2, %v2517
  %v2519 = vrot.slane %v2504, %v2518
  %v2520 = vlaneseq
  %v2521 = vshrl.u32 %v2520, 7
  %v2522 = vsub.s32 3, %v2521
  %v2523 = vrot.slane %v2504, %v2522
  %v2524 = vlaneseq
  %v2525 = vshrl.u32 %v2524, 7
  %v2526 = vsub.s32 4, %v2525
  %v2527 = vrot.slane %v2504, %v2526
  %v2528 = vlaneseq
  %v2529 = vshrl.u32 %v2528, 7
  %v2530 = vsub.s32 5, %v2529
  %v2531 = vrot.slane %v2504, %v2530
  %v2532 = vlaneseq
  %v2533 = vshrl.u32 %v2532, 7
  %v2534 = vsub.s32 6, %v2533
  %v2535 = vrot.slane %v2504, %v2534
  %v2536 = vlaneseq
  %v2537 = vshrl.u32 %v2536, 7
  %v2538 = vsub.s32 7, %v2537
  %v2539 = vrot.slane %v2504, %v2538
  %v2540 = vlaneseq
  %v2541 = vshrl.u32 %v2540, 7
  %v2542 = vsub.s32 0, %v2541
  %v2543 = vrot.slane %v2505, %v2542
  %v2544 = vlaneseq
  %v2545 = vshrl.u32 %v2544, 7
  %v2546 = vsub.s32 1, %v2545
  %v2547 = vrot.slane %v2505, %v2546
  %v2558 = vsub.f32 %v2410, %v2511
  %v2559 = vsub.f32 %v2411, %v2515
  %v2560 = vsub.f32 %v2412, %v2519
  %v2561 = vsub.f32 %v2413, %v2523
  %v2562 = vsub.f32 %v2414, %v2527
  %v2563 = vsub.f32 %v2415, %v2531
  %v2564 = vsub.f32 %v2416, %v2535
  %v2565 = vsub.f32 %v2417, %v2539
  %v2566 = vsub.f32 %v2418, %v2543
  %v2567 = vsub.f32 %v2419, %v2547
  %v2568 = vmul.f32 %v2558, %v2558
  %v2569 = vmul.f32 %v2559, %v2559
  %v2570 = vmul.f32 %v2560, %v2560
  %v2571 = vmul.f32 %v2561, %v2561
  %v2572 = vmul.f32 %v2562, %v2562
  %v2573 = vmul.f32 %v2563, %v2563
  %v2574 = vmul.f32 %v2564, %v2564
  %v2575 = vmul.f32 %v2565, %v2565
  %v2576 = vmul.f32 %v2566, %v2566
  %v2577 = vmul.f32 %v2567, %v2567
  %v2588 = vcombine.low %v2568, %v2569
  %v2589 = vcombine.low %v2570, %v2571
  %v2590 = vcombine.low %v2572, %v2573
  %v2591 = vcombine.low %v2574, %v2575
  %v2593 = vunpack.c.l.s4 1966171168
  %v2594 = vunpack.c.0.s8 %v2593
  %v2595 = vlaneseq
  %v2596 = vshrl.u32 %v2595, 7
  %v2597 = vsub.s32 %v2594, %v2596
  %v2598 = vrot.slane %v2588, %v2597
  %v2600 = vunpack.c.l.s4 1966171168
  %v2601 = vunpack.c.0.s8 %v2600
  %v2602 = vlaneseq
  %v2603 = vshrl.u32 %v2602, 7
  %v2604 = vsub.s32 %v2601, %v2603
  %v2605 = vrot.slane %v2589, %v2604
  %v2607 = vunpack.c.l.s4 1966171168
  %v2608 = vunpack.c.0.s8 %v2607
  %v2609 = vlaneseq
  %v2610 = vshrl.u32 %v2609, 7
  %v2611 = vsub.s32 %v2608, %v2610
  %v2612 = vrot.slane %v2590, %v2611
  %v2614 = vunpack.c.l.s4 1966171168
  %v2615 = vunpack.c.0.s8 %v2614
  %v2616 = vlaneseq
  %v2617 = vshrl.u32 %v2616, 7
  %v2618 = vsub.s32 %v2615, %v2617
  %v2619 = vrot.slane %v2591, %v2618
  %v2620 = vcombine.low %v2598, %v2605
  %v2621 = vcombine.low %v2612, %v2619
  %v2623 = vunpack.c.l.s4 1966171168
  %v2624 = vunpack.c.0.s8 %v2623
  %v2625 = vlaneseq
  %v2626 = vshrl.u32 %v2625, 7
  %v2627 = vsub.s32 %v2624, %v2626
  %v2628 = vrot.slane %v2620, %v2627
  %v2630 = vunpack.c.l.s4 1966171168
  %v2631 = vunpack.c.0.s8 %v2630
  %v2632 = vlaneseq
  %v2633 = vshrl.u32 %v2632, 7
  %v2634 = vsub.s32 %v2631, %v2633
  %v2635 = vrot.slane %v2621, %v2634
  %v2636 = vcombine.low %v2628, %v2635
  %v2637 = vcombine.low %v2576, %v2577
  %v2639 = vunpack.c.l.s4 1966171168
  %v2640 = vunpack.c.0.s8 %v2639
  %v2641 = vlaneseq
  %v2642 = vshrl.u32 %v2641, 7
  %v2643 = vsub.s32 %v2640, %v2642
  %v2644 = vrot.slane %v2637, %v2643
  %v2646 = vunpack.c.l.s4 1966171168
  %v2647 = vunpack.c.0.s8 %v2646
  %v2648 = vlaneseq
  %v2649 = vshrl.u32 %v2648, 7
  %v2650 = vsub.s32 %v2647, %v2649
  %v2651 = vrot.slane %v2644, %v2650
  %v2654 = vsel %vm214, %v2636, 0.0
  %2655 = vadd.xlane.f32.xlu0 %v2654
  %v2656 = vpop.xlane.xlu0 %2655
  %v2657 = vsel %vm218, %v2651, 0.0
  %2658 = vadd.xlane.f32.xlu0 %v2657
  %v2659 = vpop.xlane.xlu0 %2658
  %v2660 = vmul.f32 %v2656, %v222
  %v2661 = vmul.f32 %v2659, %v222
  %v2662 = vadd.f32 %v2660, 1e-05
  %v2663 = vadd.f32 %v2661, 1e-05
  %v2664 = vrsqrt.pop %v2662
  %v2665 = vrsqrt.pop %v2663
  %v2668 = vlaneseq
  %v2669 = vshrl.u32 %v2668, 7
  %v2670 = vsub.s32 0, %v2669
  %v2671 = vrot.slane %v2664, %v2670
  %v2672 = vlaneseq
  %v2673 = vshrl.u32 %v2672, 7
  %v2674 = vsub.s32 1, %v2673
  %v2675 = vrot.slane %v2664, %v2674
  %v2676 = vlaneseq
  %v2677 = vshrl.u32 %v2676, 7
  %v2678 = vsub.s32 2, %v2677
  %v2679 = vrot.slane %v2664, %v2678
  %v2680 = vlaneseq
  %v2681 = vshrl.u32 %v2680, 7
  %v2682 = vsub.s32 3, %v2681
  %v2683 = vrot.slane %v2664, %v2682
  %v2684 = vlaneseq
  %v2685 = vshrl.u32 %v2684, 7
  %v2686 = vsub.s32 4, %v2685
  %v2687 = vrot.slane %v2664, %v2686
  %v2688 = vlaneseq
  %v2689 = vshrl.u32 %v2688, 7
  %v2690 = vsub.s32 5, %v2689
  %v2691 = vrot.slane %v2664, %v2690
  %v2692 = vlaneseq
  %v2693 = vshrl.u32 %v2692, 7
  %v2694 = vsub.s32 6, %v2693
  %v2695 = vrot.slane %v2664, %v2694
  %v2696 = vlaneseq
  %v2697 = vshrl.u32 %v2696, 7
  %v2698 = vsub.s32 7, %v2697
  %v2699 = vrot.slane %v2664, %v2698
  %v2700 = vlaneseq
  %v2701 = vshrl.u32 %v2700, 7
  %v2702 = vsub.s32 0, %v2701
  %v2703 = vrot.slane %v2665, %v2702
  %v2704 = vlaneseq
  %v2705 = vshrl.u32 %v2704, 7
  %v2706 = vsub.s32 1, %v2705
  %v2707 = vrot.slane %v2665, %v2706
  %v2718 = vmul.f32 %v2558, %v2671
  %v2719 = vmul.f32 %v2559, %v2675
  %v2720 = vmul.f32 %v2560, %v2679
  %v2721 = vmul.f32 %v2561, %v2683
  %v2722 = vmul.f32 %v2562, %v2687
  %v2723 = vmul.f32 %v2563, %v2691
  %v2724 = vmul.f32 %v2564, %v2695
  %v2725 = vmul.f32 %v2565, %v2699
  %v2726 = vmul.f32 %v2566, %v2703
  %v2727 = vmul.f32 %v2567, %v2707
  %v2729 = vlaneseq
  %v2730 = vshrl.u32 %v2729, 7
  %v2731 = vsub.s32 0, %v2730
  %v2732 = vrot.slane %v2420, %v2731
  %v2733 = vcombine.high %v2732, %v2732
  %v2735 = vunpack.c.l.s4 1966171168
  %v2736 = vunpack.c.0.s8 %v2735
  %v2737 = vlaneseq
  %v2738 = vshrl.u32 %v2737, 7
  %v2739 = vsub.s32 %v2736, %v2738
  %v2740 = vrot.slane %v2732, %v2739
  %v2742 = vunpack.c.l.s4 1966171168
  %v2743 = vunpack.c.0.s8 %v2742
  %v2744 = vlaneseq
  %v2745 = vshrl.u32 %v2744, 7
  %v2746 = vsub.s32 %v2743, %v2745
  %v2747 = vrot.slane %v2733, %v2746
  %v2748 = vcombine.high %v2740, %v2740
  %v2749 = vcombine.high %v2747, %v2747
  %v2751 = vunpack.c.l.s4 1966171168
  %v2752 = vunpack.c.0.s8 %v2751
  %v2753 = vlaneseq
  %v2754 = vshrl.u32 %v2753, 7
  %v2755 = vsub.s32 %v2752, %v2754
  %v2756 = vrot.slane %v2740, %v2755
  %v2758 = vunpack.c.l.s4 1966171168
  %v2759 = vunpack.c.0.s8 %v2758
  %v2760 = vlaneseq
  %v2761 = vshrl.u32 %v2760, 7
  %v2762 = vsub.s32 %v2759, %v2761
  %v2763 = vrot.slane %v2747, %v2762
  %v2765 = vunpack.c.l.s4 1966171168
  %v2766 = vunpack.c.0.s8 %v2765
  %v2767 = vlaneseq
  %v2768 = vshrl.u32 %v2767, 7
  %v2769 = vsub.s32 %v2766, %v2768
  %v2770 = vrot.slane %v2748, %v2769
  %v2772 = vunpack.c.l.s4 1966171168
  %v2773 = vunpack.c.0.s8 %v2772
  %v2774 = vlaneseq
  %v2775 = vshrl.u32 %v2774, 7
  %v2776 = vsub.s32 %v2773, %v2775
  %v2777 = vrot.slane %v2749, %v2776
  %v2778 = vcombine.high %v2756, %v2756
  %v2779 = vcombine.high %v2763, %v2763
  %v2780 = vcombine.high %v2770, %v2770
  %v2781 = vcombine.high %v2777, %v2777
  %v2790 = vmul.f32 %v2718, %v2756
  %v2791 = vmul.f32 %v2719, %v2770
  %v2792 = vmul.f32 %v2720, %v2778
  %v2793 = vmul.f32 %v2721, %v2780
  %v2794 = vmul.f32 %v2722, %v2763
  %v2795 = vmul.f32 %v2723, %v2777
  %v2796 = vmul.f32 %v2724, %v2779
  %v2797 = vmul.f32 %v2725, %v2781
  %v2798 = vmul.f32 %v2726, %v2756
  %v2799 = vmul.f32 %v2727, %v2770
  %v2801 = vlaneseq
  %v2802 = vshrl.u32 %v2801, 7
  %v2803 = vsub.s32 0, %v2802
  %v2804 = vrot.slane %v2421, %v2803
  %v2805 = vcombine.high %v2804, %v2804
  %v2807 = vunpack.c.l.s4 1966171168
  %v2808 = vunpack.c.0.s8 %v2807
  %v2809 = vlaneseq
  %v2810 = vshrl.u32 %v2809, 7
  %v2811 = vsub.s32 %v2808, %v2810
  %v2812 = vrot.slane %v2804, %v2811
  %v2814 = vunpack.c.l.s4 1966171168
  %v2815 = vunpack.c.0.s8 %v2814
  %v2816 = vlaneseq
  %v2817 = vshrl.u32 %v2816, 7
  %v2818 = vsub.s32 %v2815, %v2817
  %v2819 = vrot.slane %v2805, %v2818
  %v2820 = vcombine.high %v2812, %v2812
  %v2821 = vcombine.high %v2819, %v2819
  %v2823 = vunpack.c.l.s4 1966171168
  %v2824 = vunpack.c.0.s8 %v2823
  %v2825 = vlaneseq
  %v2826 = vshrl.u32 %v2825, 7
  %v2827 = vsub.s32 %v2824, %v2826
  %v2828 = vrot.slane %v2812, %v2827
  %v2830 = vunpack.c.l.s4 1966171168
  %v2831 = vunpack.c.0.s8 %v2830
  %v2832 = vlaneseq
  %v2833 = vshrl.u32 %v2832, 7
  %v2834 = vsub.s32 %v2831, %v2833
  %v2835 = vrot.slane %v2819, %v2834
  %v2837 = vunpack.c.l.s4 1966171168
  %v2838 = vunpack.c.0.s8 %v2837
  %v2839 = vlaneseq
  %v2840 = vshrl.u32 %v2839, 7
  %v2841 = vsub.s32 %v2838, %v2840
  %v2842 = vrot.slane %v2820, %v2841
  %v2844 = vunpack.c.l.s4 1966171168
  %v2845 = vunpack.c.0.s8 %v2844
  %v2846 = vlaneseq
  %v2847 = vshrl.u32 %v2846, 7
  %v2848 = vsub.s32 %v2845, %v2847
  %v2849 = vrot.slane %v2821, %v2848
  %v2850 = vcombine.high %v2828, %v2828
  %v2851 = vcombine.high %v2835, %v2835
  %v2852 = vcombine.high %v2842, %v2842
  %v2853 = vcombine.high %v2849, %v2849
  %v2862 = vadd.f32 %v2790, %v2828
  %v2863 = vadd.f32 %v2791, %v2842
  %v2864 = vadd.f32 %v2792, %v2850
  %v2865 = vadd.f32 %v2793, %v2852
  %v2866 = vadd.f32 %v2794, %v2835
  %v2867 = vadd.f32 %v2795, %v2849
  %v2868 = vadd.f32 %v2796, %v2851
  %v2869 = vadd.f32 %v2797, %v2853
  %v2870 = vadd.f32 %v2798, %v2828
  %v2871 = vadd.f32 %v2799, %v2842
  %v2882 = vcombine.low %v2862, %v2863
  %v2883 = vcombine.low %v2864, %v2865
  %v2885 = vunpack.c.l.s4 1966171168
  %v2886 = vunpack.c.0.s8 %v2885
  %v2887 = vlaneseq
  %v2888 = vshrl.u32 %v2887, 7
  %v2889 = vsub.s32 %v2886, %v2888
  %v2890 = vrot.slane %v2882, %v2889
  %v2892 = vunpack.c.l.s4 1966171168
  %v2893 = vunpack.c.0.s8 %v2892
  %v2894 = vlaneseq
  %v2895 = vshrl.u32 %v2894, 7
  %v2896 = vsub.s32 %v2893, %v2895
  %v2897 = vrot.slane %v2883, %v2896
  %v2899 = vunpack.c.l.s4 1966171168
  %v2900 = vunpack.c.0.s8 %v2899
  %v2901 = vlaneseq
  %v2902 = vshrl.u32 %v2901, 7
  %v2903 = vsub.s32 %v2900, %v2902
  %v2904 = vrot.slane %v2866, %v2903
  %v2905 = vcombine.low %v2890, %v2897
  %v2907 = vunpack.c.l.s4 1966171168
  %v2908 = vunpack.c.0.s8 %v2907
  %v2909 = vlaneseq
  %v2910 = vshrl.u32 %v2909, 7
  %v2911 = vsub.s32 %v2908, %v2910
  %v2912 = vrot.slane %v2905, %v2911
  %v2914 = vunpack.c.l.s4 1966171168
  %v2915 = vunpack.c.0.s8 %v2914
  %v2916 = vlaneseq
  %v2917 = vshrl.u32 %v2916, 7
  %v2918 = vsub.s32 %v2915, %v2917
  %v2919 = vrot.slane %v2904, %v2918
  %v2920 = vcombine.low %v2912, %v2919
  %v2921 = vcombine.low %v2867, %v2868
  %v2922 = vcombine.low %v2869, %v2870
  %v2924 = vunpack.c.l.s4 1966171168
  %v2925 = vunpack.c.0.s8 %v2924
  %v2926 = vlaneseq
  %v2927 = vshrl.u32 %v2926, 7
  %v2928 = vsub.s32 %v2925, %v2927
  %v2929 = vrot.slane %v2921, %v2928
  %v2931 = vunpack.c.l.s4 1966171168
  %v2932 = vunpack.c.0.s8 %v2931
  %v2933 = vlaneseq
  %v2934 = vshrl.u32 %v2933, 7
  %v2935 = vsub.s32 %v2932, %v2934
  %v2936 = vrot.slane %v2922, %v2935
  %v2938 = vunpack.c.l.s4 1966171168
  %v2939 = vunpack.c.0.s8 %v2938
  %v2940 = vlaneseq
  %v2941 = vshrl.u32 %v2940, 7
  %v2942 = vsub.s32 %v2939, %v2941
  %v2943 = vrot.slane %v2871, %v2942
  %v2944 = vcombine.low %v2929, %v2936
  %v2946 = vunpack.c.l.s4 1966171168
  %v2947 = vunpack.c.0.s8 %v2946
  %v2948 = vlaneseq
  %v2949 = vshrl.u32 %v2948, 7
  %v2950 = vsub.s32 %v2947, %v2949
  %v2951 = vrot.slane %v2944, %v2950
  %v2953 = vunpack.c.l.s4 1966171168
  %v2954 = vunpack.c.0.s8 %v2953
  %v2955 = vlaneseq
  %v2956 = vshrl.u32 %v2955, 7
  %v2957 = vsub.s32 %v2954, %v2956
  %v2958 = vrot.slane %v2943, %v2957
  %v2959 = vcombine.low %v2951, %v2958
  %vm2962 = vcmask 258048
  %2963 = vst.msk [vmem:[%s15] sm:$0x1f] %vm2962, %v2920
  %2964 = vst.msk [vmem:[%s15 + $0x8] sm:$0x1f] %vm2962, %v2959
  // Predicated region
  $region62: #{_lambda_.4} parent=0 // pred_check
    _
  $region63: #{_lambda_.4} parent=0 // pred_check_branch
    %2966 = sbr.rel (0) target = $region65
  $region64: #{_lambda_.4} parent=0 // pred_region
    _
  $region65: #{_lambda_.4} parent=0 // pred_fallthru
    _
  // Predicated region
  $region66: #{_lambda_.4} parent=0 // pred_check
    _
  $region67: #{_lambda_.4} parent=0 // pred_check_branch
    %2968 = sbr.rel (0) target = $region69
  $region68: #{_lambda_.4} parent=0 // pred_region
    _
  $region69: #{_lambda_.4} parent=0 // pred_fallthru
    _

// kernel: _lambda_.3
$region0: #{_lambda_.3}
  #allocation0 [shape = 'u32[]', space=smem, size = 0x4, offset = 0x4, fixed_abs, tag = 'smem constant byte address 0x4 - core index']
  #allocation1 [shape = 'u32[144,128]{1,0:T(1,128)}', space=vmem, size = 0x12000, scoped, tag = 'internal scratch']
  %s0 = inlined_call_operand.vmem [shape: f32[8,10,32], index: 0, kind: input, shape index: {}]
  %s1 = inlined_call_operand.vmem [shape: f32[1,10,32], index: 1, kind: input, shape index: {}]
  %s2 = inlined_call_operand.vmem [shape: f32[1,32], index: 2, kind: input, shape index: {}, may-alias: {2,7,13}]
  %s3 = inlined_call_operand.vmem [shape: f32[1,32], index: 3, kind: input, shape index: {}, may-alias: {3,6,8,10,12,14}]
  %s4 = inlined_call_operand.vmem [shape: bf16[32,96], index: 4, kind: input, shape index: {}]
  %s5 = inlined_call_operand.vmem [shape: bf16[32,32], index: 5, kind: input, shape index: {}]
  %s6 = inlined_call_operand.vmem [shape: f32[1,32], index: 6, kind: input, shape index: {}, may-alias: {3,6,8,10,12,14}]
  %s7 = inlined_call_operand.vmem [shape: f32[1,32], index: 7, kind: input, shape index: {}, may-alias: {2,7,13}]
  %s8 = inlined_call_operand.vmem [shape: f32[1,32], index: 8, kind: input, shape index: {}, may-alias: {3,6,8,10,12,14}]
  %s9 = inlined_call_operand.vmem [shape: bf16[32,32], index: 9, kind: input, shape index: {}]
  %s10 = inlined_call_operand.vmem [shape: f32[1,32], index: 10, kind: input, shape index: {}, may-alias: {3,6,8,10,12,14}]
  %s11 = inlined_call_operand.vmem [shape: bf16[32,32], index: 11, kind: input, shape index: {}]
  %s12 = inlined_call_operand.vmem [shape: f32[1,32], index: 12, kind: input, shape index: {}, may-alias: {3,6,8,10,12,14}]
  %s13 = inlined_call_operand.vmem [shape: f32[1,32], index: 13, kind: input, shape index: {}, may-alias: {2,7,13}]
  %s14 = inlined_call_operand.vmem [shape: f32[1,32], index: 14, kind: input, shape index: {}, may-alias: {3,6,8,10,12,14}]
  %s15 = inlined_call_operand.vmem [shape: f32[8,10,32], index: 15, kind: output, shape index: {}]
  %s16 = sld [smem:[#allocation0]]
  $region70: #{_lambda_.3} parent=0
    _
  %s18 = ssub.s32 1, %s16
  %s19 = scalar_select 0, %s18, %s16
  // Predicated region
  $region2: #{_lambda_.3} parent=0 // pred_check
    _
  $region3: #{_lambda_.3} parent=0 // pred_check_branch
    %21 = sbr.rel (0) target = $region5
  $region4: #{_lambda_.3} parent=0 // pred_region
    _
  $region5: #{_lambda_.3} parent=0 // pred_fallthru
    _
  // Predicated region
  $region6: #{_lambda_.3} parent=0 // pred_check
    _
  $region7: #{_lambda_.3} parent=0 // pred_check_branch
    %23 = sbr.rel (0) target = $region9
  $region8: #{_lambda_.3} parent=0 // pred_region
    _
  $region9: #{_lambda_.3} parent=0 // pred_fallthru
    _
  // Predicated region
  $region10: #{_lambda_.3} parent=0 // pred_check
    _
  $region11: #{_lambda_.3} parent=0 // pred_check_branch
    %25 = sbr.rel (0) target = $region13
  $region12: #{_lambda_.3} parent=0 // pred_region
    _
  $region13: #{_lambda_.3} parent=0 // pred_fallthru
    _
  // Predicated region
  $region14: #{_lambda_.3} parent=0 // pred_check
    _
  $region15: #{_lambda_.3} parent=0 // pred_check_branch
    %27 = sbr.rel (0) target = $region17
  $region16: #{_lambda_.3} parent=0 // pred_region
    _
  $region17: #{_lambda_.3} parent=0 // pred_fallthru
    _
  // Predicated region
  $region18: #{_lambda_.3} parent=0 // pred_check
    _
  $region19: #{_lambda_.3} parent=0 // pred_check_branch
    %29 = sbr.rel (0) target = $region21
  $region20: #{_lambda_.3} parent=0 // pred_region
    _
  $region21: #{_lambda_.3} parent=0 // pred_fallthru
    _
  // Predicated region
  $region22: #{_lambda_.3} parent=0 // pred_check
    _
  $region23: #{_lambda_.3} parent=0 // pred_check_branch
    %31 = sbr.rel (0) target = $region25
  $region24: #{_lambda_.3} parent=0 // pred_region
    _
  $region25: #{_lambda_.3} parent=0 // pred_fallthru
    _
  // Predicated region
  $region26: #{_lambda_.3} parent=0 // pred_check
    _
  $region27: #{_lambda_.3} parent=0 // pred_check_branch
    %33 = sbr.rel (0) target = $region29
  $region28: #{_lambda_.3} parent=0 // pred_region
    _
  $region29: #{_lambda_.3} parent=0 // pred_fallthru
    _
  // Predicated region
  $region30: #{_lambda_.3} parent=0 // pred_check
    _
  $region31: #{_lambda_.3} parent=0 // pred_check_branch
    %35 = sbr.rel (0) target = $region33
  $region32: #{_lambda_.3} parent=0 // pred_region
    _
  $region33: #{_lambda_.3} parent=0 // pred_fallthru
    _
  // Predicated region
  $region34: #{_lambda_.3} parent=0 // pred_check
    _
  $region35: #{_lambda_.3} parent=0 // pred_check_branch
    %37 = sbr.rel (0) target = $region37
  $region36: #{_lambda_.3} parent=0 // pred_region
    _
  $region37: #{_lambda_.3} parent=0 // pred_fallthru
    _
  // Predicated region
  $region38: #{_lambda_.3} parent=0 // pred_check
    _
  $region39: #{_lambda_.3} parent=0 // pred_check_branch
    %39 = sbr.rel (0) target = $region41
  $region40: #{_lambda_.3} parent=0 // pred_region
    _
  $region41: #{_lambda_.3} parent=0 // pred_fallthru
    _
  // Predicated region
  $region42: #{_lambda_.3} parent=0 // pred_check
    _
  $region43: #{_lambda_.3} parent=0 // pred_check_branch
    %41 = sbr.rel (0) target = $region45
  $region44: #{_lambda_.3} parent=0 // pred_region
    _
  $region45: #{_lambda_.3} parent=0 // pred_fallthru
    _
  // Predicated region
  $region46: #{_lambda_.3} parent=0 // pred_check
    _
  $region47: #{_lambda_.3} parent=0 // pred_check_branch
    %43 = sbr.rel (0) target = $region49
  $region48: #{_lambda_.3} parent=0 // pred_region
    _
  $region49: #{_lambda_.3} parent=0 // pred_fallthru
    _
  // Predicated region
  $region50: #{_lambda_.3} parent=0 // pred_check
    _
  $region51: #{_lambda_.3} parent=0 // pred_check_branch
    %45 = sbr.rel (0) target = $region53
  $region52: #{_lambda_.3} parent=0 // pred_region
    _
  $region53: #{_lambda_.3} parent=0 // pred_fallthru
    _
  // Predicated region
  $region54: #{_lambda_.3} parent=0 // pred_check
    _
  $region55: #{_lambda_.3} parent=0 // pred_check_branch
    %47 = sbr.rel (0) target = $region57
  $region56: #{_lambda_.3} parent=0 // pred_region
    _
  $region57: #{_lambda_.3} parent=0 // pred_fallthru
    _
  // Predicated region
  $region58: #{_lambda_.3} parent=0 // pred_check
    _
  $region59: #{_lambda_.3} parent=0 // pred_check_branch
    %49 = sbr.rel (0) target = $region61
  $region60: #{_lambda_.3} parent=0 // pred_region
    _
  $region61: #{_lambda_.3} parent=0 // pred_fallthru
    _
  %v51 = vld [vmem:[%s0] sm:$0xff]
  %v52 = vld [vmem:[%s0 + $0x8] sm:$0x3]
  %v53 = vld [vmem:[%s0 + $0x10] sm:$0xff]
  %v54 = vld [vmem:[%s0 + $0x18] sm:$0x3]
  %v55 = vld [vmem:[%s0 + $0x20] sm:$0xff]
  %v56 = vld [vmem:[%s0 + $0x28] sm:$0x3]
  %v57 = vld [vmem:[%s0 + $0x30] sm:$0xff]
  %v58 = vld [vmem:[%s0 + $0x38] sm:$0x3]
  %v59 = vld [vmem:[%s0 + $0x40] sm:$0xff]
  %v60 = vld [vmem:[%s0 + $0x48] sm:$0x3]
  %v61 = vld [vmem:[%s0 + $0x50] sm:$0xff]
  %v62 = vld [vmem:[%s0 + $0x58] sm:$0x3]
  %v63 = vld [vmem:[%s0 + $0x60] sm:$0xff]
  %v64 = vld [vmem:[%s0 + $0x68] sm:$0x3]
  %v65 = vld [vmem:[%s0 + $0x70] sm:$0xff]
  %v66 = vld [vmem:[%s0 + $0x78] sm:$0x3]
  %v67 = vld [vmem:[%s1] sm:$0xff]
  %v68 = vld [vmem:[%s1 + $0x8] sm:$0x3]
  %v69 = vadd.f32 %v51, %v67
  %v70 = vadd.f32 %v52, %v68
  %v71 = vadd.f32 %v53, %v67
  %v72 = vadd.f32 %v54, %v68
  %v73 = vadd.f32 %v55, %v67
  %v74 = vadd.f32 %v56, %v68
  %v75 = vadd.f32 %v57, %v67
  %v76 = vadd.f32 %v58, %v68
  %v77 = vadd.f32 %v59, %v67
  %v78 = vadd.f32 %v60, %v68
  %v79 = vadd.f32 %v61, %v67
  %v80 = vadd.f32 %v62, %v68
  %v81 = vadd.f32 %v63, %v67
  %v82 = vadd.f32 %v64, %v68
  %v83 = vadd.f32 %v65, %v67
  %v84 = vadd.f32 %v66, %v68
  %v101 = vcombine.high %v69, %v69
  %v103 = vunpack.c.l.s4 1983009808
  %v104 = vunpack.c.0.s8 %v103
  %v105 = vlaneseq
  %v106 = vshrl.u32 %v105, 7
  %v107 = vsub.s32 %v104, %v106
  %v108 = vrot.slane %v69, %v107
  %v110 = vunpack.c.l.s4 1983009808
  %v111 = vunpack.c.0.s8 %v110
  %v112 = vlaneseq
  %v113 = vshrl.u32 %v112, 7
  %v114 = vsub.s32 %v111, %v113
  %v115 = vrot.slane %v101, %v114
  %v116 = vcombine.high %v108, %v108
  %v117 = vcombine.high %v115, %v115
  %v119 = vunpack.c.l.s4 1983009808
  %v120 = vunpack.c.0.s8 %v119
  %v121 = vlaneseq
  %v122 = vshrl.u32 %v121, 7
  %v123 = vsub.s32 %v120, %v122
  %v124 = vrot.slane %v70, %v123
  %v125 = vcombine.high %v71, %v71
  %v127 = vunpack.c.l.s4 1983009808
  %v128 = vunpack.c.0.s8 %v127
  %v129 = vlaneseq
  %v130 = vshrl.u32 %v129, 7
  %v131 = vsub.s32 %v128, %v130
  %v132 = vrot.slane %v71, %v131
  %v134 = vunpack.c.l.s4 1983009808
  %v135 = vunpack.c.0.s8 %v134
  %v136 = vlaneseq
  %v137 = vshrl.u32 %v136, 7
  %v138 = vsub.s32 %v135, %v137
  %v139 = vrot.slane %v125, %v138
  %v140 = vcombine.high %v132, %v132
  %v141 = vcombine.high %v139, %v139
  %v143 = vunpack.c.l.s4 1983009808
  %v144 = vunpack.c.0.s8 %v143
  %v145 = vlaneseq
  %v146 = vshrl.u32 %v145, 7
  %v147 = vsub.s32 %v144, %v146
  %v148 = vrot.slane %v72, %v147
  %v149 = vcombine.high %v73, %v73
  %v151 = vunpack.c.l.s4 1983009808
  %v152 = vunpack.c.0.s8 %v151
  %v153 = vlaneseq
  %v154 = vshrl.u32 %v153, 7
  %v155 = vsub.s32 %v152, %v154
  %v156 = vrot.slane %v73, %v155
  %v158 = vunpack.c.l.s4 1983009808
  %v159 = vunpack.c.0.s8 %v158
  %v160 = vlaneseq
  %v161 = vshrl.u32 %v160, 7
  %v162 = vsub.s32 %v159, %v161
  %v163 = vrot.slane %v149, %v162
  %v164 = vcombine.high %v156, %v156
  %v165 = vcombine.high %v163, %v163
  %v167 = vunpack.c.l.s4 1983009808
  %v168 = vunpack.c.0.s8 %v167
  %v169 = vlaneseq
  %v170 = vshrl.u32 %v169, 7
  %v171 = vsub.s32 %v168, %v170
  %v172 = vrot.slane %v74, %v171
  %v173 = vcombine.high %v75, %v75
  %v175 = vunpack.c.l.s4 1983009808
  %v176 = vunpack.c.0.s8 %v175
  %v177 = vlaneseq
  %v178 = vshrl.u32 %v177, 7
  %v179 = vsub.s32 %v176, %v178
  %v180 = vrot.slane %v75, %v179
  %v182 = vunpack.c.l.s4 1983009808
  %v183 = vunpack.c.0.s8 %v182
  %v184 = vlaneseq
  %v185 = vshrl.u32 %v184, 7
  %v186 = vsub.s32 %v183, %v185
  %v187 = vrot.slane %v173, %v186
  %v188 = vcombine.high %v180, %v180
  %v189 = vcombine.high %v187, %v187
  %v191 = vunpack.c.l.s4 1983009808
  %v192 = vunpack.c.0.s8 %v191
  %v193 = vlaneseq
  %v194 = vshrl.u32 %v193, 7
  %v195 = vsub.s32 %v192, %v194
  %v196 = vrot.slane %v76, %v195
  %v197 = vcombine.high %v77, %v77
  %v199 = vunpack.c.l.s4 1983009808
  %v200 = vunpack.c.0.s8 %v199
  %v201 = vlaneseq
  %v202 = vshrl.u32 %v201, 7
  %v203 = vsub.s32 %v200, %v202
  %v204 = vrot.slane %v77, %v203
  %v206 = vunpack.c.l.s4 1983009808
  %v207 = vunpack.c.0.s8 %v206
  %v208 = vlaneseq
  %v209 = vshrl.u32 %v208, 7
  %v210 = vsub.s32 %v207, %v209
  %v211 = vrot.slane %v197, %v210
  %v212 = vcombine.high %v204, %v204
  %v213 = vcombine.high %v211, %v211
  %v215 = vunpack.c.l.s4 1983009808
  %v216 = vunpack.c.0.s8 %v215
  %v217 = vlaneseq
  %v218 = vshrl.u32 %v217, 7
  %v219 = vsub.s32 %v216, %v218
  %v220 = vrot.slane %v78, %v219
  %v221 = vcombine.high %v79, %v79
  %v223 = vunpack.c.l.s4 1983009808
  %v224 = vunpack.c.0.s8 %v223
  %v225 = vlaneseq
  %v226 = vshrl.u32 %v225, 7
  %v227 = vsub.s32 %v224, %v226
  %v228 = vrot.slane %v79, %v227
  %v230 = vunpack.c.l.s4 1983009808
  %v231 = vunpack.c.0.s8 %v230
  %v232 = vlaneseq
  %v233 = vshrl.u32 %v232, 7
  %v234 = vsub.s32 %v231, %v233
  %v235 = vrot.slane %v221, %v234
  %v236 = vcombine.high %v228, %v228
  %v237 = vcombine.high %v235, %v235
  %v239 = vunpack.c.l.s4 1983009808
  %v240 = vunpack.c.0.s8 %v239
  %v241 = vlaneseq
  %v242 = vshrl.u32 %v241, 7
  %v243 = vsub.s32 %v240, %v242
  %v244 = vrot.slane %v80, %v243
  %v245 = vcombine.high %v81, %v81
  %v247 = vunpack.c.l.s4 1983009808
  %v248 = vunpack.c.0.s8 %v247
  %v249 = vlaneseq
  %v250 = vshrl.u32 %v249, 7
  %v251 = vsub.s32 %v248, %v250
  %v252 = vrot.slane %v81, %v251
  %v254 = vunpack.c.l.s4 1983009808
  %v255 = vunpack.c.0.s8 %v254
  %v256 = vlaneseq
  %v257 = vshrl.u32 %v256, 7
  %v258 = vsub.s32 %v255, %v257
  %v259 = vrot.slane %v245, %v258
  %v260 = vcombine.high %v252, %v252
  %v261 = vcombine.high %v259, %v259
  %v263 = vunpack.c.l.s4 1983009808
  %v264 = vunpack.c.0.s8 %v263
  %v265 = vlaneseq
  %v266 = vshrl.u32 %v265, 7
  %v267 = vsub.s32 %v264, %v266
  %v268 = vrot.slane %v82, %v267
  %v269 = vcombine.high %v83, %v83
  %v271 = vunpack.c.l.s4 1983009808
  %v272 = vunpack.c.0.s8 %v271
  %v273 = vlaneseq
  %v274 = vshrl.u32 %v273, 7
  %v275 = vsub.s32 %v272, %v274
  %v276 = vrot.slane %v83, %v275
  %v278 = vunpack.c.l.s4 1983009808
  %v279 = vunpack.c.0.s8 %v278
  %v280 = vlaneseq
  %v281 = vshrl.u32 %v280, 7
  %v282 = vsub.s32 %v279, %v281
  %v283 = vrot.slane %v269, %v282
  %v284 = vcombine.high %v276, %v276
  %v285 = vcombine.high %v283, %v283
  %v287 = vunpack.c.l.s4 1983009808
  %v288 = vunpack.c.0.s8 %v287
  %v289 = vlaneseq
  %v290 = vshrl.u32 %v289, 7
  %v291 = vsub.s32 %v288, %v290
  %v292 = vrot.slane %v84, %v291
  %v333 = vld [vmem:[%s2] sm:$0x1]
  %v334 = vld [vmem:[%s3] sm:$0x1]
  %v335 = vcombine.low %v108, %v116
  %v336 = vcombine.low %v115, %v117
  %v338 = vunpack.c.l.s4 1983009808
  %v339 = vunpack.c.0.s8 %v338
  %v340 = vlaneseq
  %v341 = vshrl.u32 %v340, 7
  %v342 = vsub.s32 %v339, %v341
  %v343 = vrot.slane %v335, %v342
  %v345 = vunpack.c.l.s4 1983009808
  %v346 = vunpack.c.0.s8 %v345
  %v347 = vlaneseq
  %v348 = vshrl.u32 %v347, 7
  %v349 = vsub.s32 %v346, %v348
  %v350 = vrot.slane %v336, %v349
  %v351 = vcombine.low %v343, %v350
  %v352 = vcombine.low %v124, %v132
  %v353 = vcombine.low %v140, %v139
  %v355 = vunpack.c.l.s4 1983009808
  %v356 = vunpack.c.0.s8 %v355
  %v357 = vlaneseq
  %v358 = vshrl.u32 %v357, 7
  %v359 = vsub.s32 %v356, %v358
  %v360 = vrot.slane %v352, %v359
  %v362 = vunpack.c.l.s4 1983009808
  %v363 = vunpack.c.0.s8 %v362
  %v364 = vlaneseq
  %v365 = vshrl.u32 %v364, 7
  %v366 = vsub.s32 %v363, %v365
  %v367 = vrot.slane %v353, %v366
  %v368 = vcombine.low %v360, %v367
  %v369 = vcombine.low %v141, %v148
  %v370 = vcombine.low %v156, %v164
  %v372 = vunpack.c.l.s4 1983009808
  %v373 = vunpack.c.0.s8 %v372
  %v374 = vlaneseq
  %v375 = vshrl.u32 %v374, 7
  %v376 = vsub.s32 %v373, %v375
  %v377 = vrot.slane %v369, %v376
  %v379 = vunpack.c.l.s4 1983009808
  %v380 = vunpack.c.0.s8 %v379
  %v381 = vlaneseq
  %v382 = vshrl.u32 %v381, 7
  %v383 = vsub.s32 %v380, %v382
  %v384 = vrot.slane %v370, %v383
  %v385 = vcombine.low %v377, %v384
  %v386 = vcombine.low %v163, %v165
  %v387 = vcombine.low %v172, %v180
  %v389 = vunpack.c.l.s4 1983009808
  %v390 = vunpack.c.0.s8 %v389
  %v391 = vlaneseq
  %v392 = vshrl.u32 %v391, 7
  %v393 = vsub.s32 %v390, %v392
  %v394 = vrot.slane %v386, %v393
  %v396 = vunpack.c.l.s4 1983009808
  %v397 = vunpack.c.0.s8 %v396
  %v398 = vlaneseq
  %v399 = vshrl.u32 %v398, 7
  %v400 = vsub.s32 %v397, %v399
  %v401 = vrot.slane %v387, %v400
  %v402 = vcombine.low %v394, %v401
  %v403 = vcombine.low %v188, %v187
  %v404 = vcombine.low %v189, %v196
  %v406 = vunpack.c.l.s4 1983009808
  %v407 = vunpack.c.0.s8 %v406
  %v408 = vlaneseq
  %v409 = vshrl.u32 %v408, 7
  %v410 = vsub.s32 %v407, %v409
  %v411 = vrot.slane %v403, %v410
  %v413 = vunpack.c.l.s4 1983009808
  %v414 = vunpack.c.0.s8 %v413
  %v415 = vlaneseq
  %v416 = vshrl.u32 %v415, 7
  %v417 = vsub.s32 %v414, %v416
  %v418 = vrot.slane %v404, %v417
  %v419 = vcombine.low %v411, %v418
  %v420 = vcombine.low %v204, %v212
  %v421 = vcombine.low %v211, %v213
  %v423 = vunpack.c.l.s4 1983009808
  %v424 = vunpack.c.0.s8 %v423
  %v425 = vlaneseq
  %v426 = vshrl.u32 %v425, 7
  %v427 = vsub.s32 %v424, %v426
  %v428 = vrot.slane %v420, %v427
  %v430 = vunpack.c.l.s4 1983009808
  %v431 = vunpack.c.0.s8 %v430
  %v432 = vlaneseq
  %v433 = vshrl.u32 %v432, 7
  %v434 = vsub.s32 %v431, %v433
  %v435 = vrot.slane %v421, %v434
  %v436 = vcombine.low %v428, %v435
  %v437 = vcombine.low %v220, %v228
  %v438 = vcombine.low %v236, %v235
  %v440 = vunpack.c.l.s4 1983009808
  %v441 = vunpack.c.0.s8 %v440
  %v442 = vlaneseq
  %v443 = vshrl.u32 %v442, 7
  %v444 = vsub.s32 %v441, %v443
  %v445 = vrot.slane %v437, %v444
  %v447 = vunpack.c.l.s4 1983009808
  %v448 = vunpack.c.0.s8 %v447
  %v449 = vlaneseq
  %v450 = vshrl.u32 %v449, 7
  %v451 = vsub.s32 %v448, %v450
  %v452 = vrot.slane %v438, %v451
  %v453 = vcombine.low %v445, %v452
  %v454 = vcombine.low %v237, %v244
  %v455 = vcombine.low %v252, %v260
  %v457 = vunpack.c.l.s4 1983009808
  %v458 = vunpack.c.0.s8 %v457
  %v459 = vlaneseq
  %v460 = vshrl.u32 %v459, 7
  %v461 = vsub.s32 %v458, %v460
  %v462 = vrot.slane %v454, %v461
  %v464 = vunpack.c.l.s4 1983009808
  %v465 = vunpack.c.0.s8 %v464
  %v466 = vlaneseq
  %v467 = vshrl.u32 %v466, 7
  %v468 = vsub.s32 %v465, %v467
  %v469 = vrot.slane %v455, %v468
  %v470 = vcombine.low %v462, %v469
  %v471 = vcombine.low %v259, %v261
  %v472 = vcombine.low %v268, %v276
  %v474 = vunpack.c.l.s4 1983009808
  %v475 = vunpack.c.0.s8 %v474
  %v476 = vlaneseq
  %v477 = vshrl.u32 %v476, 7
  %v478 = vsub.s32 %v475, %v477
  %v479 = vrot.slane %v471, %v478
  %v481 = vunpack.c.l.s4 1983009808
  %v482 = vunpack.c.0.s8 %v481
  %v483 = vlaneseq
  %v484 = vshrl.u32 %v483, 7
  %v485 = vsub.s32 %v482, %v484
  %v486 = vrot.slane %v472, %v485
  %v487 = vcombine.low %v479, %v486
  %v488 = vcombine.low %v284, %v283
  %v489 = vcombine.low %v285, %v292
  %v491 = vunpack.c.l.s4 1983009808
  %v492 = vunpack.c.0.s8 %v491
  %v493 = vlaneseq
  %v494 = vshrl.u32 %v493, 7
  %v495 = vsub.s32 %v492, %v494
  %v496 = vrot.slane %v488, %v495
  %v498 = vunpack.c.l.s4 1983009808
  %v499 = vunpack.c.0.s8 %v498
  %v500 = vlaneseq
  %v501 = vshrl.u32 %v500, 7
  %v502 = vsub.s32 %v499, %v501
  %v503 = vrot.slane %v489, %v502
  %v504 = vcombine.low %v496, %v503
  %vm515 = vcmask 261120
  %v516 = vsel %vm515, %v351, 0.0
  %517 = vadd.xlane.f32.xlu0 %v516
  %v518 = vpop.xlane.xlu0 %517
  %v519 = vsel %vm515, %v368, 0.0
  %520 = vadd.xlane.f32.xlu0 %v519
  %v521 = vpop.xlane.xlu0 %520
  %v522 = vsel %vm515, %v385, 0.0
  %523 = vadd.xlane.f32.xlu0 %v522
  %v524 = vpop.xlane.xlu0 %523
  %v525 = vsel %vm515, %v402, 0.0
  %526 = vadd.xlane.f32.xlu0 %v525
  %v527 = vpop.xlane.xlu0 %526
  %v528 = vsel %vm515, %v419, 0.0
  %529 = vadd.xlane.f32.xlu0 %v528
  %v530 = vpop.xlane.xlu0 %529
  %v531 = vsel %vm515, %v436, 0.0
  %532 = vadd.xlane.f32.xlu0 %v531
  %v533 = vpop.xlane.xlu0 %532
  %v534 = vsel %vm515, %v453, 0.0
  %535 = vadd.xlane.f32.xlu0 %v534
  %v536 = vpop.xlane.xlu0 %535
  %v537 = vsel %vm515, %v470, 0.0
  %538 = vadd.xlane.f32.xlu0 %v537
  %v539 = vpop.xlane.xlu0 %538
  %v540 = vsel %vm515, %v487, 0.0
  %541 = vadd.xlane.f32.xlu0 %v540
  %v542 = vpop.xlane.xlu0 %541
  %v543 = vsel %vm515, %v504, 0.0
  %544 = vadd.xlane.f32.xlu0 %v543
  %v545 = vpop.xlane.xlu0 %544
  %v546 = vrcp.pop 32.0
  %v547 = vmul.f32 %v518, %v546
  %v548 = vmul.f32 %v521, %v546
  %v549 = vmul.f32 %v524, %v546
  %v550 = vmul.f32 %v527, %v546
  %v551 = vmul.f32 %v530, %v546
  %v552 = vmul.f32 %v533, %v546
  %v553 = vmul.f32 %v536, %v546
  %v554 = vmul.f32 %v539, %v546
  %v555 = vmul.f32 %v542, %v546
  %v556 = vmul.f32 %v545, %v546
  %v568 = vunpack.c.l.s4 269488144
  %v569 = vunpack.c.0.s8 %v568
  %v570 = vlaneseq
  %v571 = vshrl.u32 %v570, 7
  %v572 = vsub.s32 %v569, %v571
  %v573 = vrot.slane %v547, %v572
  %v575 = vunpack.c.l.s4 842150450
  %v576 = vunpack.c.0.s8 %v575
  %v577 = vlaneseq
  %v578 = vshrl.u32 %v577, 7
  %v579 = vsub.s32 %v576, %v578
  %v580 = vrot.slane %v547, %v579
  %v582 = vunpack.c.l.s4 1414812756
  %v583 = vunpack.c.0.s8 %v582
  %v584 = vlaneseq
  %v585 = vshrl.u32 %v584, 7
  %v586 = vsub.s32 %v583, %v585
  %v587 = vrot.slane %v547, %v586
  %v589 = vunpack.c.l.s4 1987475062
  %v590 = vunpack.c.0.s8 %v589
  %v591 = vlaneseq
  %v592 = vshrl.u32 %v591, 7
  %v593 = vsub.s32 %v590, %v592
  %v594 = vrot.slane %v547, %v593
  %v596 = vunpack.c.l.s4 269488144
  %v597 = vunpack.c.0.s8 %v596
  %v598 = vlaneseq
  %v599 = vshrl.u32 %v598, 7
  %v600 = vsub.s32 %v597, %v599
  %v601 = vrot.slane %v548, %v600
  %v603 = vunpack.c.l.s4 842150450
  %v604 = vunpack.c.0.s8 %v603
  %v605 = vlaneseq
  %v606 = vshrl.u32 %v605, 7
  %v607 = vsub.s32 %v604, %v606
  %v608 = vrot.slane %v548, %v607
  %v610 = vunpack.c.l.s4 1414812756
  %v611 = vunpack.c.0.s8 %v610
  %v612 = vlaneseq
  %v613 = vshrl.u32 %v612, 7
  %v614 = vsub.s32 %v611, %v613
  %v615 = vrot.slane %v548, %v614
  %v617 = vunpack.c.l.s4 1987475062
  %v618 = vunpack.c.0.s8 %v617
  %v619 = vlaneseq
  %v620 = vshrl.u32 %v619, 7
  %v621 = vsub.s32 %v618, %v620
  %v622 = vrot.slane %v548, %v621
  %v624 = vunpack.c.l.s4 269488144
  %v625 = vunpack.c.0.s8 %v624
  %v626 = vlaneseq
  %v627 = vshrl.u32 %v626, 7
  %v628 = vsub.s32 %v625, %v627
  %v629 = vrot.slane %v549, %v628
  %v631 = vunpack.c.l.s4 842150450
  %v632 = vunpack.c.0.s8 %v631
  %v633 = vlaneseq
  %v634 = vshrl.u32 %v633, 7
  %v635 = vsub.s32 %v632, %v634
  %v636 = vrot.slane %v549, %v635
  %v638 = vunpack.c.l.s4 1414812756
  %v639 = vunpack.c.0.s8 %v638
  %v640 = vlaneseq
  %v641 = vshrl.u32 %v640, 7
  %v642 = vsub.s32 %v639, %v641
  %v643 = vrot.slane %v549, %v642
  %v645 = vunpack.c.l.s4 1987475062
  %v646 = vunpack.c.0.s8 %v645
  %v647 = vlaneseq
  %v648 = vshrl.u32 %v647, 7
  %v649 = vsub.s32 %v646, %v648
  %v650 = vrot.slane %v549, %v649
  %v652 = vunpack.c.l.s4 269488144
  %v653 = vunpack.c.0.s8 %v652
  %v654 = vlaneseq
  %v655 = vshrl.u32 %v654, 7
  %v656 = vsub.s32 %v653, %v655
  %v657 = vrot.slane %v550, %v656
  %v659 = vunpack.c.l.s4 842150450
  %v660 = vunpack.c.0.s8 %v659
  %v661 = vlaneseq
  %v662 = vshrl.u32 %v661, 7
  %v663 = vsub.s32 %v660, %v662
  %v664 = vrot.slane %v550, %v663
  %v666 = vunpack.c.l.s4 1414812756
  %v667 = vunpack.c.0.s8 %v666
  %v668 = vlaneseq
  %v669 = vshrl.u32 %v668, 7
  %v670 = vsub.s32 %v667, %v669
  %v671 = vrot.slane %v550, %v670
  %v673 = vunpack.c.l.s4 1987475062
  %v674 = vunpack.c.0.s8 %v673
  %v675 = vlaneseq
  %v676 = vshrl.u32 %v675, 7
  %v677 = vsub.s32 %v674, %v676
  %v678 = vrot.slane %v550, %v677
  %v680 = vunpack.c.l.s4 269488144
  %v681 = vunpack.c.0.s8 %v680
  %v682 = vlaneseq
  %v683 = vshrl.u32 %v682, 7
  %v684 = vsub.s32 %v681, %v683
  %v685 = vrot.slane %v551, %v684
  %v687 = vunpack.c.l.s4 842150450
  %v688 = vunpack.c.0.s8 %v687
  %v689 = vlaneseq
  %v690 = vshrl.u32 %v689, 7
  %v691 = vsub.s32 %v688, %v690
  %v692 = vrot.slane %v551, %v691
  %v694 = vunpack.c.l.s4 1414812756
  %v695 = vunpack.c.0.s8 %v694
  %v696 = vlaneseq
  %v697 = vshrl.u32 %v696, 7
  %v698 = vsub.s32 %v695, %v697
  %v699 = vrot.slane %v551, %v698
  %v701 = vunpack.c.l.s4 1987475062
  %v702 = vunpack.c.0.s8 %v701
  %v703 = vlaneseq
  %v704 = vshrl.u32 %v703, 7
  %v705 = vsub.s32 %v702, %v704
  %v706 = vrot.slane %v551, %v705
  %v708 = vunpack.c.l.s4 269488144
  %v709 = vunpack.c.0.s8 %v708
  %v710 = vlaneseq
  %v711 = vshrl.u32 %v710, 7
  %v712 = vsub.s32 %v709, %v711
  %v713 = vrot.slane %v552, %v712
  %v715 = vunpack.c.l.s4 842150450
  %v716 = vunpack.c.0.s8 %v715
  %v717 = vlaneseq
  %v718 = vshrl.u32 %v717, 7
  %v719 = vsub.s32 %v716, %v718
  %v720 = vrot.slane %v552, %v719
  %v722 = vunpack.c.l.s4 1414812756
  %v723 = vunpack.c.0.s8 %v722
  %v724 = vlaneseq
  %v725 = vshrl.u32 %v724, 7
  %v726 = vsub.s32 %v723, %v725
  %v727 = vrot.slane %v552, %v726
  %v729 = vunpack.c.l.s4 1987475062
  %v730 = vunpack.c.0.s8 %v729
  %v731 = vlaneseq
  %v732 = vshrl.u32 %v731, 7
  %v733 = vsub.s32 %v730, %v732
  %v734 = vrot.slane %v552, %v733
  %v736 = vunpack.c.l.s4 269488144
  %v737 = vunpack.c.0.s8 %v736
  %v738 = vlaneseq
  %v739 = vshrl.u32 %v738, 7
  %v740 = vsub.s32 %v737, %v739
  %v741 = vrot.slane %v553, %v740
  %v743 = vunpack.c.l.s4 842150450
  %v744 = vunpack.c.0.s8 %v743
  %v745 = vlaneseq
  %v746 = vshrl.u32 %v745, 7
  %v747 = vsub.s32 %v744, %v746
  %v748 = vrot.slane %v553, %v747
  %v750 = vunpack.c.l.s4 1414812756
  %v751 = vunpack.c.0.s8 %v750
  %v752 = vlaneseq
  %v753 = vshrl.u32 %v752, 7
  %v754 = vsub.s32 %v751, %v753
  %v755 = vrot.slane %v553, %v754
  %v757 = vunpack.c.l.s4 1987475062
  %v758 = vunpack.c.0.s8 %v757
  %v759 = vlaneseq
  %v760 = vshrl.u32 %v759, 7
  %v761 = vsub.s32 %v758, %v760
  %v762 = vrot.slane %v553, %v761
  %v764 = vunpack.c.l.s4 269488144
  %v765 = vunpack.c.0.s8 %v764
  %v766 = vlaneseq
  %v767 = vshrl.u32 %v766, 7
  %v768 = vsub.s32 %v765, %v767
  %v769 = vrot.slane %v554, %v768
  %v771 = vunpack.c.l.s4 842150450
  %v772 = vunpack.c.0.s8 %v771
  %v773 = vlaneseq
  %v774 = vshrl.u32 %v773, 7
  %v775 = vsub.s32 %v772, %v774
  %v776 = vrot.slane %v554, %v775
  %v778 = vunpack.c.l.s4 1414812756
  %v779 = vunpack.c.0.s8 %v778
  %v780 = vlaneseq
  %v781 = vshrl.u32 %v780, 7
  %v782 = vsub.s32 %v779, %v781
  %v783 = vrot.slane %v554, %v782
  %v785 = vunpack.c.l.s4 1987475062
  %v786 = vunpack.c.0.s8 %v785
  %v787 = vlaneseq
  %v788 = vshrl.u32 %v787, 7
  %v789 = vsub.s32 %v786, %v788
  %v790 = vrot.slane %v554, %v789
  %v792 = vunpack.c.l.s4 269488144
  %v793 = vunpack.c.0.s8 %v792
  %v794 = vlaneseq
  %v795 = vshrl.u32 %v794, 7
  %v796 = vsub.s32 %v793, %v795
  %v797 = vrot.slane %v555, %v796
  %v799 = vunpack.c.l.s4 842150450
  %v800 = vunpack.c.0.s8 %v799
  %v801 = vlaneseq
  %v802 = vshrl.u32 %v801, 7
  %v803 = vsub.s32 %v800, %v802
  %v804 = vrot.slane %v555, %v803
  %v806 = vunpack.c.l.s4 1414812756
  %v807 = vunpack.c.0.s8 %v806
  %v808 = vlaneseq
  %v809 = vshrl.u32 %v808, 7
  %v810 = vsub.s32 %v807, %v809
  %v811 = vrot.slane %v555, %v810
  %v813 = vunpack.c.l.s4 1987475062
  %v814 = vunpack.c.0.s8 %v813
  %v815 = vlaneseq
  %v816 = vshrl.u32 %v815, 7
  %v817 = vsub.s32 %v814, %v816
  %v818 = vrot.slane %v555, %v817
  %v820 = vunpack.c.l.s4 269488144
  %v821 = vunpack.c.0.s8 %v820
  %v822 = vlaneseq
  %v823 = vshrl.u32 %v822, 7
  %v824 = vsub.s32 %v821, %v823
  %v825 = vrot.slane %v556, %v824
  %v827 = vunpack.c.l.s4 842150450
  %v828 = vunpack.c.0.s8 %v827
  %v829 = vlaneseq
  %v830 = vshrl.u32 %v829, 7
  %v831 = vsub.s32 %v828, %v830
  %v832 = vrot.slane %v556, %v831
  %v834 = vunpack.c.l.s4 1414812756
  %v835 = vunpack.c.0.s8 %v834
  %v836 = vlaneseq
  %v837 = vshrl.u32 %v836, 7
  %v838 = vsub.s32 %v835, %v837
  %v839 = vrot.slane %v556, %v838
  %v841 = vunpack.c.l.s4 1987475062
  %v842 = vunpack.c.0.s8 %v841
  %v843 = vlaneseq
  %v844 = vshrl.u32 %v843, 7
  %v845 = vsub.s32 %v842, %v844
  %v846 = vrot.slane %v556, %v845
  %v887 = vsub.f32 %v108, %v573
  %v888 = vsub.f32 %v116, %v580
  %v889 = vsub.f32 %v115, %v587
  %v890 = vsub.f32 %v117, %v594
  %v891 = vsub.f32 %v124, %v601
  %v892 = vsub.f32 %v132, %v608
  %v893 = vsub.f32 %v140, %v615
  %v894 = vsub.f32 %v139, %v622
  %v895 = vsub.f32 %v141, %v629
  %v896 = vsub.f32 %v148, %v636
  %v897 = vsub.f32 %v156, %v643
  %v898 = vsub.f32 %v164, %v650
  %v899 = vsub.f32 %v163, %v657
  %v900 = vsub.f32 %v165, %v664
  %v901 = vsub.f32 %v172, %v671
  %v902 = vsub.f32 %v180, %v678
  %v903 = vsub.f32 %v188, %v685
  %v904 = vsub.f32 %v187, %v692
  %v905 = vsub.f32 %v189, %v699
  %v906 = vsub.f32 %v196, %v706
  %v907 = vsub.f32 %v204, %v713
  %v908 = vsub.f32 %v212, %v720
  %v909 = vsub.f32 %v211, %v727
  %v910 = vsub.f32 %v213, %v734
  %v911 = vsub.f32 %v220, %v741
  %v912 = vsub.f32 %v228, %v748
  %v913 = vsub.f32 %v236, %v755
  %v914 = vsub.f32 %v235, %v762
  %v915 = vsub.f32 %v237, %v769
  %v916 = vsub.f32 %v244, %v776
  %v917 = vsub.f32 %v252, %v783
  %v918 = vsub.f32 %v260, %v790
  %v919 = vsub.f32 %v259, %v797
  %v920 = vsub.f32 %v261, %v804
  %v921 = vsub.f32 %v268, %v811
  %v922 = vsub.f32 %v276, %v818
  %v923 = vsub.f32 %v284, %v825
  %v924 = vsub.f32 %v283, %v832
  %v925 = vsub.f32 %v285, %v839
  %v926 = vsub.f32 %v292, %v846
  %v927 = vmul.f32 %v887, %v887
  %v928 = vmul.f32 %v888, %v888
  %v929 = vmul.f32 %v889, %v889
  %v930 = vmul.f32 %v890, %v890
  %v931 = vmul.f32 %v891, %v891
  %v932 = vmul.f32 %v892, %v892
  %v933 = vmul.f32 %v893, %v893
  %v934 = vmul.f32 %v894, %v894
  %v935 = vmul.f32 %v895, %v895
  %v936 = vmul.f32 %v896, %v896
  %v937 = vmul.f32 %v897, %v897
  %v938 = vmul.f32 %v898, %v898
  %v939 = vmul.f32 %v899, %v899
  %v940 = vmul.f32 %v900, %v900
  %v941 = vmul.f32 %v901, %v901
  %v942 = vmul.f32 %v902, %v902
  %v943 = vmul.f32 %v903, %v903
  %v944 = vmul.f32 %v904, %v904
  %v945 = vmul.f32 %v905, %v905
  %v946 = vmul.f32 %v906, %v906
  %v947 = vmul.f32 %v907, %v907
  %v948 = vmul.f32 %v908, %v908
  %v949 = vmul.f32 %v909, %v909
  %v950 = vmul.f32 %v910, %v910
  %v951 = vmul.f32 %v911, %v911
  %v952 = vmul.f32 %v912, %v912
  %v953 = vmul.f32 %v913, %v913
  %v954 = vmul.f32 %v914, %v914
  %v955 = vmul.f32 %v915, %v915
  %v956 = vmul.f32 %v916, %v916
  %v957 = vmul.f32 %v917, %v917
  %v958 = vmul.f32 %v918, %v918
  %v959 = vmul.f32 %v919, %v919
  %v960 = vmul.f32 %v920, %v920
  %v961 = vmul.f32 %v921, %v921
  %v962 = vmul.f32 %v922, %v922
  %v963 = vmul.f32 %v923, %v923
  %v964 = vmul.f32 %v924, %v924
  %v965 = vmul.f32 %v925, %v925
  %v966 = vmul.f32 %v926, %v926
  %v1007 = vcombine.low %v927, %v928
  %v1008 = vcombine.low %v929, %v930
  %v1010 = vunpack.c.l.s4 1983009808
  %v1011 = vunpack.c.0.s8 %v1010
  %v1012 = vlaneseq
  %v1013 = vshrl.u32 %v1012, 7
  %v1014 = vsub.s32 %v1011, %v1013
  %v1015 = vrot.slane %v1007, %v1014
  %v1017 = vunpack.c.l.s4 1983009808
  %v1018 = vunpack.c.0.s8 %v1017
  %v1019 = vlaneseq
  %v1020 = vshrl.u32 %v1019, 7
  %v1021 = vsub.s32 %v1018, %v1020
  %v1022 = vrot.slane %v1008, %v1021
  %v1023 = vcombine.low %v1015, %v1022
  %v1024 = vcombine.low %v931, %v932
  %v1025 = vcombine.low %v933, %v934
  %v1027 = vunpack.c.l.s4 1983009808
  %v1028 = vunpack.c.0.s8 %v1027
  %v1029 = vlaneseq
  %v1030 = vshrl.u32 %v1029, 7
  %v1031 = vsub.s32 %v1028, %v1030
  %v1032 = vrot.slane %v1024, %v1031
  %v1034 = vunpack.c.l.s4 1983009808
  %v1035 = vunpack.c.0.s8 %v1034
  %v1036 = vlaneseq
  %v1037 = vshrl.u32 %v1036, 7
  %v1038 = vsub.s32 %v1035, %v1037
  %v1039 = vrot.slane %v1025, %v1038
  %v1040 = vcombine.low %v1032, %v1039
  %v1041 = vcombine.low %v935, %v936
  %v1042 = vcombine.low %v937, %v938
  %v1044 = vunpack.c.l.s4 1983009808
  %v1045 = vunpack.c.0.s8 %v1044
  %v1046 = vlaneseq
  %v1047 = vshrl.u32 %v1046, 7
  %v1048 = vsub.s32 %v1045, %v1047
  %v1049 = vrot.slane %v1041, %v1048
  %v1051 = vunpack.c.l.s4 1983009808
  %v1052 = vunpack.c.0.s8 %v1051
  %v1053 = vlaneseq
  %v1054 = vshrl.u32 %v1053, 7
  %v1055 = vsub.s32 %v1052, %v1054
  %v1056 = vrot.slane %v1042, %v1055
  %v1057 = vcombine.low %v1049, %v1056
  %v1058 = vcombine.low %v939, %v940
  %v1059 = vcombine.low %v941, %v942
  %v1061 = vunpack.c.l.s4 1983009808
  %v1062 = vunpack.c.0.s8 %v1061
  %v1063 = vlaneseq
  %v1064 = vshrl.u32 %v1063, 7
  %v1065 = vsub.s32 %v1062, %v1064
  %v1066 = vrot.slane %v1058, %v1065
  %v1068 = vunpack.c.l.s4 1983009808
  %v1069 = vunpack.c.0.s8 %v1068
  %v1070 = vlaneseq
  %v1071 = vshrl.u32 %v1070, 7
  %v1072 = vsub.s32 %v1069, %v1071
  %v1073 = vrot.slane %v1059, %v1072
  %v1074 = vcombine.low %v1066, %v1073
  %v1075 = vcombine.low %v943, %v944
  %v1076 = vcombine.low %v945, %v946
  %v1078 = vunpack.c.l.s4 1983009808
  %v1079 = vunpack.c.0.s8 %v1078
  %v1080 = vlaneseq
  %v1081 = vshrl.u32 %v1080, 7
  %v1082 = vsub.s32 %v1079, %v1081
  %v1083 = vrot.slane %v1075, %v1082
  %v1085 = vunpack.c.l.s4 1983009808
  %v1086 = vunpack.c.0.s8 %v1085
  %v1087 = vlaneseq
  %v1088 = vshrl.u32 %v1087, 7
  %v1089 = vsub.s32 %v1086, %v1088
  %v1090 = vrot.slane %v1076, %v1089
  %v1091 = vcombine.low %v1083, %v1090
  %v1092 = vcombine.low %v947, %v948
  %v1093 = vcombine.low %v949, %v950
  %v1095 = vunpack.c.l.s4 1983009808
  %v1096 = vunpack.c.0.s8 %v1095
  %v1097 = vlaneseq
  %v1098 = vshrl.u32 %v1097, 7
  %v1099 = vsub.s32 %v1096, %v1098
  %v1100 = vrot.slane %v1092, %v1099
  %v1102 = vunpack.c.l.s4 1983009808
  %v1103 = vunpack.c.0.s8 %v1102
  %v1104 = vlaneseq
  %v1105 = vshrl.u32 %v1104, 7
  %v1106 = vsub.s32 %v1103, %v1105
  %v1107 = vrot.slane %v1093, %v1106
  %v1108 = vcombine.low %v1100, %v1107
  %v1109 = vcombine.low %v951, %v952
  %v1110 = vcombine.low %v953, %v954
  %v1112 = vunpack.c.l.s4 1983009808
  %v1113 = vunpack.c.0.s8 %v1112
  %v1114 = vlaneseq
  %v1115 = vshrl.u32 %v1114, 7
  %v1116 = vsub.s32 %v1113, %v1115
  %v1117 = vrot.slane %v1109, %v1116
  %v1119 = vunpack.c.l.s4 1983009808
  %v1120 = vunpack.c.0.s8 %v1119
  %v1121 = vlaneseq
  %v1122 = vshrl.u32 %v1121, 7
  %v1123 = vsub.s32 %v1120, %v1122
  %v1124 = vrot.slane %v1110, %v1123
  %v1125 = vcombine.low %v1117, %v1124
  %v1126 = vcombine.low %v955, %v956
  %v1127 = vcombine.low %v957, %v958
  %v1129 = vunpack.c.l.s4 1983009808
  %v1130 = vunpack.c.0.s8 %v1129
  %v1131 = vlaneseq
  %v1132 = vshrl.u32 %v1131, 7
  %v1133 = vsub.s32 %v1130, %v1132
  %v1134 = vrot.slane %v1126, %v1133
  %v1136 = vunpack.c.l.s4 1983009808
  %v1137 = vunpack.c.0.s8 %v1136
  %v1138 = vlaneseq
  %v1139 = vshrl.u32 %v1138, 7
  %v1140 = vsub.s32 %v1137, %v1139
  %v1141 = vrot.slane %v1127, %v1140
  %v1142 = vcombine.low %v1134, %v1141
  %v1143 = vcombine.low %v959, %v960
  %v1144 = vcombine.low %v961, %v962
  %v1146 = vunpack.c.l.s4 1983009808
  %v1147 = vunpack.c.0.s8 %v1146
  %v1148 = vlaneseq
  %v1149 = vshrl.u32 %v1148, 7
  %v1150 = vsub.s32 %v1147, %v1149
  %v1151 = vrot.slane %v1143, %v1150
  %v1153 = vunpack.c.l.s4 1983009808
  %v1154 = vunpack.c.0.s8 %v1153
  %v1155 = vlaneseq
  %v1156 = vshrl.u32 %v1155, 7
  %v1157 = vsub.s32 %v1154, %v1156
  %v1158 = vrot.slane %v1144, %v1157
  %v1159 = vcombine.low %v1151, %v1158
  %v1160 = vcombine.low %v963, %v964
  %v1161 = vcombine.low %v965, %v966
  %v1163 = vunpack.c.l.s4 1983009808
  %v1164 = vunpack.c.0.s8 %v1163
  %v1165 = vlaneseq
  %v1166 = vshrl.u32 %v1165, 7
  %v1167 = vsub.s32 %v1164, %v1166
  %v1168 = vrot.slane %v1160, %v1167
  %v1170 = vunpack.c.l.s4 1983009808
  %v1171 = vunpack.c.0.s8 %v1170
  %v1172 = vlaneseq
  %v1173 = vshrl.u32 %v1172, 7
  %v1174 = vsub.s32 %v1171, %v1173
  %v1175 = vrot.slane %v1161, %v1174
  %v1176 = vcombine.low %v1168, %v1175
  %v1187 = vsel %vm515, %v1023, 0.0
  %1188 = vadd.xlane.f32.xlu0 %v1187
  %v1189 = vpop.xlane.xlu0 %1188
  %v1190 = vsel %vm515, %v1040, 0.0
  %1191 = vadd.xlane.f32.xlu0 %v1190
  %v1192 = vpop.xlane.xlu0 %1191
  %v1193 = vsel %vm515, %v1057, 0.0
  %1194 = vadd.xlane.f32.xlu0 %v1193
  %v1195 = vpop.xlane.xlu0 %1194
  %v1196 = vsel %vm515, %v1074, 0.0
  %1197 = vadd.xlane.f32.xlu0 %v1196
  %v1198 = vpop.xlane.xlu0 %1197
  %v1199 = vsel %vm515, %v1091, 0.0
  %1200 = vadd.xlane.f32.xlu0 %v1199
  %v1201 = vpop.xlane.xlu0 %1200
  %v1202 = vsel %vm515, %v1108, 0.0
  %1203 = vadd.xlane.f32.xlu0 %v1202
  %v1204 = vpop.xlane.xlu0 %1203
  %v1205 = vsel %vm515, %v1125, 0.0
  %1206 = vadd.xlane.f32.xlu0 %v1205
  %v1207 = vpop.xlane.xlu0 %1206
  %v1208 = vsel %vm515, %v1142, 0.0
  %1209 = vadd.xlane.f32.xlu0 %v1208
  %v1210 = vpop.xlane.xlu0 %1209
  %v1211 = vsel %vm515, %v1159, 0.0
  %1212 = vadd.xlane.f32.xlu0 %v1211
  %v1213 = vpop.xlane.xlu0 %1212
  %v1214 = vsel %vm515, %v1176, 0.0
  %1215 = vadd.xlane.f32.xlu0 %v1214
  %v1216 = vpop.xlane.xlu0 %1215
  %v1217 = vmul.f32 %v1189, %v546
  %v1218 = vmul.f32 %v1192, %v546
  %v1219 = vmul.f32 %v1195, %v546
  %v1220 = vmul.f32 %v1198, %v546
  %v1221 = vmul.f32 %v1201, %v546
  %v1222 = vmul.f32 %v1204, %v546
  %v1223 = vmul.f32 %v1207, %v546
  %v1224 = vmul.f32 %v1210, %v546
  %v1225 = vmul.f32 %v1213, %v546
  %v1226 = vmul.f32 %v1216, %v546
  %v1227 = vadd.f32 %v1217, 1e-05
  %v1228 = vadd.f32 %v1218, 1e-05
  %v1229 = vadd.f32 %v1219, 1e-05
  %v1230 = vadd.f32 %v1220, 1e-05
  %v1231 = vadd.f32 %v1221, 1e-05
  %v1232 = vadd.f32 %v1222, 1e-05
  %v1233 = vadd.f32 %v1223, 1e-05
  %v1234 = vadd.f32 %v1224, 1e-05
  %v1235 = vadd.f32 %v1225, 1e-05
  %v1236 = vadd.f32 %v1226, 1e-05
  %v1237 = vrsqrt.pop %v1227
  %v1238 = vrsqrt.pop %v1228
  %v1239 = vrsqrt.pop %v1229
  %v1240 = vrsqrt.pop %v1230
  %v1241 = vrsqrt.pop %v1231
  %v1242 = vrsqrt.pop %v1232
  %v1243 = vrsqrt.pop %v1233
  %v1244 = vrsqrt.pop %v1234
  %v1245 = vrsqrt.pop %v1235
  %v1246 = vrsqrt.pop %v1236
  %v1258 = vunpack.c.l.s4 269488144
  %v1259 = vunpack.c.0.s8 %v1258
  %v1260 = vlaneseq
  %v1261 = vshrl.u32 %v1260, 7
  %v1262 = vsub.s32 %v1259, %v1261
  %v1263 = vrot.slane %v1237, %v1262
  %v1265 = vunpack.c.l.s4 842150450
  %v1266 = vunpack.c.0.s8 %v1265
  %v1267 = vlaneseq
  %v1268 = vshrl.u32 %v1267, 7
  %v1269 = vsub.s32 %v1266, %v1268
  %v1270 = vrot.slane %v1237, %v1269
  %v1272 = vunpack.c.l.s4 1414812756
  %v1273 = vunpack.c.0.s8 %v1272
  %v1274 = vlaneseq
  %v1275 = vshrl.u32 %v1274, 7
  %v1276 = vsub.s32 %v1273, %v1275
  %v1277 = vrot.slane %v1237, %v1276
  %v1279 = vunpack.c.l.s4 1987475062
  %v1280 = vunpack.c.0.s8 %v1279
  %v1281 = vlaneseq
  %v1282 = vshrl.u32 %v1281, 7
  %v1283 = vsub.s32 %v1280, %v1282
  %v1284 = vrot.slane %v1237, %v1283
  %v1286 = vunpack.c.l.s4 269488144
  %v1287 = vunpack.c.0.s8 %v1286
  %v1288 = vlaneseq
  %v1289 = vshrl.u32 %v1288, 7
  %v1290 = vsub.s32 %v1287, %v1289
  %v1291 = vrot.slane %v1238, %v1290
  %v1293 = vunpack.c.l.s4 842150450
  %v1294 = vunpack.c.0.s8 %v1293
  %v1295 = vlaneseq
  %v1296 = vshrl.u32 %v1295, 7
  %v1297 = vsub.s32 %v1294, %v1296
  %v1298 = vrot.slane %v1238, %v1297
  %v1300 = vunpack.c.l.s4 1414812756
  %v1301 = vunpack.c.0.s8 %v1300
  %v1302 = vlaneseq
  %v1303 = vshrl.u32 %v1302, 7
  %v1304 = vsub.s32 %v1301, %v1303
  %v1305 = vrot.slane %v1238, %v1304
  %v1307 = vunpack.c.l.s4 1987475062
  %v1308 = vunpack.c.0.s8 %v1307
  %v1309 = vlaneseq
  %v1310 = vshrl.u32 %v1309, 7
  %v1311 = vsub.s32 %v1308, %v1310
  %v1312 = vrot.slane %v1238, %v1311
  %v1314 = vunpack.c.l.s4 269488144
  %v1315 = vunpack.c.0.s8 %v1314
  %v1316 = vlaneseq
  %v1317 = vshrl.u32 %v1316, 7
  %v1318 = vsub.s32 %v1315, %v1317
  %v1319 = vrot.slane %v1239, %v1318
  %v1321 = vunpack.c.l.s4 842150450
  %v1322 = vunpack.c.0.s8 %v1321
  %v1323 = vlaneseq
  %v1324 = vshrl.u32 %v1323, 7
  %v1325 = vsub.s32 %v1322, %v1324
  %v1326 = vrot.slane %v1239, %v1325
  %v1328 = vunpack.c.l.s4 1414812756
  %v1329 = vunpack.c.0.s8 %v1328
  %v1330 = vlaneseq
  %v1331 = vshrl.u32 %v1330, 7
  %v1332 = vsub.s32 %v1329, %v1331
  %v1333 = vrot.slane %v1239, %v1332
  %v1335 = vunpack.c.l.s4 1987475062
  %v1336 = vunpack.c.0.s8 %v1335
  %v1337 = vlaneseq
  %v1338 = vshrl.u32 %v1337, 7
  %v1339 = vsub.s32 %v1336, %v1338
  %v1340 = vrot.slane %v1239, %v1339
  %v1342 = vunpack.c.l.s4 269488144
  %v1343 = vunpack.c.0.s8 %v1342
  %v1344 = vlaneseq
  %v1345 = vshrl.u32 %v1344, 7
  %v1346 = vsub.s32 %v1343, %v1345
  %v1347 = vrot.slane %v1240, %v1346
  %v1349 = vunpack.c.l.s4 842150450
  %v1350 = vunpack.c.0.s8 %v1349
  %v1351 = vlaneseq
  %v1352 = vshrl.u32 %v1351, 7
  %v1353 = vsub.s32 %v1350, %v1352
  %v1354 = vrot.slane %v1240, %v1353
  %v1356 = vunpack.c.l.s4 1414812756
  %v1357 = vunpack.c.0.s8 %v1356
  %v1358 = vlaneseq
  %v1359 = vshrl.u32 %v1358, 7
  %v1360 = vsub.s32 %v1357, %v1359
  %v1361 = vrot.slane %v1240, %v1360
  %v1363 = vunpack.c.l.s4 1987475062
  %v1364 = vunpack.c.0.s8 %v1363
  %v1365 = vlaneseq
  %v1366 = vshrl.u32 %v1365, 7
  %v1367 = vsub.s32 %v1364, %v1366
  %v1368 = vrot.slane %v1240, %v1367
  %v1370 = vunpack.c.l.s4 269488144
  %v1371 = vunpack.c.0.s8 %v1370
  %v1372 = vlaneseq
  %v1373 = vshrl.u32 %v1372, 7
  %v1374 = vsub.s32 %v1371, %v1373
  %v1375 = vrot.slane %v1241, %v1374
  %v1377 = vunpack.c.l.s4 842150450
  %v1378 = vunpack.c.0.s8 %v1377
  %v1379 = vlaneseq
  %v1380 = vshrl.u32 %v1379, 7
  %v1381 = vsub.s32 %v1378, %v1380
  %v1382 = vrot.slane %v1241, %v1381
  %v1384 = vunpack.c.l.s4 1414812756
  %v1385 = vunpack.c.0.s8 %v1384
  %v1386 = vlaneseq
  %v1387 = vshrl.u32 %v1386, 7
  %v1388 = vsub.s32 %v1385, %v1387
  %v1389 = vrot.slane %v1241, %v1388
  %v1391 = vunpack.c.l.s4 1987475062
  %v1392 = vunpack.c.0.s8 %v1391
  %v1393 = vlaneseq
  %v1394 = vshrl.u32 %v1393, 7
  %v1395 = vsub.s32 %v1392, %v1394
  %v1396 = vrot.slane %v1241, %v1395
  %v1398 = vunpack.c.l.s4 269488144
  %v1399 = vunpack.c.0.s8 %v1398
  %v1400 = vlaneseq
  %v1401 = vshrl.u32 %v1400, 7
  %v1402 = vsub.s32 %v1399, %v1401
  %v1403 = vrot.slane %v1242, %v1402
  %v1405 = vunpack.c.l.s4 842150450
  %v1406 = vunpack.c.0.s8 %v1405
  %v1407 = vlaneseq
  %v1408 = vshrl.u32 %v1407, 7
  %v1409 = vsub.s32 %v1406, %v1408
  %v1410 = vrot.slane %v1242, %v1409
  %v1412 = vunpack.c.l.s4 1414812756
  %v1413 = vunpack.c.0.s8 %v1412
  %v1414 = vlaneseq
  %v1415 = vshrl.u32 %v1414, 7
  %v1416 = vsub.s32 %v1413, %v1415
  %v1417 = vrot.slane %v1242, %v1416
  %v1419 = vunpack.c.l.s4 1987475062
  %v1420 = vunpack.c.0.s8 %v1419
  %v1421 = vlaneseq
  %v1422 = vshrl.u32 %v1421, 7
  %v1423 = vsub.s32 %v1420, %v1422
  %v1424 = vrot.slane %v1242, %v1423
  %v1426 = vunpack.c.l.s4 269488144
  %v1427 = vunpack.c.0.s8 %v1426
  %v1428 = vlaneseq
  %v1429 = vshrl.u32 %v1428, 7
  %v1430 = vsub.s32 %v1427, %v1429
  %v1431 = vrot.slane %v1243, %v1430
  %v1433 = vunpack.c.l.s4 842150450
  %v1434 = vunpack.c.0.s8 %v1433
  %v1435 = vlaneseq
  %v1436 = vshrl.u32 %v1435, 7
  %v1437 = vsub.s32 %v1434, %v1436
  %v1438 = vrot.slane %v1243, %v1437
  %v1440 = vunpack.c.l.s4 1414812756
  %v1441 = vunpack.c.0.s8 %v1440
  %v1442 = vlaneseq
  %v1443 = vshrl.u32 %v1442, 7
  %v1444 = vsub.s32 %v1441, %v1443
  %v1445 = vrot.slane %v1243, %v1444
  %v1447 = vunpack.c.l.s4 1987475062
  %v1448 = vunpack.c.0.s8 %v1447
  %v1449 = vlaneseq
  %v1450 = vshrl.u32 %v1449, 7
  %v1451 = vsub.s32 %v1448, %v1450
  %v1452 = vrot.slane %v1243, %v1451
  %v1454 = vunpack.c.l.s4 269488144
  %v1455 = vunpack.c.0.s8 %v1454
  %v1456 = vlaneseq
  %v1457 = vshrl.u32 %v1456, 7
  %v1458 = vsub.s32 %v1455, %v1457
  %v1459 = vrot.slane %v1244, %v1458
  %v1461 = vunpack.c.l.s4 842150450
  %v1462 = vunpack.c.0.s8 %v1461
  %v1463 = vlaneseq
  %v1464 = vshrl.u32 %v1463, 7
  %v1465 = vsub.s32 %v1462, %v1464
  %v1466 = vrot.slane %v1244, %v1465
  %v1468 = vunpack.c.l.s4 1414812756
  %v1469 = vunpack.c.0.s8 %v1468
  %v1470 = vlaneseq
  %v1471 = vshrl.u32 %v1470, 7
  %v1472 = vsub.s32 %v1469, %v1471
  %v1473 = vrot.slane %v1244, %v1472
  %v1475 = vunpack.c.l.s4 1987475062
  %v1476 = vunpack.c.0.s8 %v1475
  %v1477 = vlaneseq
  %v1478 = vshrl.u32 %v1477, 7
  %v1479 = vsub.s32 %v1476, %v1478
  %v1480 = vrot.slane %v1244, %v1479
  %v1482 = vunpack.c.l.s4 269488144
  %v1483 = vunpack.c.0.s8 %v1482
  %v1484 = vlaneseq
  %v1485 = vshrl.u32 %v1484, 7
  %v1486 = vsub.s32 %v1483, %v1485
  %v1487 = vrot.slane %v1245, %v1486
  %v1489 = vunpack.c.l.s4 842150450
  %v1490 = vunpack.c.0.s8 %v1489
  %v1491 = vlaneseq
  %v1492 = vshrl.u32 %v1491, 7
  %v1493 = vsub.s32 %v1490, %v1492
  %v1494 = vrot.slane %v1245, %v1493
  %v1496 = vunpack.c.l.s4 1414812756
  %v1497 = vunpack.c.0.s8 %v1496
  %v1498 = vlaneseq
  %v1499 = vshrl.u32 %v1498, 7
  %v1500 = vsub.s32 %v1497, %v1499
  %v1501 = vrot.slane %v1245, %v1500
  %v1503 = vunpack.c.l.s4 1987475062
  %v1504 = vunpack.c.0.s8 %v1503
  %v1505 = vlaneseq
  %v1506 = vshrl.u32 %v1505, 7
  %v1507 = vsub.s32 %v1504, %v1506
  %v1508 = vrot.slane %v1245, %v1507
  %v1510 = vunpack.c.l.s4 269488144
  %v1511 = vunpack.c.0.s8 %v1510
  %v1512 = vlaneseq
  %v1513 = vshrl.u32 %v1512, 7
  %v1514 = vsub.s32 %v1511, %v1513
  %v1515 = vrot.slane %v1246, %v1514
  %v1517 = vunpack.c.l.s4 842150450
  %v1518 = vunpack.c.0.s8 %v1517
  %v1519 = vlaneseq
  %v1520 = vshrl.u32 %v1519, 7
  %v1521 = vsub.s32 %v1518, %v1520
  %v1522 = vrot.slane %v1246, %v1521
  %v1524 = vunpack.c.l.s4 1414812756
  %v1525 = vunpack.c.0.s8 %v1524
  %v1526 = vlaneseq
  %v1527 = vshrl.u32 %v1526, 7
  %v1528 = vsub.s32 %v1525, %v1527
  %v1529 = vrot.slane %v1246, %v1528
  %v1531 = vunpack.c.l.s4 1987475062
  %v1532 = vunpack.c.0.s8 %v1531
  %v1533 = vlaneseq
  %v1534 = vshrl.u32 %v1533, 7
  %v1535 = vsub.s32 %v1532, %v1534
  %v1536 = vrot.slane %v1246, %v1535
  %v1577 = vmul.f32 %v887, %v1263
  %v1578 = vmul.f32 %v888, %v1270
  %v1579 = vmul.f32 %v889, %v1277
  %v1580 = vmul.f32 %v890, %v1284
  %v1581 = vmul.f32 %v891, %v1291
  %v1582 = vmul.f32 %v892, %v1298
  %v1583 = vmul.f32 %v893, %v1305
  %v1584 = vmul.f32 %v894, %v1312
  %v1585 = vmul.f32 %v895, %v1319
  %v1586 = vmul.f32 %v896, %v1326
  %v1587 = vmul.f32 %v897, %v1333
  %v1588 = vmul.f32 %v898, %v1340
  %v1589 = vmul.f32 %v899, %v1347
  %v1590 = vmul.f32 %v900, %v1354
  %v1591 = vmul.f32 %v901, %v1361
  %v1592 = vmul.f32 %v902, %v1368
  %v1593 = vmul.f32 %v903, %v1375
  %v1594 = vmul.f32 %v904, %v1382
  %v1595 = vmul.f32 %v905, %v1389
  %v1596 = vmul.f32 %v906, %v1396
  %v1597 = vmul.f32 %v907, %v1403
  %v1598 = vmul.f32 %v908, %v1410
  %v1599 = vmul.f32 %v909, %v1417
  %v1600 = vmul.f32 %v910, %v1424
  %v1601 = vmul.f32 %v911, %v1431
  %v1602 = vmul.f32 %v912, %v1438
  %v1603 = vmul.f32 %v913, %v1445
  %v1604 = vmul.f32 %v914, %v1452
  %v1605 = vmul.f32 %v915, %v1459
  %v1606 = vmul.f32 %v916, %v1466
  %v1607 = vmul.f32 %v917, %v1473
  %v1608 = vmul.f32 %v918, %v1480
  %v1609 = vmul.f32 %v919, %v1487
  %v1610 = vmul.f32 %v920, %v1494
  %v1611 = vmul.f32 %v921, %v1501
  %v1612 = vmul.f32 %v922, %v1508
  %v1613 = vmul.f32 %v923, %v1515
  %v1614 = vmul.f32 %v924, %v1522
  %v1615 = vmul.f32 %v925, %v1529
  %v1616 = vmul.f32 %v926, %v1536
  %v1618 = vlaneseq
  %v1619 = vshrl.u32 %v1618, 7
  %v1620 = vsub.s32 0, %v1619
  %v1621 = vrot.slane %v333, %v1620
  %v1622 = vcombine.high %v1621, %v1621
  %v1624 = vunpack.c.l.s4 1983009808
  %v1625 = vunpack.c.0.s8 %v1624
  %v1626 = vlaneseq
  %v1627 = vshrl.u32 %v1626, 7
  %v1628 = vsub.s32 %v1625, %v1627
  %v1629 = vrot.slane %v1621, %v1628
  %v1631 = vunpack.c.l.s4 1983009808
  %v1632 = vunpack.c.0.s8 %v1631
  %v1633 = vlaneseq
  %v1634 = vshrl.u32 %v1633, 7
  %v1635 = vsub.s32 %v1632, %v1634
  %v1636 = vrot.slane %v1622, %v1635
  %v1637 = vcombine.high %v1629, %v1629
  %v1638 = vcombine.high %v1636, %v1636
  %v1643 = vmul.f32 %v1577, %v1629
  %v1644 = vmul.f32 %v1578, %v1637
  %v1645 = vmul.f32 %v1579, %v1636
  %v1646 = vmul.f32 %v1580, %v1638
  %v1647 = vmul.f32 %v1581, %v1629
  %v1648 = vmul.f32 %v1582, %v1637
  %v1649 = vmul.f32 %v1583, %v1636
  %v1650 = vmul.f32 %v1584, %v1638
  %v1651 = vmul.f32 %v1585, %v1629
  %v1652 = vmul.f32 %v1586, %v1637
  %v1653 = vmul.f32 %v1587, %v1636
  %v1654 = vmul.f32 %v1588, %v1638
  %v1655 = vmul.f32 %v1589, %v1629
  %v1656 = vmul.f32 %v1590, %v1637
  %v1657 = vmul.f32 %v1591, %v1636
  %v1658 = vmul.f32 %v1592, %v1638
  %v1659 = vmul.f32 %v1593, %v1629
  %v1660 = vmul.f32 %v1594, %v1637
  %v1661 = vmul.f32 %v1595, %v1636
  %v1662 = vmul.f32 %v1596, %v1638
  %v1663 = vmul.f32 %v1597, %v1629
  %v1664 = vmul.f32 %v1598, %v1637
  %v1665 = vmul.f32 %v1599, %v1636
  %v1666 = vmul.f32 %v1600, %v1638
  %v1667 = vmul.f32 %v1601, %v1629
  %v1668 = vmul.f32 %v1602, %v1637
  %v1669 = vmul.f32 %v1603, %v1636
  %v1670 = vmul.f32 %v1604, %v1638
  %v1671 = vmul.f32 %v1605, %v1629
  %v1672 = vmul.f32 %v1606, %v1637
  %v1673 = vmul.f32 %v1607, %v1636
  %v1674 = vmul.f32 %v1608, %v1638
  %v1675 = vmul.f32 %v1609, %v1629
  %v1676 = vmul.f32 %v1610, %v1637
  %v1677 = vmul.f32 %v1611, %v1636
  %v1678 = vmul.f32 %v1612, %v1638
  %v1679 = vmul.f32 %v1613, %v1629
  %v1680 = vmul.f32 %v1614, %v1637
  %v1681 = vmul.f32 %v1615, %v1636
  %v1682 = vmul.f32 %v1616, %v1638
  %v1684 = vlaneseq
  %v1685 = vshrl.u32 %v1684, 7
  %v1686 = vsub.s32 0, %v1685
  %v1687 = vrot.slane %v334, %v1686
  %v1688 = vcombine.high %v1687, %v1687
  %v1690 = vunpack.c.l.s4 1983009808
  %v1691 = vunpack.c.0.s8 %v1690
  %v1692 = vlaneseq
  %v1693 = vshrl.u32 %v1692, 7
  %v1694 = vsub.s32 %v1691, %v1693
  %v1695 = vrot.slane %v1687, %v1694
  %v1697 = vunpack.c.l.s4 1983009808
  %v1698 = vunpack.c.0.s8 %v1697
  %v1699 = vlaneseq
  %v1700 = vshrl.u32 %v1699, 7
  %v1701 = vsub.s32 %v1698, %v1700
  %v1702 = vrot.slane %v1688, %v1701
  %v1703 = vcombine.high %v1695, %v1695
  %v1704 = vcombine.high %v1702, %v1702
  %v1709 = vadd.f32 %v1643, %v1695
  %v1710 = vadd.f32 %v1644, %v1703
  %v1711 = vadd.f32 %v1645, %v1702
  %v1712 = vadd.f32 %v1646, %v1704
  %v1713 = vadd.f32 %v1647, %v1695
  %v1714 = vadd.f32 %v1648, %v1703
  %v1715 = vadd.f32 %v1649, %v1702
  %v1716 = vadd.f32 %v1650, %v1704
  %v1717 = vadd.f32 %v1651, %v1695
  %v1718 = vadd.f32 %v1652, %v1703
  %v1719 = vadd.f32 %v1653, %v1702
  %v1720 = vadd.f32 %v1654, %v1704
  %v1721 = vadd.f32 %v1655, %v1695
  %v1722 = vadd.f32 %v1656, %v1703
  %v1723 = vadd.f32 %v1657, %v1702
  %v1724 = vadd.f32 %v1658, %v1704
  %v1725 = vadd.f32 %v1659, %v1695
  %v1726 = vadd.f32 %v1660, %v1703
  %v1727 = vadd.f32 %v1661, %v1702
  %v1728 = vadd.f32 %v1662, %v1704
  %v1729 = vadd.f32 %v1663, %v1695
  %v1730 = vadd.f32 %v1664, %v1703
  %v1731 = vadd.f32 %v1665, %v1702
  %v1732 = vadd.f32 %v1666, %v1704
  %v1733 = vadd.f32 %v1667, %v1695
  %v1734 = vadd.f32 %v1668, %v1703
  %v1735 = vadd.f32 %v1669, %v1702
  %v1736 = vadd.f32 %v1670, %v1704
  %v1737 = vadd.f32 %v1671, %v1695
  %v1738 = vadd.f32 %v1672, %v1703
  %v1739 = vadd.f32 %v1673, %v1702
  %v1740 = vadd.f32 %v1674, %v1704
  %v1741 = vadd.f32 %v1675, %v1695
  %v1742 = vadd.f32 %v1676, %v1703
  %v1743 = vadd.f32 %v1677, %v1702
  %v1744 = vadd.f32 %v1678, %v1704
  %v1745 = vadd.f32 %v1679, %v1695
  %v1746 = vadd.f32 %v1680, %v1703
  %v1747 = vadd.f32 %v1681, %v1702
  %v1748 = vadd.f32 %v1682, %v1704
  %v1789 = vcombine.low %v1709, %v1710
  %v1790 = vcombine.low %v1711, %v1712
  %v1792 = vunpack.c.l.s4 1983009808
  %v1793 = vunpack.c.0.s8 %v1792
  %v1794 = vlaneseq
  %v1795 = vshrl.u32 %v1794, 7
  %v1796 = vsub.s32 %v1793, %v1795
  %v1797 = vrot.slane %v1789, %v1796
  %v1799 = vunpack.c.l.s4 1983009808
  %v1800 = vunpack.c.0.s8 %v1799
  %v1801 = vlaneseq
  %v1802 = vshrl.u32 %v1801, 7
  %v1803 = vsub.s32 %v1800, %v1802
  %v1804 = vrot.slane %v1790, %v1803
  %v1805 = vcombine.low %v1797, %v1804
  %v1806 = vcombine.low %v1713, %v1714
  %v1807 = vcombine.low %v1715, %v1716
  %v1809 = vunpack.c.l.s4 1983009808
  %v1810 = vunpack.c.0.s8 %v1809
  %v1811 = vlaneseq
  %v1812 = vshrl.u32 %v1811, 7
  %v1813 = vsub.s32 %v1810, %v1812
  %v1814 = vrot.slane %v1806, %v1813
  %v1816 = vunpack.c.l.s4 1983009808
  %v1817 = vunpack.c.0.s8 %v1816
  %v1818 = vlaneseq
  %v1819 = vshrl.u32 %v1818, 7
  %v1820 = vsub.s32 %v1817, %v1819
  %v1821 = vrot.slane %v1807, %v1820
  %v1822 = vcombine.low %v1814, %v1821
  %v1823 = vcombine.low %v1717, %v1718
  %v1824 = vcombine.low %v1719, %v1720
  %v1826 = vunpack.c.l.s4 1983009808
  %v1827 = vunpack.c.0.s8 %v1826
  %v1828 = vlaneseq
  %v1829 = vshrl.u32 %v1828, 7
  %v1830 = vsub.s32 %v1827, %v1829
  %v1831 = vrot.slane %v1823, %v1830
  %v1833 = vunpack.c.l.s4 1983009808
  %v1834 = vunpack.c.0.s8 %v1833
  %v1835 = vlaneseq
  %v1836 = vshrl.u32 %v1835, 7
  %v1837 = vsub.s32 %v1834, %v1836
  %v1838 = vrot.slane %v1824, %v1837
  %v1839 = vcombine.low %v1831, %v1838
  %v1840 = vcombine.low %v1721, %v1722
  %v1841 = vcombine.low %v1723, %v1724
  %v1843 = vunpack.c.l.s4 1983009808
  %v1844 = vunpack.c.0.s8 %v1843
  %v1845 = vlaneseq
  %v1846 = vshrl.u32 %v1845, 7
  %v1847 = vsub.s32 %v1844, %v1846
  %v1848 = vrot.slane %v1840, %v1847
  %v1850 = vunpack.c.l.s4 1983009808
  %v1851 = vunpack.c.0.s8 %v1850
  %v1852 = vlaneseq
  %v1853 = vshrl.u32 %v1852, 7
  %v1854 = vsub.s32 %v1851, %v1853
  %v1855 = vrot.slane %v1841, %v1854
  %v1856 = vcombine.low %v1848, %v1855
  %v1857 = vcombine.low %v1725, %v1726
  %v1858 = vcombine.low %v1727, %v1728
  %v1860 = vunpack.c.l.s4 1983009808
  %v1861 = vunpack.c.0.s8 %v1860
  %v1862 = vlaneseq
  %v1863 = vshrl.u32 %v1862, 7
  %v1864 = vsub.s32 %v1861, %v1863
  %v1865 = vrot.slane %v1857, %v1864
  %v1867 = vunpack.c.l.s4 1983009808
  %v1868 = vunpack.c.0.s8 %v1867
  %v1869 = vlaneseq
  %v1870 = vshrl.u32 %v1869, 7
  %v1871 = vsub.s32 %v1868, %v1870
  %v1872 = vrot.slane %v1858, %v1871
  %v1873 = vcombine.low %v1865, %v1872
  %v1874 = vcombine.low %v1729, %v1730
  %v1875 = vcombine.low %v1731, %v1732
  %v1877 = vunpack.c.l.s4 1983009808
  %v1878 = vunpack.c.0.s8 %v1877
  %v1879 = vlaneseq
  %v1880 = vshrl.u32 %v1879, 7
  %v1881 = vsub.s32 %v1878, %v1880
  %v1882 = vrot.slane %v1874, %v1881
  %v1884 = vunpack.c.l.s4 1983009808
  %v1885 = vunpack.c.0.s8 %v1884
  %v1886 = vlaneseq
  %v1887 = vshrl.u32 %v1886, 7
  %v1888 = vsub.s32 %v1885, %v1887
  %v1889 = vrot.slane %v1875, %v1888
  %v1890 = vcombine.low %v1882, %v1889
  %v1891 = vcombine.low %v1733, %v1734
  %v1892 = vcombine.low %v1735, %v1736
  %v1894 = vunpack.c.l.s4 1983009808
  %v1895 = vunpack.c.0.s8 %v1894
  %v1896 = vlaneseq
  %v1897 = vshrl.u32 %v1896, 7
  %v1898 = vsub.s32 %v1895, %v1897
  %v1899 = vrot.slane %v1891, %v1898
  %v1901 = vunpack.c.l.s4 1983009808
  %v1902 = vunpack.c.0.s8 %v1901
  %v1903 = vlaneseq
  %v1904 = vshrl.u32 %v1903, 7
  %v1905 = vsub.s32 %v1902, %v1904
  %v1906 = vrot.slane %v1892, %v1905
  %v1907 = vcombine.low %v1899, %v1906
  %v1908 = vcombine.low %v1737, %v1738
  %v1909 = vcombine.low %v1739, %v1740
  %v1911 = vunpack.c.l.s4 1983009808
  %v1912 = vunpack.c.0.s8 %v1911
  %v1913 = vlaneseq
  %v1914 = vshrl.u32 %v1913, 7
  %v1915 = vsub.s32 %v1912, %v1914
  %v1916 = vrot.slane %v1908, %v1915
  %v1918 = vunpack.c.l.s4 1983009808
  %v1919 = vunpack.c.0.s8 %v1918
  %v1920 = vlaneseq
  %v1921 = vshrl.u32 %v1920, 7
  %v1922 = vsub.s32 %v1919, %v1921
  %v1923 = vrot.slane %v1909, %v1922
  %v1924 = vcombine.low %v1916, %v1923
  %v1925 = vcombine.low %v1741, %v1742
  %v1926 = vcombine.low %v1743, %v1744
  %v1928 = vunpack.c.l.s4 1983009808
  %v1929 = vunpack.c.0.s8 %v1928
  %v1930 = vlaneseq
  %v1931 = vshrl.u32 %v1930, 7
  %v1932 = vsub.s32 %v1929, %v1931
  %v1933 = vrot.slane %v1925, %v1932
  %v1935 = vunpack.c.l.s4 1983009808
  %v1936 = vunpack.c.0.s8 %v1935
  %v1937 = vlaneseq
  %v1938 = vshrl.u32 %v1937, 7
  %v1939 = vsub.s32 %v1936, %v1938
  %v1940 = vrot.slane %v1926, %v1939
  %v1941 = vcombine.low %v1933, %v1940
  %v1942 = vcombine.low %v1745, %v1746
  %v1943 = vcombine.low %v1747, %v1748
  %v1945 = vunpack.c.l.s4 1983009808
  %v1946 = vunpack.c.0.s8 %v1945
  %v1947 = vlaneseq
  %v1948 = vshrl.u32 %v1947, 7
  %v1949 = vsub.s32 %v1946, %v1948
  %v1950 = vrot.slane %v1942, %v1949
  %v1952 = vunpack.c.l.s4 1983009808
  %v1953 = vunpack.c.0.s8 %v1952
  %v1954 = vlaneseq
  %v1955 = vshrl.u32 %v1954, 7
  %v1956 = vsub.s32 %v1953, %v1955
  %v1957 = vrot.slane %v1943, %v1956
  %v1958 = vcombine.low %v1950, %v1957
  %v1969 = vpack.c.bf16 %v1822, %v1805
  %v1970 = vpack.c.bf16 %v1856, %v1839
  %v1971 = vpack.c.bf16 %v1890, %v1873
  %v1972 = vpack.c.bf16 %v1924, %v1907
  %v1973 = vpack.c.bf16 %v1958, %v1941
  %v1974 = vld [vmem:[%s4] sm:$0xf]
  %v1975 = vld [vmem:[%s4 + $0x4] sm:$0xf]
  %v1976 = vld [vmem:[%s4 + $0x8] sm:$0xf]
  %v1977 = vld [vmem:[%s4 + $0xc] sm:$0xf]
  %v1982 = vunpack.c.l.b16 %v1974
  %v1983 = vunpack.c.l.b16 %v1975
  %v1984 = vunpack.c.l.b16 %v1976
  %v1985 = vunpack.c.l.b16 %v1977
  %v1986 = vpack.c.b16 %v1983, %v1982
  %v1987 = vpack.c.b16 %v1985, %v1984
  %v1991 = vsel %vm515, %v1969, 0
  %v1994 = vsel %vm515, %v1970, 0
  %v1997 = vsel %vm515, %v1971, 0
  %v2000 = vsel %vm515, %v1972, 0
  %v2003 = vsel %vm515, %v1973, 0
  %2005 = vmatprep.subr.bf16.mxu0 0
  %2006 = vmatpush1.bf16.msra.mxu0 %v1986
  %2007 = vmatprep.subr.bf16.mxu0 0
  %2008 = vmatpush1.bf16.msra.mxu0 %v1987
  %2009 = vmatprep.subr.bf16.mxu0 0
  %2010 = vmatpush1.bf16.msra.mxu0 0
  %2011 = vmatprep.subr.bf16.mxu0 0
  %2012 = vmatpush1.bf16.msra.mxu0 0
  %2013 = vmatprep.subr.bf16.mxu0 0
  %2014 = vmatpush1.bf16.msra.mxu0 0
  %2015 = vmatprep.subr.bf16.mxu0 0
  %2016 = vmatpush1.bf16.msra.mxu0 0
  %2017 = vmatprep.subr.bf16.mxu0 0
  %2018 = vmatpush1.bf16.msra.mxu0 0
  %2019 = vmatprep.subr.bf16.mxu0 0
  %2020 = vmatpush1.bf16.msra.mxu0 0
  %2021 = vmatprep.subr.bf16.mxu0 0
  %2022 = vmatpush1.bf16.msra.mxu0 0
  %2023 = vmatprep.subr.bf16.mxu0 0
  %2024 = vmatpush1.bf16.msra.mxu0 0
  %2025 = vmatprep.subr.bf16.mxu0 0
  %2026 = vmatpush1.bf16.msra.mxu0 0
  %2027 = vmatprep.subr.bf16.mxu0 0
  %2028 = vmatpush1.bf16.msra.mxu0 0
  %2029 = vmatprep.subr.bf16.mxu0 0
  %2030 = vmatpush1.bf16.msra.mxu0 0
  %2031 = vmatprep.subr.bf16.mxu0 0
  %2032 = vmatpush1.bf16.msra.mxu0 0
  %2033 = vmatprep.subr.bf16.mxu0 0
  %2034 = vmatpush1.bf16.msra.mxu0 0
  %2035 = vmatprep.subr.bf16.mxu0 0
  %2036 = vmatpush1.bf16.msra.mxu0 0
  %2037 = vmatprep.mubr.bf16.mxu0 0
  %2038 = vmatmul.mubr.bf16.gmra.mrb[0].mxu0 %v1991
  %v2039 = vpop.f32.mrb[0].mxu0
  %v2040 = vadd.f32 0.0, %v2039
  %v2041 = vpop.f32.mrb[0].mxu0
  %v2042 = vpop.f32.mrb[0].mxu0
  %v2043 = vadd.f32 0.0, %v2042
  %v2044 = vpop.f32.mrb[0].mxu0
  %2045 = vmatprep.mubr.bf16.mxu0 0
  %2046 = vmatmul.mubr.bf16.gmra.mrb[0].mxu0 %v1994
  %v2047 = vpop.f32.mrb[0].mxu0
  %v2048 = vadd.f32 0.0, %v2047
  %v2049 = vpop.f32.mrb[0].mxu0
  %v2050 = vpop.f32.mrb[0].mxu0
  %v2051 = vadd.f32 0.0, %v2050
  %v2052 = vpop.f32.mrb[0].mxu0
  %2053 = vmatprep.mubr.bf16.mxu0 0
  %2054 = vmatmul.mubr.bf16.gmra.mrb[0].mxu0 %v1997
  %v2055 = vpop.f32.mrb[0].mxu0
  %v2056 = vadd.f32 0.0, %v2055
  %v2057 = vpop.f32.mrb[0].mxu0
  %v2058 = vpop.f32.mrb[0].mxu0
  %v2059 = vadd.f32 0.0, %v2058
  %v2060 = vpop.f32.mrb[0].mxu0
  %2061 = vmatprep.mubr.bf16.mxu0 0
  %2062 = vmatmul.mubr.bf16.gmra.mrb[0].mxu0 %v2000
  %v2063 = vpop.f32.mrb[0].mxu0
  %v2064 = vadd.f32 0.0, %v2063
  %v2065 = vpop.f32.mrb[0].mxu0
  %v2066 = vpop.f32.mrb[0].mxu0
  %v2067 = vadd.f32 0.0, %v2066
  %v2068 = vpop.f32.mrb[0].mxu0
  %2069 = vmatprep.mubr.bf16.mxu0 0
  %2070 = vmatmul.mubr.bf16.gmra.mrb[0].mxu0 %v2003
  %v2071 = vpop.f32.mrb[0].mxu0
  %v2072 = vadd.f32 0.0, %v2071
  %v2073 = vpop.f32.mrb[0].mxu0
  %v2074 = vpop.f32.mrb[0].mxu0
  %v2075 = vadd.f32 0.0, %v2074
  %v2076 = vpop.f32.mrb[0].mxu0
  %2077 = vdwg.mxu0
  %v2088 = vcombine.high %v2040, %v2040
  %v2090 = vunpack.c.l.s4 1983009808
  %v2091 = vunpack.c.0.s8 %v2090
  %v2092 = vlaneseq
  %v2093 = vshrl.u32 %v2092, 7
  %v2094 = vsub.s32 %v2091, %v2093
  %v2095 = vrot.slane %v2040, %v2094
  %v2097 = vunpack.c.l.s4 1983009808
  %v2098 = vunpack.c.0.s8 %v2097
  %v2099 = vlaneseq
  %v2100 = vshrl.u32 %v2099, 7
  %v2101 = vsub.s32 %v2098, %v2100
  %v2102 = vrot.slane %v2088, %v2101
  %v2103 = vcombine.high %v2095, %v2095
  %v2104 = vcombine.high %v2102, %v2102
  %v2105 = vcombine.high %v2043, %v2043
  %v2107 = vunpack.c.l.s4 1983009808
  %v2108 = vunpack.c.0.s8 %v2107
  %v2109 = vlaneseq
  %v2110 = vshrl.u32 %v2109, 7
  %v2111 = vsub.s32 %v2108, %v2110
  %v2112 = vrot.slane %v2043, %v2111
  %v2114 = vunpack.c.l.s4 1983009808
  %v2115 = vunpack.c.0.s8 %v2114
  %v2116 = vlaneseq
  %v2117 = vshrl.u32 %v2116, 7
  %v2118 = vsub.s32 %v2115, %v2117
  %v2119 = vrot.slane %v2105, %v2118
  %v2120 = vcombine.high %v2112, %v2112
  %v2121 = vcombine.high %v2119, %v2119
  %v2122 = vcombine.high %v2048, %v2048
  %v2124 = vunpack.c.l.s4 1983009808
  %v2125 = vunpack.c.0.s8 %v2124
  %v2126 = vlaneseq
  %v2127 = vshrl.u32 %v2126, 7
  %v2128 = vsub.s32 %v2125, %v2127
  %v2129 = vrot.slane %v2048, %v2128
  %v2131 = vunpack.c.l.s4 1983009808
  %v2132 = vunpack.c.0.s8 %v2131
  %v2133 = vlaneseq
  %v2134 = vshrl.u32 %v2133, 7
  %v2135 = vsub.s32 %v2132, %v2134
  %v2136 = vrot.slane %v2122, %v2135
  %v2137 = vcombine.high %v2129, %v2129
  %v2138 = vcombine.high %v2136, %v2136
  %v2139 = vcombine.high %v2051, %v2051
  %v2141 = vunpack.c.l.s4 1983009808
  %v2142 = vunpack.c.0.s8 %v2141
  %v2143 = vlaneseq
  %v2144 = vshrl.u32 %v2143, 7
  %v2145 = vsub.s32 %v2142, %v2144
  %v2146 = vrot.slane %v2051, %v2145
  %v2148 = vunpack.c.l.s4 1983009808
  %v2149 = vunpack.c.0.s8 %v2148
  %v2150 = vlaneseq
  %v2151 = vshrl.u32 %v2150, 7
  %v2152 = vsub.s32 %v2149, %v2151
  %v2153 = vrot.slane %v2139, %v2152
  %v2154 = vcombine.high %v2146, %v2146
  %v2155 = vcombine.high %v2153, %v2153
  %v2156 = vcombine.high %v2056, %v2056
  %v2158 = vunpack.c.l.s4 1983009808
  %v2159 = vunpack.c.0.s8 %v2158
  %v2160 = vlaneseq
  %v2161 = vshrl.u32 %v2160, 7
  %v2162 = vsub.s32 %v2159, %v2161
  %v2163 = vrot.slane %v2056, %v2162
  %v2165 = vunpack.c.l.s4 1983009808
  %v2166 = vunpack.c.0.s8 %v2165
  %v2167 = vlaneseq
  %v2168 = vshrl.u32 %v2167, 7
  %v2169 = vsub.s32 %v2166, %v2168
  %v2170 = vrot.slane %v2156, %v2169
  %v2171 = vcombine.high %v2163, %v2163
  %v2172 = vcombine.high %v2170, %v2170
  %v2173 = vcombine.high %v2059, %v2059
  %v2175 = vunpack.c.l.s4 1983009808
  %v2176 = vunpack.c.0.s8 %v2175
  %v2177 = vlaneseq
  %v2178 = vshrl.u32 %v2177, 7
  %v2179 = vsub.s32 %v2176, %v2178
  %v2180 = vrot.slane %v2059, %v2179
  %v2182 = vunpack.c.l.s4 1983009808
  %v2183 = vunpack.c.0.s8 %v2182
  %v2184 = vlaneseq
  %v2185 = vshrl.u32 %v2184, 7
  %v2186 = vsub.s32 %v2183, %v2185
  %v2187 = vrot.slane %v2173, %v2186
  %v2188 = vcombine.high %v2180, %v2180
  %v2189 = vcombine.high %v2187, %v2187
  %v2190 = vcombine.high %v2064, %v2064
  %v2192 = vunpack.c.l.s4 1983009808
  %v2193 = vunpack.c.0.s8 %v2192
  %v2194 = vlaneseq
  %v2195 = vshrl.u32 %v2194, 7
  %v2196 = vsub.s32 %v2193, %v2195
  %v2197 = vrot.slane %v2064, %v2196
  %v2199 = vunpack.c.l.s4 1983009808
  %v2200 = vunpack.c.0.s8 %v2199
  %v2201 = vlaneseq
  %v2202 = vshrl.u32 %v2201, 7
  %v2203 = vsub.s32 %v2200, %v2202
  %v2204 = vrot.slane %v2190, %v2203
  %v2205 = vcombine.high %v2197, %v2197
  %v2206 = vcombine.high %v2204, %v2204
  %v2207 = vcombine.high %v2067, %v2067
  %v2209 = vunpack.c.l.s4 1983009808
  %v2210 = vunpack.c.0.s8 %v2209
  %v2211 = vlaneseq
  %v2212 = vshrl.u32 %v2211, 7
  %v2213 = vsub.s32 %v2210, %v2212
  %v2214 = vrot.slane %v2067, %v2213
  %v2216 = vunpack.c.l.s4 1983009808
  %v2217 = vunpack.c.0.s8 %v2216
  %v2218 = vlaneseq
  %v2219 = vshrl.u32 %v2218, 7
  %v2220 = vsub.s32 %v2217, %v2219
  %v2221 = vrot.slane %v2207, %v2220
  %v2222 = vcombine.high %v2214, %v2214
  %v2223 = vcombine.high %v2221, %v2221
  %v2224 = vcombine.high %v2072, %v2072
  %v2226 = vunpack.c.l.s4 1983009808
  %v2227 = vunpack.c.0.s8 %v2226
  %v2228 = vlaneseq
  %v2229 = vshrl.u32 %v2228, 7
  %v2230 = vsub.s32 %v2227, %v2229
  %v2231 = vrot.slane %v2072, %v2230
  %v2233 = vunpack.c.l.s4 1983009808
  %v2234 = vunpack.c.0.s8 %v2233
  %v2235 = vlaneseq
  %v2236 = vshrl.u32 %v2235, 7
  %v2237 = vsub.s32 %v2234, %v2236
  %v2238 = vrot.slane %v2224, %v2237
  %v2239 = vcombine.high %v2231, %v2231
  %v2240 = vcombine.high %v2238, %v2238
  %v2241 = vcombine.high %v2075, %v2075
  %v2243 = vunpack.c.l.s4 1983009808
  %v2244 = vunpack.c.0.s8 %v2243
  %v2245 = vlaneseq
  %v2246 = vshrl.u32 %v2245, 7
  %v2247 = vsub.s32 %v2244, %v2246
  %v2248 = vrot.slane %v2075, %v2247
  %v2250 = vunpack.c.l.s4 1983009808
  %v2251 = vunpack.c.0.s8 %v2250
  %v2252 = vlaneseq
  %v2253 = vshrl.u32 %v2252, 7
  %v2254 = vsub.s32 %v2251, %v2253
  %v2255 = vrot.slane %v2241, %v2254
  %v2256 = vcombine.high %v2248, %v2248
  %v2257 = vcombine.high %v2255, %v2255
  %v2258 = vcombine.low %v2095, %v2103
  %v2259 = vcombine.low %v2102, %v2104
  %v2261 = vunpack.c.l.s4 1983009808
  %v2262 = vunpack.c.0.s8 %v2261
  %v2263 = vlaneseq
  %v2264 = vshrl.u32 %v2263, 7
  %v2265 = vsub.s32 %v2262, %v2264
  %v2266 = vrot.slane %v2258, %v2265
  %v2268 = vunpack.c.l.s4 1983009808
  %v2269 = vunpack.c.0.s8 %v2268
  %v2270 = vlaneseq
  %v2271 = vshrl.u32 %v2270, 7
  %v2272 = vsub.s32 %v2269, %v2271
  %v2273 = vrot.slane %v2259, %v2272
  %v2274 = vcombine.low %v2266, %v2273
  %v2276 = vunpack.c.l.s4 1983009808
  %v2277 = vunpack.c.0.s8 %v2276
  %v2278 = vlaneseq
  %v2279 = vshrl.u32 %v2278, 7
  %v2280 = vsub.s32 %v2277, %v2279
  %v2281 = vrot.slane %v2112, %v2280
  %v2282 = vcombine.low %v2120, %v2119
  %v2283 = vcombine.low %v2121, %v2129
  %v2285 = vunpack.c.l.s4 1983009808
  %v2286 = vunpack.c.0.s8 %v2285
  %v2287 = vlaneseq
  %v2288 = vshrl.u32 %v2287, 7
  %v2289 = vsub.s32 %v2286, %v2288
  %v2290 = vrot.slane %v2282, %v2289
  %v2292 = vunpack.c.l.s4 1983009808
  %v2293 = vunpack.c.0.s8 %v2292
  %v2294 = vlaneseq
  %v2295 = vshrl.u32 %v2294, 7
  %v2296 = vsub.s32 %v2293, %v2295
  %v2297 = vrot.slane %v2283, %v2296
  %v2298 = vcombine.low %v2290, %v2297
  %v2300 = vunpack.c.l.s4 1983009808
  %v2301 = vunpack.c.0.s8 %v2300
  %v2302 = vlaneseq
  %v2303 = vshrl.u32 %v2302, 7
  %v2304 = vsub.s32 %v2301, %v2303
  %v2305 = vrot.slane %v2137, %v2304
  %v2306 = vcombine.low %v2136, %v2138
  %v2307 = vcombine.low %v2146, %v2154
  %v2309 = vunpack.c.l.s4 1983009808
  %v2310 = vunpack.c.0.s8 %v2309
  %v2311 = vlaneseq
  %v2312 = vshrl.u32 %v2311, 7
  %v2313 = vsub.s32 %v2310, %v2312
  %v2314 = vrot.slane %v2306, %v2313
  %v2316 = vunpack.c.l.s4 1983009808
  %v2317 = vunpack.c.0.s8 %v2316
  %v2318 = vlaneseq
  %v2319 = vshrl.u32 %v2318, 7
  %v2320 = vsub.s32 %v2317, %v2319
  %v2321 = vrot.slane %v2307, %v2320
  %v2322 = vcombine.low %v2314, %v2321
  %v2324 = vunpack.c.l.s4 1983009808
  %v2325 = vunpack.c.0.s8 %v2324
  %v2326 = vlaneseq
  %v2327 = vshrl.u32 %v2326, 7
  %v2328 = vsub.s32 %v2325, %v2327
  %v2329 = vrot.slane %v2153, %v2328
  %v2330 = vcombine.low %v2155, %v2163
  %v2331 = vcombine.low %v2171, %v2170
  %v2333 = vunpack.c.l.s4 1983009808
  %v2334 = vunpack.c.0.s8 %v2333
  %v2335 = vlaneseq
  %v2336 = vshrl.u32 %v2335, 7
  %v2337 = vsub.s32 %v2334, %v2336
  %v2338 = vrot.slane %v2330, %v2337
  %v2340 = vunpack.c.l.s4 1983009808
  %v2341 = vunpack.c.0.s8 %v2340
  %v2342 = vlaneseq
  %v2343 = vshrl.u32 %v2342, 7
  %v2344 = vsub.s32 %v2341, %v2343
  %v2345 = vrot.slane %v2331, %v2344
  %v2346 = vcombine.low %v2338, %v2345
  %v2348 = vunpack.c.l.s4 1983009808
  %v2349 = vunpack.c.0.s8 %v2348
  %v2350 = vlaneseq
  %v2351 = vshrl.u32 %v2350, 7
  %v2352 = vsub.s32 %v2349, %v2351
  %v2353 = vrot.slane %v2172, %v2352
  %v2354 = vcombine.low %v2180, %v2188
  %v2355 = vcombine.low %v2187, %v2189
  %v2357 = vunpack.c.l.s4 1983009808
  %v2358 = vunpack.c.0.s8 %v2357
  %v2359 = vlaneseq
  %v2360 = vshrl.u32 %v2359, 7
  %v2361 = vsub.s32 %v2358, %v2360
  %v2362 = vrot.slane %v2354, %v2361
  %v2364 = vunpack.c.l.s4 1983009808
  %v2365 = vunpack.c.0.s8 %v2364
  %v2366 = vlaneseq
  %v2367 = vshrl.u32 %v2366, 7
  %v2368 = vsub.s32 %v2365, %v2367
  %v2369 = vrot.slane %v2355, %v2368
  %v2370 = vcombine.low %v2362, %v2369
  %v2372 = vunpack.c.l.s4 1983009808
  %v2373 = vunpack.c.0.s8 %v2372
  %v2374 = vlaneseq
  %v2375 = vshrl.u32 %v2374, 7
  %v2376 = vsub.s32 %v2373, %v2375
  %v2377 = vrot.slane %v2197, %v2376
  %v2378 = vcombine.low %v2205, %v2204
  %v2379 = vcombine.low %v2206, %v2214
  %v2381 = vunpack.c.l.s4 1983009808
  %v2382 = vunpack.c.0.s8 %v2381
  %v2383 = vlaneseq
  %v2384 = vshrl.u32 %v2383, 7
  %v2385 = vsub.s32 %v2382, %v2384
  %v2386 = vrot.slane %v2378, %v2385
  %v2388 = vunpack.c.l.s4 1983009808
  %v2389 = vunpack.c.0.s8 %v2388
  %v2390 = vlaneseq
  %v2391 = vshrl.u32 %v2390, 7
  %v2392 = vsub.s32 %v2389, %v2391
  %v2393 = vrot.slane %v2379, %v2392
  %v2394 = vcombine.low %v2386, %v2393
  %v2396 = vunpack.c.l.s4 1983009808
  %v2397 = vunpack.c.0.s8 %v2396
  %v2398 = vlaneseq
  %v2399 = vshrl.u32 %v2398, 7
  %v2400 = vsub.s32 %v2397, %v2399
  %v2401 = vrot.slane %v2222, %v2400
  %v2402 = vcombine.low %v2221, %v2223
  %v2403 = vcombine.low %v2231, %v2239
  %v2405 = vunpack.c.l.s4 1983009808
  %v2406 = vunpack.c.0.s8 %v2405
  %v2407 = vlaneseq
  %v2408 = vshrl.u32 %v2407, 7
  %v2409 = vsub.s32 %v2406, %v2408
  %v2410 = vrot.slane %v2402, %v2409
  %v2412 = vunpack.c.l.s4 1983009808
  %v2413 = vunpack.c.0.s8 %v2412
  %v2414 = vlaneseq
  %v2415 = vshrl.u32 %v2414, 7
  %v2416 = vsub.s32 %v2413, %v2415
  %v2417 = vrot.slane %v2403, %v2416
  %v2418 = vcombine.low %v2410, %v2417
  %v2420 = vunpack.c.l.s4 1983009808
  %v2421 = vunpack.c.0.s8 %v2420
  %v2422 = vlaneseq
  %v2423 = vshrl.u32 %v2422, 7
  %v2424 = vsub.s32 %v2421, %v2423
  %v2425 = vrot.slane %v2238, %v2424
  %v2426 = vcombine.low %v2240, %v2248
  %v2427 = vcombine.low %v2256, %v2255
  %v2429 = vunpack.c.l.s4 1983009808
  %v2430 = vunpack.c.0.s8 %v2429
  %v2431 = vlaneseq
  %v2432 = vshrl.u32 %v2431, 7
  %v2433 = vsub.s32 %v2430, %v2432
  %v2434 = vrot.slane %v2426, %v2433
  %v2436 = vunpack.c.l.s4 1983009808
  %v2437 = vunpack.c.0.s8 %v2436
  %v2438 = vlaneseq
  %v2439 = vshrl.u32 %v2438, 7
  %v2440 = vsub.s32 %v2437, %v2439
  %v2441 = vrot.slane %v2427, %v2440
  %v2442 = vcombine.low %v2434, %v2441
  %v2444 = vunpack.c.l.s4 1983009808
  %v2445 = vunpack.c.0.s8 %v2444
  %v2446 = vlaneseq
  %v2447 = vshrl.u32 %v2446, 7
  %v2448 = vsub.s32 %v2445, %v2447
  %v2449 = vrot.slane %v2257, %v2448
  %v2466 = vpack.c.bf16 %v2281, %v2274
  %v2467 = vpack.c.bf16 %v2305, %v2298
  %v2468 = vpack.c.bf16 %v2329, %v2322
  %v2469 = vpack.c.bf16 %v2353, %v2346
  %v2470 = vpack.c.bf16 %v2377, %v2370
  %v2471 = vpack.c.bf16 %v2401, %v2394
  %v2472 = vpack.c.bf16 %v2425, %v2418
  %v2473 = vpack.c.bf16 %v2449, %v2442
  %2475 = vrot.lane.b32.xlu0 %v2466, 96
  %v2476 = vpop.permute.xlu0 %2475
  %vm2477 = vcmask 130048
  %v2479 = vsel %vm2477, %v2466, 0
  %v2482 = vsel %vm2477, %v2476, 0
  %2484 = vmatprep.subr.bf16.mxu0 0
  %2485 = vmatpush1.bf16.xpose.msra.mxu0 %v2482
  %2486 = vmatprep.subr.bf16.mxu0 0
  %2487 = vmatpush1.bf16.xpose.msra.mxu0 0
  %2488 = vmatprep.subr.bf16.mxu0 0
  %2489 = vmatpush1.bf16.xpose.msra.mxu0 0
  %2490 = vmatprep.subr.bf16.mxu0 0
  %2491 = vmatpush1.bf16.xpose.msra.mxu0 0
  %2492 = vmatprep.subr.bf16.mxu0 0
  %2493 = vmatpush1.bf16.xpose.msra.mxu0 0
  %2494 = vmatprep.subr.bf16.mxu0 0
  %2495 = vmatpush1.bf16.xpose.msra.mxu0 0
  %2496 = vmatprep.subr.bf16.mxu0 0
  %2497 = vmatpush1.bf16.xpose.msra.mxu0 0
  %2498 = vmatprep.subr.bf16.mxu0 0
  %2499 = vmatpush1.bf16.xpose.msra.mxu0 0
  %2500 = vmatprep.subr.bf16.mxu0 0
  %2501 = vmatpush1.bf16.xpose.msra.mxu0 0
  %2502 = vmatprep.subr.bf16.mxu0 0
  %2503 = vmatpush1.bf16.xpose.msra.mxu0 0
  %2504 = vmatprep.subr.bf16.mxu0 0
  %2505 = vmatpush1.bf16.xpose.msra.mxu0 0
  %2506 = vmatprep.subr.bf16.mxu0 0
  %2507 = vmatpush1.bf16.xpose.msra.mxu0 0
  %2508 = vmatprep.subr.bf16.mxu0 0
  %2509 = vmatpush1.bf16.xpose.msra.mxu0 0
  %2510 = vmatprep.subr.bf16.mxu0 0
  %2511 = vmatpush1.bf16.xpose.msra.mxu0 0
  %2512 = vmatprep.subr.bf16.mxu0 0
  %2513 = vmatpush1.bf16.xpose.msra.mxu0 0
  %2514 = vmatprep.subr.bf16.mxu0 0
  %2515 = vmatpush1.bf16.xpose.msra.mxu0 0
  %2516 = vmatprep.mubr.bf16.mxu0 0
  %2517 = vmatmul.mubr.bf16.gmra.mrb[0].mxu0 %v2479
  %v2518 = vpop.f32.mrb[0].mxu0
  %v2519 = vadd.f32 0.0, %v2518
  %v2520 = vpop.f32.mrb[0].mxu0
  %v2521 = vpop.f32.mrb[0].mxu0
  %v2522 = vadd.f32 0.0, %v2521
  %v2523 = vpop.f32.mrb[0].mxu0
  %2524 = vdwg.mxu0
  %2526 = vrot.lane.b32.xlu0 %v2467, 96
  %v2527 = vpop.permute.xlu0 %2526
  %v2529 = vsel %vm2477, %v2467, 0
  %v2532 = vsel %vm2477, %v2527, 0
  %2534 = vmatprep.subr.bf16.mxu0 0
  %2535 = vmatpush1.bf16.xpose.msra.mxu0 %v2532
  %2536 = vmatprep.subr.bf16.mxu0 0
  %2537 = vmatpush1.bf16.xpose.msra.mxu0 0
  %2538 = vmatprep.subr.bf16.mxu0 0
  %2539 = vmatpush1.bf16.xpose.msra.mxu0 0
  %2540 = vmatprep.subr.bf16.mxu0 0
  %2541 = vmatpush1.bf16.xpose.msra.mxu0 0
  %2542 = vmatprep.subr.bf16.mxu0 0
  %2543 = vmatpush1.bf16.xpose.msra.mxu0 0
  %2544 = vmatprep.subr.bf16.mxu0 0
  %2545 = vmatpush1.bf16.xpose.msra.mxu0 0
  %2546 = vmatprep.subr.bf16.mxu0 0
  %2547 = vmatpush1.bf16.xpose.msra.mxu0 0
  %2548 = vmatprep.subr.bf16.mxu0 0
  %2549 = vmatpush1.bf16.xpose.msra.mxu0 0
  %2550 = vmatprep.subr.bf16.mxu0 0
  %2551 = vmatpush1.bf16.xpose.msra.mxu0 0
  %2552 = vmatprep.subr.bf16.mxu0 0
  %2553 = vmatpush1.bf16.xpose.msra.mxu0 0
  %2554 = vmatprep.subr.bf16.mxu0 0
  %2555 = vmatpush1.bf16.xpose.msra.mxu0 0
  %2556 = vmatprep.subr.bf16.mxu0 0
  %2557 = vmatpush1.bf16.xpose.msra.mxu0 0
  %2558 = vmatprep.subr.bf16.mxu0 0
  %2559 = vmatpush1.bf16.xpose.msra.mxu0 0
  %2560 = vmatprep.subr.bf16.mxu0 0
  %2561 = vmatpush1.bf16.xpose.msra.mxu0 0
  %2562 = vmatprep.subr.bf16.mxu0 0
  %2563 = vmatpush1.bf16.xpose.msra.mxu0 0
  %2564 = vmatprep.subr.bf16.mxu0 0
  %2565 = vmatpush1.bf16.xpose.msra.mxu0 0
  %2566 = vmatprep.mubr.bf16.mxu0 0
  %2567 = vmatmul.mubr.bf16.gmra.mrb[0].mxu0 %v2529
  %v2568 = vpop.f32.mrb[0].mxu0
  %v2569 = vadd.f32 0.0, %v2568
  %v2570 = vpop.f32.mrb[0].mxu0
  %v2571 = vpop.f32.mrb[0].mxu0
  %v2572 = vadd.f32 0.0, %v2571
  %v2573 = vpop.f32.mrb[0].mxu0
  %2574 = vdwg.mxu0
  %2576 = vrot.lane.b32.xlu0 %v2468, 96
  %v2577 = vpop.permute.xlu0 %2576
  %v2579 = vsel %vm2477, %v2468, 0
  %v2582 = vsel %vm2477, %v2577, 0
  %2584 = vmatprep.subr.bf16.mxu0 0
  %2585 = vmatpush1.bf16.xpose.msra.mxu0 %v2582
  %2586 = vmatprep.subr.bf16.mxu0 0
  %2587 = vmatpush1.bf16.xpose.msra.mxu0 0
  %2588 = vmatprep.subr.bf16.mxu0 0
  %2589 = vmatpush1.bf16.xpose.msra.mxu0 0
  %2590 = vmatprep.subr.bf16.mxu0 0
  %2591 = vmatpush1.bf16.xpose.msra.mxu0 0
  %2592 = vmatprep.subr.bf16.mxu0 0
  %2593 = vmatpush1.bf16.xpose.msra.mxu0 0
  %2594 = vmatprep.subr.bf16.mxu0 0
  %2595 = vmatpush1.bf16.xpose.msra.mxu0 0
  %2596 = vmatprep.subr.bf16.mxu0 0
  %2597 = vmatpush1.bf16.xpose.msra.mxu0 0
  %2598 = vmatprep.subr.bf16.mxu0 0
  %2599 = vmatpush1.bf16.xpose.msra.mxu0 0
  %2600 = vmatprep.subr.bf16.mxu0 0
  %2601 = vmatpush1.bf16.xpose.msra.mxu0 0
  %2602 = vmatprep.subr.bf16.mxu0 0
  %2603 = vmatpush1.bf16.xpose.msra.mxu0 0
  %2604 = vmatprep.subr.bf16.mxu0 0
  %2605 = vmatpush1.bf16.xpose.msra.mxu0 0
  %2606 = vmatprep.subr.bf16.mxu0 0
  %2607 = vmatpush1.bf16.xpose.msra.mxu0 0
  %2608 = vmatprep.subr.bf16.mxu0 0
  %2609 = vmatpush1.bf16.xpose.msra.mxu0 0
  %2610 = vmatprep.subr.bf16.mxu0 0
  %2611 = vmatpush1.bf16.xpose.msra.mxu0 0
  %2612 = vmatprep.subr.bf16.mxu0 0
  %2613 = vmatpush1.bf16.xpose.msra.mxu0 0
  %2614 = vmatprep.subr.bf16.mxu0 0
  %2615 = vmatpush1.bf16.xpose.msra.mxu0 0
  %2616 = vmatprep.mubr.bf16.mxu0 0
  %2617 = vmatmul.mubr.bf16.gmra.mrb[0].mxu0 %v2579
  %v2618 = vpop.f32.mrb[0].mxu0
  %v2619 = vadd.f32 0.0, %v2618
  %v2620 = vpop.f32.mrb[0].mxu0
  %v2621 = vpop.f32.mrb[0].mxu0
  %v2622 = vadd.f32 0.0, %v2621
  %v2623 = vpop.f32.mrb[0].mxu0
  %2624 = vdwg.mxu0
  %2626 = vrot.lane.b32.xlu0 %v2469, 96
  %v2627 = vpop.permute.xlu0 %2626
  %v2629 = vsel %vm2477, %v2469, 0
  %v2632 = vsel %vm2477, %v2627, 0
  %2634 = vmatprep.subr.bf16.mxu0 0
  %2635 = vmatpush1.bf16.xpose.msra.mxu0 %v2632
  %2636 = vmatprep.subr.bf16.mxu0 0
  %2637 = vmatpush1.bf16.xpose.msra.mxu0 0
  %2638 = vmatprep.subr.bf16.mxu0 0
  %2639 = vmatpush1.bf16.xpose.msra.mxu0 0
  %2640 = vmatprep.subr.bf16.mxu0 0
  %2641 = vmatpush1.bf16.xpose.msra.mxu0 0
  %2642 = vmatprep.subr.bf16.mxu0 0
  %2643 = vmatpush1.bf16.xpose.msra.mxu0 0
  %2644 = vmatprep.subr.bf16.mxu0 0
  %2645 = vmatpush1.bf16.xpose.msra.mxu0 0
  %2646 = vmatprep.subr.bf16.mxu0 0
  %2647 = vmatpush1.bf16.xpose.msra.mxu0 0
  %2648 = vmatprep.subr.bf16.mxu0 0
  %2649 = vmatpush1.bf16.xpose.msra.mxu0 0
  %2650 = vmatprep.subr.bf16.mxu0 0
  %2651 = vmatpush1.bf16.xpose.msra.mxu0 0
  %2652 = vmatprep.subr.bf16.mxu0 0
  %2653 = vmatpush1.bf16.xpose.msra.mxu0 0
  %2654 = vmatprep.subr.bf16.mxu0 0
  %2655 = vmatpush1.bf16.xpose.msra.mxu0 0
  %2656 = vmatprep.subr.bf16.mxu0 0
  %2657 = vmatpush1.bf16.xpose.msra.mxu0 0
  %2658 = vmatprep.subr.bf16.mxu0 0
  %2659 = vmatpush1.bf16.xpose.msra.mxu0 0
  %2660 = vmatprep.subr.bf16.mxu0 0
  %2661 = vmatpush1.bf16.xpose.msra.mxu0 0
  %2662 = vmatprep.subr.bf16.mxu0 0
  %2663 = vmatpush1.bf16.xpose.msra.mxu0 0
  %2664 = vmatprep.subr.bf16.mxu0 0
  %2665 = vmatpush1.bf16.xpose.msra.mxu0 0
  %2666 = vmatprep.mubr.bf16.mxu0 0
  %2667 = vmatmul.mubr.bf16.gmra.mrb[0].mxu0 %v2629
  %v2668 = vpop.f32.mrb[0].mxu0
  %v2669 = vadd.f32 0.0, %v2668
  %v2670 = vpop.f32.mrb[0].mxu0
  %v2671 = vpop.f32.mrb[0].mxu0
  %v2672 = vadd.f32 0.0, %v2671
  %v2673 = vpop.f32.mrb[0].mxu0
  %2674 = vdwg.mxu0
  %2676 = vrot.lane.b32.xlu0 %v2470, 96
  %v2677 = vpop.permute.xlu0 %2676
  %v2679 = vsel %vm2477, %v2470, 0
  %v2682 = vsel %vm2477, %v2677, 0
  %2684 = vmatprep.subr.bf16.mxu0 0
  %2685 = vmatpush1.bf16.xpose.msra.mxu0 %v2682
  %2686 = vmatprep.subr.bf16.mxu0 0
  %2687 = vmatpush1.bf16.xpose.msra.mxu0 0
  %2688 = vmatprep.subr.bf16.mxu0 0
  %2689 = vmatpush1.bf16.xpose.msra.mxu0 0
  %2690 = vmatprep.subr.bf16.mxu0 0
  %2691 = vmatpush1.bf16.xpose.msra.mxu0 0
  %2692 = vmatprep.subr.bf16.mxu0 0
  %2693 = vmatpush1.bf16.xpose.msra.mxu0 0
  %2694 = vmatprep.subr.bf16.mxu0 0
  %2695 = vmatpush1.bf16.xpose.msra.mxu0 0
  %2696 = vmatprep.subr.bf16.mxu0 0
  %2697 = vmatpush1.bf16.xpose.msra.mxu0 0
  %2698 = vmatprep.subr.bf16.mxu0 0
  %2699 = vmatpush1.bf16.xpose.msra.mxu0 0
  %2700 = vmatprep.subr.bf16.mxu0 0
  %2701 = vmatpush1.bf16.xpose.msra.mxu0 0
  %2702 = vmatprep.subr.bf16.mxu0 0
  %2703 = vmatpush1.bf16.xpose.msra.mxu0 0
  %2704 = vmatprep.subr.bf16.mxu0 0
  %2705 = vmatpush1.bf16.xpose.msra.mxu0 0
  %2706 = vmatprep.subr.bf16.mxu0 0
  %2707 = vmatpush1.bf16.xpose.msra.mxu0 0
  %2708 = vmatprep.subr.bf16.mxu0 0
  %2709 = vmatpush1.bf16.xpose.msra.mxu0 0
  %2710 = vmatprep.subr.bf16.mxu0 0
  %2711 = vmatpush1.bf16.xpose.msra.mxu0 0
  %2712 = vmatprep.subr.bf16.mxu0 0
  %2713 = vmatpush1.bf16.xpose.msra.mxu0 0
  %2714 = vmatprep.subr.bf16.mxu0 0
  %2715 = vmatpush1.bf16.xpose.msra.mxu0 0
  %2716 = vmatprep.mubr.bf16.mxu0 0
  %2717 = vmatmul.mubr.bf16.gmra.mrb[0].mxu0 %v2679
  %v2718 = vpop.f32.mrb[0].mxu0
  %v2719 = vadd.f32 0.0, %v2718
  %v2720 = vpop.f32.mrb[0].mxu0
  %v2721 = vpop.f32.mrb[0].mxu0
  %v2722 = vadd.f32 0.0, %v2721
  %v2723 = vpop.f32.mrb[0].mxu0
  %2724 = vdwg.mxu0
  %2726 = vrot.lane.b32.xlu0 %v2471, 96
  %v2727 = vpop.permute.xlu0 %2726
  %v2729 = vsel %vm2477, %v2471, 0
  %v2732 = vsel %vm2477, %v2727, 0
  %2734 = vmatprep.subr.bf16.mxu0 0
  %2735 = vmatpush1.bf16.xpose.msra.mxu0 %v2732
  %2736 = vmatprep.subr.bf16.mxu0 0
  %2737 = vmatpush1.bf16.xpose.msra.mxu0 0
  %2738 = vmatprep.subr.bf16.mxu0 0
  %2739 = vmatpush1.bf16.xpose.msra.mxu0 0
  %2740 = vmatprep.subr.bf16.mxu0 0
  %2741 = vmatpush1.bf16.xpose.msra.mxu0 0
  %2742 = vmatprep.subr.bf16.mxu0 0
  %2743 = vmatpush1.bf16.xpose.msra.mxu0 0
  %2744 = vmatprep.subr.bf16.mxu0 0
  %2745 = vmatpush1.bf16.xpose.msra.mxu0 0
  %2746 = vmatprep.subr.bf16.mxu0 0
  %2747 = vmatpush1.bf16.xpose.msra.mxu0 0
  %2748 = vmatprep.subr.bf16.mxu0 0
  %2749 = vmatpush1.bf16.xpose.msra.mxu0 0
  %2750 = vmatprep.subr.bf16.mxu0 0
  %2751 = vmatpush1.bf16.xpose.msra.mxu0 0
  %2752 = vmatprep.subr.bf16.mxu0 0
  %2753 = vmatpush1.bf16.xpose.msra.mxu0 0
  %2754 = vmatprep.subr.bf16.mxu0 0
  %2755 = vmatpush1.bf16.xpose.msra.mxu0 0
  %2756 = vmatprep.subr.bf16.mxu0 0
  %2757 = vmatpush1.bf16.xpose.msra.mxu0 0
  %2758 = vmatprep.subr.bf16.mxu0 0
  %2759 = vmatpush1.bf16.xpose.msra.mxu0 0
  %2760 = vmatprep.subr.bf16.mxu0 0
  %2761 = vmatpush1.bf16.xpose.msra.mxu0 0
  %2762 = vmatprep.subr.bf16.mxu0 0
  %2763 = vmatpush1.bf16.xpose.msra.mxu0 0
  %2764 = vmatprep.subr.bf16.mxu0 0
  %2765 = vmatpush1.bf16.xpose.msra.mxu0 0
  %2766 = vmatprep.mubr.bf16.mxu0 0
  %2767 = vmatmul.mubr.bf16.gmra.mrb[0].mxu0 %v2729
  %v2768 = vpop.f32.mrb[0].mxu0
  %v2769 = vadd.f32 0.0, %v2768
  %v2770 = vpop.f32.mrb[0].mxu0
  %v2771 = vpop.f32.mrb[0].mxu0
  %v2772 = vadd.f32 0.0, %v2771
  %v2773 = vpop.f32.mrb[0].mxu0
  %2774 = vdwg.mxu0
  %2776 = vrot.lane.b32.xlu0 %v2472, 96
  %v2777 = vpop.permute.xlu0 %2776
  %v2779 = vsel %vm2477, %v2472, 0
  %v2782 = vsel %vm2477, %v2777, 0
  %2784 = vmatprep.subr.bf16.mxu0 0
  %2785 = vmatpush1.bf16.xpose.msra.mxu0 %v2782
  %2786 = vmatprep.subr.bf16.mxu0 0
  %2787 = vmatpush1.bf16.xpose.msra.mxu0 0
  %2788 = vmatprep.subr.bf16.mxu0 0
  %2789 = vmatpush1.bf16.xpose.msra.mxu0 0
  %2790 = vmatprep.subr.bf16.mxu0 0
  %2791 = vmatpush1.bf16.xpose.msra.mxu0 0
  %2792 = vmatprep.subr.bf16.mxu0 0
  %2793 = vmatpush1.bf16.xpose.msra.mxu0 0
  %2794 = vmatprep.subr.bf16.mxu0 0
  %2795 = vmatpush1.bf16.xpose.msra.mxu0 0
  %2796 = vmatprep.subr.bf16.mxu0 0
  %2797 = vmatpush1.bf16.xpose.msra.mxu0 0
  %2798 = vmatprep.subr.bf16.mxu0 0
  %2799 = vmatpush1.bf16.xpose.msra.mxu0 0
  %2800 = vmatprep.subr.bf16.mxu0 0
  %2801 = vmatpush1.bf16.xpose.msra.mxu0 0
  %2802 = vmatprep.subr.bf16.mxu0 0
  %2803 = vmatpush1.bf16.xpose.msra.mxu0 0
  %2804 = vmatprep.subr.bf16.mxu0 0
  %2805 = vmatpush1.bf16.xpose.msra.mxu0 0
  %2806 = vmatprep.subr.bf16.mxu0 0
  %2807 = vmatpush1.bf16.xpose.msra.mxu0 0
  %2808 = vmatprep.subr.bf16.mxu0 0
  %2809 = vmatpush1.bf16.xpose.msra.mxu0 0
  %2810 = vmatprep.subr.bf16.mxu0 0
  %2811 = vmatpush1.bf16.xpose.msra.mxu0 0
  %2812 = vmatprep.subr.bf16.mxu0 0
  %2813 = vmatpush1.bf16.xpose.msra.mxu0 0
  %2814 = vmatprep.subr.bf16.mxu0 0
  %2815 = vmatpush1.bf16.xpose.msra.mxu0 0
  %2816 = vmatprep.mubr.bf16.mxu0 0
  %2817 = vmatmul.mubr.bf16.gmra.mrb[0].mxu0 %v2779
  %v2818 = vpop.f32.mrb[0].mxu0
  %v2819 = vadd.f32 0.0, %v2818
  %v2820 = vpop.f32.mrb[0].mxu0
  %v2821 = vpop.f32.mrb[0].mxu0
  %v2822 = vadd.f32 0.0, %v2821
  %v2823 = vpop.f32.mrb[0].mxu0
  %2824 = vdwg.mxu0
  %2826 = vrot.lane.b32.xlu0 %v2473, 96
  %v2827 = vpop.permute.xlu0 %2826
  %v2829 = vsel %vm2477, %v2473, 0
  %v2832 = vsel %vm2477, %v2827, 0
  %2834 = vmatprep.subr.bf16.mxu0 0
  %2835 = vmatpush1.bf16.xpose.msra.mxu0 %v2832
  %2836 = vmatprep.subr.bf16.mxu0 0
  %2837 = vmatpush1.bf16.xpose.msra.mxu0 0
  %2838 = vmatprep.subr.bf16.mxu0 0
  %2839 = vmatpush1.bf16.xpose.msra.mxu0 0
  %2840 = vmatprep.subr.bf16.mxu0 0
  %2841 = vmatpush1.bf16.xpose.msra.mxu0 0
  %2842 = vmatprep.subr.bf16.mxu0 0
  %2843 = vmatpush1.bf16.xpose.msra.mxu0 0
  %2844 = vmatprep.subr.bf16.mxu0 0
  %2845 = vmatpush1.bf16.xpose.msra.mxu0 0
  %2846 = vmatprep.subr.bf16.mxu0 0
  %2847 = vmatpush1.bf16.xpose.msra.mxu0 0
  %2848 = vmatprep.subr.bf16.mxu0 0
  %2849 = vmatpush1.bf16.xpose.msra.mxu0 0
  %2850 = vmatprep.subr.bf16.mxu0 0
  %2851 = vmatpush1.bf16.xpose.msra.mxu0 0
  %2852 = vmatprep.subr.bf16.mxu0 0
  %2853 = vmatpush1.bf16.xpose.msra.mxu0 0
  %2854 = vmatprep.subr.bf16.mxu0 0
  %2855 = vmatpush1.bf16.xpose.msra.mxu0 0
  %2856 = vmatprep.subr.bf16.mxu0 0
  %2857 = vmatpush1.bf16.xpose.msra.mxu0 0
  %2858 = vmatprep.subr.bf16.mxu0 0
  %2859 = vmatpush1.bf16.xpose.msra.mxu0 0
  %2860 = vmatprep.subr.bf16.mxu0 0
  %2861 = vmatpush1.bf16.xpose.msra.mxu0 0
  %2862 = vmatprep.subr.bf16.mxu0 0
  %2863 = vmatpush1.bf16.xpose.msra.mxu0 0
  %2864 = vmatprep.subr.bf16.mxu0 0
  %2865 = vmatpush1.bf16.xpose.msra.mxu0 0
  %2866 = vmatprep.mubr.bf16.mxu0 0
  %2867 = vmatmul.mubr.bf16.gmra.mrb[0].mxu0 %v2829
  %v2868 = vpop.f32.mrb[0].mxu0
  %v2869 = vadd.f32 0.0, %v2868
  %v2870 = vpop.f32.mrb[0].mxu0
  %v2871 = vpop.f32.mrb[0].mxu0
  %v2872 = vadd.f32 0.0, %v2871
  %v2873 = vpop.f32.mrb[0].mxu0
  %2874 = vdwg.mxu0
  %vm2875 = vcmask 80896
  %v2876 = vsel %vm2875, %v2519, -inf
  %2877 = vmax.xlane.f32.xlu0 %v2876
  %v2878 = vpop.xlane.xlu0 %2877
  %vm2879 = vcmask 74752
  %v2880 = vsel %vm2879, %v2522, -inf
  %2881 = vmax.xlane.f32.xlu0 %v2880
  %v2882 = vpop.xlane.xlu0 %2881
  %v2883 = vsel %vm2875, %v2569, -inf
  %2884 = vmax.xlane.f32.xlu0 %v2883
  %v2885 = vpop.xlane.xlu0 %2884
  %v2886 = vsel %vm2879, %v2572, -inf
  %2887 = vmax.xlane.f32.xlu0 %v2886
  %v2888 = vpop.xlane.xlu0 %2887
  %v2889 = vsel %vm2875, %v2619, -inf
  %2890 = vmax.xlane.f32.xlu0 %v2889
  %v2891 = vpop.xlane.xlu0 %2890
  %v2892 = vsel %vm2879, %v2622, -inf
  %2893 = vmax.xlane.f32.xlu0 %v2892
  %v2894 = vpop.xlane.xlu0 %2893
  %v2895 = vsel %vm2875, %v2669, -inf
  %2896 = vmax.xlane.f32.xlu0 %v2895
  %v2897 = vpop.xlane.xlu0 %2896
  %v2898 = vsel %vm2879, %v2672, -inf
  %2899 = vmax.xlane.f32.xlu0 %v2898
  %v2900 = vpop.xlane.xlu0 %2899
  %v2901 = vsel %vm2875, %v2719, -inf
  %2902 = vmax.xlane.f32.xlu0 %v2901
  %v2903 = vpop.xlane.xlu0 %2902
  %v2904 = vsel %vm2879, %v2722, -inf
  %2905 = vmax.xlane.f32.xlu0 %v2904
  %v2906 = vpop.xlane.xlu0 %2905
  %v2907 = vsel %vm2875, %v2769, -inf
  %2908 = vmax.xlane.f32.xlu0 %v2907
  %v2909 = vpop.xlane.xlu0 %2908
  %v2910 = vsel %vm2879, %v2772, -inf
  %2911 = vmax.xlane.f32.xlu0 %v2910
  %v2912 = vpop.xlane.xlu0 %2911
  %v2913 = vsel %vm2875, %v2819, -inf
  %2914 = vmax.xlane.f32.xlu0 %v2913
  %v2915 = vpop.xlane.xlu0 %2914
  %v2916 = vsel %vm2879, %v2822, -inf
  %2917 = vmax.xlane.f32.xlu0 %v2916
  %v2918 = vpop.xlane.xlu0 %2917
  %v2919 = vsel %vm2875, %v2869, -inf
  %2920 = vmax.xlane.f32.xlu0 %v2919
  %v2921 = vpop.xlane.xlu0 %2920
  %v2922 = vsel %vm2879, %v2872, -inf
  %2923 = vmax.xlane.f32.xlu0 %v2922
  %v2924 = vpop.xlane.xlu0 %2923
  %v2925 = vsub.f32 %v2519, %v2878
  %v2926 = vsub.f32 %v2522, %v2882
  %v2927 = vsub.f32 %v2569, %v2885
  %v2928 = vsub.f32 %v2572, %v2888
  %v2929 = vsub.f32 %v2619, %v2891
  %v2930 = vsub.f32 %v2622, %v2894
  %v2931 = vsub.f32 %v2669, %v2897
  %v2932 = vsub.f32 %v2672, %v2900
  %v2933 = vsub.f32 %v2719, %v2903
  %v2934 = vsub.f32 %v2722, %v2906
  %v2935 = vsub.f32 %v2769, %v2909
  %v2936 = vsub.f32 %v2772, %v2912
  %v2937 = vsub.f32 %v2819, %v2915
  %v2938 = vsub.f32 %v2822, %v2918
  %v2939 = vsub.f32 %v2869, %v2921
  %v2940 = vsub.f32 %v2872, %v2924
  %v2941 = vmul.f32 %v2925, 1.442695
  %v2942 = vpow.pop %v2941
  %v2943 = vmul.f32 %v2926, 1.442695
  %v2944 = vpow.pop %v2943
  %v2945 = vmul.f32 %v2927, 1.442695
  %v2946 = vpow.pop %v2945
  %v2947 = vmul.f32 %v2928, 1.442695
  %v2948 = vpow.pop %v2947
  %v2949 = vmul.f32 %v2929, 1.442695
  %v2950 = vpow.pop %v2949
  %v2951 = vmul.f32 %v2930, 1.442695
  %v2952 = vpow.pop %v2951
  %v2953 = vmul.f32 %v2931, 1.442695
  %v2954 = vpow.pop %v2953
  %v2955 = vmul.f32 %v2932, 1.442695
  %v2956 = vpow.pop %v2955
  %v2957 = vmul.f32 %v2933, 1.442695
  %v2958 = vpow.pop %v2957
  %v2959 = vmul.f32 %v2934, 1.442695
  %v2960 = vpow.pop %v2959
  %v2961 = vmul.f32 %v2935, 1.442695
  %v2962 = vpow.pop %v2961
  %v2963 = vmul.f32 %v2936, 1.442695
  %v2964 = vpow.pop %v2963
  %v2965 = vmul.f32 %v2937, 1.442695
  %v2966 = vpow.pop %v2965
  %v2967 = vmul.f32 %v2938, 1.442695
  %v2968 = vpow.pop %v2967
  %v2969 = vmul.f32 %v2939, 1.442695
  %v2970 = vpow.pop %v2969
  %v2971 = vmul.f32 %v2940, 1.442695
  %v2972 = vpow.pop %v2971
  %v2973 = vsel %vm2875, %v2942, 0.0
  %2974 = vadd.xlane.f32.xlu0 %v2973
  %v2975 = vpop.xlane.xlu0 %2974
  %v2976 = vsel %vm2879, %v2944, 0.0
  %2977 = vadd.xlane.f32.xlu0 %v2976
  %v2978 = vpop.xlane.xlu0 %2977
  %v2979 = vsel %vm2875, %v2946, 0.0
  %2980 = vadd.xlane.f32.xlu0 %v2979
  %v2981 = vpop.xlane.xlu0 %2980
  %v2982 = vsel %vm2879, %v2948, 0.0
  %2983 = vadd.xlane.f32.xlu0 %v2982
  %v2984 = vpop.xlane.xlu0 %2983
  %v2985 = vsel %vm2875, %v2950, 0.0
  %2986 = vadd.xlane.f32.xlu0 %v2985
  %v2987 = vpop.xlane.xlu0 %2986
  %v2988 = vsel %vm2879, %v2952, 0.0
  %2989 = vadd.xlane.f32.xlu0 %v2988
  %v2990 = vpop.xlane.xlu0 %2989
  %v2991 = vsel %vm2875, %v2954, 0.0
  %2992 = vadd.xlane.f32.xlu0 %v2991
  %v2993 = vpop.xlane.xlu0 %2992
  %v2994 = vsel %vm2879, %v2956, 0.0
  %2995 = vadd.xlane.f32.xlu0 %v2994
  %v2996 = vpop.xlane.xlu0 %2995
  %v2997 = vsel %vm2875, %v2958, 0.0
  %2998 = vadd.xlane.f32.xlu0 %v2997
  %v2999 = vpop.xlane.xlu0 %2998
  %v3000 = vsel %vm2879, %v2960, 0.0
  %3001 = vadd.xlane.f32.xlu0 %v3000
  %v3002 = vpop.xlane.xlu0 %3001
  %v3003 = vsel %vm2875, %v2962, 0.0
  %3004 = vadd.xlane.f32.xlu0 %v3003
  %v3005 = vpop.xlane.xlu0 %3004
  %v3006 = vsel %vm2879, %v2964, 0.0
  %3007 = vadd.xlane.f32.xlu0 %v3006
  %v3008 = vpop.xlane.xlu0 %3007
  %v3009 = vsel %vm2875, %v2966, 0.0
  %3010 = vadd.xlane.f32.xlu0 %v3009
  %v3011 = vpop.xlane.xlu0 %3010
  %v3012 = vsel %vm2879, %v2968, 0.0
  %3013 = vadd.xlane.f32.xlu0 %v3012
  %v3014 = vpop.xlane.xlu0 %3013
  %v3015 = vsel %vm2875, %v2970, 0.0
  %3016 = vadd.xlane.f32.xlu0 %v3015
  %v3017 = vpop.xlane.xlu0 %3016
  %v3018 = vsel %vm2879, %v2972, 0.0
  %3019 = vadd.xlane.f32.xlu0 %v3018
  %v3020 = vpop.xlane.xlu0 %3019
  %v3021 = vrcp.pop %v2975
  %v3022 = vrcp.pop %v2978
  %v3023 = vrcp.pop %v2981
  %v3024 = vrcp.pop %v2984
  %v3025 = vrcp.pop %v2987
  %v3026 = vrcp.pop %v2990
  %v3027 = vrcp.pop %v2993
  %v3028 = vrcp.pop %v2996
  %v3029 = vrcp.pop %v2999
  %v3030 = vrcp.pop %v3002
  %v3031 = vrcp.pop %v3005
  %v3032 = vrcp.pop %v3008
  %v3033 = vrcp.pop %v3011
  %v3034 = vrcp.pop %v3014
  %v3035 = vrcp.pop %v3017
  %v3036 = vrcp.pop %v3020
  %v3037 = vmul.f32 %v2942, %v3021
  %v3038 = vmul.f32 %v2944, %v3022
  %v3039 = vmul.f32 %v2946, %v3023
  %v3040 = vmul.f32 %v2948, %v3024
  %v3041 = vmul.f32 %v2950, %v3025
  %v3042 = vmul.f32 %v2952, %v3026
  %v3043 = vmul.f32 %v2954, %v3027
  %v3044 = vmul.f32 %v2956, %v3028
  %v3045 = vmul.f32 %v2958, %v3029
  %v3046 = vmul.f32 %v2960, %v3030
  %v3047 = vmul.f32 %v2962, %v3031
  %v3048 = vmul.f32 %v2964, %v3032
  %v3049 = vmul.f32 %v2966, %v3033
  %v3050 = vmul.f32 %v2968, %v3034
  %v3051 = vmul.f32 %v2970, %v3035
  %v3052 = vmul.f32 %v2972, %v3036
  %v3053 = vpack.c.bf16 %v3038, %v3037
  %v3054 = vpack.c.bf16 %v3040, %v3039
  %v3055 = vpack.c.bf16 %v3042, %v3041
  %v3056 = vpack.c.bf16 %v3044, %v3043
  %v3057 = vpack.c.bf16 %v3046, %v3045
  %v3058 = vpack.c.bf16 %v3048, %v3047
  %v3059 = vpack.c.bf16 %v3050, %v3049
  %v3060 = vpack.c.bf16 %v3052, %v3051
  %3061 = vrot.lane.b32.xlu0 %v2466, 64
  %v3062 = vpop.permute.xlu0 %3061
  %v3064 = vsel %vm2875, %v3053, 0
  %vm3066 = vcmask 1044480
  %v3068 = vsel %vm3066, %v3062, 0
  %3070 = vmatprep.subr.bf16.mxu0 0
  %3071 = vmatpush1.bf16.msra.mxu0 %v3068
  %3072 = vmatprep.subr.bf16.mxu0 0
  %3073 = vmatpush1.bf16.msra.mxu0 0
  %3074 = vmatprep.subr.bf16.mxu0 0
  %3075 = vmatpush1.bf16.msra.mxu0 0
  %3076 = vmatprep.subr.bf16.mxu0 0
  %3077 = vmatpush1.bf16.msra.mxu0 0
  %3078 = vmatprep.subr.bf16.mxu0 0
  %3079 = vmatpush1.bf16.msra.mxu0 0
  %3080 = vmatprep.subr.bf16.mxu0 0
  %3081 = vmatpush1.bf16.msra.mxu0 0
  %3082 = vmatprep.subr.bf16.mxu0 0
  %3083 = vmatpush1.bf16.msra.mxu0 0
  %3084 = vmatprep.subr.bf16.mxu0 0
  %3085 = vmatpush1.bf16.msra.mxu0 0
  %3086 = vmatprep.subr.bf16.mxu0 0
  %3087 = vmatpush1.bf16.msra.mxu0 0
  %3088 = vmatprep.subr.bf16.mxu0 0
  %3089 = vmatpush1.bf16.msra.mxu0 0
  %3090 = vmatprep.subr.bf16.mxu0 0
  %3091 = vmatpush1.bf16.msra.mxu0 0
  %3092 = vmatprep.subr.bf16.mxu0 0
  %3093 = vmatpush1.bf16.msra.mxu0 0
  %3094 = vmatprep.subr.bf16.mxu0 0
  %3095 = vmatpush1.bf16.msra.mxu0 0
  %3096 = vmatprep.subr.bf16.mxu0 0
  %3097 = vmatpush1.bf16.msra.mxu0 0
  %3098 = vmatprep.subr.bf16.mxu0 0
  %3099 = vmatpush1.bf16.msra.mxu0 0
  %3100 = vmatprep.subr.bf16.mxu0 0
  %3101 = vmatpush1.bf16.msra.mxu0 0
  %3102 = vmatprep.mubr.bf16.mxu0 0
  %3103 = vmatmul.mubr.bf16.gmra.mrb[0].mxu0 %v3064
  %v3104 = vpop.f32.mrb[0].mxu0
  %v3105 = vadd.f32 0.0, %v3104
  %v3106 = vpop.f32.mrb[0].mxu0
  %v3107 = vpop.f32.mrb[0].mxu0
  %v3108 = vadd.f32 0.0, %v3107
  %v3109 = vpop.f32.mrb[0].mxu0
  %3110 = vdwg.mxu0
  %3111 = vrot.lane.b32.xlu0 %v2467, 64
  %v3112 = vpop.permute.xlu0 %3111
  %v3114 = vsel %vm2875, %v3054, 0
  %v3117 = vsel %vm3066, %v3112, 0
  %3119 = vmatprep.subr.bf16.mxu0 0
  %3120 = vmatpush1.bf16.msra.mxu0 %v3117
  %3121 = vmatprep.subr.bf16.mxu0 0
  %3122 = vmatpush1.bf16.msra.mxu0 0
  %3123 = vmatprep.subr.bf16.mxu0 0
  %3124 = vmatpush1.bf16.msra.mxu0 0
  %3125 = vmatprep.subr.bf16.mxu0 0
  %3126 = vmatpush1.bf16.msra.mxu0 0
  %3127 = vmatprep.subr.bf16.mxu0 0
  %3128 = vmatpush1.bf16.msra.mxu0 0
  %3129 = vmatprep.subr.bf16.mxu0 0
  %3130 = vmatpush1.bf16.msra.mxu0 0
  %3131 = vmatprep.subr.bf16.mxu0 0
  %3132 = vmatpush1.bf16.msra.mxu0 0
  %3133 = vmatprep.subr.bf16.mxu0 0
  %3134 = vmatpush1.bf16.msra.mxu0 0
  %3135 = vmatprep.subr.bf16.mxu0 0
  %3136 = vmatpush1.bf16.msra.mxu0 0
  %3137 = vmatprep.subr.bf16.mxu0 0
  %3138 = vmatpush1.bf16.msra.mxu0 0
  %3139 = vmatprep.subr.bf16.mxu0 0
  %3140 = vmatpush1.bf16.msra.mxu0 0
  %3141 = vmatprep.subr.bf16.mxu0 0
  %3142 = vmatpush1.bf16.msra.mxu0 0
  %3143 = vmatprep.subr.bf16.mxu0 0
  %3144 = vmatpush1.bf16.msra.mxu0 0
  %3145 = vmatprep.subr.bf16.mxu0 0
  %3146 = vmatpush1.bf16.msra.mxu0 0
  %3147 = vmatprep.subr.bf16.mxu0 0
  %3148 = vmatpush1.bf16.msra.mxu0 0
  %3149 = vmatprep.subr.bf16.mxu0 0
  %3150 = vmatpush1.bf16.msra.mxu0 0
  %3151 = vmatprep.mubr.bf16.mxu0 0
  %3152 = vmatmul.mubr.bf16.gmra.mrb[0].mxu0 %v3114
  %v3153 = vpop.f32.mrb[0].mxu0
  %v3154 = vadd.f32 0.0, %v3153
  %v3155 = vpop.f32.mrb[0].mxu0
  %v3156 = vpop.f32.mrb[0].mxu0
  %v3157 = vadd.f32 0.0, %v3156
  %v3158 = vpop.f32.mrb[0].mxu0
  %3159 = vdwg.mxu0
  %3160 = vrot.lane.b32.xlu0 %v2468, 64
  %v3161 = vpop.permute.xlu0 %3160
  %v3163 = vsel %vm2875, %v3055, 0
  %v3166 = vsel %vm3066, %v3161, 0
  %3168 = vmatprep.subr.bf16.mxu0 0
  %3169 = vmatpush1.bf16.msra.mxu0 %v3166
  %3170 = vmatprep.subr.bf16.mxu0 0
  %3171 = vmatpush1.bf16.msra.mxu0 0
  %3172 = vmatprep.subr.bf16.mxu0 0
  %3173 = vmatpush1.bf16.msra.mxu0 0
  %3174 = vmatprep.subr.bf16.mxu0 0
  %3175 = vmatpush1.bf16.msra.mxu0 0
  %3176 = vmatprep.subr.bf16.mxu0 0
  %3177 = vmatpush1.bf16.msra.mxu0 0
  %3178 = vmatprep.subr.bf16.mxu0 0
  %3179 = vmatpush1.bf16.msra.mxu0 0
  %3180 = vmatprep.subr.bf16.mxu0 0
  %3181 = vmatpush1.bf16.msra.mxu0 0
  %3182 = vmatprep.subr.bf16.mxu0 0
  %3183 = vmatpush1.bf16.msra.mxu0 0
  %3184 = vmatprep.subr.bf16.mxu0 0
  %3185 = vmatpush1.bf16.msra.mxu0 0
  %3186 = vmatprep.subr.bf16.mxu0 0
  %3187 = vmatpush1.bf16.msra.mxu0 0
  %3188 = vmatprep.subr.bf16.mxu0 0
  %3189 = vmatpush1.bf16.msra.mxu0 0
  %3190 = vmatprep.subr.bf16.mxu0 0
  %3191 = vmatpush1.bf16.msra.mxu0 0
  %3192 = vmatprep.subr.bf16.mxu0 0
  %3193 = vmatpush1.bf16.msra.mxu0 0
  %3194 = vmatprep.subr.bf16.mxu0 0
  %3195 = vmatpush1.bf16.msra.mxu0 0
  %3196 = vmatprep.subr.bf16.mxu0 0
  %3197 = vmatpush1.bf16.msra.mxu0 0
  %3198 = vmatprep.subr.bf16.mxu0 0
  %3199 = vmatpush1.bf16.msra.mxu0 0
  %3200 = vmatprep.mubr.bf16.mxu0 0
  %3201 = vmatmul.mubr.bf16.gmra.mrb[0].mxu0 %v3163
  %v3202 = vpop.f32.mrb[0].mxu0
  %v3203 = vadd.f32 0.0, %v3202
  %v3204 = vpop.f32.mrb[0].mxu0
  %v3205 = vpop.f32.mrb[0].mxu0
  %v3206 = vadd.f32 0.0, %v3205
  %v3207 = vpop.f32.mrb[0].mxu0
  %3208 = vdwg.mxu0
  %3209 = vrot.lane.b32.xlu0 %v2469, 64
  %v3210 = vpop.permute.xlu0 %3209
  %v3212 = vsel %vm2875, %v3056, 0
  %v3215 = vsel %vm3066, %v3210, 0
  %3217 = vmatprep.subr.bf16.mxu0 0
  %3218 = vmatpush1.bf16.msra.mxu0 %v3215
  %3219 = vmatprep.subr.bf16.mxu0 0
  %3220 = vmatpush1.bf16.msra.mxu0 0
  %3221 = vmatprep.subr.bf16.mxu0 0
  %3222 = vmatpush1.bf16.msra.mxu0 0
  %3223 = vmatprep.subr.bf16.mxu0 0
  %3224 = vmatpush1.bf16.msra.mxu0 0
  %3225 = vmatprep.subr.bf16.mxu0 0
  %3226 = vmatpush1.bf16.msra.mxu0 0
  %3227 = vmatprep.subr.bf16.mxu0 0
  %3228 = vmatpush1.bf16.msra.mxu0 0
  %3229 = vmatprep.subr.bf16.mxu0 0
  %3230 = vmatpush1.bf16.msra.mxu0 0
  %3231 = vmatprep.subr.bf16.mxu0 0
  %3232 = vmatpush1.bf16.msra.mxu0 0
  %3233 = vmatprep.subr.bf16.mxu0 0
  %3234 = vmatpush1.bf16.msra.mxu0 0
  %3235 = vmatprep.subr.bf16.mxu0 0
  %3236 = vmatpush1.bf16.msra.mxu0 0
  %3237 = vmatprep.subr.bf16.mxu0 0
  %3238 = vmatpush1.bf16.msra.mxu0 0
  %3239 = vmatprep.subr.bf16.mxu0 0
  %3240 = vmatpush1.bf16.msra.mxu0 0
  %3241 = vmatprep.subr.bf16.mxu0 0
  %3242 = vmatpush1.bf16.msra.mxu0 0
  %3243 = vmatprep.subr.bf16.mxu0 0
  %3244 = vmatpush1.bf16.msra.mxu0 0
  %3245 = vmatprep.subr.bf16.mxu0 0
  %3246 = vmatpush1.bf16.msra.mxu0 0
  %3247 = vmatprep.subr.bf16.mxu0 0
  %3248 = vmatpush1.bf16.msra.mxu0 0
  %3249 = vmatprep.mubr.bf16.mxu0 0
  %3250 = vmatmul.mubr.bf16.gmra.mrb[0].mxu0 %v3212
  %v3251 = vpop.f32.mrb[0].mxu0
  %v3252 = vadd.f32 0.0, %v3251
  %v3253 = vpop.f32.mrb[0].mxu0
  %v3254 = vpop.f32.mrb[0].mxu0
  %v3255 = vadd.f32 0.0, %v3254
  %v3256 = vpop.f32.mrb[0].mxu0
  %3257 = vdwg.mxu0
  %3258 = vrot.lane.b32.xlu0 %v2470, 64
  %v3259 = vpop.permute.xlu0 %3258
  %v3261 = vsel %vm2875, %v3057, 0
  %v3264 = vsel %vm3066, %v3259, 0
  %3266 = vmatprep.subr.bf16.mxu0 0
  %3267 = vmatpush1.bf16.msra.mxu0 %v3264
  %3268 = vmatprep.subr.bf16.mxu0 0
  %3269 = vmatpush1.bf16.msra.mxu0 0
  %3270 = vmatprep.subr.bf16.mxu0 0
  %3271 = vmatpush1.bf16.msra.mxu0 0
  %3272 = vmatprep.subr.bf16.mxu0 0
  %3273 = vmatpush1.bf16.msra.mxu0 0
  %3274 = vmatprep.subr.bf16.mxu0 0
  %3275 = vmatpush1.bf16.msra.mxu0 0
  %3276 = vmatprep.subr.bf16.mxu0 0
  %3277 = vmatpush1.bf16.msra.mxu0 0
  %3278 = vmatprep.subr.bf16.mxu0 0
  %3279 = vmatpush1.bf16.msra.mxu0 0
  %3280 = vmatprep.subr.bf16.mxu0 0
  %3281 = vmatpush1.bf16.msra.mxu0 0
  %3282 = vmatprep.subr.bf16.mxu0 0
  %3283 = vmatpush1.bf16.msra.mxu0 0
  %3284 = vmatprep.subr.bf16.mxu0 0
  %3285 = vmatpush1.bf16.msra.mxu0 0
  %3286 = vmatprep.subr.bf16.mxu0 0
  %3287 = vmatpush1.bf16.msra.mxu0 0
  %3288 = vmatprep.subr.bf16.mxu0 0
  %3289 = vmatpush1.bf16.msra.mxu0 0
  %3290 = vmatprep.subr.bf16.mxu0 0
  %3291 = vmatpush1.bf16.msra.mxu0 0
  %3292 = vmatprep.subr.bf16.mxu0 0
  %3293 = vmatpush1.bf16.msra.mxu0 0
  %3294 = vmatprep.subr.bf16.mxu0 0
  %3295 = vmatpush1.bf16.msra.mxu0 0
  %3296 = vmatprep.subr.bf16.mxu0 0
  %3297 = vmatpush1.bf16.msra.mxu0 0
  %3298 = vmatprep.mubr.bf16.mxu0 0
  %3299 = vmatmul.mubr.bf16.gmra.mrb[0].mxu0 %v3261
  %v3300 = vpop.f32.mrb[0].mxu0
  %v3301 = vadd.f32 0.0, %v3300
  %v3302 = vpop.f32.mrb[0].mxu0
  %v3303 = vpop.f32.mrb[0].mxu0
  %v3304 = vadd.f32 0.0, %v3303
  %v3305 = vpop.f32.mrb[0].mxu0
  %3306 = vdwg.mxu0
  %3307 = vrot.lane.b32.xlu0 %v2471, 64
  %v3308 = vpop.permute.xlu0 %3307
  %v3310 = vsel %vm2875, %v3058, 0
  %v3313 = vsel %vm3066, %v3308, 0
  %3315 = vmatprep.subr.bf16.mxu0 0
  %3316 = vmatpush1.bf16.msra.mxu0 %v3313
  %3317 = vmatprep.subr.bf16.mxu0 0
  %3318 = vmatpush1.bf16.msra.mxu0 0
  %3319 = vmatprep.subr.bf16.mxu0 0
  %3320 = vmatpush1.bf16.msra.mxu0 0
  %3321 = vmatprep.subr.bf16.mxu0 0
  %3322 = vmatpush1.bf16.msra.mxu0 0
  %3323 = vmatprep.subr.bf16.mxu0 0
  %3324 = vmatpush1.bf16.msra.mxu0 0
  %3325 = vmatprep.subr.bf16.mxu0 0
  %3326 = vmatpush1.bf16.msra.mxu0 0
  %3327 = vmatprep.subr.bf16.mxu0 0
  %3328 = vmatpush1.bf16.msra.mxu0 0
  %3329 = vmatprep.subr.bf16.mxu0 0
  %3330 = vmatpush1.bf16.msra.mxu0 0
  %3331 = vmatprep.subr.bf16.mxu0 0
  %3332 = vmatpush1.bf16.msra.mxu0 0
  %3333 = vmatprep.subr.bf16.mxu0 0
  %3334 = vmatpush1.bf16.msra.mxu0 0
  %3335 = vmatprep.subr.bf16.mxu0 0
  %3336 = vmatpush1.bf16.msra.mxu0 0
  %3337 = vmatprep.subr.bf16.mxu0 0
  %3338 = vmatpush1.bf16.msra.mxu0 0
  %3339 = vmatprep.subr.bf16.mxu0 0
  %3340 = vmatpush1.bf16.msra.mxu0 0
  %3341 = vmatprep.subr.bf16.mxu0 0
  %3342 = vmatpush1.bf16.msra.mxu0 0
  %3343 = vmatprep.subr.bf16.mxu0 0
  %3344 = vmatpush1.bf16.msra.mxu0 0
  %3345 = vmatprep.subr.bf16.mxu0 0
  %3346 = vmatpush1.bf16.msra.mxu0 0
  %3347 = vmatprep.mubr.bf16.mxu0 0
  %3348 = vmatmul.mubr.bf16.gmra.mrb[0].mxu0 %v3310
  %v3349 = vpop.f32.mrb[0].mxu0
  %v3350 = vadd.f32 0.0, %v3349
  %v3351 = vpop.f32.mrb[0].mxu0
  %v3352 = vpop.f32.mrb[0].mxu0
  %v3353 = vadd.f32 0.0, %v3352
  %v3354 = vpop.f32.mrb[0].mxu0
  %3355 = vdwg.mxu0
  %3356 = vrot.lane.b32.xlu0 %v2472, 64
  %v3357 = vpop.permute.xlu0 %3356
  %v3359 = vsel %vm2875, %v3059, 0
  %v3362 = vsel %vm3066, %v3357, 0
  %3364 = vmatprep.subr.bf16.mxu0 0
  %3365 = vmatpush1.bf16.msra.mxu0 %v3362
  %3366 = vmatprep.subr.bf16.mxu0 0
  %3367 = vmatpush1.bf16.msra.mxu0 0
  %3368 = vmatprep.subr.bf16.mxu0 0
  %3369 = vmatpush1.bf16.msra.mxu0 0
  %3370 = vmatprep.subr.bf16.mxu0 0
  %3371 = vmatpush1.bf16.msra.mxu0 0
  %3372 = vmatprep.subr.bf16.mxu0 0
  %3373 = vmatpush1.bf16.msra.mxu0 0
  %3374 = vmatprep.subr.bf16.mxu0 0
  %3375 = vmatpush1.bf16.msra.mxu0 0
  %3376 = vmatprep.subr.bf16.mxu0 0
  %3377 = vmatpush1.bf16.msra.mxu0 0
  %3378 = vmatprep.subr.bf16.mxu0 0
  %3379 = vmatpush1.bf16.msra.mxu0 0
  %3380 = vmatprep.subr.bf16.mxu0 0
  %3381 = vmatpush1.bf16.msra.mxu0 0
  %3382 = vmatprep.subr.bf16.mxu0 0
  %3383 = vmatpush1.bf16.msra.mxu0 0
  %3384 = vmatprep.subr.bf16.mxu0 0
  %3385 = vmatpush1.bf16.msra.mxu0 0
  %3386 = vmatprep.subr.bf16.mxu0 0
  %3387 = vmatpush1.bf16.msra.mxu0 0
  %3388 = vmatprep.subr.bf16.mxu0 0
  %3389 = vmatpush1.bf16.msra.mxu0 0
  %3390 = vmatprep.subr.bf16.mxu0 0
  %3391 = vmatpush1.bf16.msra.mxu0 0
  %3392 = vmatprep.subr.bf16.mxu0 0
  %3393 = vmatpush1.bf16.msra.mxu0 0
  %3394 = vmatprep.subr.bf16.mxu0 0
  %3395 = vmatpush1.bf16.msra.mxu0 0
  %3396 = vmatprep.mubr.bf16.mxu0 0
  %3397 = vmatmul.mubr.bf16.gmra.mrb[0].mxu0 %v3359
  %v3398 = vpop.f32.mrb[0].mxu0
  %v3399 = vadd.f32 0.0, %v3398
  %v3400 = vpop.f32.mrb[0].mxu0
  %v3401 = vpop.f32.mrb[0].mxu0
  %v3402 = vadd.f32 0.0, %v3401
  %v3403 = vpop.f32.mrb[0].mxu0
  %3404 = vdwg.mxu0
  %3405 = vrot.lane.b32.xlu0 %v2473, 64
  %v3406 = vpop.permute.xlu0 %3405
  %v3408 = vsel %vm2875, %v3060, 0
  %v3411 = vsel %vm3066, %v3406, 0
  %3413 = vmatprep.subr.bf16.mxu0 0
  %3414 = vmatpush1.bf16.msra.mxu0 %v3411
  %3415 = vmatprep.subr.bf16.mxu0 0
  %3416 = vmatpush1.bf16.msra.mxu0 0
  %3417 = vmatprep.subr.bf16.mxu0 0
  %3418 = vmatpush1.bf16.msra.mxu0 0
  %3419 = vmatprep.subr.bf16.mxu0 0
  %3420 = vmatpush1.bf16.msra.mxu0 0
  %3421 = vmatprep.subr.bf16.mxu0 0
  %3422 = vmatpush1.bf16.msra.mxu0 0
  %3423 = vmatprep.subr.bf16.mxu0 0
  %3424 = vmatpush1.bf16.msra.mxu0 0
  %3425 = vmatprep.subr.bf16.mxu0 0
  %3426 = vmatpush1.bf16.msra.mxu0 0
  %3427 = vmatprep.subr.bf16.mxu0 0
  %3428 = vmatpush1.bf16.msra.mxu0 0
  %3429 = vmatprep.subr.bf16.mxu0 0
  %3430 = vmatpush1.bf16.msra.mxu0 0
  %3431 = vmatprep.subr.bf16.mxu0 0
  %3432 = vmatpush1.bf16.msra.mxu0 0
  %3433 = vmatprep.subr.bf16.mxu0 0
  %3434 = vmatpush1.bf16.msra.mxu0 0
  %3435 = vmatprep.subr.bf16.mxu0 0
  %3436 = vmatpush1.bf16.msra.mxu0 0
  %3437 = vmatprep.subr.bf16.mxu0 0
  %3438 = vmatpush1.bf16.msra.mxu0 0
  %3439 = vmatprep.subr.bf16.mxu0 0
  %3440 = vmatpush1.bf16.msra.mxu0 0
  %3441 = vmatprep.subr.bf16.mxu0 0
  %3442 = vmatpush1.bf16.msra.mxu0 0
  %3443 = vmatprep.subr.bf16.mxu0 0
  %3444 = vmatpush1.bf16.msra.mxu0 0
  %3445 = vmatprep.mubr.bf16.mxu0 0
  %3446 = vmatmul.mubr.bf16.gmra.mrb[0].mxu0 %v3408
  %v3447 = vpop.f32.mrb[0].mxu0
  %v3448 = vadd.f32 0.0, %v3447
  %v3449 = vpop.f32.mrb[0].mxu0
  %v3450 = vpop.f32.mrb[0].mxu0
  %v3451 = vadd.f32 0.0, %v3450
  %v3452 = vpop.f32.mrb[0].mxu0
  %3453 = vdwg.mxu0
  %3454 = vrot.lane.b32.xlu0 %v2466, 112
  %v3455 = vpop.permute.xlu0 %3454
  %3456 = vrot.lane.b32.xlu0 %v2466, 80
  %v3457 = vpop.permute.xlu0 %3456
  %v3459 = vsel %vm2477, %v3455, 0
  %v3462 = vsel %vm2477, %v3457, 0
  %3464 = vmatprep.subr.bf16.mxu0 0
  %3465 = vmatpush1.bf16.xpose.msra.mxu0 %v3462
  %3466 = vmatprep.subr.bf16.mxu0 0
  %3467 = vmatpush1.bf16.xpose.msra.mxu0 0
  %3468 = vmatprep.subr.bf16.mxu0 0
  %3469 = vmatpush1.bf16.xpose.msra.mxu0 0
  %3470 = vmatprep.subr.bf16.mxu0 0
  %3471 = vmatpush1.bf16.xpose.msra.mxu0 0
  %3472 = vmatprep.subr.bf16.mxu0 0
  %3473 = vmatpush1.bf16.xpose.msra.mxu0 0
  %3474 = vmatprep.subr.bf16.mxu0 0
  %3475 = vmatpush1.bf16.xpose.msra.mxu0 0
  %3476 = vmatprep.subr.bf16.mxu0 0
  %3477 = vmatpush1.bf16.xpose.msra.mxu0 0
  %3478 = vmatprep.subr.bf16.mxu0 0
  %3479 = vmatpush1.bf16.xpose.msra.mxu0 0
  %3480 = vmatprep.subr.bf16.mxu0 0
  %3481 = vmatpush1.bf16.xpose.msra.mxu0 0
  %3482 = vmatprep.subr.bf16.mxu0 0
  %3483 = vmatpush1.bf16.xpose.msra.mxu0 0
  %3484 = vmatprep.subr.bf16.mxu0 0
  %3485 = vmatpush1.bf16.xpose.msra.mxu0 0
  %3486 = vmatprep.subr.bf16.mxu0 0
  %3487 = vmatpush1.bf16.xpose.msra.mxu0 0
  %3488 = vmatprep.subr.bf16.mxu0 0
  %3489 = vmatpush1.bf16.xpose.msra.mxu0 0
  %3490 = vmatprep.subr.bf16.mxu0 0
  %3491 = vmatpush1.bf16.xpose.msra.mxu0 0
  %3492 = vmatprep.subr.bf16.mxu0 0
  %3493 = vmatpush1.bf16.xpose.msra.mxu0 0
  %3494 = vmatprep.subr.bf16.mxu0 0
  %3495 = vmatpush1.bf16.xpose.msra.mxu0 0
  %3496 = vmatprep.mubr.bf16.mxu0 0
  %3497 = vmatmul.mubr.bf16.gmra.mrb[0].mxu0 %v3459
  %v3498 = vpop.f32.mrb[0].mxu0
  %v3499 = vadd.f32 0.0, %v3498
  %v3500 = vpop.f32.mrb[0].mxu0
  %v3501 = vpop.f32.mrb[0].mxu0
  %v3502 = vadd.f32 0.0, %v3501
  %v3503 = vpop.f32.mrb[0].mxu0
  %3504 = vdwg.mxu0
  %3505 = vrot.lane.b32.xlu0 %v2467, 112
  %v3506 = vpop.permute.xlu0 %3505
  %3507 = vrot.lane.b32.xlu0 %v2467, 80
  %v3508 = vpop.permute.xlu0 %3507
  %v3510 = vsel %vm2477, %v3506, 0
  %v3513 = vsel %vm2477, %v3508, 0
  %3515 = vmatprep.subr.bf16.mxu0 0
  %3516 = vmatpush1.bf16.xpose.msra.mxu0 %v3513
  %3517 = vmatprep.subr.bf16.mxu0 0
  %3518 = vmatpush1.bf16.xpose.msra.mxu0 0
  %3519 = vmatprep.subr.bf16.mxu0 0
  %3520 = vmatpush1.bf16.xpose.msra.mxu0 0
  %3521 = vmatprep.subr.bf16.mxu0 0
  %3522 = vmatpush1.bf16.xpose.msra.mxu0 0
  %3523 = vmatprep.subr.bf16.mxu0 0
  %3524 = vmatpush1.bf16.xpose.msra.mxu0 0
  %3525 = vmatprep.subr.bf16.mxu0 0
  %3526 = vmatpush1.bf16.xpose.msra.mxu0 0
  %3527 = vmatprep.subr.bf16.mxu0 0
  %3528 = vmatpush1.bf16.xpose.msra.mxu0 0
  %3529 = vmatprep.subr.bf16.mxu0 0
  %3530 = vmatpush1.bf16.xpose.msra.mxu0 0
  %3531 = vmatprep.subr.bf16.mxu0 0
  %3532 = vmatpush1.bf16.xpose.msra.mxu0 0
  %3533 = vmatprep.subr.bf16.mxu0 0
  %3534 = vmatpush1.bf16.xpose.msra.mxu0 0
  %3535 = vmatprep.subr.bf16.mxu0 0
  %3536 = vmatpush1.bf16.xpose.msra.mxu0 0
  %3537 = vmatprep.subr.bf16.mxu0 0
  %3538 = vmatpush1.bf16.xpose.msra.mxu0 0
  %3539 = vmatprep.subr.bf16.mxu0 0
  %3540 = vmatpush1.bf16.xpose.msra.mxu0 0
  %3541 = vmatprep.subr.bf16.mxu0 0
  %3542 = vmatpush1.bf16.xpose.msra.mxu0 0
  %3543 = vmatprep.subr.bf16.mxu0 0
  %3544 = vmatpush1.bf16.xpose.msra.mxu0 0
  %3545 = vmatprep.subr.bf16.mxu0 0
  %3546 = vmatpush1.bf16.xpose.msra.mxu0 0
  %3547 = vmatprep.mubr.bf16.mxu0 0
  %3548 = vmatmul.mubr.bf16.gmra.mrb[0].mxu0 %v3510
  %v3549 = vpop.f32.mrb[0].mxu0
  %v3550 = vadd.f32 0.0, %v3549
  %v3551 = vpop.f32.mrb[0].mxu0
  %v3552 = vpop.f32.mrb[0].mxu0
  %v3553 = vadd.f32 0.0, %v3552
  %v3554 = vpop.f32.mrb[0].mxu0
  %3555 = vdwg.mxu0
  %3556 = vrot.lane.b32.xlu0 %v2468, 112
  %v3557 = vpop.permute.xlu0 %3556
  %3558 = vrot.lane.b32.xlu0 %v2468, 80
  %v3559 = vpop.permute.xlu0 %3558
  %v3561 = vsel %vm2477, %v3557, 0
  %v3564 = vsel %vm2477, %v3559, 0
  %3566 = vmatprep.subr.bf16.mxu0 0
  %3567 = vmatpush1.bf16.xpose.msra.mxu0 %v3564
  %3568 = vmatprep.subr.bf16.mxu0 0
  %3569 = vmatpush1.bf16.xpose.msra.mxu0 0
  %3570 = vmatprep.subr.bf16.mxu0 0
  %3571 = vmatpush1.bf16.xpose.msra.mxu0 0
  %3572 = vmatprep.subr.bf16.mxu0 0
  %3573 = vmatpush1.bf16.xpose.msra.mxu0 0
  %3574 = vmatprep.subr.bf16.mxu0 0
  %3575 = vmatpush1.bf16.xpose.msra.mxu0 0
  %3576 = vmatprep.subr.bf16.mxu0 0
  %3577 = vmatpush1.bf16.xpose.msra.mxu0 0
  %3578 = vmatprep.subr.bf16.mxu0 0
  %3579 = vmatpush1.bf16.xpose.msra.mxu0 0
  %3580 = vmatprep.subr.bf16.mxu0 0
  %3581 = vmatpush1.bf16.xpose.msra.mxu0 0
  %3582 = vmatprep.subr.bf16.mxu0 0
  %3583 = vmatpush1.bf16.xpose.msra.mxu0 0
  %3584 = vmatprep.subr.bf16.mxu0 0
  %3585 = vmatpush1.bf16.xpose.msra.mxu0 0
  %3586 = vmatprep.subr.bf16.mxu0 0
  %3587 = vmatpush1.bf16.xpose.msra.mxu0 0
  %3588 = vmatprep.subr.bf16.mxu0 0
  %3589 = vmatpush1.bf16.xpose.msra.mxu0 0
  %3590 = vmatprep.subr.bf16.mxu0 0
  %3591 = vmatpush1.bf16.xpose.msra.mxu0 0
  %3592 = vmatprep.subr.bf16.mxu0 0
  %3593 = vmatpush1.bf16.xpose.msra.mxu0 0
  %3594 = vmatprep.subr.bf16.mxu0 0
  %3595 = vmatpush1.bf16.xpose.msra.mxu0 0
  %3596 = vmatprep.subr.bf16.mxu0 0
  %3597 = vmatpush1.bf16.xpose.msra.mxu0 0
  %3598 = vmatprep.mubr.bf16.mxu0 0
  %3599 = vmatmul.mubr.bf16.gmra.mrb[0].mxu0 %v3561
  %v3600 = vpop.f32.mrb[0].mxu0
  %v3601 = vadd.f32 0.0, %v3600
  %v3602 = vpop.f32.mrb[0].mxu0
  %v3603 = vpop.f32.mrb[0].mxu0
  %v3604 = vadd.f32 0.0, %v3603
  %v3605 = vpop.f32.mrb[0].mxu0
  %3606 = vdwg.mxu0
  %3607 = vrot.lane.b32.xlu0 %v2469, 112
  %v3608 = vpop.permute.xlu0 %3607
  %3609 = vrot.lane.b32.xlu0 %v2469, 80
  %v3610 = vpop.permute.xlu0 %3609
  %v3612 = vsel %vm2477, %v3608, 0
  %v3615 = vsel %vm2477, %v3610, 0
  %3617 = vmatprep.subr.bf16.mxu0 0
  %3618 = vmatpush1.bf16.xpose.msra.mxu0 %v3615
  %3619 = vmatprep.subr.bf16.mxu0 0
  %3620 = vmatpush1.bf16.xpose.msra.mxu0 0
  %3621 = vmatprep.subr.bf16.mxu0 0
  %3622 = vmatpush1.bf16.xpose.msra.mxu0 0
  %3623 = vmatprep.subr.bf16.mxu0 0
  %3624 = vmatpush1.bf16.xpose.msra.mxu0 0
  %3625 = vmatprep.subr.bf16.mxu0 0
  %3626 = vmatpush1.bf16.xpose.msra.mxu0 0
  %3627 = vmatprep.subr.bf16.mxu0 0
  %3628 = vmatpush1.bf16.xpose.msra.mxu0 0
  %3629 = vmatprep.subr.bf16.mxu0 0
  %3630 = vmatpush1.bf16.xpose.msra.mxu0 0
  %3631 = vmatprep.subr.bf16.mxu0 0
  %3632 = vmatpush1.bf16.xpose.msra.mxu0 0
  %3633 = vmatprep.subr.bf16.mxu0 0
  %3634 = vmatpush1.bf16.xpose.msra.mxu0 0
  %3635 = vmatprep.subr.bf16.mxu0 0
  %3636 = vmatpush1.bf16.xpose.msra.mxu0 0
  %3637 = vmatprep.subr.bf16.mxu0 0
  %3638 = vmatpush1.bf16.xpose.msra.mxu0 0
  %3639 = vmatprep.subr.bf16.mxu0 0
  %3640 = vmatpush1.bf16.xpose.msra.mxu0 0
  %3641 = vmatprep.subr.bf16.mxu0 0
  %3642 = vmatpush1.bf16.xpose.msra.mxu0 0
  %3643 = vmatprep.subr.bf16.mxu0 0
  %3644 = vmatpush1.bf16.xpose.msra.mxu0 0
  %3645 = vmatprep.subr.bf16.mxu0 0
  %3646 = vmatpush1.bf16.xpose.msra.mxu0 0
  %3647 = vmatprep.subr.bf16.mxu0 0
  %3648 = vmatpush1.bf16.xpose.msra.mxu0 0
  %3649 = vmatprep.mubr.bf16.mxu0 0
  %3650 = vmatmul.mubr.bf16.gmra.mrb[0].mxu0 %v3612
  %v3651 = vpop.f32.mrb[0].mxu0
  %v3652 = vadd.f32 0.0, %v3651
  %v3653 = vpop.f32.mrb[0].mxu0
  %v3654 = vpop.f32.mrb[0].mxu0
  %v3655 = vadd.f32 0.0, %v3654
  %v3656 = vpop.f32.mrb[0].mxu0
  %3657 = vdwg.mxu0
  %3658 = vrot.lane.b32.xlu0 %v2470, 112
  %v3659 = vpop.permute.xlu0 %3658
  %3660 = vrot.lane.b32.xlu0 %v2470, 80
  %v3661 = vpop.permute.xlu0 %3660
  %v3663 = vsel %vm2477, %v3659, 0
  %v3666 = vsel %vm2477, %v3661, 0
  %3668 = vmatprep.subr.bf16.mxu0 0
  %3669 = vmatpush1.bf16.xpose.msra.mxu0 %v3666
  %3670 = vmatprep.subr.bf16.mxu0 0
  %3671 = vmatpush1.bf16.xpose.msra.mxu0 0
  %3672 = vmatprep.subr.bf16.mxu0 0
  %3673 = vmatpush1.bf16.xpose.msra.mxu0 0
  %3674 = vmatprep.subr.bf16.mxu0 0
  %3675 = vmatpush1.bf16.xpose.msra.mxu0 0
  %3676 = vmatprep.subr.bf16.mxu0 0
  %3677 = vmatpush1.bf16.xpose.msra.mxu0 0
  %3678 = vmatprep.subr.bf16.mxu0 0
  %3679 = vmatpush1.bf16.xpose.msra.mxu0 0
  %3680 = vmatprep.subr.bf16.mxu0 0
  %3681 = vmatpush1.bf16.xpose.msra.mxu0 0
  %3682 = vmatprep.subr.bf16.mxu0 0
  %3683 = vmatpush1.bf16.xpose.msra.mxu0 0
  %3684 = vmatprep.subr.bf16.mxu0 0
  %3685 = vmatpush1.bf16.xpose.msra.mxu0 0
  %3686 = vmatprep.subr.bf16.mxu0 0
  %3687 = vmatpush1.bf16.xpose.msra.mxu0 0
  %3688 = vmatprep.subr.bf16.mxu0 0
  %3689 = vmatpush1.bf16.xpose.msra.mxu0 0
  %3690 = vmatprep.subr.bf16.mxu0 0
  %3691 = vmatpush1.bf16.xpose.msra.mxu0 0
  %3692 = vmatprep.subr.bf16.mxu0 0
  %3693 = vmatpush1.bf16.xpose.msra.mxu0 0
  %3694 = vmatprep.subr.bf16.mxu0 0
  %3695 = vmatpush1.bf16.xpose.msra.mxu0 0
  %3696 = vmatprep.subr.bf16.mxu0 0
  %3697 = vmatpush1.bf16.xpose.msra.mxu0 0
  %3698 = vmatprep.subr.bf16.mxu0 0
  %3699 = vmatpush1.bf16.xpose.msra.mxu0 0
  %3700 = vmatprep.mubr.bf16.mxu0 0
  %3701 = vmatmul.mubr.bf16.gmra.mrb[0].mxu0 %v3663
  %v3702 = vpop.f32.mrb[0].mxu0
  %v3703 = vadd.f32 0.0, %v3702
  %v3704 = vpop.f32.mrb[0].mxu0
  %v3705 = vpop.f32.mrb[0].mxu0
  %v3706 = vadd.f32 0.0, %v3705
  %v3707 = vpop.f32.mrb[0].mxu0
  %3708 = vdwg.mxu0
  %3709 = vrot.lane.b32.xlu0 %v2471, 112
  %v3710 = vpop.permute.xlu0 %3709
  %3711 = vrot.lane.b32.xlu0 %v2471, 80
  %v3712 = vpop.permute.xlu0 %3711
  %v3714 = vsel %vm2477, %v3710, 0
  %v3717 = vsel %vm2477, %v3712, 0
  %3719 = vmatprep.subr.bf16.mxu0 0
  %3720 = vmatpush1.bf16.xpose.msra.mxu0 %v3717
  %3721 = vmatprep.subr.bf16.mxu0 0
  %3722 = vmatpush1.bf16.xpose.msra.mxu0 0
  %3723 = vmatprep.subr.bf16.mxu0 0
  %3724 = vmatpush1.bf16.xpose.msra.mxu0 0
  %3725 = vmatprep.subr.bf16.mxu0 0
  %3726 = vmatpush1.bf16.xpose.msra.mxu0 0
  %3727 = vmatprep.subr.bf16.mxu0 0
  %3728 = vmatpush1.bf16.xpose.msra.mxu0 0
  %3729 = vmatprep.subr.bf16.mxu0 0
  %3730 = vmatpush1.bf16.xpose.msra.mxu0 0
  %3731 = vmatprep.subr.bf16.mxu0 0
  %3732 = vmatpush1.bf16.xpose.msra.mxu0 0
  %3733 = vmatprep.subr.bf16.mxu0 0
  %3734 = vmatpush1.bf16.xpose.msra.mxu0 0
  %3735 = vmatprep.subr.bf16.mxu0 0
  %3736 = vmatpush1.bf16.xpose.msra.mxu0 0
  %3737 = vmatprep.subr.bf16.mxu0 0
  %3738 = vmatpush1.bf16.xpose.msra.mxu0 0
  %3739 = vmatprep.subr.bf16.mxu0 0
  %3740 = vmatpush1.bf16.xpose.msra.mxu0 0
  %3741 = vmatprep.subr.bf16.mxu0 0
  %3742 = vmatpush1.bf16.xpose.msra.mxu0 0
  %3743 = vmatprep.subr.bf16.mxu0 0
  %3744 = vmatpush1.bf16.xpose.msra.mxu0 0
  %3745 = vmatprep.subr.bf16.mxu0 0
  %3746 = vmatpush1.bf16.xpose.msra.mxu0 0
  %3747 = vmatprep.subr.bf16.mxu0 0
  %3748 = vmatpush1.bf16.xpose.msra.mxu0 0
  %3749 = vmatprep.subr.bf16.mxu0 0
  %3750 = vmatpush1.bf16.xpose.msra.mxu0 0
  %3751 = vmatprep.mubr.bf16.mxu0 0
  %3752 = vmatmul.mubr.bf16.gmra.mrb[0].mxu0 %v3714
  %v3753 = vpop.f32.mrb[0].mxu0
  %v3754 = vadd.f32 0.0, %v3753
  %v3755 = vpop.f32.mrb[0].mxu0
  %v3756 = vpop.f32.mrb[0].mxu0
  %v3757 = vadd.f32 0.0, %v3756
  %v3758 = vpop.f32.mrb[0].mxu0
  %3759 = vdwg.mxu0
  %3760 = vrot.lane.b32.xlu0 %v2472, 112
  %v3761 = vpop.permute.xlu0 %3760
  %3762 = vrot.lane.b32.xlu0 %v2472, 80
  %v3763 = vpop.permute.xlu0 %3762
  %v3765 = vsel %vm2477, %v3761, 0
  %v3768 = vsel %vm2477, %v3763, 0
  %3770 = vmatprep.subr.bf16.mxu0 0
  %3771 = vmatpush1.bf16.xpose.msra.mxu0 %v3768
  %3772 = vmatprep.subr.bf16.mxu0 0
  %3773 = vmatpush1.bf16.xpose.msra.mxu0 0
  %3774 = vmatprep.subr.bf16.mxu0 0
  %3775 = vmatpush1.bf16.xpose.msra.mxu0 0
  %3776 = vmatprep.subr.bf16.mxu0 0
  %3777 = vmatpush1.bf16.xpose.msra.mxu0 0
  %3778 = vmatprep.subr.bf16.mxu0 0
  %3779 = vmatpush1.bf16.xpose.msra.mxu0 0
  %3780 = vmatprep.subr.bf16.mxu0 0
  %3781 = vmatpush1.bf16.xpose.msra.mxu0 0
  %3782 = vmatprep.subr.bf16.mxu0 0
  %3783 = vmatpush1.bf16.xpose.msra.mxu0 0
  %3784 = vmatprep.subr.bf16.mxu0 0
  %3785 = vmatpush1.bf16.xpose.msra.mxu0 0
  %3786 = vmatprep.subr.bf16.mxu0 0
  %3787 = vmatpush1.bf16.xpose.msra.mxu0 0
  %3788 = vmatprep.subr.bf16.mxu0 0
  %3789 = vmatpush1.bf16.xpose.msra.mxu0 0
  %3790 = vmatprep.subr.bf16.mxu0 0
  %3791 = vmatpush1.bf16.xpose.msra.mxu0 0
  %3792 = vmatprep.subr.bf16.mxu0 0
  %3793 = vmatpush1.bf16.xpose.msra.mxu0 0
  %3794 = vmatprep.subr.bf16.mxu0 0
  %3795 = vmatpush1.bf16.xpose.msra.mxu0 0
  %3796 = vmatprep.subr.bf16.mxu0 0
  %3797 = vmatpush1.bf16.xpose.msra.mxu0 0
  %3798 = vmatprep.subr.bf16.mxu0 0
  %3799 = vmatpush1.bf16.xpose.msra.mxu0 0
  %3800 = vmatprep.subr.bf16.mxu0 0
  %3801 = vmatpush1.bf16.xpose.msra.mxu0 0
  %3802 = vmatprep.mubr.bf16.mxu0 0
  %3803 = vmatmul.mubr.bf16.gmra.mrb[0].mxu0 %v3765
  %v3804 = vpop.f32.mrb[0].mxu0
  %v3805 = vadd.f32 0.0, %v3804
  %v3806 = vpop.f32.mrb[0].mxu0
  %v3807 = vpop.f32.mrb[0].mxu0
  %v3808 = vadd.f32 0.0, %v3807
  %v3809 = vpop.f32.mrb[0].mxu0
  %3810 = vdwg.mxu0
  %3811 = vrot.lane.b32.xlu0 %v2473, 112
  %v3812 = vpop.permute.xlu0 %3811
  %3813 = vrot.lane.b32.xlu0 %v2473, 80
  %v3814 = vpop.permute.xlu0 %3813
  %v3816 = vsel %vm2477, %v3812, 0
  %v3819 = vsel %vm2477, %v3814, 0
  %3821 = vmatprep.subr.bf16.mxu0 0
  %3822 = vmatpush1.bf16.xpose.msra.mxu0 %v3819
  %3823 = vmatprep.subr.bf16.mxu0 0
  %3824 = vmatpush1.bf16.xpose.msra.mxu0 0
  %3825 = vmatprep.subr.bf16.mxu0 0
  %3826 = vmatpush1.bf16.xpose.msra.mxu0 0
  %3827 = vmatprep.subr.bf16.mxu0 0
  %3828 = vmatpush1.bf16.xpose.msra.mxu0 0
  %3829 = vmatprep.subr.bf16.mxu0 0
  %3830 = vmatpush1.bf16.xpose.msra.mxu0 0
  %3831 = vmatprep.subr.bf16.mxu0 0
  %3832 = vmatpush1.bf16.xpose.msra.mxu0 0
  %3833 = vmatprep.subr.bf16.mxu0 0
  %3834 = vmatpush1.bf16.xpose.msra.mxu0 0
  %3835 = vmatprep.subr.bf16.mxu0 0
  %3836 = vmatpush1.bf16.xpose.msra.mxu0 0
  %3837 = vmatprep.subr.bf16.mxu0 0
  %3838 = vmatpush1.bf16.xpose.msra.mxu0 0
  %3839 = vmatprep.subr.bf16.mxu0 0
  %3840 = vmatpush1.bf16.xpose.msra.mxu0 0
  %3841 = vmatprep.subr.bf16.mxu0 0
  %3842 = vmatpush1.bf16.xpose.msra.mxu0 0
  %3843 = vmatprep.subr.bf16.mxu0 0
  %3844 = vmatpush1.bf16.xpose.msra.mxu0 0
  %3845 = vmatprep.subr.bf16.mxu0 0
  %3846 = vmatpush1.bf16.xpose.msra.mxu0 0
  %3847 = vmatprep.subr.bf16.mxu0 0
  %3848 = vmatpush1.bf16.xpose.msra.mxu0 0
  %3849 = vmatprep.subr.bf16.mxu0 0
  %3850 = vmatpush1.bf16.xpose.msra.mxu0 0
  %3851 = vmatprep.subr.bf16.mxu0 0
  %3852 = vmatpush1.bf16.xpose.msra.mxu0 0
  %3853 = vmatprep.mubr.bf16.mxu0 0
  %3854 = vmatmul.mubr.bf16.gmra.mrb[0].mxu0 %v3816
  %v3855 = vpop.f32.mrb[0].mxu0
  %v3856 = vadd.f32 0.0, %v3855
  %v3857 = vpop.f32.mrb[0].mxu0
  %v3858 = vpop.f32.mrb[0].mxu0
  %v3859 = vadd.f32 0.0, %v3858
  %v3860 = vpop.f32.mrb[0].mxu0
  %3861 = vdwg.mxu0
  %v3862 = vsel %vm2875, %v3499, -inf
  %3863 = vmax.xlane.f32.xlu0 %v3862
  %v3864 = vpop.xlane.xlu0 %3863
  %v3865 = vsel %vm2879, %v3502, -inf
  %3866 = vmax.xlane.f32.xlu0 %v3865
  %v3867 = vpop.xlane.xlu0 %3866
  %v3868 = vsel %vm2875, %v3550, -inf
  %3869 = vmax.xlane.f32.xlu0 %v3868
  %v3870 = vpop.xlane.xlu0 %3869
  %v3871 = vsel %vm2879, %v3553, -inf
  %3872 = vmax.xlane.f32.xlu0 %v3871
  %v3873 = vpop.xlane.xlu0 %3872
  %v3874 = vsel %vm2875, %v3601, -inf
  %3875 = vmax.xlane.f32.xlu0 %v3874
  %v3876 = vpop.xlane.xlu0 %3875
  %v3877 = vsel %vm2879, %v3604, -inf
  %3878 = vmax.xlane.f32.xlu0 %v3877
  %v3879 = vpop.xlane.xlu0 %3878
  %v3880 = vsel %vm2875, %v3652, -inf
  %3881 = vmax.xlane.f32.xlu0 %v3880
  %v3882 = vpop.xlane.xlu0 %3881
  %v3883 = vsel %vm2879, %v3655, -inf
  %3884 = vmax.xlane.f32.xlu0 %v3883
  %v3885 = vpop.xlane.xlu0 %3884
  %v3886 = vsel %vm2875, %v3703, -inf
  %3887 = vmax.xlane.f32.xlu0 %v3886
  %v3888 = vpop.xlane.xlu0 %3887
  %v3889 = vsel %vm2879, %v3706, -inf
  %3890 = vmax.xlane.f32.xlu0 %v3889
  %v3891 = vpop.xlane.xlu0 %3890
  %v3892 = vsel %vm2875, %v3754, -inf
  %3893 = vmax.xlane.f32.xlu0 %v3892
  %v3894 = vpop.xlane.xlu0 %3893
  %v3895 = vsel %vm2879, %v3757, -inf
  %3896 = vmax.xlane.f32.xlu0 %v3895
  %v3897 = vpop.xlane.xlu0 %3896
  %v3898 = vsel %vm2875, %v3805, -inf
  %3899 = vmax.xlane.f32.xlu0 %v3898
  %v3900 = vpop.xlane.xlu0 %3899
  %v3901 = vsel %vm2879, %v3808, -inf
  %3902 = vmax.xlane.f32.xlu0 %v3901
  %v3903 = vpop.xlane.xlu0 %3902
  %v3904 = vsel %vm2875, %v3856, -inf
  %3905 = vmax.xlane.f32.xlu0 %v3904
  %v3906 = vpop.xlane.xlu0 %3905
  %v3907 = vsel %vm2879, %v3859, -inf
  %3908 = vmax.xlane.f32.xlu0 %v3907
  %v3909 = vpop.xlane.xlu0 %3908
  %v3910 = vsub.f32 %v3499, %v3864
  %v3911 = vsub.f32 %v3502, %v3867
  %v3912 = vsub.f32 %v3550, %v3870
  %v3913 = vsub.f32 %v3553, %v3873
  %v3914 = vsub.f32 %v3601, %v3876
  %v3915 = vsub.f32 %v3604, %v3879
  %v3916 = vsub.f32 %v3652, %v3882
  %v3917 = vsub.f32 %v3655, %v3885
  %v3918 = vsub.f32 %v3703, %v3888
  %v3919 = vsub.f32 %v3706, %v3891
  %v3920 = vsub.f32 %v3754, %v3894
  %v3921 = vsub.f32 %v3757, %v3897
  %v3922 = vsub.f32 %v3805, %v3900
  %v3923 = vsub.f32 %v3808, %v3903
  %v3924 = vsub.f32 %v3856, %v3906
  %v3925 = vsub.f32 %v3859, %v3909
  %v3926 = vmul.f32 %v3910, 1.442695
  %v3927 = vpow.pop %v3926
  %v3928 = vmul.f32 %v3911, 1.442695
  %v3929 = vpow.pop %v3928
  %v3930 = vmul.f32 %v3912, 1.442695
  %v3931 = vpow.pop %v3930
  %v3932 = vmul.f32 %v3913, 1.442695
  %v3933 = vpow.pop %v3932
  %v3934 = vmul.f32 %v3914, 1.442695
  %v3935 = vpow.pop %v3934
  %v3936 = vmul.f32 %v3915, 1.442695
  %v3937 = vpow.pop %v3936
  %v3938 = vmul.f32 %v3916, 1.442695
  %v3939 = vpow.pop %v3938
  %v3940 = vmul.f32 %v3917, 1.442695
  %v3941 = vpow.pop %v3940
  %v3942 = vmul.f32 %v3918, 1.442695
  %v3943 = vpow.pop %v3942
  %v3944 = vmul.f32 %v3919, 1.442695
  %v3945 = vpow.pop %v3944
  %v3946 = vmul.f32 %v3920, 1.442695
  %v3947 = vpow.pop %v3946
  %v3948 = vmul.f32 %v3921, 1.442695
  %v3949 = vpow.pop %v3948
  %v3950 = vmul.f32 %v3922, 1.442695
  %v3951 = vpow.pop %v3950
  %v3952 = vmul.f32 %v3923, 1.442695
  %v3953 = vpow.pop %v3952
  %v3954 = vmul.f32 %v3924, 1.442695
  %v3955 = vpow.pop %v3954
  %v3956 = vmul.f32 %v3925, 1.442695
  %v3957 = vpow.pop %v3956
  %v3958 = vsel %vm2875, %v3927, 0.0
  %3959 = vadd.xlane.f32.xlu0 %v3958
  %v3960 = vpop.xlane.xlu0 %3959
  %v3961 = vsel %vm2879, %v3929, 0.0
  %3962 = vadd.xlane.f32.xlu0 %v3961
  %v3963 = vpop.xlane.xlu0 %3962
  %v3964 = vsel %vm2875, %v3931, 0.0
  %3965 = vadd.xlane.f32.xlu0 %v3964
  %v3966 = vpop.xlane.xlu0 %3965
  %v3967 = vsel %vm2879, %v3933, 0.0
  %3968 = vadd.xlane.f32.xlu0 %v3967
  %v3969 = vpop.xlane.xlu0 %3968
  %v3970 = vsel %vm2875, %v3935, 0.0
  %3971 = vadd.xlane.f32.xlu0 %v3970
  %v3972 = vpop.xlane.xlu0 %3971
  %v3973 = vsel %vm2879, %v3937, 0.0
  %3974 = vadd.xlane.f32.xlu0 %v3973
  %v3975 = vpop.xlane.xlu0 %3974
  %v3976 = vsel %vm2875, %v3939, 0.0
  %3977 = vadd.xlane.f32.xlu0 %v3976
  %v3978 = vpop.xlane.xlu0 %3977
  %v3979 = vsel %vm2879, %v3941, 0.0
  %3980 = vadd.xlane.f32.xlu0 %v3979
  %v3981 = vpop.xlane.xlu0 %3980
  %v3982 = vsel %vm2875, %v3943, 0.0
  %3983 = vadd.xlane.f32.xlu0 %v3982
  %v3984 = vpop.xlane.xlu0 %3983
  %v3985 = vsel %vm2879, %v3945, 0.0
  %3986 = vadd.xlane.f32.xlu0 %v3985
  %v3987 = vpop.xlane.xlu0 %3986
  %v3988 = vsel %vm2875, %v3947, 0.0
  %3989 = vadd.xlane.f32.xlu0 %v3988
  %v3990 = vpop.xlane.xlu0 %3989
  %v3991 = vsel %vm2879, %v3949, 0.0
  %3992 = vadd.xlane.f32.xlu0 %v3991
  %v3993 = vpop.xlane.xlu0 %3992
  %v3994 = vsel %vm2875, %v3951, 0.0
  %3995 = vadd.xlane.f32.xlu0 %v3994
  %v3996 = vpop.xlane.xlu0 %3995
  %v3997 = vsel %vm2879, %v3953, 0.0
  %3998 = vadd.xlane.f32.xlu0 %v3997
  %v3999 = vpop.xlane.xlu0 %3998
  %v4000 = vsel %vm2875, %v3955, 0.0
  %4001 = vadd.xlane.f32.xlu0 %v4000
  %v4002 = vpop.xlane.xlu0 %4001
  %v4003 = vsel %vm2879, %v3957, 0.0
  %4004 = vadd.xlane.f32.xlu0 %v4003
  %v4005 = vpop.xlane.xlu0 %4004
  %v4006 = vrcp.pop %v3960
  %v4007 = vrcp.pop %v3963
  %v4008 = vrcp.pop %v3966
  %v4009 = vrcp.pop %v3969
  %v4010 = vrcp.pop %v3972
  %v4011 = vrcp.pop %v3975
  %v4012 = vrcp.pop %v3978
  %v4013 = vrcp.pop %v3981
  %v4014 = vrcp.pop %v3984
  %v4015 = vrcp.pop %v3987
  %v4016 = vrcp.pop %v3990
  %v4017 = vrcp.pop %v3993
  %v4018 = vrcp.pop %v3996
  %v4019 = vrcp.pop %v3999
  %v4020 = vrcp.pop %v4002
  %v4021 = vrcp.pop %v4005
  %v4022 = vmul.f32 %v3927, %v4006
  %v4023 = vmul.f32 %v3929, %v4007
  %v4024 = vmul.f32 %v3931, %v4008
  %v4025 = vmul.f32 %v3933, %v4009
  %v4026 = vmul.f32 %v3935, %v4010
  %v4027 = vmul.f32 %v3937, %v4011
  %v4028 = vmul.f32 %v3939, %v4012
  %v4029 = vmul.f32 %v3941, %v4013
  %v4030 = vmul.f32 %v3943, %v4014
  %v4031 = vmul.f32 %v3945, %v4015
  %v4032 = vmul.f32 %v3947, %v4016
  %v4033 = vmul.f32 %v3949, %v4017
  %v4034 = vmul.f32 %v3951, %v4018
  %v4035 = vmul.f32 %v3953, %v4019
  %v4036 = vmul.f32 %v3955, %v4020
  %v4037 = vmul.f32 %v3957, %v4021
  %v4038 = vpack.c.bf16 %v4023, %v4022
  %v4039 = vpack.c.bf16 %v4025, %v4024
  %v4040 = vpack.c.bf16 %v4027, %v4026
  %v4041 = vpack.c.bf16 %v4029, %v4028
  %v4042 = vpack.c.bf16 %v4031, %v4030
  %v4043 = vpack.c.bf16 %v4033, %v4032
  %v4044 = vpack.c.bf16 %v4035, %v4034
  %v4045 = vpack.c.bf16 %v4037, %v4036
  %4046 = vrot.lane.b32.xlu0 %v2466, 48
  %v4047 = vpop.permute.xlu0 %4046
  %v4049 = vsel %vm2875, %v4038, 0
  %v4052 = vsel %vm3066, %v4047, 0
  %4054 = vmatprep.subr.bf16.mxu0 0
  %4055 = vmatpush1.bf16.msra.mxu0 %v4052
  %4056 = vmatprep.subr.bf16.mxu0 0
  %4057 = vmatpush1.bf16.msra.mxu0 0
  %4058 = vmatprep.subr.bf16.mxu0 0
  %4059 = vmatpush1.bf16.msra.mxu0 0
  %4060 = vmatprep.subr.bf16.mxu0 0
  %4061 = vmatpush1.bf16.msra.mxu0 0
  %4062 = vmatprep.subr.bf16.mxu0 0
  %4063 = vmatpush1.bf16.msra.mxu0 0
  %4064 = vmatprep.subr.bf16.mxu0 0
  %4065 = vmatpush1.bf16.msra.mxu0 0
  %4066 = vmatprep.subr.bf16.mxu0 0
  %4067 = vmatpush1.bf16.msra.mxu0 0
  %4068 = vmatprep.subr.bf16.mxu0 0
  %4069 = vmatpush1.bf16.msra.mxu0 0
  %4070 = vmatprep.subr.bf16.mxu0 0
  %4071 = vmatpush1.bf16.msra.mxu0 0
  %4072 = vmatprep.subr.bf16.mxu0 0
  %4073 = vmatpush1.bf16.msra.mxu0 0
  %4074 = vmatprep.subr.bf16.mxu0 0
  %4075 = vmatpush1.bf16.msra.mxu0 0
  %4076 = vmatprep.subr.bf16.mxu0 0
  %4077 = vmatpush1.bf16.msra.mxu0 0
  %4078 = vmatprep.subr.bf16.mxu0 0
  %4079 = vmatpush1.bf16.msra.mxu0 0
  %4080 = vmatprep.subr.bf16.mxu0 0
  %4081 = vmatpush1.bf16.msra.mxu0 0
  %4082 = vmatprep.subr.bf16.mxu0 0
  %4083 = vmatpush1.bf16.msra.mxu0 0
  %4084 = vmatprep.subr.bf16.mxu0 0
  %4085 = vmatpush1.bf16.msra.mxu0 0
  %4086 = vmatprep.mubr.bf16.mxu0 0
  %4087 = vmatmul.mubr.bf16.gmra.mrb[0].mxu0 %v4049
  %v4088 = vpop.f32.mrb[0].mxu0
  %v4089 = vadd.f32 0.0, %v4088
  %v4090 = vpop.f32.mrb[0].mxu0
  %v4091 = vpop.f32.mrb[0].mxu0
  %v4092 = vadd.f32 0.0, %v4091
  %v4093 = vpop.f32.mrb[0].mxu0
  %4094 = vdwg.mxu0
  %4095 = vrot.lane.b32.xlu0 %v2467, 48
  %v4096 = vpop.permute.xlu0 %4095
  %v4098 = vsel %vm2875, %v4039, 0
  %v4101 = vsel %vm3066, %v4096, 0
  %4103 = vmatprep.subr.bf16.mxu0 0
  %4104 = vmatpush1.bf16.msra.mxu0 %v4101
  %4105 = vmatprep.subr.bf16.mxu0 0
  %4106 = vmatpush1.bf16.msra.mxu0 0
  %4107 = vmatprep.subr.bf16.mxu0 0
  %4108 = vmatpush1.bf16.msra.mxu0 0
  %4109 = vmatprep.subr.bf16.mxu0 0
  %4110 = vmatpush1.bf16.msra.mxu0 0
  %4111 = vmatprep.subr.bf16.mxu0 0
  %4112 = vmatpush1.bf16.msra.mxu0 0
  %4113 = vmatprep.subr.bf16.mxu0 0
  %4114 = vmatpush1.bf16.msra.mxu0 0
  %4115 = vmatprep.subr.bf16.mxu0 0
  %4116 = vmatpush1.bf16.msra.mxu0 0
  %4117 = vmatprep.subr.bf16.mxu0 0
  %4118 = vmatpush1.bf16.msra.mxu0 0
  %4119 = vmatprep.subr.bf16.mxu0 0
  %4120 = vmatpush1.bf16.msra.mxu0 0
  %4121 = vmatprep.subr.bf16.mxu0 0
  %4122 = vmatpush1.bf16.msra.mxu0 0
  %4123 = vmatprep.subr.bf16.mxu0 0
  %4124 = vmatpush1.bf16.msra.mxu0 0
  %4125 = vmatprep.subr.bf16.mxu0 0
  %4126 = vmatpush1.bf16.msra.mxu0 0
  %4127 = vmatprep.subr.bf16.mxu0 0
  %4128 = vmatpush1.bf16.msra.mxu0 0
  %4129 = vmatprep.subr.bf16.mxu0 0
  %4130 = vmatpush1.bf16.msra.mxu0 0
  %4131 = vmatprep.subr.bf16.mxu0 0
  %4132 = vmatpush1.bf16.msra.mxu0 0
  %4133 = vmatprep.subr.bf16.mxu0 0
  %4134 = vmatpush1.bf16.msra.mxu0 0
  %4135 = vmatprep.mubr.bf16.mxu0 0
  %4136 = vmatmul.mubr.bf16.gmra.mrb[0].mxu0 %v4098
  %v4137 = vpop.f32.mrb[0].mxu0
  %v4138 = vadd.f32 0.0, %v4137
  %v4139 = vpop.f32.mrb[0].mxu0
  %v4140 = vpop.f32.mrb[0].mxu0
  %v4141 = vadd.f32 0.0, %v4140
  %v4142 = vpop.f32.mrb[0].mxu0
  %4143 = vdwg.mxu0
  %4144 = vrot.lane.b32.xlu0 %v2468, 48
  %v4145 = vpop.permute.xlu0 %4144
  %v4147 = vsel %vm2875, %v4040, 0
  %v4150 = vsel %vm3066, %v4145, 0
  %4152 = vmatprep.subr.bf16.mxu0 0
  %4153 = vmatpush1.bf16.msra.mxu0 %v4150
  %4154 = vmatprep.subr.bf16.mxu0 0
  %4155 = vmatpush1.bf16.msra.mxu0 0
  %4156 = vmatprep.subr.bf16.mxu0 0
  %4157 = vmatpush1.bf16.msra.mxu0 0
  %4158 = vmatprep.subr.bf16.mxu0 0
  %4159 = vmatpush1.bf16.msra.mxu0 0
  %4160 = vmatprep.subr.bf16.mxu0 0
  %4161 = vmatpush1.bf16.msra.mxu0 0
  %4162 = vmatprep.subr.bf16.mxu0 0
  %4163 = vmatpush1.bf16.msra.mxu0 0
  %4164 = vmatprep.subr.bf16.mxu0 0
  %4165 = vmatpush1.bf16.msra.mxu0 0
  %4166 = vmatprep.subr.bf16.mxu0 0
  %4167 = vmatpush1.bf16.msra.mxu0 0
  %4168 = vmatprep.subr.bf16.mxu0 0
  %4169 = vmatpush1.bf16.msra.mxu0 0
  %4170 = vmatprep.subr.bf16.mxu0 0
  %4171 = vmatpush1.bf16.msra.mxu0 0
  %4172 = vmatprep.subr.bf16.mxu0 0
  %4173 = vmatpush1.bf16.msra.mxu0 0
  %4174 = vmatprep.subr.bf16.mxu0 0
  %4175 = vmatpush1.bf16.msra.mxu0 0
  %4176 = vmatprep.subr.bf16.mxu0 0
  %4177 = vmatpush1.bf16.msra.mxu0 0
  %4178 = vmatprep.subr.bf16.mxu0 0
  %4179 = vmatpush1.bf16.msra.mxu0 0
  %4180 = vmatprep.subr.bf16.mxu0 0
  %4181 = vmatpush1.bf16.msra.mxu0 0
  %4182 = vmatprep.subr.bf16.mxu0 0
  %4183 = vmatpush1.bf16.msra.mxu0 0
  %4184 = vmatprep.mubr.bf16.mxu0 0
  %4185 = vmatmul.mubr.bf16.gmra.mrb[0].mxu0 %v4147
  %v4186 = vpop.f32.mrb[0].mxu0
  %v4187 = vadd.f32 0.0, %v4186
  %v4188 = vpop.f32.mrb[0].mxu0
  %v4189 = vpop.f32.mrb[0].mxu0
  %v4190 = vadd.f32 0.0, %v4189
  %v4191 = vpop.f32.mrb[0].mxu0
  %4192 = vdwg.mxu0
  %4193 = vrot.lane.b32.xlu0 %v2469, 48
  %v4194 = vpop.permute.xlu0 %4193
  %v4196 = vsel %vm2875, %v4041, 0
  %v4199 = vsel %vm3066, %v4194, 0
  %4201 = vmatprep.subr.bf16.mxu0 0
  %4202 = vmatpush1.bf16.msra.mxu0 %v4199
  %4203 = vmatprep.subr.bf16.mxu0 0
  %4204 = vmatpush1.bf16.msra.mxu0 0
  %4205 = vmatprep.subr.bf16.mxu0 0
  %4206 = vmatpush1.bf16.msra.mxu0 0
  %4207 = vmatprep.subr.bf16.mxu0 0
  %4208 = vmatpush1.bf16.msra.mxu0 0
  %4209 = vmatprep.subr.bf16.mxu0 0
  %4210 = vmatpush1.bf16.msra.mxu0 0
  %4211 = vmatprep.subr.bf16.mxu0 0
  %4212 = vmatpush1.bf16.msra.mxu0 0
  %4213 = vmatprep.subr.bf16.mxu0 0
  %4214 = vmatpush1.bf16.msra.mxu0 0
  %4215 = vmatprep.subr.bf16.mxu0 0
  %4216 = vmatpush1.bf16.msra.mxu0 0
  %4217 = vmatprep.subr.bf16.mxu0 0
  %4218 = vmatpush1.bf16.msra.mxu0 0
  %4219 = vmatprep.subr.bf16.mxu0 0
  %4220 = vmatpush1.bf16.msra.mxu0 0
  %4221 = vmatprep.subr.bf16.mxu0 0
  %4222 = vmatpush1.bf16.msra.mxu0 0
  %4223 = vmatprep.subr.bf16.mxu0 0
  %4224 = vmatpush1.bf16.msra.mxu0 0
  %4225 = vmatprep.subr.bf16.mxu0 0
  %4226 = vmatpush1.bf16.msra.mxu0 0
  %4227 = vmatprep.subr.bf16.mxu0 0
  %4228 = vmatpush1.bf16.msra.mxu0 0
  %4229 = vmatprep.subr.bf16.mxu0 0
  %4230 = vmatpush1.bf16.msra.mxu0 0
  %4231 = vmatprep.subr.bf16.mxu0 0
  %4232 = vmatpush1.bf16.msra.mxu0 0
  %4233 = vmatprep.mubr.bf16.mxu0 0
  %4234 = vmatmul.mubr.bf16.gmra.mrb[0].mxu0 %v4196
  %v4235 = vpop.f32.mrb[0].mxu0
  %v4236 = vadd.f32 0.0, %v4235
  %v4237 = vpop.f32.mrb[0].mxu0
  %v4238 = vpop.f32.mrb[0].mxu0
  %v4239 = vadd.f32 0.0, %v4238
  %v4240 = vpop.f32.mrb[0].mxu0
  %4241 = vdwg.mxu0
  %4242 = vrot.lane.b32.xlu0 %v2470, 48
  %v4243 = vpop.permute.xlu0 %4242
  %v4245 = vsel %vm2875, %v4042, 0
  %v4248 = vsel %vm3066, %v4243, 0
  %4250 = vmatprep.subr.bf16.mxu0 0
  %4251 = vmatpush1.bf16.msra.mxu0 %v4248
  %4252 = vmatprep.subr.bf16.mxu0 0
  %4253 = vmatpush1.bf16.msra.mxu0 0
  %4254 = vmatprep.subr.bf16.mxu0 0
  %4255 = vmatpush1.bf16.msra.mxu0 0
  %4256 = vmatprep.subr.bf16.mxu0 0
  %4257 = vmatpush1.bf16.msra.mxu0 0
  %4258 = vmatprep.subr.bf16.mxu0 0
  %4259 = vmatpush1.bf16.msra.mxu0 0
  %4260 = vmatprep.subr.bf16.mxu0 0
  %4261 = vmatpush1.bf16.msra.mxu0 0
  %4262 = vmatprep.subr.bf16.mxu0 0
  %4263 = vmatpush1.bf16.msra.mxu0 0
  %4264 = vmatprep.subr.bf16.mxu0 0
  %4265 = vmatpush1.bf16.msra.mxu0 0
  %4266 = vmatprep.subr.bf16.mxu0 0
  %4267 = vmatpush1.bf16.msra.mxu0 0
  %4268 = vmatprep.subr.bf16.mxu0 0
  %4269 = vmatpush1.bf16.msra.mxu0 0
  %4270 = vmatprep.subr.bf16.mxu0 0
  %4271 = vmatpush1.bf16.msra.mxu0 0
  %4272 = vmatprep.subr.bf16.mxu0 0
  %4273 = vmatpush1.bf16.msra.mxu0 0
  %4274 = vmatprep.subr.bf16.mxu0 0
  %4275 = vmatpush1.bf16.msra.mxu0 0
  %4276 = vmatprep.subr.bf16.mxu0 0
  %4277 = vmatpush1.bf16.msra.mxu0 0
  %4278 = vmatprep.subr.bf16.mxu0 0
  %4279 = vmatpush1.bf16.msra.mxu0 0
  %4280 = vmatprep.subr.bf16.mxu0 0
  %4281 = vmatpush1.bf16.msra.mxu0 0
  %4282 = vmatprep.mubr.bf16.mxu0 0
  %4283 = vmatmul.mubr.bf16.gmra.mrb[0].mxu0 %v4245
  %v4284 = vpop.f32.mrb[0].mxu0
  %v4285 = vadd.f32 0.0, %v4284
  %v4286 = vpop.f32.mrb[0].mxu0
  %v4287 = vpop.f32.mrb[0].mxu0
  %v4288 = vadd.f32 0.0, %v4287
  %v4289 = vpop.f32.mrb[0].mxu0
  %4290 = vdwg.mxu0
  %4291 = vrot.lane.b32.xlu0 %v2471, 48
  %v4292 = vpop.permute.xlu0 %4291
  %v4294 = vsel %vm2875, %v4043, 0
  %v4297 = vsel %vm3066, %v4292, 0
  %4299 = vmatprep.subr.bf16.mxu0 0
  %4300 = vmatpush1.bf16.msra.mxu0 %v4297
  %4301 = vmatprep.subr.bf16.mxu0 0
  %4302 = vmatpush1.bf16.msra.mxu0 0
  %4303 = vmatprep.subr.bf16.mxu0 0
  %4304 = vmatpush1.bf16.msra.mxu0 0
  %4305 = vmatprep.subr.bf16.mxu0 0
  %4306 = vmatpush1.bf16.msra.mxu0 0
  %4307 = vmatprep.subr.bf16.mxu0 0
  %4308 = vmatpush1.bf16.msra.mxu0 0
  %4309 = vmatprep.subr.bf16.mxu0 0
  %4310 = vmatpush1.bf16.msra.mxu0 0
  %4311 = vmatprep.subr.bf16.mxu0 0
  %4312 = vmatpush1.bf16.msra.mxu0 0
  %4313 = vmatprep.subr.bf16.mxu0 0
  %4314 = vmatpush1.bf16.msra.mxu0 0
  %4315 = vmatprep.subr.bf16.mxu0 0
  %4316 = vmatpush1.bf16.msra.mxu0 0
  %4317 = vmatprep.subr.bf16.mxu0 0
  %4318 = vmatpush1.bf16.msra.mxu0 0
  %4319 = vmatprep.subr.bf16.mxu0 0
  %4320 = vmatpush1.bf16.msra.mxu0 0
  %4321 = vmatprep.subr.bf16.mxu0 0
  %4322 = vmatpush1.bf16.msra.mxu0 0
  %4323 = vmatprep.subr.bf16.mxu0 0
  %4324 = vmatpush1.bf16.msra.mxu0 0
  %4325 = vmatprep.subr.bf16.mxu0 0
  %4326 = vmatpush1.bf16.msra.mxu0 0
  %4327 = vmatprep.subr.bf16.mxu0 0
  %4328 = vmatpush1.bf16.msra.mxu0 0
  %4329 = vmatprep.subr.bf16.mxu0 0
  %4330 = vmatpush1.bf16.msra.mxu0 0
  %4331 = vmatprep.mubr.bf16.mxu0 0
  %4332 = vmatmul.mubr.bf16.gmra.mrb[0].mxu0 %v4294
  %v4333 = vpop.f32.mrb[0].mxu0
  %v4334 = vadd.f32 0.0, %v4333
  %v4335 = vpop.f32.mrb[0].mxu0
  %v4336 = vpop.f32.mrb[0].mxu0
  %v4337 = vadd.f32 0.0, %v4336
  %v4338 = vpop.f32.mrb[0].mxu0
  %4339 = vdwg.mxu0
  %4340 = vrot.lane.b32.xlu0 %v2472, 48
  %v4341 = vpop.permute.xlu0 %4340
  %v4343 = vsel %vm2875, %v4044, 0
  %v4346 = vsel %vm3066, %v4341, 0
  %4348 = vmatprep.subr.bf16.mxu0 0
  %4349 = vmatpush1.bf16.msra.mxu0 %v4346
  %4350 = vmatprep.subr.bf16.mxu0 0
  %4351 = vmatpush1.bf16.msra.mxu0 0
  %4352 = vmatprep.subr.bf16.mxu0 0
  %4353 = vmatpush1.bf16.msra.mxu0 0
  %4354 = vmatprep.subr.bf16.mxu0 0
  %4355 = vmatpush1.bf16.msra.mxu0 0
  %4356 = vmatprep.subr.bf16.mxu0 0
  %4357 = vmatpush1.bf16.msra.mxu0 0
  %4358 = vmatprep.subr.bf16.mxu0 0
  %4359 = vmatpush1.bf16.msra.mxu0 0
  %4360 = vmatprep.subr.bf16.mxu0 0
  %4361 = vmatpush1.bf16.msra.mxu0 0
  %4362 = vmatprep.subr.bf16.mxu0 0
  %4363 = vmatpush1.bf16.msra.mxu0 0
  %4364 = vmatprep.subr.bf16.mxu0 0
  %4365 = vmatpush1.bf16.msra.mxu0 0
  %4366 = vmatprep.subr.bf16.mxu0 0
  %4367 = vmatpush1.bf16.msra.mxu0 0
  %4368 = vmatprep.subr.bf16.mxu0 0
  %4369 = vmatpush1.bf16.msra.mxu0 0
  %4370 = vmatprep.subr.bf16.mxu0 0
  %4371 = vmatpush1.bf16.msra.mxu0 0
  %4372 = vmatprep.subr.bf16.mxu0 0
  %4373 = vmatpush1.bf16.msra.mxu0 0
  %4374 = vmatprep.subr.bf16.mxu0 0
  %4375 = vmatpush1.bf16.msra.mxu0 0
  %4376 = vmatprep.subr.bf16.mxu0 0
  %4377 = vmatpush1.bf16.msra.mxu0 0
  %4378 = vmatprep.subr.bf16.mxu0 0
  %4379 = vmatpush1.bf16.msra.mxu0 0
  %4380 = vmatprep.mubr.bf16.mxu0 0
  %4381 = vmatmul.mubr.bf16.gmra.mrb[0].mxu0 %v4343
  %v4382 = vpop.f32.mrb[0].mxu0
  %v4383 = vadd.f32 0.0, %v4382
  %v4384 = vpop.f32.mrb[0].mxu0
  %v4385 = vpop.f32.mrb[0].mxu0
  %v4386 = vadd.f32 0.0, %v4385
  %v4387 = vpop.f32.mrb[0].mxu0
  %4388 = vdwg.mxu0
  %4389 = vrot.lane.b32.xlu0 %v2473, 48
  %v4390 = vpop.permute.xlu0 %4389
  %v4392 = vsel %vm2875, %v4045, 0
  %v4395 = vsel %vm3066, %v4390, 0
  %4397 = vmatprep.subr.bf16.mxu0 0
  %4398 = vmatpush1.bf16.msra.mxu0 %v4395
  %4399 = vmatprep.subr.bf16.mxu0 0
  %4400 = vmatpush1.bf16.msra.mxu0 0
  %4401 = vmatprep.subr.bf16.mxu0 0
  %4402 = vmatpush1.bf16.msra.mxu0 0
  %4403 = vmatprep.subr.bf16.mxu0 0
  %4404 = vmatpush1.bf16.msra.mxu0 0
  %4405 = vmatprep.subr.bf16.mxu0 0
  %4406 = vmatpush1.bf16.msra.mxu0 0
  %4407 = vmatprep.subr.bf16.mxu0 0
  %4408 = vmatpush1.bf16.msra.mxu0 0
  %4409 = vmatprep.subr.bf16.mxu0 0
  %4410 = vmatpush1.bf16.msra.mxu0 0
  %4411 = vmatprep.subr.bf16.mxu0 0
  %4412 = vmatpush1.bf16.msra.mxu0 0
  %4413 = vmatprep.subr.bf16.mxu0 0
  %4414 = vmatpush1.bf16.msra.mxu0 0
  %4415 = vmatprep.subr.bf16.mxu0 0
  %4416 = vmatpush1.bf16.msra.mxu0 0
  %4417 = vmatprep.subr.bf16.mxu0 0
  %4418 = vmatpush1.bf16.msra.mxu0 0
  %4419 = vmatprep.subr.bf16.mxu0 0
  %4420 = vmatpush1.bf16.msra.mxu0 0
  %4421 = vmatprep.subr.bf16.mxu0 0
  %4422 = vmatpush1.bf16.msra.mxu0 0
  %4423 = vmatprep.subr.bf16.mxu0 0
  %4424 = vmatpush1.bf16.msra.mxu0 0
  %4425 = vmatprep.subr.bf16.mxu0 0
  %4426 = vmatpush1.bf16.msra.mxu0 0
  %4427 = vmatprep.subr.bf16.mxu0 0
  %4428 = vmatpush1.bf16.msra.mxu0 0
  %4429 = vmatprep.mubr.bf16.mxu0 0
  %4430 = vmatmul.mubr.bf16.gmra.mrb[0].mxu0 %v4392
  %v4431 = vpop.f32.mrb[0].mxu0
  %v4432 = vadd.f32 0.0, %v4431
  %v4433 = vpop.f32.mrb[0].mxu0
  %v4434 = vpop.f32.mrb[0].mxu0
  %v4435 = vadd.f32 0.0, %v4434
  %v4436 = vpop.f32.mrb[0].mxu0
  %4437 = vdwg.mxu0
  %4454 = vrot.lane.b32.xlu0 %v4089, 16
  %v4455 = vpop.permute.xlu0 %4454
  %4456 = vrot.lane.b32.xlu0 %v4092, 16
  %v4457 = vpop.permute.xlu0 %4456
  %4458 = vrot.lane.b32.xlu0 %v4138, 16
  %v4459 = vpop.permute.xlu0 %4458
  %4460 = vrot.lane.b32.xlu0 %v4141, 16
  %v4461 = vpop.permute.xlu0 %4460
  %4462 = vrot.lane.b32.xlu0 %v4187, 16
  %v4463 = vpop.permute.xlu0 %4462
  %4464 = vrot.lane.b32.xlu0 %v4190, 16
  %v4465 = vpop.permute.xlu0 %4464
  %4466 = vrot.lane.b32.xlu0 %v4236, 16
  %v4467 = vpop.permute.xlu0 %4466
  %4468 = vrot.lane.b32.xlu0 %v4239, 16
  %v4469 = vpop.permute.xlu0 %4468
  %4470 = vrot.lane.b32.xlu0 %v4285, 16
  %v4471 = vpop.permute.xlu0 %4470
  %4472 = vrot.lane.b32.xlu0 %v4288, 16
  %v4473 = vpop.permute.xlu0 %4472
  %4474 = vrot.lane.b32.xlu0 %v4334, 16
  %v4475 = vpop.permute.xlu0 %4474
  %4476 = vrot.lane.b32.xlu0 %v4337, 16
  %v4477 = vpop.permute.xlu0 %4476
  %4478 = vrot.lane.b32.xlu0 %v4383, 16
  %v4479 = vpop.permute.xlu0 %4478
  %4480 = vrot.lane.b32.xlu0 %v4386, 16
  %v4481 = vpop.permute.xlu0 %4480
  %4482 = vrot.lane.b32.xlu0 %v4432, 16
  %v4483 = vpop.permute.xlu0 %4482
  %4484 = vrot.lane.b32.xlu0 %v4435, 16
  %v4485 = vpop.permute.xlu0 %4484
  %v4502 = vsel %vm2477, %v3105, %v4455
  %v4503 = vsel %vm2477, %v3108, %v4457
  %v4504 = vsel %vm2477, %v3154, %v4459
  %v4505 = vsel %vm2477, %v3157, %v4461
  %v4506 = vsel %vm2477, %v3203, %v4463
  %v4507 = vsel %vm2477, %v3206, %v4465
  %v4508 = vsel %vm2477, %v3252, %v4467
  %v4509 = vsel %vm2477, %v3255, %v4469
  %v4510 = vsel %vm2477, %v3301, %v4471
  %v4511 = vsel %vm2477, %v3304, %v4473
  %v4512 = vsel %vm2477, %v3350, %v4475
  %v4513 = vsel %vm2477, %v3353, %v4477
  %v4514 = vsel %vm2477, %v3399, %v4479
  %v4515 = vsel %vm2477, %v3402, %v4481
  %v4516 = vsel %vm2477, %v3448, %v4483
  %v4517 = vsel %vm2477, %v3451, %v4485
  %v4534 = vcombine.high %v4502, %v4502
  %v4536 = vunpack.c.l.s4 1983009808
  %v4537 = vunpack.c.0.s8 %v4536
  %v4538 = vlaneseq
  %v4539 = vshrl.u32 %v4538, 7
  %v4540 = vsub.s32 %v4537, %v4539
  %v4541 = vrot.slane %v4502, %v4540
  %v4543 = vunpack.c.l.s4 1983009808
  %v4544 = vunpack.c.0.s8 %v4543
  %v4545 = vlaneseq
  %v4546 = vshrl.u32 %v4545, 7
  %v4547 = vsub.s32 %v4544, %v4546
  %v4548 = vrot.slane %v4534, %v4547
  %v4549 = vcombine.high %v4541, %v4541
  %v4550 = vcombine.high %v4548, %v4548
  %v4552 = vunpack.c.l.s4 1983009808
  %v4553 = vunpack.c.0.s8 %v4552
  %v4554 = vlaneseq
  %v4555 = vshrl.u32 %v4554, 7
  %v4556 = vsub.s32 %v4553, %v4555
  %v4557 = vrot.slane %v4503, %v4556
  %v4558 = vcombine.high %v4504, %v4504
  %v4560 = vunpack.c.l.s4 1983009808
  %v4561 = vunpack.c.0.s8 %v4560
  %v4562 = vlaneseq
  %v4563 = vshrl.u32 %v4562, 7
  %v4564 = vsub.s32 %v4561, %v4563
  %v4565 = vrot.slane %v4504, %v4564
  %v4567 = vunpack.c.l.s4 1983009808
  %v4568 = vunpack.c.0.s8 %v4567
  %v4569 = vlaneseq
  %v4570 = vshrl.u32 %v4569, 7
  %v4571 = vsub.s32 %v4568, %v4570
  %v4572 = vrot.slane %v4558, %v4571
  %v4573 = vcombine.high %v4565, %v4565
  %v4574 = vcombine.high %v4572, %v4572
  %v4576 = vunpack.c.l.s4 1983009808
  %v4577 = vunpack.c.0.s8 %v4576
  %v4578 = vlaneseq
  %v4579 = vshrl.u32 %v4578, 7
  %v4580 = vsub.s32 %v4577, %v4579
  %v4581 = vrot.slane %v4505, %v4580
  %v4582 = vcombine.high %v4506, %v4506
  %v4584 = vunpack.c.l.s4 1983009808
  %v4585 = vunpack.c.0.s8 %v4584
  %v4586 = vlaneseq
  %v4587 = vshrl.u32 %v4586, 7
  %v4588 = vsub.s32 %v4585, %v4587
  %v4589 = vrot.slane %v4506, %v4588
  %v4591 = vunpack.c.l.s4 1983009808
  %v4592 = vunpack.c.0.s8 %v4591
  %v4593 = vlaneseq
  %v4594 = vshrl.u32 %v4593, 7
  %v4595 = vsub.s32 %v4592, %v4594
  %v4596 = vrot.slane %v4582, %v4595
  %v4597 = vcombine.high %v4589, %v4589
  %v4598 = vcombine.high %v4596, %v4596
  %v4600 = vunpack.c.l.s4 1983009808
  %v4601 = vunpack.c.0.s8 %v4600
  %v4602 = vlaneseq
  %v4603 = vshrl.u32 %v4602, 7
  %v4604 = vsub.s32 %v4601, %v4603
  %v4605 = vrot.slane %v4507, %v4604
  %v4606 = vcombine.high %v4508, %v4508
  %v4608 = vunpack.c.l.s4 1983009808
  %v4609 = vunpack.c.0.s8 %v4608
  %v4610 = vlaneseq
  %v4611 = vshrl.u32 %v4610, 7
  %v4612 = vsub.s32 %v4609, %v4611
  %v4613 = vrot.slane %v4508, %v4612
  %v4615 = vunpack.c.l.s4 1983009808
  %v4616 = vunpack.c.0.s8 %v4615
  %v4617 = vlaneseq
  %v4618 = vshrl.u32 %v4617, 7
  %v4619 = vsub.s32 %v4616, %v4618
  %v4620 = vrot.slane %v4606, %v4619
  %v4621 = vcombine.high %v4613, %v4613
  %v4622 = vcombine.high %v4620, %v4620
  %v4624 = vunpack.c.l.s4 1983009808
  %v4625 = vunpack.c.0.s8 %v4624
  %v4626 = vlaneseq
  %v4627 = vshrl.u32 %v4626, 7
  %v4628 = vsub.s32 %v4625, %v4627
  %v4629 = vrot.slane %v4509, %v4628
  %v4630 = vcombine.high %v4510, %v4510
  %v4632 = vunpack.c.l.s4 1983009808
  %v4633 = vunpack.c.0.s8 %v4632
  %v4634 = vlaneseq
  %v4635 = vshrl.u32 %v4634, 7
  %v4636 = vsub.s32 %v4633, %v4635
  %v4637 = vrot.slane %v4510, %v4636
  %v4639 = vunpack.c.l.s4 1983009808
  %v4640 = vunpack.c.0.s8 %v4639
  %v4641 = vlaneseq
  %v4642 = vshrl.u32 %v4641, 7
  %v4643 = vsub.s32 %v4640, %v4642
  %v4644 = vrot.slane %v4630, %v4643
  %v4645 = vcombine.high %v4637, %v4637
  %v4646 = vcombine.high %v4644, %v4644
  %v4648 = vunpack.c.l.s4 1983009808
  %v4649 = vunpack.c.0.s8 %v4648
  %v4650 = vlaneseq
  %v4651 = vshrl.u32 %v4650, 7
  %v4652 = vsub.s32 %v4649, %v4651
  %v4653 = vrot.slane %v4511, %v4652
  %v4654 = vcombine.high %v4512, %v4512
  %v4656 = vunpack.c.l.s4 1983009808
  %v4657 = vunpack.c.0.s8 %v4656
  %v4658 = vlaneseq
  %v4659 = vshrl.u32 %v4658, 7
  %v4660 = vsub.s32 %v4657, %v4659
  %v4661 = vrot.slane %v4512, %v4660
  %v4663 = vunpack.c.l.s4 1983009808
  %v4664 = vunpack.c.0.s8 %v4663
  %v4665 = vlaneseq
  %v4666 = vshrl.u32 %v4665, 7
  %v4667 = vsub.s32 %v4664, %v4666
  %v4668 = vrot.slane %v4654, %v4667
  %v4669 = vcombine.high %v4661, %v4661
  %v4670 = vcombine.high %v4668, %v4668
  %v4672 = vunpack.c.l.s4 1983009808
  %v4673 = vunpack.c.0.s8 %v4672
  %v4674 = vlaneseq
  %v4675 = vshrl.u32 %v4674, 7
  %v4676 = vsub.s32 %v4673, %v4675
  %v4677 = vrot.slane %v4513, %v4676
  %v4678 = vcombine.high %v4514, %v4514
  %v4680 = vunpack.c.l.s4 1983009808
  %v4681 = vunpack.c.0.s8 %v4680
  %v4682 = vlaneseq
  %v4683 = vshrl.u32 %v4682, 7
  %v4684 = vsub.s32 %v4681, %v4683
  %v4685 = vrot.slane %v4514, %v4684
  %v4687 = vunpack.c.l.s4 1983009808
  %v4688 = vunpack.c.0.s8 %v4687
  %v4689 = vlaneseq
  %v4690 = vshrl.u32 %v4689, 7
  %v4691 = vsub.s32 %v4688, %v4690
  %v4692 = vrot.slane %v4678, %v4691
  %v4693 = vcombine.high %v4685, %v4685
  %v4694 = vcombine.high %v4692, %v4692
  %v4696 = vunpack.c.l.s4 1983009808
  %v4697 = vunpack.c.0.s8 %v4696
  %v4698 = vlaneseq
  %v4699 = vshrl.u32 %v4698, 7
  %v4700 = vsub.s32 %v4697, %v4699
  %v4701 = vrot.slane %v4515, %v4700
  %v4702 = vcombine.high %v4516, %v4516
  %v4704 = vunpack.c.l.s4 1983009808
  %v4705 = vunpack.c.0.s8 %v4704
  %v4706 = vlaneseq
  %v4707 = vshrl.u32 %v4706, 7
  %v4708 = vsub.s32 %v4705, %v4707
  %v4709 = vrot.slane %v4516, %v4708
  %v4711 = vunpack.c.l.s4 1983009808
  %v4712 = vunpack.c.0.s8 %v4711
  %v4713 = vlaneseq
  %v4714 = vshrl.u32 %v4713, 7
  %v4715 = vsub.s32 %v4712, %v4714
  %v4716 = vrot.slane %v4702, %v4715
  %v4717 = vcombine.high %v4709, %v4709
  %v4718 = vcombine.high %v4716, %v4716
  %v4720 = vunpack.c.l.s4 1983009808
  %v4721 = vunpack.c.0.s8 %v4720
  %v4722 = vlaneseq
  %v4723 = vshrl.u32 %v4722, 7
  %v4724 = vsub.s32 %v4721, %v4723
  %v4725 = vrot.slane %v4517, %v4724
  %v4726 = vcombine.low %v4541, %v4549
  %v4727 = vcombine.low %v4548, %v4550
  %v4729 = vunpack.c.l.s4 1983009808
  %v4730 = vunpack.c.0.s8 %v4729
  %v4731 = vlaneseq
  %v4732 = vshrl.u32 %v4731, 7
  %v4733 = vsub.s32 %v4730, %v4732
  %v4734 = vrot.slane %v4726, %v4733
  %v4736 = vunpack.c.l.s4 1983009808
  %v4737 = vunpack.c.0.s8 %v4736
  %v4738 = vlaneseq
  %v4739 = vshrl.u32 %v4738, 7
  %v4740 = vsub.s32 %v4737, %v4739
  %v4741 = vrot.slane %v4727, %v4740
  %v4742 = vcombine.low %v4734, %v4741
  %v4743 = vcombine.low %v4557, %v4565
  %v4744 = vcombine.low %v4573, %v4572
  %v4746 = vunpack.c.l.s4 1983009808
  %v4747 = vunpack.c.0.s8 %v4746
  %v4748 = vlaneseq
  %v4749 = vshrl.u32 %v4748, 7
  %v4750 = vsub.s32 %v4747, %v4749
  %v4751 = vrot.slane %v4743, %v4750
  %v4753 = vunpack.c.l.s4 1983009808
  %v4754 = vunpack.c.0.s8 %v4753
  %v4755 = vlaneseq
  %v4756 = vshrl.u32 %v4755, 7
  %v4757 = vsub.s32 %v4754, %v4756
  %v4758 = vrot.slane %v4744, %v4757
  %v4759 = vcombine.low %v4751, %v4758
  %v4760 = vcombine.low %v4574, %v4581
  %v4761 = vcombine.low %v4589, %v4597
  %v4763 = vunpack.c.l.s4 1983009808
  %v4764 = vunpack.c.0.s8 %v4763
  %v4765 = vlaneseq
  %v4766 = vshrl.u32 %v4765, 7
  %v4767 = vsub.s32 %v4764, %v4766
  %v4768 = vrot.slane %v4760, %v4767
  %v4770 = vunpack.c.l.s4 1983009808
  %v4771 = vunpack.c.0.s8 %v4770
  %v4772 = vlaneseq
  %v4773 = vshrl.u32 %v4772, 7
  %v4774 = vsub.s32 %v4771, %v4773
  %v4775 = vrot.slane %v4761, %v4774
  %v4776 = vcombine.low %v4768, %v4775
  %v4777 = vcombine.low %v4596, %v4598
  %v4778 = vcombine.low %v4605, %v4613
  %v4780 = vunpack.c.l.s4 1983009808
  %v4781 = vunpack.c.0.s8 %v4780
  %v4782 = vlaneseq
  %v4783 = vshrl.u32 %v4782, 7
  %v4784 = vsub.s32 %v4781, %v4783
  %v4785 = vrot.slane %v4777, %v4784
  %v4787 = vunpack.c.l.s4 1983009808
  %v4788 = vunpack.c.0.s8 %v4787
  %v4789 = vlaneseq
  %v4790 = vshrl.u32 %v4789, 7
  %v4791 = vsub.s32 %v4788, %v4790
  %v4792 = vrot.slane %v4778, %v4791
  %v4793 = vcombine.low %v4785, %v4792
  %v4794 = vcombine.low %v4621, %v4620
  %v4795 = vcombine.low %v4622, %v4629
  %v4797 = vunpack.c.l.s4 1983009808
  %v4798 = vunpack.c.0.s8 %v4797
  %v4799 = vlaneseq
  %v4800 = vshrl.u32 %v4799, 7
  %v4801 = vsub.s32 %v4798, %v4800
  %v4802 = vrot.slane %v4794, %v4801
  %v4804 = vunpack.c.l.s4 1983009808
  %v4805 = vunpack.c.0.s8 %v4804
  %v4806 = vlaneseq
  %v4807 = vshrl.u32 %v4806, 7
  %v4808 = vsub.s32 %v4805, %v4807
  %v4809 = vrot.slane %v4795, %v4808
  %v4810 = vcombine.low %v4802, %v4809
  %v4811 = vcombine.low %v4637, %v4645
  %v4812 = vcombine.low %v4644, %v4646
  %v4814 = vunpack.c.l.s4 1983009808
  %v4815 = vunpack.c.0.s8 %v4814
  %v4816 = vlaneseq
  %v4817 = vshrl.u32 %v4816, 7
  %v4818 = vsub.s32 %v4815, %v4817
  %v4819 = vrot.slane %v4811, %v4818
  %v4821 = vunpack.c.l.s4 1983009808
  %v4822 = vunpack.c.0.s8 %v4821
  %v4823 = vlaneseq
  %v4824 = vshrl.u32 %v4823, 7
  %v4825 = vsub.s32 %v4822, %v4824
  %v4826 = vrot.slane %v4812, %v4825
  %v4827 = vcombine.low %v4819, %v4826
  %v4828 = vcombine.low %v4653, %v4661
  %v4829 = vcombine.low %v4669, %v4668
  %v4831 = vunpack.c.l.s4 1983009808
  %v4832 = vunpack.c.0.s8 %v4831
  %v4833 = vlaneseq
  %v4834 = vshrl.u32 %v4833, 7
  %v4835 = vsub.s32 %v4832, %v4834
  %v4836 = vrot.slane %v4828, %v4835
  %v4838 = vunpack.c.l.s4 1983009808
  %v4839 = vunpack.c.0.s8 %v4838
  %v4840 = vlaneseq
  %v4841 = vshrl.u32 %v4840, 7
  %v4842 = vsub.s32 %v4839, %v4841
  %v4843 = vrot.slane %v4829, %v4842
  %v4844 = vcombine.low %v4836, %v4843
  %v4845 = vcombine.low %v4670, %v4677
  %v4846 = vcombine.low %v4685, %v4693
  %v4848 = vunpack.c.l.s4 1983009808
  %v4849 = vunpack.c.0.s8 %v4848
  %v4850 = vlaneseq
  %v4851 = vshrl.u32 %v4850, 7
  %v4852 = vsub.s32 %v4849, %v4851
  %v4853 = vrot.slane %v4845, %v4852
  %v4855 = vunpack.c.l.s4 1983009808
  %v4856 = vunpack.c.0.s8 %v4855
  %v4857 = vlaneseq
  %v4858 = vshrl.u32 %v4857, 7
  %v4859 = vsub.s32 %v4856, %v4858
  %v4860 = vrot.slane %v4846, %v4859
  %v4861 = vcombine.low %v4853, %v4860
  %v4862 = vcombine.low %v4692, %v4694
  %v4863 = vcombine.low %v4701, %v4709
  %v4865 = vunpack.c.l.s4 1983009808
  %v4866 = vunpack.c.0.s8 %v4865
  %v4867 = vlaneseq
  %v4868 = vshrl.u32 %v4867, 7
  %v4869 = vsub.s32 %v4866, %v4868
  %v4870 = vrot.slane %v4862, %v4869
  %v4872 = vunpack.c.l.s4 1983009808
  %v4873 = vunpack.c.0.s8 %v4872
  %v4874 = vlaneseq
  %v4875 = vshrl.u32 %v4874, 7
  %v4876 = vsub.s32 %v4873, %v4875
  %v4877 = vrot.slane %v4863, %v4876
  %v4878 = vcombine.low %v4870, %v4877
  %v4879 = vcombine.low %v4717, %v4716
  %v4880 = vcombine.low %v4718, %v4725
  %v4882 = vunpack.c.l.s4 1983009808
  %v4883 = vunpack.c.0.s8 %v4882
  %v4884 = vlaneseq
  %v4885 = vshrl.u32 %v4884, 7
  %v4886 = vsub.s32 %v4883, %v4885
  %v4887 = vrot.slane %v4879, %v4886
  %v4889 = vunpack.c.l.s4 1983009808
  %v4890 = vunpack.c.0.s8 %v4889
  %v4891 = vlaneseq
  %v4892 = vshrl.u32 %v4891, 7
  %v4893 = vsub.s32 %v4890, %v4892
  %v4894 = vrot.slane %v4880, %v4893
  %v4895 = vcombine.low %v4887, %v4894
  %v4906 = vpack.c.bf16 %v4759, %v4742
  %v4907 = vpack.c.bf16 %v4793, %v4776
  %v4908 = vpack.c.bf16 %v4827, %v4810
  %v4909 = vpack.c.bf16 %v4861, %v4844
  %v4910 = vpack.c.bf16 %v4895, %v4878
  %v4911 = vld [vmem:[%s5] sm:$0xf]
  %v4912 = vld [vmem:[%s5 + $0x4] sm:$0xf]
  %v4913 = vld [vmem:[%s5 + $0x8] sm:$0xf]
  %v4914 = vld [vmem:[%s5 + $0xc] sm:$0xf]
  %v4915 = vld [vmem:[%s6] sm:$0x1]
  %v4917 = vlaneseq
  %v4918 = vshrl.u32 %v4917, 7
  %v4919 = vsub.s32 0, %v4918
  %v4920 = vrot.slane %v4915, %v4919
  %v4926 = vunpack.c.l.b16 %v4911
  %v4927 = vunpack.c.l.b16 %v4912
  %v4928 = vunpack.c.l.b16 %v4913
  %v4929 = vunpack.c.l.b16 %v4914
  %v4930 = vpack.c.b16 %v4927, %v4926
  %v4931 = vpack.c.b16 %v4929, %v4928
  %v4935 = vsel %vm515, %v4906, 0
  %v4938 = vsel %vm515, %v4907, 0
  %v4941 = vsel %vm515, %v4908, 0
  %v4944 = vsel %vm515, %v4909, 0
  %v4947 = vsel %vm515, %v4910, 0
  %4949 = vmatprep.subr.bf16.mxu0 0
  %4950 = vmatpush1.bf16.msra.mxu0 %v4930
  %4951 = vmatprep.subr.bf16.mxu0 0
  %4952 = vmatpush1.bf16.msra.mxu0 %v4931
  %4953 = vmatprep.subr.bf16.mxu0 0
  %4954 = vmatpush1.bf16.msra.mxu0 0
  %4955 = vmatprep.subr.bf16.mxu0 0
  %4956 = vmatpush1.bf16.msra.mxu0 0
  %4957 = vmatprep.subr.bf16.mxu0 0
  %4958 = vmatpush1.bf16.msra.mxu0 0
  %4959 = vmatprep.subr.bf16.mxu0 0
  %4960 = vmatpush1.bf16.msra.mxu0 0
  %4961 = vmatprep.subr.bf16.mxu0 0
  %4962 = vmatpush1.bf16.msra.mxu0 0
  %4963 = vmatprep.subr.bf16.mxu0 0
  %4964 = vmatpush1.bf16.msra.mxu0 0
  %4965 = vmatprep.subr.bf16.mxu0 0
  %4966 = vmatpush1.bf16.msra.mxu0 0
  %4967 = vmatprep.subr.bf16.mxu0 0
  %4968 = vmatpush1.bf16.msra.mxu0 0
  %4969 = vmatprep.subr.bf16.mxu0 0
  %4970 = vmatpush1.bf16.msra.mxu0 0
  %4971 = vmatprep.subr.bf16.mxu0 0
  %4972 = vmatpush1.bf16.msra.mxu0 0
  %4973 = vmatprep.subr.bf16.mxu0 0
  %4974 = vmatpush1.bf16.msra.mxu0 0
  %4975 = vmatprep.subr.bf16.mxu0 0
  %4976 = vmatpush1.bf16.msra.mxu0 0
  %4977 = vmatprep.subr.bf16.mxu0 0
  %4978 = vmatpush1.bf16.msra.mxu0 0
  %4979 = vmatprep.subr.bf16.mxu0 0
  %4980 = vmatpush1.bf16.msra.mxu0 0
  %4981 = vmatprep.mubr.bf16.mxu0 0
  %4982 = vmatmul.mubr.bf16.gmra.mrb[0].mxu0 %v4935
  %v4983 = vpop.f32.mrb[0].mxu0
  %v4984 = vadd.f32 %v4920, %v4983
  %v4985 = vpop.f32.mrb[0].mxu0
  %v4986 = vpop.f32.mrb[0].mxu0
  %v4987 = vadd.f32 %v4920, %v4986
  %v4988 = vpop.f32.mrb[0].mxu0
  %4989 = vmatprep.mubr.bf16.mxu0 0
  %4990 = vmatmul.mubr.bf16.gmra.mrb[0].mxu0 %v4938
  %v4991 = vpop.f32.mrb[0].mxu0
  %v4992 = vadd.f32 %v4920, %v4991
  %v4993 = vpop.f32.mrb[0].mxu0
  %v4994 = vpop.f32.mrb[0].mxu0
  %v4995 = vadd.f32 %v4920, %v4994
  %v4996 = vpop.f32.mrb[0].mxu0
  %4997 = vmatprep.mubr.bf16.mxu0 0
  %4998 = vmatmul.mubr.bf16.gmra.mrb[0].mxu0 %v4941
  %v4999 = vpop.f32.mrb[0].mxu0
  %v5000 = vadd.f32 %v4920, %v4999
  %v5001 = vpop.f32.mrb[0].mxu0
  %v5002 = vpop.f32.mrb[0].mxu0
  %v5003 = vadd.f32 %v4920, %v5002
  %v5004 = vpop.f32.mrb[0].mxu0
  %5005 = vmatprep.mubr.bf16.mxu0 0
  %5006 = vmatmul.mubr.bf16.gmra.mrb[0].mxu0 %v4944
  %v5007 = vpop.f32.mrb[0].mxu0
  %v5008 = vadd.f32 %v4920, %v5007
  %v5009 = vpop.f32.mrb[0].mxu0
  %v5010 = vpop.f32.mrb[0].mxu0
  %v5011 = vadd.f32 %v4920, %v5010
  %v5012 = vpop.f32.mrb[0].mxu0
  %5013 = vmatprep.mubr.bf16.mxu0 0
  %5014 = vmatmul.mubr.bf16.gmra.mrb[0].mxu0 %v4947
  %v5015 = vpop.f32.mrb[0].mxu0
  %v5016 = vadd.f32 %v4920, %v5015
  %v5017 = vpop.f32.mrb[0].mxu0
  %v5018 = vpop.f32.mrb[0].mxu0
  %v5019 = vadd.f32 %v4920, %v5018
  %v5020 = vpop.f32.mrb[0].mxu0
  %5021 = vdwg.mxu0
  %v5032 = vcombine.high %v4984, %v4984
  %v5034 = vunpack.c.l.s4 1983009808
  %v5035 = vunpack.c.0.s8 %v5034
  %v5036 = vlaneseq
  %v5037 = vshrl.u32 %v5036, 7
  %v5038 = vsub.s32 %v5035, %v5037
  %v5039 = vrot.slane %v4984, %v5038
  %v5041 = vunpack.c.l.s4 1983009808
  %v5042 = vunpack.c.0.s8 %v5041
  %v5043 = vlaneseq
  %v5044 = vshrl.u32 %v5043, 7
  %v5045 = vsub.s32 %v5042, %v5044
  %v5046 = vrot.slane %v5032, %v5045
  %v5047 = vcombine.high %v5039, %v5039
  %v5048 = vcombine.high %v5046, %v5046
  %v5049 = vcombine.high %v4987, %v4987
  %v5051 = vunpack.c.l.s4 1983009808
  %v5052 = vunpack.c.0.s8 %v5051
  %v5053 = vlaneseq
  %v5054 = vshrl.u32 %v5053, 7
  %v5055 = vsub.s32 %v5052, %v5054
  %v5056 = vrot.slane %v4987, %v5055
  %v5058 = vunpack.c.l.s4 1983009808
  %v5059 = vunpack.c.0.s8 %v5058
  %v5060 = vlaneseq
  %v5061 = vshrl.u32 %v5060, 7
  %v5062 = vsub.s32 %v5059, %v5061
  %v5063 = vrot.slane %v5049, %v5062
  %v5064 = vcombine.high %v5056, %v5056
  %v5065 = vcombine.high %v5063, %v5063
  %v5066 = vcombine.high %v4992, %v4992
  %v5068 = vunpack.c.l.s4 1983009808
  %v5069 = vunpack.c.0.s8 %v5068
  %v5070 = vlaneseq
  %v5071 = vshrl.u32 %v5070, 7
  %v5072 = vsub.s32 %v5069, %v5071
  %v5073 = vrot.slane %v4992, %v5072
  %v5075 = vunpack.c.l.s4 1983009808
  %v5076 = vunpack.c.0.s8 %v5075
  %v5077 = vlaneseq
  %v5078 = vshrl.u32 %v5077, 7
  %v5079 = vsub.s32 %v5076, %v5078
  %v5080 = vrot.slane %v5066, %v5079
  %v5081 = vcombine.high %v5073, %v5073
  %v5082 = vcombine.high %v5080, %v5080
  %v5083 = vcombine.high %v4995, %v4995
  %v5085 = vunpack.c.l.s4 1983009808
  %v5086 = vunpack.c.0.s8 %v5085
  %v5087 = vlaneseq
  %v5088 = vshrl.u32 %v5087, 7
  %v5089 = vsub.s32 %v5086, %v5088
  %v5090 = vrot.slane %v4995, %v5089
  %v5092 = vunpack.c.l.s4 1983009808
  %v5093 = vunpack.c.0.s8 %v5092
  %v5094 = vlaneseq
  %v5095 = vshrl.u32 %v5094, 7
  %v5096 = vsub.s32 %v5093, %v5095
  %v5097 = vrot.slane %v5083, %v5096
  %v5098 = vcombine.high %v5090, %v5090
  %v5099 = vcombine.high %v5097, %v5097
  %v5100 = vcombine.high %v5000, %v5000
  %v5102 = vunpack.c.l.s4 1983009808
  %v5103 = vunpack.c.0.s8 %v5102
  %v5104 = vlaneseq
  %v5105 = vshrl.u32 %v5104, 7
  %v5106 = vsub.s32 %v5103, %v5105
  %v5107 = vrot.slane %v5000, %v5106
  %v5109 = vunpack.c.l.s4 1983009808
  %v5110 = vunpack.c.0.s8 %v5109
  %v5111 = vlaneseq
  %v5112 = vshrl.u32 %v5111, 7
  %v5113 = vsub.s32 %v5110, %v5112
  %v5114 = vrot.slane %v5100, %v5113
  %v5115 = vcombine.high %v5107, %v5107
  %v5116 = vcombine.high %v5114, %v5114
  %v5117 = vcombine.high %v5003, %v5003
  %v5119 = vunpack.c.l.s4 1983009808
  %v5120 = vunpack.c.0.s8 %v5119
  %v5121 = vlaneseq
  %v5122 = vshrl.u32 %v5121, 7
  %v5123 = vsub.s32 %v5120, %v5122
  %v5124 = vrot.slane %v5003, %v5123
  %v5126 = vunpack.c.l.s4 1983009808
  %v5127 = vunpack.c.0.s8 %v5126
  %v5128 = vlaneseq
  %v5129 = vshrl.u32 %v5128, 7
  %v5130 = vsub.s32 %v5127, %v5129
  %v5131 = vrot.slane %v5117, %v5130
  %v5132 = vcombine.high %v5124, %v5124
  %v5133 = vcombine.high %v5131, %v5131
  %v5134 = vcombine.high %v5008, %v5008
  %v5136 = vunpack.c.l.s4 1983009808
  %v5137 = vunpack.c.0.s8 %v5136
  %v5138 = vlaneseq
  %v5139 = vshrl.u32 %v5138, 7
  %v5140 = vsub.s32 %v5137, %v5139
  %v5141 = vrot.slane %v5008, %v5140
  %v5143 = vunpack.c.l.s4 1983009808
  %v5144 = vunpack.c.0.s8 %v5143
  %v5145 = vlaneseq
  %v5146 = vshrl.u32 %v5145, 7
  %v5147 = vsub.s32 %v5144, %v5146
  %v5148 = vrot.slane %v5134, %v5147
  %v5149 = vcombine.high %v5141, %v5141
  %v5150 = vcombine.high %v5148, %v5148
  %v5151 = vcombine.high %v5011, %v5011
  %v5153 = vunpack.c.l.s4 1983009808
  %v5154 = vunpack.c.0.s8 %v5153
  %v5155 = vlaneseq
  %v5156 = vshrl.u32 %v5155, 7
  %v5157 = vsub.s32 %v5154, %v5156
  %v5158 = vrot.slane %v5011, %v5157
  %v5160 = vunpack.c.l.s4 1983009808
  %v5161 = vunpack.c.0.s8 %v5160
  %v5162 = vlaneseq
  %v5163 = vshrl.u32 %v5162, 7
  %v5164 = vsub.s32 %v5161, %v5163
  %v5165 = vrot.slane %v5151, %v5164
  %v5166 = vcombine.high %v5158, %v5158
  %v5167 = vcombine.high %v5165, %v5165
  %v5168 = vcombine.high %v5016, %v5016
  %v5170 = vunpack.c.l.s4 1983009808
  %v5171 = vunpack.c.0.s8 %v5170
  %v5172 = vlaneseq
  %v5173 = vshrl.u32 %v5172, 7
  %v5174 = vsub.s32 %v5171, %v5173
  %v5175 = vrot.slane %v5016, %v5174
  %v5177 = vunpack.c.l.s4 1983009808
  %v5178 = vunpack.c.0.s8 %v5177
  %v5179 = vlaneseq
  %v5180 = vshrl.u32 %v5179, 7
  %v5181 = vsub.s32 %v5178, %v5180
  %v5182 = vrot.slane %v5168, %v5181
  %v5183 = vcombine.high %v5175, %v5175
  %v5184 = vcombine.high %v5182, %v5182
  %v5185 = vcombine.high %v5019, %v5019
  %v5187 = vunpack.c.l.s4 1983009808
  %v5188 = vunpack.c.0.s8 %v5187
  %v5189 = vlaneseq
  %v5190 = vshrl.u32 %v5189, 7
  %v5191 = vsub.s32 %v5188, %v5190
  %v5192 = vrot.slane %v5019, %v5191
  %v5194 = vunpack.c.l.s4 1983009808
  %v5195 = vunpack.c.0.s8 %v5194
  %v5196 = vlaneseq
  %v5197 = vshrl.u32 %v5196, 7
  %v5198 = vsub.s32 %v5195, %v5197
  %v5199 = vrot.slane %v5185, %v5198
  %v5200 = vcombine.high %v5192, %v5192
  %v5201 = vcombine.high %v5199, %v5199
  %v5242 = vadd.f32 %v108, %v5039
  %v5243 = vadd.f32 %v116, %v5047
  %v5244 = vadd.f32 %v115, %v5046
  %v5245 = vadd.f32 %v117, %v5048
  %v5246 = vadd.f32 %v124, %v5056
  %v5247 = vadd.f32 %v132, %v5064
  %v5248 = vadd.f32 %v140, %v5063
  %v5249 = vadd.f32 %v139, %v5065
  %v5250 = vadd.f32 %v141, %v5073
  %v5251 = vadd.f32 %v148, %v5081
  %v5252 = vadd.f32 %v156, %v5080
  %v5253 = vadd.f32 %v164, %v5082
  %v5254 = vadd.f32 %v163, %v5090
  %v5255 = vadd.f32 %v165, %v5098
  %v5256 = vadd.f32 %v172, %v5097
  %v5257 = vadd.f32 %v180, %v5099
  %v5258 = vadd.f32 %v188, %v5107
  %v5259 = vadd.f32 %v187, %v5115
  %v5260 = vadd.f32 %v189, %v5114
  %v5261 = vadd.f32 %v196, %v5116
  %v5262 = vadd.f32 %v204, %v5124
  %v5263 = vadd.f32 %v212, %v5132
  %v5264 = vadd.f32 %v211, %v5131
  %v5265 = vadd.f32 %v213, %v5133
  %v5266 = vadd.f32 %v220, %v5141
  %v5267 = vadd.f32 %v228, %v5149
  %v5268 = vadd.f32 %v236, %v5148
  %v5269 = vadd.f32 %v235, %v5150
  %v5270 = vadd.f32 %v237, %v5158
  %v5271 = vadd.f32 %v244, %v5166
  %v5272 = vadd.f32 %v252, %v5165
  %v5273 = vadd.f32 %v260, %v5167
  %v5274 = vadd.f32 %v259, %v5175
  %v5275 = vadd.f32 %v261, %v5183
  %v5276 = vadd.f32 %v268, %v5182
  %v5277 = vadd.f32 %v276, %v5184
  %v5278 = vadd.f32 %v284, %v5192
  %v5279 = vadd.f32 %v283, %v5200
  %v5280 = vadd.f32 %v285, %v5199
  %v5281 = vadd.f32 %v292, %v5201
  %v5282 = vld [vmem:[%s7] sm:$0x1]
  %v5283 = vld [vmem:[%s8] sm:$0x1]
  %v5324 = vcombine.low %v5242, %v5243
  %v5325 = vcombine.low %v5244, %v5245
  %v5327 = vunpack.c.l.s4 1983009808
  %v5328 = vunpack.c.0.s8 %v5327
  %v5329 = vlaneseq
  %v5330 = vshrl.u32 %v5329, 7
  %v5331 = vsub.s32 %v5328, %v5330
  %v5332 = vrot.slane %v5324, %v5331
  %v5334 = vunpack.c.l.s4 1983009808
  %v5335 = vunpack.c.0.s8 %v5334
  %v5336 = vlaneseq
  %v5337 = vshrl.u32 %v5336, 7
  %v5338 = vsub.s32 %v5335, %v5337
  %v5339 = vrot.slane %v5325, %v5338
  %v5340 = vcombine.low %v5332, %v5339
  %v5341 = vcombine.low %v5246, %v5247
  %v5342 = vcombine.low %v5248, %v5249
  %v5344 = vunpack.c.l.s4 1983009808
  %v5345 = vunpack.c.0.s8 %v5344
  %v5346 = vlaneseq
  %v5347 = vshrl.u32 %v5346, 7
  %v5348 = vsub.s32 %v5345, %v5347
  %v5349 = vrot.slane %v5341, %v5348
  %v5351 = vunpack.c.l.s4 1983009808
  %v5352 = vunpack.c.0.s8 %v5351
  %v5353 = vlaneseq
  %v5354 = vshrl.u32 %v5353, 7
  %v5355 = vsub.s32 %v5352, %v5354
  %v5356 = vrot.slane %v5342, %v5355
  %v5357 = vcombine.low %v5349, %v5356
  %v5358 = vcombine.low %v5250, %v5251
  %v5359 = vcombine.low %v5252, %v5253
  %v5361 = vunpack.c.l.s4 1983009808
  %v5362 = vunpack.c.0.s8 %v5361
  %v5363 = vlaneseq
  %v5364 = vshrl.u32 %v5363, 7
  %v5365 = vsub.s32 %v5362, %v5364
  %v5366 = vrot.slane %v5358, %v5365
  %v5368 = vunpack.c.l.s4 1983009808
  %v5369 = vunpack.c.0.s8 %v5368
  %v5370 = vlaneseq
  %v5371 = vshrl.u32 %v5370, 7
  %v5372 = vsub.s32 %v5369, %v5371
  %v5373 = vrot.slane %v5359, %v5372
  %v5374 = vcombine.low %v5366, %v5373
  %v5375 = vcombine.low %v5254, %v5255
  %v5376 = vcombine.low %v5256, %v5257
  %v5378 = vunpack.c.l.s4 1983009808
  %v5379 = vunpack.c.0.s8 %v5378
  %v5380 = vlaneseq
  %v5381 = vshrl.u32 %v5380, 7
  %v5382 = vsub.s32 %v5379, %v5381
  %v5383 = vrot.slane %v5375, %v5382
  %v5385 = vunpack.c.l.s4 1983009808
  %v5386 = vunpack.c.0.s8 %v5385
  %v5387 = vlaneseq
  %v5388 = vshrl.u32 %v5387, 7
  %v5389 = vsub.s32 %v5386, %v5388
  %v5390 = vrot.slane %v5376, %v5389
  %v5391 = vcombine.low %v5383, %v5390
  %v5392 = vcombine.low %v5258, %v5259
  %v5393 = vcombine.low %v5260, %v5261
  %v5395 = vunpack.c.l.s4 1983009808
  %v5396 = vunpack.c.0.s8 %v5395
  %v5397 = vlaneseq
  %v5398 = vshrl.u32 %v5397, 7
  %v5399 = vsub.s32 %v5396, %v5398
  %v5400 = vrot.slane %v5392, %v5399
  %v5402 = vunpack.c.l.s4 1983009808
  %v5403 = vunpack.c.0.s8 %v5402
  %v5404 = vlaneseq
  %v5405 = vshrl.u32 %v5404, 7
  %v5406 = vsub.s32 %v5403, %v5405
  %v5407 = vrot.slane %v5393, %v5406
  %v5408 = vcombine.low %v5400, %v5407
  %v5409 = vcombine.low %v5262, %v5263
  %v5410 = vcombine.low %v5264, %v5265
  %v5412 = vunpack.c.l.s4 1983009808
  %v5413 = vunpack.c.0.s8 %v5412
  %v5414 = vlaneseq
  %v5415 = vshrl.u32 %v5414, 7
  %v5416 = vsub.s32 %v5413, %v5415
  %v5417 = vrot.slane %v5409, %v5416
  %v5419 = vunpack.c.l.s4 1983009808
  %v5420 = vunpack.c.0.s8 %v5419
  %v5421 = vlaneseq
  %v5422 = vshrl.u32 %v5421, 7
  %v5423 = vsub.s32 %v5420, %v5422
  %v5424 = vrot.slane %v5410, %v5423
  %v5425 = vcombine.low %v5417, %v5424
  %v5426 = vcombine.low %v5266, %v5267
  %v5427 = vcombine.low %v5268, %v5269
  %v5429 = vunpack.c.l.s4 1983009808
  %v5430 = vunpack.c.0.s8 %v5429
  %v5431 = vlaneseq
  %v5432 = vshrl.u32 %v5431, 7
  %v5433 = vsub.s32 %v5430, %v5432
  %v5434 = vrot.slane %v5426, %v5433
  %v5436 = vunpack.c.l.s4 1983009808
  %v5437 = vunpack.c.0.s8 %v5436
  %v5438 = vlaneseq
  %v5439 = vshrl.u32 %v5438, 7
  %v5440 = vsub.s32 %v5437, %v5439
  %v5441 = vrot.slane %v5427, %v5440
  %v5442 = vcombine.low %v5434, %v5441
  %v5443 = vcombine.low %v5270, %v5271
  %v5444 = vcombine.low %v5272, %v5273
  %v5446 = vunpack.c.l.s4 1983009808
  %v5447 = vunpack.c.0.s8 %v5446
  %v5448 = vlaneseq
  %v5449 = vshrl.u32 %v5448, 7
  %v5450 = vsub.s32 %v5447, %v5449
  %v5451 = vrot.slane %v5443, %v5450
  %v5453 = vunpack.c.l.s4 1983009808
  %v5454 = vunpack.c.0.s8 %v5453
  %v5455 = vlaneseq
  %v5456 = vshrl.u32 %v5455, 7
  %v5457 = vsub.s32 %v5454, %v5456
  %v5458 = vrot.slane %v5444, %v5457
  %v5459 = vcombine.low %v5451, %v5458
  %v5460 = vcombine.low %v5274, %v5275
  %v5461 = vcombine.low %v5276, %v5277
  %v5463 = vunpack.c.l.s4 1983009808
  %v5464 = vunpack.c.0.s8 %v5463
  %v5465 = vlaneseq
  %v5466 = vshrl.u32 %v5465, 7
  %v5467 = vsub.s32 %v5464, %v5466
  %v5468 = vrot.slane %v5460, %v5467
  %v5470 = vunpack.c.l.s4 1983009808
  %v5471 = vunpack.c.0.s8 %v5470
  %v5472 = vlaneseq
  %v5473 = vshrl.u32 %v5472, 7
  %v5474 = vsub.s32 %v5471, %v5473
  %v5475 = vrot.slane %v5461, %v5474
  %v5476 = vcombine.low %v5468, %v5475
  %v5477 = vcombine.low %v5278, %v5279
  %v5478 = vcombine.low %v5280, %v5281
  %v5480 = vunpack.c.l.s4 1983009808
  %v5481 = vunpack.c.0.s8 %v5480
  %v5482 = vlaneseq
  %v5483 = vshrl.u32 %v5482, 7
  %v5484 = vsub.s32 %v5481, %v5483
  %v5485 = vrot.slane %v5477, %v5484
  %v5487 = vunpack.c.l.s4 1983009808
  %v5488 = vunpack.c.0.s8 %v5487
  %v5489 = vlaneseq
  %v5490 = vshrl.u32 %v5489, 7
  %v5491 = vsub.s32 %v5488, %v5490
  %v5492 = vrot.slane %v5478, %v5491
  %v5493 = vcombine.low %v5485, %v5492
  %v5504 = vsel %vm515, %v5340, 0.0
  %5505 = vadd.xlane.f32.xlu0 %v5504
  %v5506 = vpop.xlane.xlu0 %5505
  %v5507 = vsel %vm515, %v5357, 0.0
  %5508 = vadd.xlane.f32.xlu0 %v5507
  %v5509 = vpop.xlane.xlu0 %5508
  %v5510 = vsel %vm515, %v5374, 0.0
  %5511 = vadd.xlane.f32.xlu0 %v5510
  %v5512 = vpop.xlane.xlu0 %5511
  %v5513 = vsel %vm515, %v5391, 0.0
  %5514 = vadd.xlane.f32.xlu0 %v5513
  %v5515 = vpop.xlane.xlu0 %5514
  %v5516 = vsel %vm515, %v5408, 0.0
  %5517 = vadd.xlane.f32.xlu0 %v5516
  %v5518 = vpop.xlane.xlu0 %5517
  %v5519 = vsel %vm515, %v5425, 0.0
  %5520 = vadd.xlane.f32.xlu0 %v5519
  %v5521 = vpop.xlane.xlu0 %5520
  %v5522 = vsel %vm515, %v5442, 0.0
  %5523 = vadd.xlane.f32.xlu0 %v5522
  %v5524 = vpop.xlane.xlu0 %5523
  %v5525 = vsel %vm515, %v5459, 0.0
  %5526 = vadd.xlane.f32.xlu0 %v5525
  %v5527 = vpop.xlane.xlu0 %5526
  %v5528 = vsel %vm515, %v5476, 0.0
  %5529 = vadd.xlane.f32.xlu0 %v5528
  %v5530 = vpop.xlane.xlu0 %5529
  %v5531 = vsel %vm515, %v5493, 0.0
  %5532 = vadd.xlane.f32.xlu0 %v5531
  %v5533 = vpop.xlane.xlu0 %5532
  %v5534 = vmul.f32 %v5506, %v546
  %v5535 = vmul.f32 %v5509, %v546
  %v5536 = vmul.f32 %v5512, %v546
  %v5537 = vmul.f32 %v5515, %v546
  %v5538 = vmul.f32 %v5518, %v546
  %v5539 = vmul.f32 %v5521, %v546
  %v5540 = vmul.f32 %v5524, %v546
  %v5541 = vmul.f32 %v5527, %v546
  %v5542 = vmul.f32 %v5530, %v546
  %v5543 = vmul.f32 %v5533, %v546
  %v5555 = vunpack.c.l.s4 269488144
  %v5556 = vunpack.c.0.s8 %v5555
  %v5557 = vlaneseq
  %v5558 = vshrl.u32 %v5557, 7
  %v5559 = vsub.s32 %v5556, %v5558
  %v5560 = vrot.slane %v5534, %v5559
  %v5562 = vunpack.c.l.s4 842150450
  %v5563 = vunpack.c.0.s8 %v5562
  %v5564 = vlaneseq
  %v5565 = vshrl.u32 %v5564, 7
  %v5566 = vsub.s32 %v5563, %v5565
  %v5567 = vrot.slane %v5534, %v5566
  %v5569 = vunpack.c.l.s4 1414812756
  %v5570 = vunpack.c.0.s8 %v5569
  %v5571 = vlaneseq
  %v5572 = vshrl.u32 %v5571, 7
  %v5573 = vsub.s32 %v5570, %v5572
  %v5574 = vrot.slane %v5534, %v5573
  %v5576 = vunpack.c.l.s4 1987475062
  %v5577 = vunpack.c.0.s8 %v5576
  %v5578 = vlaneseq
  %v5579 = vshrl.u32 %v5578, 7
  %v5580 = vsub.s32 %v5577, %v5579
  %v5581 = vrot.slane %v5534, %v5580
  %v5583 = vunpack.c.l.s4 269488144
  %v5584 = vunpack.c.0.s8 %v5583
  %v5585 = vlaneseq
  %v5586 = vshrl.u32 %v5585, 7
  %v5587 = vsub.s32 %v5584, %v5586
  %v5588 = vrot.slane %v5535, %v5587
  %v5590 = vunpack.c.l.s4 842150450
  %v5591 = vunpack.c.0.s8 %v5590
  %v5592 = vlaneseq
  %v5593 = vshrl.u32 %v5592, 7
  %v5594 = vsub.s32 %v5591, %v5593
  %v5595 = vrot.slane %v5535, %v5594
  %v5597 = vunpack.c.l.s4 1414812756
  %v5598 = vunpack.c.0.s8 %v5597
  %v5599 = vlaneseq
  %v5600 = vshrl.u32 %v5599, 7
  %v5601 = vsub.s32 %v5598, %v5600
  %v5602 = vrot.slane %v5535, %v5601
  %v5604 = vunpack.c.l.s4 1987475062
  %v5605 = vunpack.c.0.s8 %v5604
  %v5606 = vlaneseq
  %v5607 = vshrl.u32 %v5606, 7
  %v5608 = vsub.s32 %v5605, %v5607
  %v5609 = vrot.slane %v5535, %v5608
  %v5611 = vunpack.c.l.s4 269488144
  %v5612 = vunpack.c.0.s8 %v5611
  %v5613 = vlaneseq
  %v5614 = vshrl.u32 %v5613, 7
  %v5615 = vsub.s32 %v5612, %v5614
  %v5616 = vrot.slane %v5536, %v5615
  %v5618 = vunpack.c.l.s4 842150450
  %v5619 = vunpack.c.0.s8 %v5618
  %v5620 = vlaneseq
  %v5621 = vshrl.u32 %v5620, 7
  %v5622 = vsub.s32 %v5619, %v5621
  %v5623 = vrot.slane %v5536, %v5622
  %v5625 = vunpack.c.l.s4 1414812756
  %v5626 = vunpack.c.0.s8 %v5625
  %v5627 = vlaneseq
  %v5628 = vshrl.u32 %v5627, 7
  %v5629 = vsub.s32 %v5626, %v5628
  %v5630 = vrot.slane %v5536, %v5629
  %v5632 = vunpack.c.l.s4 1987475062
  %v5633 = vunpack.c.0.s8 %v5632
  %v5634 = vlaneseq
  %v5635 = vshrl.u32 %v5634, 7
  %v5636 = vsub.s32 %v5633, %v5635
  %v5637 = vrot.slane %v5536, %v5636
  %v5639 = vunpack.c.l.s4 269488144
  %v5640 = vunpack.c.0.s8 %v5639
  %v5641 = vlaneseq
  %v5642 = vshrl.u32 %v5641, 7
  %v5643 = vsub.s32 %v5640, %v5642
  %v5644 = vrot.slane %v5537, %v5643
  %v5646 = vunpack.c.l.s4 842150450
  %v5647 = vunpack.c.0.s8 %v5646
  %v5648 = vlaneseq
  %v5649 = vshrl.u32 %v5648, 7
  %v5650 = vsub.s32 %v5647, %v5649
  %v5651 = vrot.slane %v5537, %v5650
  %v5653 = vunpack.c.l.s4 1414812756
  %v5654 = vunpack.c.0.s8 %v5653
  %v5655 = vlaneseq
  %v5656 = vshrl.u32 %v5655, 7
  %v5657 = vsub.s32 %v5654, %v5656
  %v5658 = vrot.slane %v5537, %v5657
  %v5660 = vunpack.c.l.s4 1987475062
  %v5661 = vunpack.c.0.s8 %v5660
  %v5662 = vlaneseq
  %v5663 = vshrl.u32 %v5662, 7
  %v5664 = vsub.s32 %v5661, %v5663
  %v5665 = vrot.slane %v5537, %v5664
  %v5667 = vunpack.c.l.s4 269488144
  %v5668 = vunpack.c.0.s8 %v5667
  %v5669 = vlaneseq
  %v5670 = vshrl.u32 %v5669, 7
  %v5671 = vsub.s32 %v5668, %v5670
  %v5672 = vrot.slane %v5538, %v5671
  %v5674 = vunpack.c.l.s4 842150450
  %v5675 = vunpack.c.0.s8 %v5674
  %v5676 = vlaneseq
  %v5677 = vshrl.u32 %v5676, 7
  %v5678 = vsub.s32 %v5675, %v5677
  %v5679 = vrot.slane %v5538, %v5678
  %v5681 = vunpack.c.l.s4 1414812756
  %v5682 = vunpack.c.0.s8 %v5681
  %v5683 = vlaneseq
  %v5684 = vshrl.u32 %v5683, 7
  %v5685 = vsub.s32 %v5682, %v5684
  %v5686 = vrot.slane %v5538, %v5685
  %v5688 = vunpack.c.l.s4 1987475062
  %v5689 = vunpack.c.0.s8 %v5688
  %v5690 = vlaneseq
  %v5691 = vshrl.u32 %v5690, 7
  %v5692 = vsub.s32 %v5689, %v5691
  %v5693 = vrot.slane %v5538, %v5692
  %v5695 = vunpack.c.l.s4 269488144
  %v5696 = vunpack.c.0.s8 %v5695
  %v5697 = vlaneseq
  %v5698 = vshrl.u32 %v5697, 7
  %v5699 = vsub.s32 %v5696, %v5698
  %v5700 = vrot.slane %v5539, %v5699
  %v5702 = vunpack.c.l.s4 842150450
  %v5703 = vunpack.c.0.s8 %v5702
  %v5704 = vlaneseq
  %v5705 = vshrl.u32 %v5704, 7
  %v5706 = vsub.s32 %v5703, %v5705
  %v5707 = vrot.slane %v5539, %v5706
  %v5709 = vunpack.c.l.s4 1414812756
  %v5710 = vunpack.c.0.s8 %v5709
  %v5711 = vlaneseq
  %v5712 = vshrl.u32 %v5711, 7
  %v5713 = vsub.s32 %v5710, %v5712
  %v5714 = vrot.slane %v5539, %v5713
  %v5716 = vunpack.c.l.s4 1987475062
  %v5717 = vunpack.c.0.s8 %v5716
  %v5718 = vlaneseq
  %v5719 = vshrl.u32 %v5718, 7
  %v5720 = vsub.s32 %v5717, %v5719
  %v5721 = vrot.slane %v5539, %v5720
  %v5723 = vunpack.c.l.s4 269488144
  %v5724 = vunpack.c.0.s8 %v5723
  %v5725 = vlaneseq
  %v5726 = vshrl.u32 %v5725, 7
  %v5727 = vsub.s32 %v5724, %v5726
  %v5728 = vrot.slane %v5540, %v5727
  %v5730 = vunpack.c.l.s4 842150450
  %v5731 = vunpack.c.0.s8 %v5730
  %v5732 = vlaneseq
  %v5733 = vshrl.u32 %v5732, 7
  %v5734 = vsub.s32 %v5731, %v5733
  %v5735 = vrot.slane %v5540, %v5734
  %v5737 = vunpack.c.l.s4 1414812756
  %v5738 = vunpack.c.0.s8 %v5737
  %v5739 = vlaneseq
  %v5740 = vshrl.u32 %v5739, 7
  %v5741 = vsub.s32 %v5738, %v5740
  %v5742 = vrot.slane %v5540, %v5741
  %v5744 = vunpack.c.l.s4 1987475062
  %v5745 = vunpack.c.0.s8 %v5744
  %v5746 = vlaneseq
  %v5747 = vshrl.u32 %v5746, 7
  %v5748 = vsub.s32 %v5745, %v5747
  %v5749 = vrot.slane %v5540, %v5748
  %v5751 = vunpack.c.l.s4 269488144
  %v5752 = vunpack.c.0.s8 %v5751
  %v5753 = vlaneseq
  %v5754 = vshrl.u32 %v5753, 7
  %v5755 = vsub.s32 %v5752, %v5754
  %v5756 = vrot.slane %v5541, %v5755
  %v5758 = vunpack.c.l.s4 842150450
  %v5759 = vunpack.c.0.s8 %v5758
  %v5760 = vlaneseq
  %v5761 = vshrl.u32 %v5760, 7
  %v5762 = vsub.s32 %v5759, %v5761
  %v5763 = vrot.slane %v5541, %v5762
  %v5765 = vunpack.c.l.s4 1414812756
  %v5766 = vunpack.c.0.s8 %v5765
  %v5767 = vlaneseq
  %v5768 = vshrl.u32 %v5767, 7
  %v5769 = vsub.s32 %v5766, %v5768
  %v5770 = vrot.slane %v5541, %v5769
  %v5772 = vunpack.c.l.s4 1987475062
  %v5773 = vunpack.c.0.s8 %v5772
  %v5774 = vlaneseq
  %v5775 = vshrl.u32 %v5774, 7
  %v5776 = vsub.s32 %v5773, %v5775
  %v5777 = vrot.slane %v5541, %v5776
  %v5779 = vunpack.c.l.s4 269488144
  %v5780 = vunpack.c.0.s8 %v5779
  %v5781 = vlaneseq
  %v5782 = vshrl.u32 %v5781, 7
  %v5783 = vsub.s32 %v5780, %v5782
  %v5784 = vrot.slane %v5542, %v5783
  %v5786 = vunpack.c.l.s4 842150450
  %v5787 = vunpack.c.0.s8 %v5786
  %v5788 = vlaneseq
  %v5789 = vshrl.u32 %v5788, 7
  %v5790 = vsub.s32 %v5787, %v5789
  %v5791 = vrot.slane %v5542, %v5790
  %v5793 = vunpack.c.l.s4 1414812756
  %v5794 = vunpack.c.0.s8 %v5793
  %v5795 = vlaneseq
  %v5796 = vshrl.u32 %v5795, 7
  %v5797 = vsub.s32 %v5794, %v5796
  %v5798 = vrot.slane %v5542, %v5797
  %v5800 = vunpack.c.l.s4 1987475062
  %v5801 = vunpack.c.0.s8 %v5800
  %v5802 = vlaneseq
  %v5803 = vshrl.u32 %v5802, 7
  %v5804 = vsub.s32 %v5801, %v5803
  %v5805 = vrot.slane %v5542, %v5804
  %v5807 = vunpack.c.l.s4 269488144
  %v5808 = vunpack.c.0.s8 %v5807
  %v5809 = vlaneseq
  %v5810 = vshrl.u32 %v5809, 7
  %v5811 = vsub.s32 %v5808, %v5810
  %v5812 = vrot.slane %v5543, %v5811
  %v5814 = vunpack.c.l.s4 842150450
  %v5815 = vunpack.c.0.s8 %v5814
  %v5816 = vlaneseq
  %v5817 = vshrl.u32 %v5816, 7
  %v5818 = vsub.s32 %v5815, %v5817
  %v5819 = vrot.slane %v5543, %v5818
  %v5821 = vunpack.c.l.s4 1414812756
  %v5822 = vunpack.c.0.s8 %v5821
  %v5823 = vlaneseq
  %v5824 = vshrl.u32 %v5823, 7
  %v5825 = vsub.s32 %v5822, %v5824
  %v5826 = vrot.slane %v5543, %v5825
  %v5828 = vunpack.c.l.s4 1987475062
  %v5829 = vunpack.c.0.s8 %v5828
  %v5830 = vlaneseq
  %v5831 = vshrl.u32 %v5830, 7
  %v5832 = vsub.s32 %v5829, %v5831
  %v5833 = vrot.slane %v5543, %v5832
  %v5874 = vsub.f32 %v5242, %v5560
  %v5875 = vsub.f32 %v5243, %v5567
  %v5876 = vsub.f32 %v5244, %v5574
  %v5877 = vsub.f32 %v5245, %v5581
  %v5878 = vsub.f32 %v5246, %v5588
  %v5879 = vsub.f32 %v5247, %v5595
  %v5880 = vsub.f32 %v5248, %v5602
  %v5881 = vsub.f32 %v5249, %v5609
  %v5882 = vsub.f32 %v5250, %v5616
  %v5883 = vsub.f32 %v5251, %v5623
  %v5884 = vsub.f32 %v5252, %v5630
  %v5885 = vsub.f32 %v5253, %v5637
  %v5886 = vsub.f32 %v5254, %v5644
  %v5887 = vsub.f32 %v5255, %v5651
  %v5888 = vsub.f32 %v5256, %v5658
  %v5889 = vsub.f32 %v5257, %v5665
  %v5890 = vsub.f32 %v5258, %v5672
  %v5891 = vsub.f32 %v5259, %v5679
  %v5892 = vsub.f32 %v5260, %v5686
  %v5893 = vsub.f32 %v5261, %v5693
  %v5894 = vsub.f32 %v5262, %v5700
  %v5895 = vsub.f32 %v5263, %v5707
  %v5896 = vsub.f32 %v5264, %v5714
  %v5897 = vsub.f32 %v5265, %v5721
  %v5898 = vsub.f32 %v5266, %v5728
  %v5899 = vsub.f32 %v5267, %v5735
  %v5900 = vsub.f32 %v5268, %v5742
  %v5901 = vsub.f32 %v5269, %v5749
  %v5902 = vsub.f32 %v5270, %v5756
  %v5903 = vsub.f32 %v5271, %v5763
  %v5904 = vsub.f32 %v5272, %v5770
  %v5905 = vsub.f32 %v5273, %v5777
  %v5906 = vsub.f32 %v5274, %v5784
  %v5907 = vsub.f32 %v5275, %v5791
  %v5908 = vsub.f32 %v5276, %v5798
  %v5909 = vsub.f32 %v5277, %v5805
  %v5910 = vsub.f32 %v5278, %v5812
  %v5911 = vsub.f32 %v5279, %v5819
  %v5912 = vsub.f32 %v5280, %v5826
  %v5913 = vsub.f32 %v5281, %v5833
  %v5914 = vmul.f32 %v5874, %v5874
  %v5915 = vmul.f32 %v5875, %v5875
  %v5916 = vmul.f32 %v5876, %v5876
  %v5917 = vmul.f32 %v5877, %v5877
  %v5918 = vmul.f32 %v5878, %v5878
  %v5919 = vmul.f32 %v5879, %v5879
  %v5920 = vmul.f32 %v5880, %v5880
  %v5921 = vmul.f32 %v5881, %v5881
  %v5922 = vmul.f32 %v5882, %v5882
  %v5923 = vmul.f32 %v5883, %v5883
  %v5924 = vmul.f32 %v5884, %v5884
  %v5925 = vmul.f32 %v5885, %v5885
  %v5926 = vmul.f32 %v5886, %v5886
  %v5927 = vmul.f32 %v5887, %v5887
  %v5928 = vmul.f32 %v5888, %v5888
  %v5929 = vmul.f32 %v5889, %v5889
  %v5930 = vmul.f32 %v5890, %v5890
  %v5931 = vmul.f32 %v5891, %v5891
  %v5932 = vmul.f32 %v5892, %v5892
  %v5933 = vmul.f32 %v5893, %v5893
  %v5934 = vmul.f32 %v5894, %v5894
  %v5935 = vmul.f32 %v5895, %v5895
  %v5936 = vmul.f32 %v5896, %v5896
  %v5937 = vmul.f32 %v5897, %v5897
  %v5938 = vmul.f32 %v5898, %v5898
  %v5939 = vmul.f32 %v5899, %v5899
  %v5940 = vmul.f32 %v5900, %v5900
  %v5941 = vmul.f32 %v5901, %v5901
  %v5942 = vmul.f32 %v5902, %v5902
  %v5943 = vmul.f32 %v5903, %v5903
  %v5944 = vmul.f32 %v5904, %v5904
  %v5945 = vmul.f32 %v5905, %v5905
  %v5946 = vmul.f32 %v5906, %v5906
  %v5947 = vmul.f32 %v5907, %v5907
  %v5948 = vmul.f32 %v5908, %v5908
  %v5949 = vmul.f32 %v5909, %v5909
  %v5950 = vmul.f32 %v5910, %v5910
  %v5951 = vmul.f32 %v5911, %v5911
  %v5952 = vmul.f32 %v5912, %v5912
  %v5953 = vmul.f32 %v5913, %v5913
  %v5994 = vcombine.low %v5914, %v5915
  %v5995 = vcombine.low %v5916, %v5917
  %v5997 = vunpack.c.l.s4 1983009808
  %v5998 = vunpack.c.0.s8 %v5997
  %v5999 = vlaneseq
  %v6000 = vshrl.u32 %v5999, 7
  %v6001 = vsub.s32 %v5998, %v6000
  %v6002 = vrot.slane %v5994, %v6001
  %v6004 = vunpack.c.l.s4 1983009808
  %v6005 = vunpack.c.0.s8 %v6004
  %v6006 = vlaneseq
  %v6007 = vshrl.u32 %v6006, 7
  %v6008 = vsub.s32 %v6005, %v6007
  %v6009 = vrot.slane %v5995, %v6008
  %v6010 = vcombine.low %v6002, %v6009
  %v6011 = vcombine.low %v5918, %v5919
  %v6012 = vcombine.low %v5920, %v5921
  %v6014 = vunpack.c.l.s4 1983009808
  %v6015 = vunpack.c.0.s8 %v6014
  %v6016 = vlaneseq
  %v6017 = vshrl.u32 %v6016, 7
  %v6018 = vsub.s32 %v6015, %v6017
  %v6019 = vrot.slane %v6011, %v6018
  %v6021 = vunpack.c.l.s4 1983009808
  %v6022 = vunpack.c.0.s8 %v6021
  %v6023 = vlaneseq
  %v6024 = vshrl.u32 %v6023, 7
  %v6025 = vsub.s32 %v6022, %v6024
  %v6026 = vrot.slane %v6012, %v6025
  %v6027 = vcombine.low %v6019, %v6026
  %v6028 = vcombine.low %v5922, %v5923
  %v6029 = vcombine.low %v5924, %v5925
  %v6031 = vunpack.c.l.s4 1983009808
  %v6032 = vunpack.c.0.s8 %v6031
  %v6033 = vlaneseq
  %v6034 = vshrl.u32 %v6033, 7
  %v6035 = vsub.s32 %v6032, %v6034
  %v6036 = vrot.slane %v6028, %v6035
  %v6038 = vunpack.c.l.s4 1983009808
  %v6039 = vunpack.c.0.s8 %v6038
  %v6040 = vlaneseq
  %v6041 = vshrl.u32 %v6040, 7
  %v6042 = vsub.s32 %v6039, %v6041
  %v6043 = vrot.slane %v6029, %v6042
  %v6044 = vcombine.low %v6036, %v6043
  %v6045 = vcombine.low %v5926, %v5927
  %v6046 = vcombine.low %v5928, %v5929
  %v6048 = vunpack.c.l.s4 1983009808
  %v6049 = vunpack.c.0.s8 %v6048
  %v6050 = vlaneseq
  %v6051 = vshrl.u32 %v6050, 7
  %v6052 = vsub.s32 %v6049, %v6051
  %v6053 = vrot.slane %v6045, %v6052
  %v6055 = vunpack.c.l.s4 1983009808
  %v6056 = vunpack.c.0.s8 %v6055
  %v6057 = vlaneseq
  %v6058 = vshrl.u32 %v6057, 7
  %v6059 = vsub.s32 %v6056, %v6058
  %v6060 = vrot.slane %v6046, %v6059
  %v6061 = vcombine.low %v6053, %v6060
  %v6062 = vcombine.low %v5930, %v5931
  %v6063 = vcombine.low %v5932, %v5933
  %v6065 = vunpack.c.l.s4 1983009808
  %v6066 = vunpack.c.0.s8 %v6065
  %v6067 = vlaneseq
  %v6068 = vshrl.u32 %v6067, 7
  %v6069 = vsub.s32 %v6066, %v6068
  %v6070 = vrot.slane %v6062, %v6069
  %v6072 = vunpack.c.l.s4 1983009808
  %v6073 = vunpack.c.0.s8 %v6072
  %v6074 = vlaneseq
  %v6075 = vshrl.u32 %v6074, 7
  %v6076 = vsub.s32 %v6073, %v6075
  %v6077 = vrot.slane %v6063, %v6076
  %v6078 = vcombine.low %v6070, %v6077
  %v6079 = vcombine.low %v5934, %v5935
  %v6080 = vcombine.low %v5936, %v5937
  %v6082 = vunpack.c.l.s4 1983009808
  %v6083 = vunpack.c.0.s8 %v6082
  %v6084 = vlaneseq
  %v6085 = vshrl.u32 %v6084, 7
  %v6086 = vsub.s32 %v6083, %v6085
  %v6087 = vrot.slane %v6079, %v6086
  %v6089 = vunpack.c.l.s4 1983009808
  %v6090 = vunpack.c.0.s8 %v6089
  %v6091 = vlaneseq
  %v6092 = vshrl.u32 %v6091, 7
  %v6093 = vsub.s32 %v6090, %v6092
  %v6094 = vrot.slane %v6080, %v6093
  %v6095 = vcombine.low %v6087, %v6094
  %v6096 = vcombine.low %v5938, %v5939
  %v6097 = vcombine.low %v5940, %v5941
  %v6099 = vunpack.c.l.s4 1983009808
  %v6100 = vunpack.c.0.s8 %v6099
  %v6101 = vlaneseq
  %v6102 = vshrl.u32 %v6101, 7
  %v6103 = vsub.s32 %v6100, %v6102
  %v6104 = vrot.slane %v6096, %v6103
  %v6106 = vunpack.c.l.s4 1983009808
  %v6107 = vunpack.c.0.s8 %v6106
  %v6108 = vlaneseq
  %v6109 = vshrl.u32 %v6108, 7
  %v6110 = vsub.s32 %v6107, %v6109
  %v6111 = vrot.slane %v6097, %v6110
  %v6112 = vcombine.low %v6104, %v6111
  %v6113 = vcombine.low %v5942, %v5943
  %v6114 = vcombine.low %v5944, %v5945
  %v6116 = vunpack.c.l.s4 1983009808
  %v6117 = vunpack.c.0.s8 %v6116
  %v6118 = vlaneseq
  %v6119 = vshrl.u32 %v6118, 7
  %v6120 = vsub.s32 %v6117, %v6119
  %v6121 = vrot.slane %v6113, %v6120
  %v6123 = vunpack.c.l.s4 1983009808
  %v6124 = vunpack.c.0.s8 %v6123
  %v6125 = vlaneseq
  %v6126 = vshrl.u32 %v6125, 7
  %v6127 = vsub.s32 %v6124, %v6126
  %v6128 = vrot.slane %v6114, %v6127
  %v6129 = vcombine.low %v6121, %v6128
  %v6130 = vcombine.low %v5946, %v5947
  %v6131 = vcombine.low %v5948, %v5949
  %v6133 = vunpack.c.l.s4 1983009808
  %v6134 = vunpack.c.0.s8 %v6133
  %v6135 = vlaneseq
  %v6136 = vshrl.u32 %v6135, 7
  %v6137 = vsub.s32 %v6134, %v6136
  %v6138 = vrot.slane %v6130, %v6137
  %v6140 = vunpack.c.l.s4 1983009808
  %v6141 = vunpack.c.0.s8 %v6140
  %v6142 = vlaneseq
  %v6143 = vshrl.u32 %v6142, 7
  %v6144 = vsub.s32 %v6141, %v6143
  %v6145 = vrot.slane %v6131, %v6144
  %v6146 = vcombine.low %v6138, %v6145
  %v6147 = vcombine.low %v5950, %v5951
  %v6148 = vcombine.low %v5952, %v5953
  %v6150 = vunpack.c.l.s4 1983009808
  %v6151 = vunpack.c.0.s8 %v6150
  %v6152 = vlaneseq
  %v6153 = vshrl.u32 %v6152, 7
  %v6154 = vsub.s32 %v6151, %v6153
  %v6155 = vrot.slane %v6147, %v6154
  %v6157 = vunpack.c.l.s4 1983009808
  %v6158 = vunpack.c.0.s8 %v6157
  %v6159 = vlaneseq
  %v6160 = vshrl.u32 %v6159, 7
  %v6161 = vsub.s32 %v6158, %v6160
  %v6162 = vrot.slane %v6148, %v6161
  %v6163 = vcombine.low %v6155, %v6162
  %v6174 = vsel %vm515, %v6010, 0.0
  %6175 = vadd.xlane.f32.xlu0 %v6174
  %v6176 = vpop.xlane.xlu0 %6175
  %v6177 = vsel %vm515, %v6027, 0.0
  %6178 = vadd.xlane.f32.xlu0 %v6177
  %v6179 = vpop.xlane.xlu0 %6178
  %v6180 = vsel %vm515, %v6044, 0.0
  %6181 = vadd.xlane.f32.xlu0 %v6180
  %v6182 = vpop.xlane.xlu0 %6181
  %v6183 = vsel %vm515, %v6061, 0.0
  %6184 = vadd.xlane.f32.xlu0 %v6183
  %v6185 = vpop.xlane.xlu0 %6184
  %v6186 = vsel %vm515, %v6078, 0.0
  %6187 = vadd.xlane.f32.xlu0 %v6186
  %v6188 = vpop.xlane.xlu0 %6187
  %v6189 = vsel %vm515, %v6095, 0.0
  %6190 = vadd.xlane.f32.xlu0 %v6189
  %v6191 = vpop.xlane.xlu0 %6190
  %v6192 = vsel %vm515, %v6112, 0.0
  %6193 = vadd.xlane.f32.xlu0 %v6192
  %v6194 = vpop.xlane.xlu0 %6193
  %v6195 = vsel %vm515, %v6129, 0.0
  %6196 = vadd.xlane.f32.xlu0 %v6195
  %v6197 = vpop.xlane.xlu0 %6196
  %v6198 = vsel %vm515, %v6146, 0.0
  %6199 = vadd.xlane.f32.xlu0 %v6198
  %v6200 = vpop.xlane.xlu0 %6199
  %v6201 = vsel %vm515, %v6163, 0.0
  %6202 = vadd.xlane.f32.xlu0 %v6201
  %v6203 = vpop.xlane.xlu0 %6202
  %v6204 = vmul.f32 %v6176, %v546
  %v6205 = vmul.f32 %v6179, %v546
  %v6206 = vmul.f32 %v6182, %v546
  %v6207 = vmul.f32 %v6185, %v546
  %v6208 = vmul.f32 %v6188, %v546
  %v6209 = vmul.f32 %v6191, %v546
  %v6210 = vmul.f32 %v6194, %v546
  %v6211 = vmul.f32 %v6197, %v546
  %v6212 = vmul.f32 %v6200, %v546
  %v6213 = vmul.f32 %v6203, %v546
  %v6214 = vadd.f32 %v6204, 1e-05
  %v6215 = vadd.f32 %v6205, 1e-05
  %v6216 = vadd.f32 %v6206, 1e-05
  %v6217 = vadd.f32 %v6207, 1e-05
  %v6218 = vadd.f32 %v6208, 1e-05
  %v6219 = vadd.f32 %v6209, 1e-05
  %v6220 = vadd.f32 %v6210, 1e-05
  %v6221 = vadd.f32 %v6211, 1e-05
  %v6222 = vadd.f32 %v6212, 1e-05
  %v6223 = vadd.f32 %v6213, 1e-05
  %v6224 = vrsqrt.pop %v6214
  %v6225 = vrsqrt.pop %v6215
  %v6226 = vrsqrt.pop %v6216
  %v6227 = vrsqrt.pop %v6217
  %v6228 = vrsqrt.pop %v6218
  %v6229 = vrsqrt.pop %v6219
  %v6230 = vrsqrt.pop %v6220
  %v6231 = vrsqrt.pop %v6221
  %v6232 = vrsqrt.pop %v6222
  %v6233 = vrsqrt.pop %v6223
  %v6245 = vunpack.c.l.s4 269488144
  %v6246 = vunpack.c.0.s8 %v6245
  %v6247 = vlaneseq
  %v6248 = vshrl.u32 %v6247, 7
  %v6249 = vsub.s32 %v6246, %v6248
  %v6250 = vrot.slane %v6224, %v6249
  %v6252 = vunpack.c.l.s4 842150450
  %v6253 = vunpack.c.0.s8 %v6252
  %v6254 = vlaneseq
  %v6255 = vshrl.u32 %v6254, 7
  %v6256 = vsub.s32 %v6253, %v6255
  %v6257 = vrot.slane %v6224, %v6256
  %v6259 = vunpack.c.l.s4 1414812756
  %v6260 = vunpack.c.0.s8 %v6259
  %v6261 = vlaneseq
  %v6262 = vshrl.u32 %v6261, 7
  %v6263 = vsub.s32 %v6260, %v6262
  %v6264 = vrot.slane %v6224, %v6263
  %v6266 = vunpack.c.l.s4 1987475062
  %v6267 = vunpack.c.0.s8 %v6266
  %v6268 = vlaneseq
  %v6269 = vshrl.u32 %v6268, 7
  %v6270 = vsub.s32 %v6267, %v6269
  %v6271 = vrot.slane %v6224, %v6270
  %v6273 = vunpack.c.l.s4 269488144
  %v6274 = vunpack.c.0.s8 %v6273
  %v6275 = vlaneseq
  %v6276 = vshrl.u32 %v6275, 7
  %v6277 = vsub.s32 %v6274, %v6276
  %v6278 = vrot.slane %v6225, %v6277
  %v6280 = vunpack.c.l.s4 842150450
  %v6281 = vunpack.c.0.s8 %v6280
  %v6282 = vlaneseq
  %v6283 = vshrl.u32 %v6282, 7
  %v6284 = vsub.s32 %v6281, %v6283
  %v6285 = vrot.slane %v6225, %v6284
  %v6287 = vunpack.c.l.s4 1414812756
  %v6288 = vunpack.c.0.s8 %v6287
  %v6289 = vlaneseq
  %v6290 = vshrl.u32 %v6289, 7
  %v6291 = vsub.s32 %v6288, %v6290
  %v6292 = vrot.slane %v6225, %v6291
  %v6294 = vunpack.c.l.s4 1987475062
  %v6295 = vunpack.c.0.s8 %v6294
  %v6296 = vlaneseq
  %v6297 = vshrl.u32 %v6296, 7
  %v6298 = vsub.s32 %v6295, %v6297
  %v6299 = vrot.slane %v6225, %v6298
  %v6301 = vunpack.c.l.s4 269488144
  %v6302 = vunpack.c.0.s8 %v6301
  %v6303 = vlaneseq
  %v6304 = vshrl.u32 %v6303, 7
  %v6305 = vsub.s32 %v6302, %v6304
  %v6306 = vrot.slane %v6226, %v6305
  %v6308 = vunpack.c.l.s4 842150450
  %v6309 = vunpack.c.0.s8 %v6308
  %v6310 = vlaneseq
  %v6311 = vshrl.u32 %v6310, 7
  %v6312 = vsub.s32 %v6309, %v6311
  %v6313 = vrot.slane %v6226, %v6312
  %v6315 = vunpack.c.l.s4 1414812756
  %v6316 = vunpack.c.0.s8 %v6315
  %v6317 = vlaneseq
  %v6318 = vshrl.u32 %v6317, 7
  %v6319 = vsub.s32 %v6316, %v6318
  %v6320 = vrot.slane %v6226, %v6319
  %v6322 = vunpack.c.l.s4 1987475062
  %v6323 = vunpack.c.0.s8 %v6322
  %v6324 = vlaneseq
  %v6325 = vshrl.u32 %v6324, 7
  %v6326 = vsub.s32 %v6323, %v6325
  %v6327 = vrot.slane %v6226, %v6326
  %v6329 = vunpack.c.l.s4 269488144
  %v6330 = vunpack.c.0.s8 %v6329
  %v6331 = vlaneseq
  %v6332 = vshrl.u32 %v6331, 7
  %v6333 = vsub.s32 %v6330, %v6332
  %v6334 = vrot.slane %v6227, %v6333
  %v6336 = vunpack.c.l.s4 842150450
  %v6337 = vunpack.c.0.s8 %v6336
  %v6338 = vlaneseq
  %v6339 = vshrl.u32 %v6338, 7
  %v6340 = vsub.s32 %v6337, %v6339
  %v6341 = vrot.slane %v6227, %v6340
  %v6343 = vunpack.c.l.s4 1414812756
  %v6344 = vunpack.c.0.s8 %v6343
  %v6345 = vlaneseq
  %v6346 = vshrl.u32 %v6345, 7
  %v6347 = vsub.s32 %v6344, %v6346
  %v6348 = vrot.slane %v6227, %v6347
  %v6350 = vunpack.c.l.s4 1987475062
  %v6351 = vunpack.c.0.s8 %v6350
  %v6352 = vlaneseq
  %v6353 = vshrl.u32 %v6352, 7
  %v6354 = vsub.s32 %v6351, %v6353
  %v6355 = vrot.slane %v6227, %v6354
  %v6357 = vunpack.c.l.s4 269488144
  %v6358 = vunpack.c.0.s8 %v6357
  %v6359 = vlaneseq
  %v6360 = vshrl.u32 %v6359, 7
  %v6361 = vsub.s32 %v6358, %v6360
  %v6362 = vrot.slane %v6228, %v6361
  %v6364 = vunpack.c.l.s4 842150450
  %v6365 = vunpack.c.0.s8 %v6364
  %v6366 = vlaneseq
  %v6367 = vshrl.u32 %v6366, 7
  %v6368 = vsub.s32 %v6365, %v6367
  %v6369 = vrot.slane %v6228, %v6368
  %v6371 = vunpack.c.l.s4 1414812756
  %v6372 = vunpack.c.0.s8 %v6371
  %v6373 = vlaneseq
  %v6374 = vshrl.u32 %v6373, 7
  %v6375 = vsub.s32 %v6372, %v6374
  %v6376 = vrot.slane %v6228, %v6375
  %v6378 = vunpack.c.l.s4 1987475062
  %v6379 = vunpack.c.0.s8 %v6378
  %v6380 = vlaneseq
  %v6381 = vshrl.u32 %v6380, 7
  %v6382 = vsub.s32 %v6379, %v6381
  %v6383 = vrot.slane %v6228, %v6382
  %v6385 = vunpack.c.l.s4 269488144
  %v6386 = vunpack.c.0.s8 %v6385
  %v6387 = vlaneseq
  %v6388 = vshrl.u32 %v6387, 7
  %v6389 = vsub.s32 %v6386, %v6388
  %v6390 = vrot.slane %v6229, %v6389
  %v6392 = vunpack.c.l.s4 842150450
  %v6393 = vunpack.c.0.s8 %v6392
  %v6394 = vlaneseq
  %v6395 = vshrl.u32 %v6394, 7
  %v6396 = vsub.s32 %v6393, %v6395
  %v6397 = vrot.slane %v6229, %v6396
  %v6399 = vunpack.c.l.s4 1414812756
  %v6400 = vunpack.c.0.s8 %v6399
  %v6401 = vlaneseq
  %v6402 = vshrl.u32 %v6401, 7
  %v6403 = vsub.s32 %v6400, %v6402
  %v6404 = vrot.slane %v6229, %v6403
  %v6406 = vunpack.c.l.s4 1987475062
  %v6407 = vunpack.c.0.s8 %v6406
  %v6408 = vlaneseq
  %v6409 = vshrl.u32 %v6408, 7
  %v6410 = vsub.s32 %v6407, %v6409
  %v6411 = vrot.slane %v6229, %v6410
  %v6413 = vunpack.c.l.s4 269488144
  %v6414 = vunpack.c.0.s8 %v6413
  %v6415 = vlaneseq
  %v6416 = vshrl.u32 %v6415, 7
  %v6417 = vsub.s32 %v6414, %v6416
  %v6418 = vrot.slane %v6230, %v6417
  %v6420 = vunpack.c.l.s4 842150450
  %v6421 = vunpack.c.0.s8 %v6420
  %v6422 = vlaneseq
  %v6423 = vshrl.u32 %v6422, 7
  %v6424 = vsub.s32 %v6421, %v6423
  %v6425 = vrot.slane %v6230, %v6424
  %v6427 = vunpack.c.l.s4 1414812756
  %v6428 = vunpack.c.0.s8 %v6427
  %v6429 = vlaneseq
  %v6430 = vshrl.u32 %v6429, 7
  %v6431 = vsub.s32 %v6428, %v6430
  %v6432 = vrot.slane %v6230, %v6431
  %v6434 = vunpack.c.l.s4 1987475062
  %v6435 = vunpack.c.0.s8 %v6434
  %v6436 = vlaneseq
  %v6437 = vshrl.u32 %v6436, 7
  %v6438 = vsub.s32 %v6435, %v6437
  %v6439 = vrot.slane %v6230, %v6438
  %v6441 = vunpack.c.l.s4 269488144
  %v6442 = vunpack.c.0.s8 %v6441
  %v6443 = vlaneseq
  %v6444 = vshrl.u32 %v6443, 7
  %v6445 = vsub.s32 %v6442, %v6444
  %v6446 = vrot.slane %v6231, %v6445
  %v6448 = vunpack.c.l.s4 842150450
  %v6449 = vunpack.c.0.s8 %v6448
  %v6450 = vlaneseq
  %v6451 = vshrl.u32 %v6450, 7
  %v6452 = vsub.s32 %v6449, %v6451
  %v6453 = vrot.slane %v6231, %v6452
  %v6455 = vunpack.c.l.s4 1414812756
  %v6456 = vunpack.c.0.s8 %v6455
  %v6457 = vlaneseq
  %v6458 = vshrl.u32 %v6457, 7
  %v6459 = vsub.s32 %v6456, %v6458
  %v6460 = vrot.slane %v6231, %v6459
  %v6462 = vunpack.c.l.s4 1987475062
  %v6463 = vunpack.c.0.s8 %v6462
  %v6464 = vlaneseq
  %v6465 = vshrl.u32 %v6464, 7
  %v6466 = vsub.s32 %v6463, %v6465
  %v6467 = vrot.slane %v6231, %v6466
  %v6469 = vunpack.c.l.s4 269488144
  %v6470 = vunpack.c.0.s8 %v6469
  %v6471 = vlaneseq
  %v6472 = vshrl.u32 %v6471, 7
  %v6473 = vsub.s32 %v6470, %v6472
  %v6474 = vrot.slane %v6232, %v6473
  %v6476 = vunpack.c.l.s4 842150450
  %v6477 = vunpack.c.0.s8 %v6476
  %v6478 = vlaneseq
  %v6479 = vshrl.u32 %v6478, 7
  %v6480 = vsub.s32 %v6477, %v6479
  %v6481 = vrot.slane %v6232, %v6480
  %v6483 = vunpack.c.l.s4 1414812756
  %v6484 = vunpack.c.0.s8 %v6483
  %v6485 = vlaneseq
  %v6486 = vshrl.u32 %v6485, 7
  %v6487 = vsub.s32 %v6484, %v6486
  %v6488 = vrot.slane %v6232, %v6487
  %v6490 = vunpack.c.l.s4 1987475062
  %v6491 = vunpack.c.0.s8 %v6490
  %v6492 = vlaneseq
  %v6493 = vshrl.u32 %v6492, 7
  %v6494 = vsub.s32 %v6491, %v6493
  %v6495 = vrot.slane %v6232, %v6494
  %v6497 = vunpack.c.l.s4 269488144
  %v6498 = vunpack.c.0.s8 %v6497
  %v6499 = vlaneseq
  %v6500 = vshrl.u32 %v6499, 7
  %v6501 = vsub.s32 %v6498, %v6500
  %v6502 = vrot.slane %v6233, %v6501
  %v6504 = vunpack.c.l.s4 842150450
  %v6505 = vunpack.c.0.s8 %v6504
  %v6506 = vlaneseq
  %v6507 = vshrl.u32 %v6506, 7
  %v6508 = vsub.s32 %v6505, %v6507
  %v6509 = vrot.slane %v6233, %v6508
  %v6511 = vunpack.c.l.s4 1414812756
  %v6512 = vunpack.c.0.s8 %v6511
  %v6513 = vlaneseq
  %v6514 = vshrl.u32 %v6513, 7
  %v6515 = vsub.s32 %v6512, %v6514
  %v6516 = vrot.slane %v6233, %v6515
  %v6518 = vunpack.c.l.s4 1987475062
  %v6519 = vunpack.c.0.s8 %v6518
  %v6520 = vlaneseq
  %v6521 = vshrl.u32 %v6520, 7
  %v6522 = vsub.s32 %v6519, %v6521
  %v6523 = vrot.slane %v6233, %v6522
  %v6564 = vmul.f32 %v5874, %v6250
  %v6565 = vmul.f32 %v5875, %v6257
  %v6566 = vmul.f32 %v5876, %v6264
  %v6567 = vmul.f32 %v5877, %v6271
  %v6568 = vmul.f32 %v5878, %v6278
  %v6569 = vmul.f32 %v5879, %v6285
  %v6570 = vmul.f32 %v5880, %v6292
  %v6571 = vmul.f32 %v5881, %v6299
  %v6572 = vmul.f32 %v5882, %v6306
  %v6573 = vmul.f32 %v5883, %v6313
  %v6574 = vmul.f32 %v5884, %v6320
  %v6575 = vmul.f32 %v5885, %v6327
  %v6576 = vmul.f32 %v5886, %v6334
  %v6577 = vmul.f32 %v5887, %v6341
  %v6578 = vmul.f32 %v5888, %v6348
  %v6579 = vmul.f32 %v5889, %v6355
  %v6580 = vmul.f32 %v5890, %v6362
  %v6581 = vmul.f32 %v5891, %v6369
  %v6582 = vmul.f32 %v5892, %v6376
  %v6583 = vmul.f32 %v5893, %v6383
  %v6584 = vmul.f32 %v5894, %v6390
  %v6585 = vmul.f32 %v5895, %v6397
  %v6586 = vmul.f32 %v5896, %v6404
  %v6587 = vmul.f32 %v5897, %v6411
  %v6588 = vmul.f32 %v5898, %v6418
  %v6589 = vmul.f32 %v5899, %v6425
  %v6590 = vmul.f32 %v5900, %v6432
  %v6591 = vmul.f32 %v5901, %v6439
  %v6592 = vmul.f32 %v5902, %v6446
  %v6593 = vmul.f32 %v5903, %v6453
  %v6594 = vmul.f32 %v5904, %v6460
  %v6595 = vmul.f32 %v5905, %v6467
  %v6596 = vmul.f32 %v5906, %v6474
  %v6597 = vmul.f32 %v5907, %v6481
  %v6598 = vmul.f32 %v5908, %v6488
  %v6599 = vmul.f32 %v5909, %v6495
  %v6600 = vmul.f32 %v5910, %v6502
  %v6601 = vmul.f32 %v5911, %v6509
  %v6602 = vmul.f32 %v5912, %v6516
  %v6603 = vmul.f32 %v5913, %v6523
  %v6605 = vlaneseq
  %v6606 = vshrl.u32 %v6605, 7
  %v6607 = vsub.s32 0, %v6606
  %v6608 = vrot.slane %v5282, %v6607
  %v6609 = vcombine.high %v6608, %v6608
  %v6611 = vunpack.c.l.s4 1983009808
  %v6612 = vunpack.c.0.s8 %v6611
  %v6613 = vlaneseq
  %v6614 = vshrl.u32 %v6613, 7
  %v6615 = vsub.s32 %v6612, %v6614
  %v6616 = vrot.slane %v6608, %v6615
  %v6618 = vunpack.c.l.s4 1983009808
  %v6619 = vunpack.c.0.s8 %v6618
  %v6620 = vlaneseq
  %v6621 = vshrl.u32 %v6620, 7
  %v6622 = vsub.s32 %v6619, %v6621
  %v6623 = vrot.slane %v6609, %v6622
  %v6624 = vcombine.high %v6616, %v6616
  %v6625 = vcombine.high %v6623, %v6623
  %v6630 = vmul.f32 %v6564, %v6616
  %v6631 = vmul.f32 %v6565, %v6624
  %v6632 = vmul.f32 %v6566, %v6623
  %v6633 = vmul.f32 %v6567, %v6625
  %v6634 = vmul.f32 %v6568, %v6616
  %v6635 = vmul.f32 %v6569, %v6624
  %v6636 = vmul.f32 %v6570, %v6623
  %v6637 = vmul.f32 %v6571, %v6625
  %v6638 = vmul.f32 %v6572, %v6616
  %v6639 = vmul.f32 %v6573, %v6624
  %v6640 = vmul.f32 %v6574, %v6623
  %v6641 = vmul.f32 %v6575, %v6625
  %v6642 = vmul.f32 %v6576, %v6616
  %v6643 = vmul.f32 %v6577, %v6624
  %v6644 = vmul.f32 %v6578, %v6623
  %v6645 = vmul.f32 %v6579, %v6625
  %v6646 = vmul.f32 %v6580, %v6616
  %v6647 = vmul.f32 %v6581, %v6624
  %v6648 = vmul.f32 %v6582, %v6623
  %v6649 = vmul.f32 %v6583, %v6625
  %v6650 = vmul.f32 %v6584, %v6616
  %v6651 = vmul.f32 %v6585, %v6624
  %v6652 = vmul.f32 %v6586, %v6623
  %v6653 = vmul.f32 %v6587, %v6625
  %v6654 = vmul.f32 %v6588, %v6616
  %v6655 = vmul.f32 %v6589, %v6624
  %v6656 = vmul.f32 %v6590, %v6623
  %v6657 = vmul.f32 %v6591, %v6625
  %v6658 = vmul.f32 %v6592, %v6616
  %v6659 = vmul.f32 %v6593, %v6624
  %v6660 = vmul.f32 %v6594, %v6623
  %v6661 = vmul.f32 %v6595, %v6625
  %v6662 = vmul.f32 %v6596, %v6616
  %v6663 = vmul.f32 %v6597, %v6624
  %v6664 = vmul.f32 %v6598, %v6623
  %v6665 = vmul.f32 %v6599, %v6625
  %v6666 = vmul.f32 %v6600, %v6616
  %v6667 = vmul.f32 %v6601, %v6624
  %v6668 = vmul.f32 %v6602, %v6623
  %v6669 = vmul.f32 %v6603, %v6625
  %v6671 = vlaneseq
  %v6672 = vshrl.u32 %v6671, 7
  %v6673 = vsub.s32 0, %v6672
  %v6674 = vrot.slane %v5283, %v6673
  %v6675 = vcombine.high %v6674, %v6674
  %v6677 = vunpack.c.l.s4 1983009808
  %v6678 = vunpack.c.0.s8 %v6677
  %v6679 = vlaneseq
  %v6680 = vshrl.u32 %v6679, 7
  %v6681 = vsub.s32 %v6678, %v6680
  %v6682 = vrot.slane %v6674, %v6681
  %v6684 = vunpack.c.l.s4 1983009808
  %v6685 = vunpack.c.0.s8 %v6684
  %v6686 = vlaneseq
  %v6687 = vshrl.u32 %v6686, 7
  %v6688 = vsub.s32 %v6685, %v6687
  %v6689 = vrot.slane %v6675, %v6688
  %v6690 = vcombine.high %v6682, %v6682
  %v6691 = vcombine.high %v6689, %v6689
  %v6696 = vadd.f32 %v6630, %v6682
  %v6697 = vadd.f32 %v6631, %v6690
  %v6698 = vadd.f32 %v6632, %v6689
  %v6699 = vadd.f32 %v6633, %v6691
  %v6700 = vadd.f32 %v6634, %v6682
  %v6701 = vadd.f32 %v6635, %v6690
  %v6702 = vadd.f32 %v6636, %v6689
  %v6703 = vadd.f32 %v6637, %v6691
  %v6704 = vadd.f32 %v6638, %v6682
  %v6705 = vadd.f32 %v6639, %v6690
  %v6706 = vadd.f32 %v6640, %v6689
  %v6707 = vadd.f32 %v6641, %v6691
  %v6708 = vadd.f32 %v6642, %v6682
  %v6709 = vadd.f32 %v6643, %v6690
  %v6710 = vadd.f32 %v6644, %v6689
  %v6711 = vadd.f32 %v6645, %v6691
  %v6712 = vadd.f32 %v6646, %v6682
  %v6713 = vadd.f32 %v6647, %v6690
  %v6714 = vadd.f32 %v6648, %v6689
  %v6715 = vadd.f32 %v6649, %v6691
  %v6716 = vadd.f32 %v6650, %v6682
  %v6717 = vadd.f32 %v6651, %v6690
  %v6718 = vadd.f32 %v6652, %v6689
  %v6719 = vadd.f32 %v6653, %v6691
  %v6720 = vadd.f32 %v6654, %v6682
  %v6721 = vadd.f32 %v6655, %v6690
  %v6722 = vadd.f32 %v6656, %v6689
  %v6723 = vadd.f32 %v6657, %v6691
  %v6724 = vadd.f32 %v6658, %v6682
  %v6725 = vadd.f32 %v6659, %v6690
  %v6726 = vadd.f32 %v6660, %v6689
  %v6727 = vadd.f32 %v6661, %v6691
  %v6728 = vadd.f32 %v6662, %v6682
  %v6729 = vadd.f32 %v6663, %v6690
  %v6730 = vadd.f32 %v6664, %v6689
  %v6731 = vadd.f32 %v6665, %v6691
  %v6732 = vadd.f32 %v6666, %v6682
  %v6733 = vadd.f32 %v6667, %v6690
  %v6734 = vadd.f32 %v6668, %v6689
  %v6735 = vadd.f32 %v6669, %v6691
  %v6776 = vcombine.low %v6696, %v6697
  %v6777 = vcombine.low %v6698, %v6699
  %v6779 = vunpack.c.l.s4 1983009808
  %v6780 = vunpack.c.0.s8 %v6779
  %v6781 = vlaneseq
  %v6782 = vshrl.u32 %v6781, 7
  %v6783 = vsub.s32 %v6780, %v6782
  %v6784 = vrot.slane %v6776, %v6783
  %v6786 = vunpack.c.l.s4 1983009808
  %v6787 = vunpack.c.0.s8 %v6786
  %v6788 = vlaneseq
  %v6789 = vshrl.u32 %v6788, 7
  %v6790 = vsub.s32 %v6787, %v6789
  %v6791 = vrot.slane %v6777, %v6790
  %v6792 = vcombine.low %v6784, %v6791
  %v6793 = vcombine.low %v6700, %v6701
  %v6794 = vcombine.low %v6702, %v6703
  %v6796 = vunpack.c.l.s4 1983009808
  %v6797 = vunpack.c.0.s8 %v6796
  %v6798 = vlaneseq
  %v6799 = vshrl.u32 %v6798, 7
  %v6800 = vsub.s32 %v6797, %v6799
  %v6801 = vrot.slane %v6793, %v6800
  %v6803 = vunpack.c.l.s4 1983009808
  %v6804 = vunpack.c.0.s8 %v6803
  %v6805 = vlaneseq
  %v6806 = vshrl.u32 %v6805, 7
  %v6807 = vsub.s32 %v6804, %v6806
  %v6808 = vrot.slane %v6794, %v6807
  %v6809 = vcombine.low %v6801, %v6808
  %v6810 = vcombine.low %v6704, %v6705
  %v6811 = vcombine.low %v6706, %v6707
  %v6813 = vunpack.c.l.s4 1983009808
  %v6814 = vunpack.c.0.s8 %v6813
  %v6815 = vlaneseq
  %v6816 = vshrl.u32 %v6815, 7
  %v6817 = vsub.s32 %v6814, %v6816
  %v6818 = vrot.slane %v6810, %v6817
  %v6820 = vunpack.c.l.s4 1983009808
  %v6821 = vunpack.c.0.s8 %v6820
  %v6822 = vlaneseq
  %v6823 = vshrl.u32 %v6822, 7
  %v6824 = vsub.s32 %v6821, %v6823
  %v6825 = vrot.slane %v6811, %v6824
  %v6826 = vcombine.low %v6818, %v6825
  %v6827 = vcombine.low %v6708, %v6709
  %v6828 = vcombine.low %v6710, %v6711
  %v6830 = vunpack.c.l.s4 1983009808
  %v6831 = vunpack.c.0.s8 %v6830
  %v6832 = vlaneseq
  %v6833 = vshrl.u32 %v6832, 7
  %v6834 = vsub.s32 %v6831, %v6833
  %v6835 = vrot.slane %v6827, %v6834
  %v6837 = vunpack.c.l.s4 1983009808
  %v6838 = vunpack.c.0.s8 %v6837
  %v6839 = vlaneseq
  %v6840 = vshrl.u32 %v6839, 7
  %v6841 = vsub.s32 %v6838, %v6840
  %v6842 = vrot.slane %v6828, %v6841
  %v6843 = vcombine.low %v6835, %v6842
  %v6844 = vcombine.low %v6712, %v6713
  %v6845 = vcombine.low %v6714, %v6715
  %v6847 = vunpack.c.l.s4 1983009808
  %v6848 = vunpack.c.0.s8 %v6847
  %v6849 = vlaneseq
  %v6850 = vshrl.u32 %v6849, 7
  %v6851 = vsub.s32 %v6848, %v6850
  %v6852 = vrot.slane %v6844, %v6851
  %v6854 = vunpack.c.l.s4 1983009808
  %v6855 = vunpack.c.0.s8 %v6854
  %v6856 = vlaneseq
  %v6857 = vshrl.u32 %v6856, 7
  %v6858 = vsub.s32 %v6855, %v6857
  %v6859 = vrot.slane %v6845, %v6858
  %v6860 = vcombine.low %v6852, %v6859
  %v6861 = vcombine.low %v6716, %v6717
  %v6862 = vcombine.low %v6718, %v6719
  %v6864 = vunpack.c.l.s4 1983009808
  %v6865 = vunpack.c.0.s8 %v6864
  %v6866 = vlaneseq
  %v6867 = vshrl.u32 %v6866, 7
  %v6868 = vsub.s32 %v6865, %v6867
  %v6869 = vrot.slane %v6861, %v6868
  %v6871 = vunpack.c.l.s4 1983009808
  %v6872 = vunpack.c.0.s8 %v6871
  %v6873 = vlaneseq
  %v6874 = vshrl.u32 %v6873, 7
  %v6875 = vsub.s32 %v6872, %v6874
  %v6876 = vrot.slane %v6862, %v6875
  %v6877 = vcombine.low %v6869, %v6876
  %v6878 = vcombine.low %v6720, %v6721
  %v6879 = vcombine.low %v6722, %v6723
  %v6881 = vunpack.c.l.s4 1983009808
  %v6882 = vunpack.c.0.s8 %v6881
  %v6883 = vlaneseq
  %v6884 = vshrl.u32 %v6883, 7
  %v6885 = vsub.s32 %v6882, %v6884
  %v6886 = vrot.slane %v6878, %v6885
  %v6888 = vunpack.c.l.s4 1983009808
  %v6889 = vunpack.c.0.s8 %v6888
  %v6890 = vlaneseq
  %v6891 = vshrl.u32 %v6890, 7
  %v6892 = vsub.s32 %v6889, %v6891
  %v6893 = vrot.slane %v6879, %v6892
  %v6894 = vcombine.low %v6886, %v6893
  %v6895 = vcombine.low %v6724, %v6725
  %v6896 = vcombine.low %v6726, %v6727
  %v6898 = vunpack.c.l.s4 1983009808
  %v6899 = vunpack.c.0.s8 %v6898
  %v6900 = vlaneseq
  %v6901 = vshrl.u32 %v6900, 7
  %v6902 = vsub.s32 %v6899, %v6901
  %v6903 = vrot.slane %v6895, %v6902
  %v6905 = vunpack.c.l.s4 1983009808
  %v6906 = vunpack.c.0.s8 %v6905
  %v6907 = vlaneseq
  %v6908 = vshrl.u32 %v6907, 7
  %v6909 = vsub.s32 %v6906, %v6908
  %v6910 = vrot.slane %v6896, %v6909
  %v6911 = vcombine.low %v6903, %v6910
  %v6912 = vcombine.low %v6728, %v6729
  %v6913 = vcombine.low %v6730, %v6731
  %v6915 = vunpack.c.l.s4 1983009808
  %v6916 = vunpack.c.0.s8 %v6915
  %v6917 = vlaneseq
  %v6918 = vshrl.u32 %v6917, 7
  %v6919 = vsub.s32 %v6916, %v6918
  %v6920 = vrot.slane %v6912, %v6919
  %v6922 = vunpack.c.l.s4 1983009808
  %v6923 = vunpack.c.0.s8 %v6922
  %v6924 = vlaneseq
  %v6925 = vshrl.u32 %v6924, 7
  %v6926 = vsub.s32 %v6923, %v6925
  %v6927 = vrot.slane %v6913, %v6926
  %v6928 = vcombine.low %v6920, %v6927
  %v6929 = vcombine.low %v6732, %v6733
  %v6930 = vcombine.low %v6734, %v6735
  %v6932 = vunpack.c.l.s4 1983009808
  %v6933 = vunpack.c.0.s8 %v6932
  %v6934 = vlaneseq
  %v6935 = vshrl.u32 %v6934, 7
  %v6936 = vsub.s32 %v6933, %v6935
  %v6937 = vrot.slane %v6929, %v6936
  %v6939 = vunpack.c.l.s4 1983009808
  %v6940 = vunpack.c.0.s8 %v6939
  %v6941 = vlaneseq
  %v6942 = vshrl.u32 %v6941, 7
  %v6943 = vsub.s32 %v6940, %v6942
  %v6944 = vrot.slane %v6930, %v6943
  %v6945 = vcombine.low %v6937, %v6944
  %v6956 = vpack.c.bf16 %v6809, %v6792
  %v6957 = vpack.c.bf16 %v6843, %v6826
  %v6958 = vpack.c.bf16 %v6877, %v6860
  %v6959 = vpack.c.bf16 %v6911, %v6894
  %v6960 = vpack.c.bf16 %v6945, %v6928
  %v6961 = vld [vmem:[%s9] sm:$0xf]
  %v6962 = vld [vmem:[%s9 + $0x4] sm:$0xf]
  %v6963 = vld [vmem:[%s9 + $0x8] sm:$0xf]
  %v6964 = vld [vmem:[%s9 + $0xc] sm:$0xf]
  %v6965 = vld [vmem:[%s10] sm:$0x1]
  %v6967 = vlaneseq
  %v6968 = vshrl.u32 %v6967, 7
  %v6969 = vsub.s32 0, %v6968
  %v6970 = vrot.slane %v6965, %v6969
  %v6976 = vunpack.c.l.b16 %v6961
  %v6977 = vunpack.c.l.b16 %v6962
  %v6978 = vunpack.c.l.b16 %v6963
  %v6979 = vunpack.c.l.b16 %v6964
  %v6980 = vpack.c.b16 %v6977, %v6976
  %v6981 = vpack.c.b16 %v6979, %v6978
  %v6985 = vsel %vm515, %v6956, 0
  %v6988 = vsel %vm515, %v6957, 0
  %v6991 = vsel %vm515, %v6958, 0
  %v6994 = vsel %vm515, %v6959, 0
  %v6997 = vsel %vm515, %v6960, 0
  %6999 = vmatprep.subr.bf16.mxu0 0
  %7000 = vmatpush1.bf16.msra.mxu0 %v6980
  %7001 = vmatprep.subr.bf16.mxu0 0
  %7002 = vmatpush1.bf16.msra.mxu0 %v6981
  %7003 = vmatprep.subr.bf16.mxu0 0
  %7004 = vmatpush1.bf16.msra.mxu0 0
  %7005 = vmatprep.subr.bf16.mxu0 0
  %7006 = vmatpush1.bf16.msra.mxu0 0
  %7007 = vmatprep.subr.bf16.mxu0 0
  %7008 = vmatpush1.bf16.msra.mxu0 0
  %7009 = vmatprep.subr.bf16.mxu0 0
  %7010 = vmatpush1.bf16.msra.mxu0 0
  %7011 = vmatprep.subr.bf16.mxu0 0
  %7012 = vmatpush1.bf16.msra.mxu0 0
  %7013 = vmatprep.subr.bf16.mxu0 0
  %7014 = vmatpush1.bf16.msra.mxu0 0
  %7015 = vmatprep.subr.bf16.mxu0 0
  %7016 = vmatpush1.bf16.msra.mxu0 0
  %7017 = vmatprep.subr.bf16.mxu0 0
  %7018 = vmatpush1.bf16.msra.mxu0 0
  %7019 = vmatprep.subr.bf16.mxu0 0
  %7020 = vmatpush1.bf16.msra.mxu0 0
  %7021 = vmatprep.subr.bf16.mxu0 0
  %7022 = vmatpush1.bf16.msra.mxu0 0
  %7023 = vmatprep.subr.bf16.mxu0 0
  %7024 = vmatpush1.bf16.msra.mxu0 0
  %7025 = vmatprep.subr.bf16.mxu0 0
  %7026 = vmatpush1.bf16.msra.mxu0 0
  %7027 = vmatprep.subr.bf16.mxu0 0
  %7028 = vmatpush1.bf16.msra.mxu0 0
  %7029 = vmatprep.subr.bf16.mxu0 0
  %7030 = vmatpush1.bf16.msra.mxu0 0
  %7031 = vmatprep.mubr.bf16.mxu0 0
  %7032 = vmatmul.mubr.bf16.gmra.mrb[0].mxu0 %v6985
  %v7033 = vpop.f32.mrb[0].mxu0
  %v7034 = vadd.f32 %v6970, %v7033
  %v7035 = vpop.f32.mrb[0].mxu0
  %v7036 = vpop.f32.mrb[0].mxu0
  %v7037 = vadd.f32 %v6970, %v7036
  %v7038 = vpop.f32.mrb[0].mxu0
  %7039 = vmatprep.mubr.bf16.mxu0 0
  %7040 = vmatmul.mubr.bf16.gmra.mrb[0].mxu0 %v6988
  %v7041 = vpop.f32.mrb[0].mxu0
  %v7042 = vadd.f32 %v6970, %v7041
  %v7043 = vpop.f32.mrb[0].mxu0
  %v7044 = vpop.f32.mrb[0].mxu0
  %v7045 = vadd.f32 %v6970, %v7044
  %v7046 = vpop.f32.mrb[0].mxu0
  %7047 = vmatprep.mubr.bf16.mxu0 0
  %7048 = vmatmul.mubr.bf16.gmra.mrb[0].mxu0 %v6991
  %v7049 = vpop.f32.mrb[0].mxu0
  %v7050 = vadd.f32 %v6970, %v7049
  %v7051 = vpop.f32.mrb[0].mxu0
  %v7052 = vpop.f32.mrb[0].mxu0
  %v7053 = vadd.f32 %v6970, %v7052
  %v7054 = vpop.f32.mrb[0].mxu0
  %7055 = vmatprep.mubr.bf16.mxu0 0
  %7056 = vmatmul.mubr.bf16.gmra.mrb[0].mxu0 %v6994
  %v7057 = vpop.f32.mrb[0].mxu0
  %v7058 = vadd.f32 %v6970, %v7057
  %v7059 = vpop.f32.mrb[0].mxu0
  %v7060 = vpop.f32.mrb[0].mxu0
  %v7061 = vadd.f32 %v6970, %v7060
  %v7062 = vpop.f32.mrb[0].mxu0
  %7063 = vmatprep.mubr.bf16.mxu0 0
  %7064 = vmatmul.mubr.bf16.gmra.mrb[0].mxu0 %v6997
  %v7065 = vpop.f32.mrb[0].mxu0
  %v7066 = vadd.f32 %v6970, %v7065
  %v7067 = vpop.f32.mrb[0].mxu0
  %v7068 = vpop.f32.mrb[0].mxu0
  %v7069 = vadd.f32 %v6970, %v7068
  %v7070 = vpop.f32.mrb[0].mxu0
  %7071 = vdwg.mxu0
  %v7072 = vmul.f32 %v7034, %v7034
  %v7073 = vmul.f32 %v7037, %v7037
  %v7074 = vmul.f32 %v7042, %v7042
  %v7075 = vmul.f32 %v7045, %v7045
  %v7076 = vmul.f32 %v7050, %v7050
  %v7077 = vmul.f32 %v7053, %v7053
  %v7078 = vmul.f32 %v7058, %v7058
  %v7079 = vmul.f32 %v7061, %v7061
  %v7080 = vmul.f32 %v7066, %v7066
  %v7081 = vmul.f32 %v7069, %v7069
  %v7082 = vmul.f32 %v7034, %v7072
  %v7083 = vmul.f32 %v7037, %v7073
  %v7084 = vmul.f32 %v7042, %v7074
  %v7085 = vmul.f32 %v7045, %v7075
  %v7086 = vmul.f32 %v7050, %v7076
  %v7087 = vmul.f32 %v7053, %v7077
  %v7088 = vmul.f32 %v7058, %v7078
  %v7089 = vmul.f32 %v7061, %v7079
  %v7090 = vmul.f32 %v7066, %v7080
  %v7091 = vmul.f32 %v7069, %v7081
  %v7092 = vmul.f32 %v7082, 0.044715
  %v7093 = vmul.f32 %v7083, 0.044715
  %v7094 = vmul.f32 %v7084, 0.044715
  %v7095 = vmul.f32 %v7085, 0.044715
  %v7096 = vmul.f32 %v7086, 0.044715
  %v7097 = vmul.f32 %v7087, 0.044715
  %v7098 = vmul.f32 %v7088, 0.044715
  %v7099 = vmul.f32 %v7089, 0.044715
  %v7100 = vmul.f32 %v7090, 0.044715
  %v7101 = vmul.f32 %v7091, 0.044715
  %v7102 = vadd.f32 %v7034, %v7092
  %v7103 = vadd.f32 %v7037, %v7093
  %v7104 = vadd.f32 %v7042, %v7094
  %v7105 = vadd.f32 %v7045, %v7095
  %v7106 = vadd.f32 %v7050, %v7096
  %v7107 = vadd.f32 %v7053, %v7097
  %v7108 = vadd.f32 %v7058, %v7098
  %v7109 = vadd.f32 %v7061, %v7099
  %v7110 = vadd.f32 %v7066, %v7100
  %v7111 = vadd.f32 %v7069, %v7101
  %v7112 = vmul.f32 %v7102, 0.7978846
  %v7113 = vmul.f32 %v7103, 0.7978846
  %v7114 = vmul.f32 %v7104, 0.7978846
  %v7115 = vmul.f32 %v7105, 0.7978846
  %v7116 = vmul.f32 %v7106, 0.7978846
  %v7117 = vmul.f32 %v7107, 0.7978846
  %v7118 = vmul.f32 %v7108, 0.7978846
  %v7119 = vmul.f32 %v7109, 0.7978846
  %v7120 = vmul.f32 %v7110, 0.7978846
  %v7121 = vmul.f32 %v7111, 0.7978846
  %v7122 = vtanh.pop %v7112
  %v7123 = vtanh.pop %v7113
  %v7124 = vtanh.pop %v7114
  %v7125 = vtanh.pop %v7115
  %v7126 = vtanh.pop %v7116
  %v7127 = vtanh.pop %v7117
  %v7128 = vtanh.pop %v7118
  %v7129 = vtanh.pop %v7119
  %v7130 = vtanh.pop %v7120
  %v7131 = vtanh.pop %v7121
  %v7132 = vadd.f32 %v7122, 1.0
  %v7133 = vadd.f32 %v7123, 1.0
  %v7134 = vadd.f32 %v7124, 1.0
  %v7135 = vadd.f32 %v7125, 1.0
  %v7136 = vadd.f32 %v7126, 1.0
  %v7137 = vadd.f32 %v7127, 1.0
  %v7138 = vadd.f32 %v7128, 1.0
  %v7139 = vadd.f32 %v7129, 1.0
  %v7140 = vadd.f32 %v7130, 1.0
  %v7141 = vadd.f32 %v7131, 1.0
  %v7142 = vmul.f32 %v7132, 0.5
  %v7143 = vmul.f32 %v7133, 0.5
  %v7144 = vmul.f32 %v7134, 0.5
  %v7145 = vmul.f32 %v7135, 0.5
  %v7146 = vmul.f32 %v7136, 0.5
  %v7147 = vmul.f32 %v7137, 0.5
  %v7148 = vmul.f32 %v7138, 0.5
  %v7149 = vmul.f32 %v7139, 0.5
  %v7150 = vmul.f32 %v7140, 0.5
  %v7151 = vmul.f32 %v7141, 0.5
  %v7152 = vmul.f32 %v7034, %v7142
  %v7153 = vmul.f32 %v7037, %v7143
  %v7154 = vmul.f32 %v7042, %v7144
  %v7155 = vmul.f32 %v7045, %v7145
  %v7156 = vmul.f32 %v7050, %v7146
  %v7157 = vmul.f32 %v7053, %v7147
  %v7158 = vmul.f32 %v7058, %v7148
  %v7159 = vmul.f32 %v7061, %v7149
  %v7160 = vmul.f32 %v7066, %v7150
  %v7161 = vmul.f32 %v7069, %v7151
  %v7162 = vpack.c.bf16 %v7153, %v7152
  %v7163 = vpack.c.bf16 %v7155, %v7154
  %v7164 = vpack.c.bf16 %v7157, %v7156
  %v7165 = vpack.c.bf16 %v7159, %v7158
  %v7166 = vpack.c.bf16 %v7161, %v7160
  %v7167 = vld [vmem:[%s11] sm:$0xf]
  %v7168 = vld [vmem:[%s11 + $0x4] sm:$0xf]
  %v7169 = vld [vmem:[%s11 + $0x8] sm:$0xf]
  %v7170 = vld [vmem:[%s11 + $0xc] sm:$0xf]
  %v7171 = vld [vmem:[%s12] sm:$0x1]
  %v7173 = vlaneseq
  %v7174 = vshrl.u32 %v7173, 7
  %v7175 = vsub.s32 0, %v7174
  %v7176 = vrot.slane %v7171, %v7175
  %v7182 = vunpack.c.l.b16 %v7167
  %v7183 = vunpack.c.l.b16 %v7168
  %v7184 = vunpack.c.l.b16 %v7169
  %v7185 = vunpack.c.l.b16 %v7170
  %v7186 = vpack.c.b16 %v7183, %v7182
  %v7187 = vpack.c.b16 %v7185, %v7184
  %v7191 = vsel %vm515, %v7162, 0
  %v7194 = vsel %vm515, %v7163, 0
  %v7197 = vsel %vm515, %v7164, 0
  %v7200 = vsel %vm515, %v7165, 0
  %v7203 = vsel %vm515, %v7166, 0
  %7205 = vmatprep.subr.bf16.mxu0 0
  %7206 = vmatpush1.bf16.msra.mxu0 %v7186
  %7207 = vmatprep.subr.bf16.mxu0 0
  %7208 = vmatpush1.bf16.msra.mxu0 %v7187
  %7209 = vmatprep.subr.bf16.mxu0 0
  %7210 = vmatpush1.bf16.msra.mxu0 0
  %7211 = vmatprep.subr.bf16.mxu0 0
  %7212 = vmatpush1.bf16.msra.mxu0 0
  %7213 = vmatprep.subr.bf16.mxu0 0
  %7214 = vmatpush1.bf16.msra.mxu0 0
  %7215 = vmatprep.subr.bf16.mxu0 0
  %7216 = vmatpush1.bf16.msra.mxu0 0
  %7217 = vmatprep.subr.bf16.mxu0 0
  %7218 = vmatpush1.bf16.msra.mxu0 0
  %7219 = vmatprep.subr.bf16.mxu0 0
  %7220 = vmatpush1.bf16.msra.mxu0 0
  %7221 = vmatprep.subr.bf16.mxu0 0
  %7222 = vmatpush1.bf16.msra.mxu0 0
  %7223 = vmatprep.subr.bf16.mxu0 0
  %7224 = vmatpush1.bf16.msra.mxu0 0
  %7225 = vmatprep.subr.bf16.mxu0 0
  %7226 = vmatpush1.bf16.msra.mxu0 0
  %7227 = vmatprep.subr.bf16.mxu0 0
  %7228 = vmatpush1.bf16.msra.mxu0 0
  %7229 = vmatprep.subr.bf16.mxu0 0
  %7230 = vmatpush1.bf16.msra.mxu0 0
  %7231 = vmatprep.subr.bf16.mxu0 0
  %7232 = vmatpush1.bf16.msra.mxu0 0
  %7233 = vmatprep.subr.bf16.mxu0 0
  %7234 = vmatpush1.bf16.msra.mxu0 0
  %7235 = vmatprep.subr.bf16.mxu0 0
  %7236 = vmatpush1.bf16.msra.mxu0 0
  %7237 = vmatprep.mubr.bf16.mxu0 0
  %7238 = vmatmul.mubr.bf16.gmra.mrb[0].mxu0 %v7191
  %v7239 = vpop.f32.mrb[0].mxu0
  %v7240 = vadd.f32 %v7176, %v7239
  %v7241 = vpop.f32.mrb[0].mxu0
  %v7242 = vpop.f32.mrb[0].mxu0
  %v7243 = vadd.f32 %v7176, %v7242
  %v7244 = vpop.f32.mrb[0].mxu0
  %7245 = vmatprep.mubr.bf16.mxu0 0
  %7246 = vmatmul.mubr.bf16.gmra.mrb[0].mxu0 %v7194
  %v7247 = vpop.f32.mrb[0].mxu0
  %v7248 = vadd.f32 %v7176, %v7247
  %v7249 = vpop.f32.mrb[0].mxu0
  %v7250 = vpop.f32.mrb[0].mxu0
  %v7251 = vadd.f32 %v7176, %v7250
  %v7252 = vpop.f32.mrb[0].mxu0
  %7253 = vmatprep.mubr.bf16.mxu0 0
  %7254 = vmatmul.mubr.bf16.gmra.mrb[0].mxu0 %v7197
  %v7255 = vpop.f32.mrb[0].mxu0
  %v7256 = vadd.f32 %v7176, %v7255
  %v7257 = vpop.f32.mrb[0].mxu0
  %v7258 = vpop.f32.mrb[0].mxu0
  %v7259 = vadd.f32 %v7176, %v7258
  %v7260 = vpop.f32.mrb[0].mxu0
  %7261 = vmatprep.mubr.bf16.mxu0 0
  %7262 = vmatmul.mubr.bf16.gmra.mrb[0].mxu0 %v7200
  %v7263 = vpop.f32.mrb[0].mxu0
  %v7264 = vadd.f32 %v7176, %v7263
  %v7265 = vpop.f32.mrb[0].mxu0
  %v7266 = vpop.f32.mrb[0].mxu0
  %v7267 = vadd.f32 %v7176, %v7266
  %v7268 = vpop.f32.mrb[0].mxu0
  %7269 = vmatprep.mubr.bf16.mxu0 0
  %7270 = vmatmul.mubr.bf16.gmra.mrb[0].mxu0 %v7203
  %v7271 = vpop.f32.mrb[0].mxu0
  %v7272 = vadd.f32 %v7176, %v7271
  %v7273 = vpop.f32.mrb[0].mxu0
  %v7274 = vpop.f32.mrb[0].mxu0
  %v7275 = vadd.f32 %v7176, %v7274
  %v7276 = vpop.f32.mrb[0].mxu0
  %7277 = vdwg.mxu0
  %v7288 = vcombine.high %v7240, %v7240
  %v7290 = vunpack.c.l.s4 1983009808
  %v7291 = vunpack.c.0.s8 %v7290
  %v7292 = vlaneseq
  %v7293 = vshrl.u32 %v7292, 7
  %v7294 = vsub.s32 %v7291, %v7293
  %v7295 = vrot.slane %v7240, %v7294
  %v7297 = vunpack.c.l.s4 1983009808
  %v7298 = vunpack.c.0.s8 %v7297
  %v7299 = vlaneseq
  %v7300 = vshrl.u32 %v7299, 7
  %v7301 = vsub.s32 %v7298, %v7300
  %v7302 = vrot.slane %v7288, %v7301
  %v7303 = vcombine.high %v7295, %v7295
  %v7304 = vcombine.high %v7302, %v7302
  %v7305 = vcombine.high %v7243, %v7243
  %v7307 = vunpack.c.l.s4 1983009808
  %v7308 = vunpack.c.0.s8 %v7307
  %v7309 = vlaneseq
  %v7310 = vshrl.u32 %v7309, 7
  %v7311 = vsub.s32 %v7308, %v7310
  %v7312 = vrot.slane %v7243, %v7311
  %v7314 = vunpack.c.l.s4 1983009808
  %v7315 = vunpack.c.0.s8 %v7314
  %v7316 = vlaneseq
  %v7317 = vshrl.u32 %v7316, 7
  %v7318 = vsub.s32 %v7315, %v7317
  %v7319 = vrot.slane %v7305, %v7318
  %v7320 = vcombine.high %v7312, %v7312
  %v7321 = vcombine.high %v7319, %v7319
  %v7322 = vcombine.high %v7248, %v7248
  %v7324 = vunpack.c.l.s4 1983009808
  %v7325 = vunpack.c.0.s8 %v7324
  %v7326 = vlaneseq
  %v7327 = vshrl.u32 %v7326, 7
  %v7328 = vsub.s32 %v7325, %v7327
  %v7329 = vrot.slane %v7248, %v7328
  %v7331 = vunpack.c.l.s4 1983009808
  %v7332 = vunpack.c.0.s8 %v7331
  %v7333 = vlaneseq
  %v7334 = vshrl.u32 %v7333, 7
  %v7335 = vsub.s32 %v7332, %v7334
  %v7336 = vrot.slane %v7322, %v7335
  %v7337 = vcombine.high %v7329, %v7329
  %v7338 = vcombine.high %v7336, %v7336
  %v7339 = vcombine.high %v7251, %v7251
  %v7341 = vunpack.c.l.s4 1983009808
  %v7342 = vunpack.c.0.s8 %v7341
  %v7343 = vlaneseq
  %v7344 = vshrl.u32 %v7343, 7
  %v7345 = vsub.s32 %v7342, %v7344
  %v7346 = vrot.slane %v7251, %v7345
  %v7348 = vunpack.c.l.s4 1983009808
  %v7349 = vunpack.c.0.s8 %v7348
  %v7350 = vlaneseq
  %v7351 = vshrl.u32 %v7350, 7
  %v7352 = vsub.s32 %v7349, %v7351
  %v7353 = vrot.slane %v7339, %v7352
  %v7354 = vcombine.high %v7346, %v7346
  %v7355 = vcombine.high %v7353, %v7353
  %v7356 = vcombine.high %v7256, %v7256
  %v7358 = vunpack.c.l.s4 1983009808
  %v7359 = vunpack.c.0.s8 %v7358
  %v7360 = vlaneseq
  %v7361 = vshrl.u32 %v7360, 7
  %v7362 = vsub.s32 %v7359, %v7361
  %v7363 = vrot.slane %v7256, %v7362
  %v7365 = vunpack.c.l.s4 1983009808
  %v7366 = vunpack.c.0.s8 %v7365
  %v7367 = vlaneseq
  %v7368 = vshrl.u32 %v7367, 7
  %v7369 = vsub.s32 %v7366, %v7368
  %v7370 = vrot.slane %v7356, %v7369
  %v7371 = vcombine.high %v7363, %v7363
  %v7372 = vcombine.high %v7370, %v7370
  %v7373 = vcombine.high %v7259, %v7259
  %v7375 = vunpack.c.l.s4 1983009808
  %v7376 = vunpack.c.0.s8 %v7375
  %v7377 = vlaneseq
  %v7378 = vshrl.u32 %v7377, 7
  %v7379 = vsub.s32 %v7376, %v7378
  %v7380 = vrot.slane %v7259, %v7379
  %v7382 = vunpack.c.l.s4 1983009808
  %v7383 = vunpack.c.0.s8 %v7382
  %v7384 = vlaneseq
  %v7385 = vshrl.u32 %v7384, 7
  %v7386 = vsub.s32 %v7383, %v7385
  %v7387 = vrot.slane %v7373, %v7386
  %v7388 = vcombine.high %v7380, %v7380
  %v7389 = vcombine.high %v7387, %v7387
  %v7390 = vcombine.high %v7264, %v7264
  %v7392 = vunpack.c.l.s4 1983009808
  %v7393 = vunpack.c.0.s8 %v7392
  %v7394 = vlaneseq
  %v7395 = vshrl.u32 %v7394, 7
  %v7396 = vsub.s32 %v7393, %v7395
  %v7397 = vrot.slane %v7264, %v7396
  %v7399 = vunpack.c.l.s4 1983009808
  %v7400 = vunpack.c.0.s8 %v7399
  %v7401 = vlaneseq
  %v7402 = vshrl.u32 %v7401, 7
  %v7403 = vsub.s32 %v7400, %v7402
  %v7404 = vrot.slane %v7390, %v7403
  %v7405 = vcombine.high %v7397, %v7397
  %v7406 = vcombine.high %v7404, %v7404
  %v7407 = vcombine.high %v7267, %v7267
  %v7409 = vunpack.c.l.s4 1983009808
  %v7410 = vunpack.c.0.s8 %v7409
  %v7411 = vlaneseq
  %v7412 = vshrl.u32 %v7411, 7
  %v7413 = vsub.s32 %v7410, %v7412
  %v7414 = vrot.slane %v7267, %v7413
  %v7416 = vunpack.c.l.s4 1983009808
  %v7417 = vunpack.c.0.s8 %v7416
  %v7418 = vlaneseq
  %v7419 = vshrl.u32 %v7418, 7
  %v7420 = vsub.s32 %v7417, %v7419
  %v7421 = vrot.slane %v7407, %v7420
  %v7422 = vcombine.high %v7414, %v7414
  %v7423 = vcombine.high %v7421, %v7421
  %v7424 = vcombine.high %v7272, %v7272
  %v7426 = vunpack.c.l.s4 1983009808
  %v7427 = vunpack.c.0.s8 %v7426
  %v7428 = vlaneseq
  %v7429 = vshrl.u32 %v7428, 7
  %v7430 = vsub.s32 %v7427, %v7429
  %v7431 = vrot.slane %v7272, %v7430
  %v7433 = vunpack.c.l.s4 1983009808
  %v7434 = vunpack.c.0.s8 %v7433
  %v7435 = vlaneseq
  %v7436 = vshrl.u32 %v7435, 7
  %v7437 = vsub.s32 %v7434, %v7436
  %v7438 = vrot.slane %v7424, %v7437
  %v7439 = vcombine.high %v7431, %v7431
  %v7440 = vcombine.high %v7438, %v7438
  %v7441 = vcombine.high %v7275, %v7275
  %v7443 = vunpack.c.l.s4 1983009808
  %v7444 = vunpack.c.0.s8 %v7443
  %v7445 = vlaneseq
  %v7446 = vshrl.u32 %v7445, 7
  %v7447 = vsub.s32 %v7444, %v7446
  %v7448 = vrot.slane %v7275, %v7447
  %v7450 = vunpack.c.l.s4 1983009808
  %v7451 = vunpack.c.0.s8 %v7450
  %v7452 = vlaneseq
  %v7453 = vshrl.u32 %v7452, 7
  %v7454 = vsub.s32 %v7451, %v7453
  %v7455 = vrot.slane %v7441, %v7454
  %v7456 = vcombine.high %v7448, %v7448
  %v7457 = vcombine.high %v7455, %v7455
  %v7498 = vadd.f32 %v5242, %v7295
  %v7499 = vadd.f32 %v5243, %v7303
  %v7500 = vadd.f32 %v5244, %v7302
  %v7501 = vadd.f32 %v5245, %v7304
  %v7502 = vadd.f32 %v5246, %v7312
  %v7503 = vadd.f32 %v5247, %v7320
  %v7504 = vadd.f32 %v5248, %v7319
  %v7505 = vadd.f32 %v5249, %v7321
  %v7506 = vadd.f32 %v5250, %v7329
  %v7507 = vadd.f32 %v5251, %v7337
  %v7508 = vadd.f32 %v5252, %v7336
  %v7509 = vadd.f32 %v5253, %v7338
  %v7510 = vadd.f32 %v5254, %v7346
  %v7511 = vadd.f32 %v5255, %v7354
  %v7512 = vadd.f32 %v5256, %v7353
  %v7513 = vadd.f32 %v5257, %v7355
  %v7514 = vadd.f32 %v5258, %v7363
  %v7515 = vadd.f32 %v5259, %v7371
  %v7516 = vadd.f32 %v5260, %v7370
  %v7517 = vadd.f32 %v5261, %v7372
  %v7518 = vadd.f32 %v5262, %v7380
  %v7519 = vadd.f32 %v5263, %v7388
  %v7520 = vadd.f32 %v5264, %v7387
  %v7521 = vadd.f32 %v5265, %v7389
  %v7522 = vadd.f32 %v5266, %v7397
  %v7523 = vadd.f32 %v5267, %v7405
  %v7524 = vadd.f32 %v5268, %v7404
  %v7525 = vadd.f32 %v5269, %v7406
  %v7526 = vadd.f32 %v5270, %v7414
  %v7527 = vadd.f32 %v5271, %v7422
  %v7528 = vadd.f32 %v5272, %v7421
  %v7529 = vadd.f32 %v5273, %v7423
  %v7530 = vadd.f32 %v5274, %v7431
  %v7531 = vadd.f32 %v5275, %v7439
  %v7532 = vadd.f32 %v5276, %v7438
  %v7533 = vadd.f32 %v5277, %v7440
  %v7534 = vadd.f32 %v5278, %v7448
  %v7535 = vadd.f32 %v5279, %v7456
  %v7536 = vadd.f32 %v5280, %v7455
  %v7537 = vadd.f32 %v5281, %v7457
  %v7538 = vld [vmem:[%s13] sm:$0x1]
  %v7539 = vld [vmem:[%s14] sm:$0x1]
  %v7580 = vcombine.low %v7498, %v7499
  %v7581 = vcombine.low %v7500, %v7501
  %v7583 = vunpack.c.l.s4 1983009808
  %v7584 = vunpack.c.0.s8 %v7583
  %v7585 = vlaneseq
  %v7586 = vshrl.u32 %v7585, 7
  %v7587 = vsub.s32 %v7584, %v7586
  %v7588 = vrot.slane %v7580, %v7587
  %v7590 = vunpack.c.l.s4 1983009808
  %v7591 = vunpack.c.0.s8 %v7590
  %v7592 = vlaneseq
  %v7593 = vshrl.u32 %v7592, 7
  %v7594 = vsub.s32 %v7591, %v7593
  %v7595 = vrot.slane %v7581, %v7594
  %v7596 = vcombine.low %v7588, %v7595
  %v7597 = vcombine.low %v7502, %v7503
  %v7598 = vcombine.low %v7504, %v7505
  %v7600 = vunpack.c.l.s4 1983009808
  %v7601 = vunpack.c.0.s8 %v7600
  %v7602 = vlaneseq
  %v7603 = vshrl.u32 %v7602, 7
  %v7604 = vsub.s32 %v7601, %v7603
  %v7605 = vrot.slane %v7597, %v7604
  %v7607 = vunpack.c.l.s4 1983009808
  %v7608 = vunpack.c.0.s8 %v7607
  %v7609 = vlaneseq
  %v7610 = vshrl.u32 %v7609, 7
  %v7611 = vsub.s32 %v7608, %v7610
  %v7612 = vrot.slane %v7598, %v7611
  %v7613 = vcombine.low %v7605, %v7612
  %v7614 = vcombine.low %v7506, %v7507
  %v7615 = vcombine.low %v7508, %v7509
  %v7617 = vunpack.c.l.s4 1983009808
  %v7618 = vunpack.c.0.s8 %v7617
  %v7619 = vlaneseq
  %v7620 = vshrl.u32 %v7619, 7
  %v7621 = vsub.s32 %v7618, %v7620
  %v7622 = vrot.slane %v7614, %v7621
  %v7624 = vunpack.c.l.s4 1983009808
  %v7625 = vunpack.c.0.s8 %v7624
  %v7626 = vlaneseq
  %v7627 = vshrl.u32 %v7626, 7
  %v7628 = vsub.s32 %v7625, %v7627
  %v7629 = vrot.slane %v7615, %v7628
  %v7630 = vcombine.low %v7622, %v7629
  %v7631 = vcombine.low %v7510, %v7511
  %v7632 = vcombine.low %v7512, %v7513
  %v7634 = vunpack.c.l.s4 1983009808
  %v7635 = vunpack.c.0.s8 %v7634
  %v7636 = vlaneseq
  %v7637 = vshrl.u32 %v7636, 7
  %v7638 = vsub.s32 %v7635, %v7637
  %v7639 = vrot.slane %v7631, %v7638
  %v7641 = vunpack.c.l.s4 1983009808
  %v7642 = vunpack.c.0.s8 %v7641
  %v7643 = vlaneseq
  %v7644 = vshrl.u32 %v7643, 7
  %v7645 = vsub.s32 %v7642, %v7644
  %v7646 = vrot.slane %v7632, %v7645
  %v7647 = vcombine.low %v7639, %v7646
  %v7648 = vcombine.low %v7514, %v7515
  %v7649 = vcombine.low %v7516, %v7517
  %v7651 = vunpack.c.l.s4 1983009808
  %v7652 = vunpack.c.0.s8 %v7651
  %v7653 = vlaneseq
  %v7654 = vshrl.u32 %v7653, 7
  %v7655 = vsub.s32 %v7652, %v7654
  %v7656 = vrot.slane %v7648, %v7655
  %v7658 = vunpack.c.l.s4 1983009808
  %v7659 = vunpack.c.0.s8 %v7658
  %v7660 = vlaneseq
  %v7661 = vshrl.u32 %v7660, 7
  %v7662 = vsub.s32 %v7659, %v7661
  %v7663 = vrot.slane %v7649, %v7662
  %v7664 = vcombine.low %v7656, %v7663
  %v7665 = vcombine.low %v7518, %v7519
  %v7666 = vcombine.low %v7520, %v7521
  %v7668 = vunpack.c.l.s4 1983009808
  %v7669 = vunpack.c.0.s8 %v7668
  %v7670 = vlaneseq
  %v7671 = vshrl.u32 %v7670, 7
  %v7672 = vsub.s32 %v7669, %v7671
  %v7673 = vrot.slane %v7665, %v7672
  %v7675 = vunpack.c.l.s4 1983009808
  %v7676 = vunpack.c.0.s8 %v7675
  %v7677 = vlaneseq
  %v7678 = vshrl.u32 %v7677, 7
  %v7679 = vsub.s32 %v7676, %v7678
  %v7680 = vrot.slane %v7666, %v7679
  %v7681 = vcombine.low %v7673, %v7680
  %v7682 = vcombine.low %v7522, %v7523
  %v7683 = vcombine.low %v7524, %v7525
  %v7685 = vunpack.c.l.s4 1983009808
  %v7686 = vunpack.c.0.s8 %v7685
  %v7687 = vlaneseq
  %v7688 = vshrl.u32 %v7687, 7
  %v7689 = vsub.s32 %v7686, %v7688
  %v7690 = vrot.slane %v7682, %v7689
  %v7692 = vunpack.c.l.s4 1983009808
  %v7693 = vunpack.c.0.s8 %v7692
  %v7694 = vlaneseq
  %v7695 = vshrl.u32 %v7694, 7
  %v7696 = vsub.s32 %v7693, %v7695
  %v7697 = vrot.slane %v7683, %v7696
  %v7698 = vcombine.low %v7690, %v7697
  %v7699 = vcombine.low %v7526, %v7527
  %v7700 = vcombine.low %v7528, %v7529
  %v7702 = vunpack.c.l.s4 1983009808
  %v7703 = vunpack.c.0.s8 %v7702
  %v7704 = vlaneseq
  %v7705 = vshrl.u32 %v7704, 7
  %v7706 = vsub.s32 %v7703, %v7705
  %v7707 = vrot.slane %v7699, %v7706
  %v7709 = vunpack.c.l.s4 1983009808
  %v7710 = vunpack.c.0.s8 %v7709
  %v7711 = vlaneseq
  %v7712 = vshrl.u32 %v7711, 7
  %v7713 = vsub.s32 %v7710, %v7712
  %v7714 = vrot.slane %v7700, %v7713
  %v7715 = vcombine.low %v7707, %v7714
  %v7716 = vcombine.low %v7530, %v7531
  %v7717 = vcombine.low %v7532, %v7533
  %v7719 = vunpack.c.l.s4 1983009808
  %v7720 = vunpack.c.0.s8 %v7719
  %v7721 = vlaneseq
  %v7722 = vshrl.u32 %v7721, 7
  %v7723 = vsub.s32 %v7720, %v7722
  %v7724 = vrot.slane %v7716, %v7723
  %v7726 = vunpack.c.l.s4 1983009808
  %v7727 = vunpack.c.0.s8 %v7726
  %v7728 = vlaneseq
  %v7729 = vshrl.u32 %v7728, 7
  %v7730 = vsub.s32 %v7727, %v7729
  %v7731 = vrot.slane %v7717, %v7730
  %v7732 = vcombine.low %v7724, %v7731
  %v7733 = vcombine.low %v7534, %v7535
  %v7734 = vcombine.low %v7536, %v7537
  %v7736 = vunpack.c.l.s4 1983009808
  %v7737 = vunpack.c.0.s8 %v7736
  %v7738 = vlaneseq
  %v7739 = vshrl.u32 %v7738, 7
  %v7740 = vsub.s32 %v7737, %v7739
  %v7741 = vrot.slane %v7733, %v7740
  %v7743 = vunpack.c.l.s4 1983009808
  %v7744 = vunpack.c.0.s8 %v7743
  %v7745 = vlaneseq
  %v7746 = vshrl.u32 %v7745, 7
  %v7747 = vsub.s32 %v7744, %v7746
  %v7748 = vrot.slane %v7734, %v7747
  %v7749 = vcombine.low %v7741, %v7748
  %v7760 = vsel %vm515, %v7596, 0.0
  %7761 = vadd.xlane.f32.xlu0 %v7760
  %v7762 = vpop.xlane.xlu0 %7761
  %v7763 = vsel %vm515, %v7613, 0.0
  %7764 = vadd.xlane.f32.xlu0 %v7763
  %v7765 = vpop.xlane.xlu0 %7764
  %v7766 = vsel %vm515, %v7630, 0.0
  %7767 = vadd.xlane.f32.xlu0 %v7766
  %v7768 = vpop.xlane.xlu0 %7767
  %v7769 = vsel %vm515, %v7647, 0.0
  %7770 = vadd.xlane.f32.xlu0 %v7769
  %v7771 = vpop.xlane.xlu0 %7770
  %v7772 = vsel %vm515, %v7664, 0.0
  %7773 = vadd.xlane.f32.xlu0 %v7772
  %v7774 = vpop.xlane.xlu0 %7773
  %v7775 = vsel %vm515, %v7681, 0.0
  %7776 = vadd.xlane.f32.xlu0 %v7775
  %v7777 = vpop.xlane.xlu0 %7776
  %v7778 = vsel %vm515, %v7698, 0.0
  %7779 = vadd.xlane.f32.xlu0 %v7778
  %v7780 = vpop.xlane.xlu0 %7779
  %v7781 = vsel %vm515, %v7715, 0.0
  %7782 = vadd.xlane.f32.xlu0 %v7781
  %v7783 = vpop.xlane.xlu0 %7782
  %v7784 = vsel %vm515, %v7732, 0.0
  %7785 = vadd.xlane.f32.xlu0 %v7784
  %v7786 = vpop.xlane.xlu0 %7785
  %v7787 = vsel %vm515, %v7749, 0.0
  %7788 = vadd.xlane.f32.xlu0 %v7787
  %v7789 = vpop.xlane.xlu0 %7788
  %v7790 = vmul.f32 %v7762, %v546
  %v7791 = vmul.f32 %v7765, %v546
  %v7792 = vmul.f32 %v7768, %v546
  %v7793 = vmul.f32 %v7771, %v546
  %v7794 = vmul.f32 %v7774, %v546
  %v7795 = vmul.f32 %v7777, %v546
  %v7796 = vmul.f32 %v7780, %v546
  %v7797 = vmul.f32 %v7783, %v546
  %v7798 = vmul.f32 %v7786, %v546
  %v7799 = vmul.f32 %v7789, %v546
  %v7811 = vunpack.c.l.s4 269488144
  %v7812 = vunpack.c.0.s8 %v7811
  %v7813 = vlaneseq
  %v7814 = vshrl.u32 %v7813, 7
  %v7815 = vsub.s32 %v7812, %v7814
  %v7816 = vrot.slane %v7790, %v7815
  %v7818 = vunpack.c.l.s4 842150450
  %v7819 = vunpack.c.0.s8 %v7818
  %v7820 = vlaneseq
  %v7821 = vshrl.u32 %v7820, 7
  %v7822 = vsub.s32 %v7819, %v7821
  %v7823 = vrot.slane %v7790, %v7822
  %v7825 = vunpack.c.l.s4 1414812756
  %v7826 = vunpack.c.0.s8 %v7825
  %v7827 = vlaneseq
  %v7828 = vshrl.u32 %v7827, 7
  %v7829 = vsub.s32 %v7826, %v7828
  %v7830 = vrot.slane %v7790, %v7829
  %v7832 = vunpack.c.l.s4 1987475062
  %v7833 = vunpack.c.0.s8 %v7832
  %v7834 = vlaneseq
  %v7835 = vshrl.u32 %v7834, 7
  %v7836 = vsub.s32 %v7833, %v7835
  %v7837 = vrot.slane %v7790, %v7836
  %v7839 = vunpack.c.l.s4 269488144
  %v7840 = vunpack.c.0.s8 %v7839
  %v7841 = vlaneseq
  %v7842 = vshrl.u32 %v7841, 7
  %v7843 = vsub.s32 %v7840, %v7842
  %v7844 = vrot.slane %v7791, %v7843
  %v7846 = vunpack.c.l.s4 842150450
  %v7847 = vunpack.c.0.s8 %v7846
  %v7848 = vlaneseq
  %v7849 = vshrl.u32 %v7848, 7
  %v7850 = vsub.s32 %v7847, %v7849
  %v7851 = vrot.slane %v7791, %v7850
  %v7853 = vunpack.c.l.s4 1414812756
  %v7854 = vunpack.c.0.s8 %v7853
  %v7855 = vlaneseq
  %v7856 = vshrl.u32 %v7855, 7
  %v7857 = vsub.s32 %v7854, %v7856
  %v7858 = vrot.slane %v7791, %v7857
  %v7860 = vunpack.c.l.s4 1987475062
  %v7861 = vunpack.c.0.s8 %v7860
  %v7862 = vlaneseq
  %v7863 = vshrl.u32 %v7862, 7
  %v7864 = vsub.s32 %v7861, %v7863
  %v7865 = vrot.slane %v7791, %v7864
  %v7867 = vunpack.c.l.s4 269488144
  %v7868 = vunpack.c.0.s8 %v7867
  %v7869 = vlaneseq
  %v7870 = vshrl.u32 %v7869, 7
  %v7871 = vsub.s32 %v7868, %v7870
  %v7872 = vrot.slane %v7792, %v7871
  %v7874 = vunpack.c.l.s4 842150450
  %v7875 = vunpack.c.0.s8 %v7874
  %v7876 = vlaneseq
  %v7877 = vshrl.u32 %v7876, 7
  %v7878 = vsub.s32 %v7875, %v7877
  %v7879 = vrot.slane %v7792, %v7878
  %v7881 = vunpack.c.l.s4 1414812756
  %v7882 = vunpack.c.0.s8 %v7881
  %v7883 = vlaneseq
  %v7884 = vshrl.u32 %v7883, 7
  %v7885 = vsub.s32 %v7882, %v7884
  %v7886 = vrot.slane %v7792, %v7885
  %v7888 = vunpack.c.l.s4 1987475062
  %v7889 = vunpack.c.0.s8 %v7888
  %v7890 = vlaneseq
  %v7891 = vshrl.u32 %v7890, 7
  %v7892 = vsub.s32 %v7889, %v7891
  %v7893 = vrot.slane %v7792, %v7892
  %v7895 = vunpack.c.l.s4 269488144
  %v7896 = vunpack.c.0.s8 %v7895
  %v7897 = vlaneseq
  %v7898 = vshrl.u32 %v7897, 7
  %v7899 = vsub.s32 %v7896, %v7898
  %v7900 = vrot.slane %v7793, %v7899
  %v7902 = vunpack.c.l.s4 842150450
  %v7903 = vunpack.c.0.s8 %v7902
  %v7904 = vlaneseq
  %v7905 = vshrl.u32 %v7904, 7
  %v7906 = vsub.s32 %v7903, %v7905
  %v7907 = vrot.slane %v7793, %v7906
  %v7909 = vunpack.c.l.s4 1414812756
  %v7910 = vunpack.c.0.s8 %v7909
  %v7911 = vlaneseq
  %v7912 = vshrl.u32 %v7911, 7
  %v7913 = vsub.s32 %v7910, %v7912
  %v7914 = vrot.slane %v7793, %v7913
  %v7916 = vunpack.c.l.s4 1987475062
  %v7917 = vunpack.c.0.s8 %v7916
  %v7918 = vlaneseq
  %v7919 = vshrl.u32 %v7918, 7
  %v7920 = vsub.s32 %v7917, %v7919
  %v7921 = vrot.slane %v7793, %v7920
  %v7923 = vunpack.c.l.s4 269488144
  %v7924 = vunpack.c.0.s8 %v7923
  %v7925 = vlaneseq
  %v7926 = vshrl.u32 %v7925, 7
  %v7927 = vsub.s32 %v7924, %v7926
  %v7928 = vrot.slane %v7794, %v7927
  %v7930 = vunpack.c.l.s4 842150450
  %v7931 = vunpack.c.0.s8 %v7930
  %v7932 = vlaneseq
  %v7933 = vshrl.u32 %v7932, 7
  %v7934 = vsub.s32 %v7931, %v7933
  %v7935 = vrot.slane %v7794, %v7934
  %v7937 = vunpack.c.l.s4 1414812756
  %v7938 = vunpack.c.0.s8 %v7937
  %v7939 = vlaneseq
  %v7940 = vshrl.u32 %v7939, 7
  %v7941 = vsub.s32 %v7938, %v7940
  %v7942 = vrot.slane %v7794, %v7941
  %v7944 = vunpack.c.l.s4 1987475062
  %v7945 = vunpack.c.0.s8 %v7944
  %v7946 = vlaneseq
  %v7947 = vshrl.u32 %v7946, 7
  %v7948 = vsub.s32 %v7945, %v7947
  %v7949 = vrot.slane %v7794, %v7948
  %v7951 = vunpack.c.l.s4 269488144
  %v7952 = vunpack.c.0.s8 %v7951
  %v7953 = vlaneseq
  %v7954 = vshrl.u32 %v7953, 7
  %v7955 = vsub.s32 %v7952, %v7954
  %v7956 = vrot.slane %v7795, %v7955
  %v7958 = vunpack.c.l.s4 842150450
  %v7959 = vunpack.c.0.s8 %v7958
  %v7960 = vlaneseq
  %v7961 = vshrl.u32 %v7960, 7
  %v7962 = vsub.s32 %v7959, %v7961
  %v7963 = vrot.slane %v7795, %v7962
  %v7965 = vunpack.c.l.s4 1414812756
  %v7966 = vunpack.c.0.s8 %v7965
  %v7967 = vlaneseq
  %v7968 = vshrl.u32 %v7967, 7
  %v7969 = vsub.s32 %v7966, %v7968
  %v7970 = vrot.slane %v7795, %v7969
  %v7972 = vunpack.c.l.s4 1987475062
  %v7973 = vunpack.c.0.s8 %v7972
  %v7974 = vlaneseq
  %v7975 = vshrl.u32 %v7974, 7
  %v7976 = vsub.s32 %v7973, %v7975
  %v7977 = vrot.slane %v7795, %v7976
  %v7979 = vunpack.c.l.s4 269488144
  %v7980 = vunpack.c.0.s8 %v7979
  %v7981 = vlaneseq
  %v7982 = vshrl.u32 %v7981, 7
  %v7983 = vsub.s32 %v7980, %v7982
  %v7984 = vrot.slane %v7796, %v7983
  %v7986 = vunpack.c.l.s4 842150450
  %v7987 = vunpack.c.0.s8 %v7986
  %v7988 = vlaneseq
  %v7989 = vshrl.u32 %v7988, 7
  %v7990 = vsub.s32 %v7987, %v7989
  %v7991 = vrot.slane %v7796, %v7990
  %v7993 = vunpack.c.l.s4 1414812756
  %v7994 = vunpack.c.0.s8 %v7993
  %v7995 = vlaneseq
  %v7996 = vshrl.u32 %v7995, 7
  %v7997 = vsub.s32 %v7994, %v7996
  %v7998 = vrot.slane %v7796, %v7997
  %v8000 = vunpack.c.l.s4 1987475062
  %v8001 = vunpack.c.0.s8 %v8000
  %v8002 = vlaneseq
  %v8003 = vshrl.u32 %v8002, 7
  %v8004 = vsub.s32 %v8001, %v8003
  %v8005 = vrot.slane %v7796, %v8004
  %v8007 = vunpack.c.l.s4 269488144
  %v8008 = vunpack.c.0.s8 %v8007
  %v8009 = vlaneseq
  %v8010 = vshrl.u32 %v8009, 7
  %v8011 = vsub.s32 %v8008, %v8010
  %v8012 = vrot.slane %v7797, %v8011
  %v8014 = vunpack.c.l.s4 842150450
  %v8015 = vunpack.c.0.s8 %v8014
  %v8016 = vlaneseq
  %v8017 = vshrl.u32 %v8016, 7
  %v8018 = vsub.s32 %v8015, %v8017
  %v8019 = vrot.slane %v7797, %v8018
  %v8021 = vunpack.c.l.s4 1414812756
  %v8022 = vunpack.c.0.s8 %v8021
  %v8023 = vlaneseq
  %v8024 = vshrl.u32 %v8023, 7
  %v8025 = vsub.s32 %v8022, %v8024
  %v8026 = vrot.slane %v7797, %v8025
  %v8028 = vunpack.c.l.s4 1987475062
  %v8029 = vunpack.c.0.s8 %v8028
  %v8030 = vlaneseq
  %v8031 = vshrl.u32 %v8030, 7
  %v8032 = vsub.s32 %v8029, %v8031
  %v8033 = vrot.slane %v7797, %v8032
  %v8035 = vunpack.c.l.s4 269488144
  %v8036 = vunpack.c.0.s8 %v8035
  %v8037 = vlaneseq
  %v8038 = vshrl.u32 %v8037, 7
  %v8039 = vsub.s32 %v8036, %v8038
  %v8040 = vrot.slane %v7798, %v8039
  %v8042 = vunpack.c.l.s4 842150450
  %v8043 = vunpack.c.0.s8 %v8042
  %v8044 = vlaneseq
  %v8045 = vshrl.u32 %v8044, 7
  %v8046 = vsub.s32 %v8043, %v8045
  %v8047 = vrot.slane %v7798, %v8046
  %v8049 = vunpack.c.l.s4 1414812756
  %v8050 = vunpack.c.0.s8 %v8049
  %v8051 = vlaneseq
  %v8052 = vshrl.u32 %v8051, 7
  %v8053 = vsub.s32 %v8050, %v8052
  %v8054 = vrot.slane %v7798, %v8053
  %v8056 = vunpack.c.l.s4 1987475062
  %v8057 = vunpack.c.0.s8 %v8056
  %v8058 = vlaneseq
  %v8059 = vshrl.u32 %v8058, 7
  %v8060 = vsub.s32 %v8057, %v8059
  %v8061 = vrot.slane %v7798, %v8060
  %v8063 = vunpack.c.l.s4 269488144
  %v8064 = vunpack.c.0.s8 %v8063
  %v8065 = vlaneseq
  %v8066 = vshrl.u32 %v8065, 7
  %v8067 = vsub.s32 %v8064, %v8066
  %v8068 = vrot.slane %v7799, %v8067
  %v8070 = vunpack.c.l.s4 842150450
  %v8071 = vunpack.c.0.s8 %v8070
  %v8072 = vlaneseq
  %v8073 = vshrl.u32 %v8072, 7
  %v8074 = vsub.s32 %v8071, %v8073
  %v8075 = vrot.slane %v7799, %v8074
  %v8077 = vunpack.c.l.s4 1414812756
  %v8078 = vunpack.c.0.s8 %v8077
  %v8079 = vlaneseq
  %v8080 = vshrl.u32 %v8079, 7
  %v8081 = vsub.s32 %v8078, %v8080
  %v8082 = vrot.slane %v7799, %v8081
  %v8084 = vunpack.c.l.s4 1987475062
  %v8085 = vunpack.c.0.s8 %v8084
  %v8086 = vlaneseq
  %v8087 = vshrl.u32 %v8086, 7
  %v8088 = vsub.s32 %v8085, %v8087
  %v8089 = vrot.slane %v7799, %v8088
  %v8130 = vsub.f32 %v7498, %v7816
  %v8131 = vsub.f32 %v7499, %v7823
  %v8132 = vsub.f32 %v7500, %v7830
  %v8133 = vsub.f32 %v7501, %v7837
  %v8134 = vsub.f32 %v7502, %v7844
  %v8135 = vsub.f32 %v7503, %v7851
  %v8136 = vsub.f32 %v7504, %v7858
  %v8137 = vsub.f32 %v7505, %v7865
  %v8138 = vsub.f32 %v7506, %v7872
  %v8139 = vsub.f32 %v7507, %v7879
  %v8140 = vsub.f32 %v7508, %v7886
  %v8141 = vsub.f32 %v7509, %v7893
  %v8142 = vsub.f32 %v7510, %v7900
  %v8143 = vsub.f32 %v7511, %v7907
  %v8144 = vsub.f32 %v7512, %v7914
  %v8145 = vsub.f32 %v7513, %v7921
  %v8146 = vsub.f32 %v7514, %v7928
  %v8147 = vsub.f32 %v7515, %v7935
  %v8148 = vsub.f32 %v7516, %v7942
  %v8149 = vsub.f32 %v7517, %v7949
  %v8150 = vsub.f32 %v7518, %v7956
  %v8151 = vsub.f32 %v7519, %v7963
  %v8152 = vsub.f32 %v7520, %v7970
  %v8153 = vsub.f32 %v7521, %v7977
  %v8154 = vsub.f32 %v7522, %v7984
  %v8155 = vsub.f32 %v7523, %v7991
  %v8156 = vsub.f32 %v7524, %v7998
  %v8157 = vsub.f32 %v7525, %v8005
  %v8158 = vsub.f32 %v7526, %v8012
  %v8159 = vsub.f32 %v7527, %v8019
  %v8160 = vsub.f32 %v7528, %v8026
  %v8161 = vsub.f32 %v7529, %v8033
  %v8162 = vsub.f32 %v7530, %v8040
  %v8163 = vsub.f32 %v7531, %v8047
  %v8164 = vsub.f32 %v7532, %v8054
  %v8165 = vsub.f32 %v7533, %v8061
  %v8166 = vsub.f32 %v7534, %v8068
  %v8167 = vsub.f32 %v7535, %v8075
  %v8168 = vsub.f32 %v7536, %v8082
  %v8169 = vsub.f32 %v7537, %v8089
  %v8170 = vmul.f32 %v8130, %v8130
  %v8171 = vmul.f32 %v8131, %v8131
  %v8172 = vmul.f32 %v8132, %v8132
  %v8173 = vmul.f32 %v8133, %v8133
  %v8174 = vmul.f32 %v8134, %v8134
  %v8175 = vmul.f32 %v8135, %v8135
  %v8176 = vmul.f32 %v8136, %v8136
  %v8177 = vmul.f32 %v8137, %v8137
  %v8178 = vmul.f32 %v8138, %v8138
  %v8179 = vmul.f32 %v8139, %v8139
  %v8180 = vmul.f32 %v8140, %v8140
  %v8181 = vmul.f32 %v8141, %v8141
  %v8182 = vmul.f32 %v8142, %v8142
  %v8183 = vmul.f32 %v8143, %v8143
  %v8184 = vmul.f32 %v8144, %v8144
  %v8185 = vmul.f32 %v8145, %v8145
  %v8186 = vmul.f32 %v8146, %v8146
  %v8187 = vmul.f32 %v8147, %v8147
  %v8188 = vmul.f32 %v8148, %v8148
  %v8189 = vmul.f32 %v8149, %v8149
  %v8190 = vmul.f32 %v8150, %v8150
  %v8191 = vmul.f32 %v8151, %v8151
  %v8192 = vmul.f32 %v8152, %v8152
  %v8193 = vmul.f32 %v8153, %v8153
  %v8194 = vmul.f32 %v8154, %v8154
  %v8195 = vmul.f32 %v8155, %v8155
  %v8196 = vmul.f32 %v8156, %v8156
  %v8197 = vmul.f32 %v8157, %v8157
  %v8198 = vmul.f32 %v8158, %v8158
  %v8199 = vmul.f32 %v8159, %v8159
  %v8200 = vmul.f32 %v8160, %v8160
  %v8201 = vmul.f32 %v8161, %v8161
  %v8202 = vmul.f32 %v8162, %v8162
  %v8203 = vmul.f32 %v8163, %v8163
  %v8204 = vmul.f32 %v8164, %v8164
  %v8205 = vmul.f32 %v8165, %v8165
  %v8206 = vmul.f32 %v8166, %v8166
  %v8207 = vmul.f32 %v8167, %v8167
  %v8208 = vmul.f32 %v8168, %v8168
  %v8209 = vmul.f32 %v8169, %v8169
  %v8250 = vcombine.low %v8170, %v8171
  %v8251 = vcombine.low %v8172, %v8173
  %v8253 = vunpack.c.l.s4 1983009808
  %v8254 = vunpack.c.0.s8 %v8253
  %v8255 = vlaneseq
  %v8256 = vshrl.u32 %v8255, 7
  %v8257 = vsub.s32 %v8254, %v8256
  %v8258 = vrot.slane %v8250, %v8257
  %v8260 = vunpack.c.l.s4 1983009808
  %v8261 = vunpack.c.0.s8 %v8260
  %v8262 = vlaneseq
  %v8263 = vshrl.u32 %v8262, 7
  %v8264 = vsub.s32 %v8261, %v8263
  %v8265 = vrot.slane %v8251, %v8264
  %v8266 = vcombine.low %v8258, %v8265
  %v8267 = vcombine.low %v8174, %v8175
  %v8268 = vcombine.low %v8176, %v8177
  %v8270 = vunpack.c.l.s4 1983009808
  %v8271 = vunpack.c.0.s8 %v8270
  %v8272 = vlaneseq
  %v8273 = vshrl.u32 %v8272, 7
  %v8274 = vsub.s32 %v8271, %v8273
  %v8275 = vrot.slane %v8267, %v8274
  %v8277 = vunpack.c.l.s4 1983009808
  %v8278 = vunpack.c.0.s8 %v8277
  %v8279 = vlaneseq
  %v8280 = vshrl.u32 %v8279, 7
  %v8281 = vsub.s32 %v8278, %v8280
  %v8282 = vrot.slane %v8268, %v8281
  %v8283 = vcombine.low %v8275, %v8282
  %v8284 = vcombine.low %v8178, %v8179
  %v8285 = vcombine.low %v8180, %v8181
  %v8287 = vunpack.c.l.s4 1983009808
  %v8288 = vunpack.c.0.s8 %v8287
  %v8289 = vlaneseq
  %v8290 = vshrl.u32 %v8289, 7
  %v8291 = vsub.s32 %v8288, %v8290
  %v8292 = vrot.slane %v8284, %v8291
  %v8294 = vunpack.c.l.s4 1983009808
  %v8295 = vunpack.c.0.s8 %v8294
  %v8296 = vlaneseq
  %v8297 = vshrl.u32 %v8296, 7
  %v8298 = vsub.s32 %v8295, %v8297
  %v8299 = vrot.slane %v8285, %v8298
  %v8300 = vcombine.low %v8292, %v8299
  %v8301 = vcombine.low %v8182, %v8183
  %v8302 = vcombine.low %v8184, %v8185
  %v8304 = vunpack.c.l.s4 1983009808
  %v8305 = vunpack.c.0.s8 %v8304
  %v8306 = vlaneseq
  %v8307 = vshrl.u32 %v8306, 7
  %v8308 = vsub.s32 %v8305, %v8307
  %v8309 = vrot.slane %v8301, %v8308
  %v8311 = vunpack.c.l.s4 1983009808
  %v8312 = vunpack.c.0.s8 %v8311
  %v8313 = vlaneseq
  %v8314 = vshrl.u32 %v8313, 7
  %v8315 = vsub.s32 %v8312, %v8314
  %v8316 = vrot.slane %v8302, %v8315
  %v8317 = vcombine.low %v8309, %v8316
  %v8318 = vcombine.low %v8186, %v8187
  %v8319 = vcombine.low %v8188, %v8189
  %v8321 = vunpack.c.l.s4 1983009808
  %v8322 = vunpack.c.0.s8 %v8321
  %v8323 = vlaneseq
  %v8324 = vshrl.u32 %v8323, 7
  %v8325 = vsub.s32 %v8322, %v8324
  %v8326 = vrot.slane %v8318, %v8325
  %v8328 = vunpack.c.l.s4 1983009808
  %v8329 = vunpack.c.0.s8 %v8328
  %v8330 = vlaneseq
  %v8331 = vshrl.u32 %v8330, 7
  %v8332 = vsub.s32 %v8329, %v8331
  %v8333 = vrot.slane %v8319, %v8332
  %v8334 = vcombine.low %v8326, %v8333
  %v8335 = vcombine.low %v8190, %v8191
  %v8336 = vcombine.low %v8192, %v8193
  %v8338 = vunpack.c.l.s4 1983009808
  %v8339 = vunpack.c.0.s8 %v8338
  %v8340 = vlaneseq
  %v8341 = vshrl.u32 %v8340, 7
  %v8342 = vsub.s32 %v8339, %v8341
  %v8343 = vrot.slane %v8335, %v8342
  %v8345 = vunpack.c.l.s4 1983009808
  %v8346 = vunpack.c.0.s8 %v8345
  %v8347 = vlaneseq
  %v8348 = vshrl.u32 %v8347, 7
  %v8349 = vsub.s32 %v8346, %v8348
  %v8350 = vrot.slane %v8336, %v8349
  %v8351 = vcombine.low %v8343, %v8350
  %v8352 = vcombine.low %v8194, %v8195
  %v8353 = vcombine.low %v8196, %v8197
  %v8355 = vunpack.c.l.s4 1983009808
  %v8356 = vunpack.c.0.s8 %v8355
  %v8357 = vlaneseq
  %v8358 = vshrl.u32 %v8357, 7
  %v8359 = vsub.s32 %v8356, %v8358
  %v8360 = vrot.slane %v8352, %v8359
  %v8362 = vunpack.c.l.s4 1983009808
  %v8363 = vunpack.c.0.s8 %v8362
  %v8364 = vlaneseq
  %v8365 = vshrl.u32 %v8364, 7
  %v8366 = vsub.s32 %v8363, %v8365
  %v8367 = vrot.slane %v8353, %v8366
  %v8368 = vcombine.low %v8360, %v8367
  %v8369 = vcombine.low %v8198, %v8199
  %v8370 = vcombine.low %v8200, %v8201
  %v8372 = vunpack.c.l.s4 1983009808
  %v8373 = vunpack.c.0.s8 %v8372
  %v8374 = vlaneseq
  %v8375 = vshrl.u32 %v8374, 7
  %v8376 = vsub.s32 %v8373, %v8375
  %v8377 = vrot.slane %v8369, %v8376
  %v8379 = vunpack.c.l.s4 1983009808
  %v8380 = vunpack.c.0.s8 %v8379
  %v8381 = vlaneseq
  %v8382 = vshrl.u32 %v8381, 7
  %v8383 = vsub.s32 %v8380, %v8382
  %v8384 = vrot.slane %v8370, %v8383
  %v8385 = vcombine.low %v8377, %v8384
  %v8386 = vcombine.low %v8202, %v8203
  %v8387 = vcombine.low %v8204, %v8205
  %v8389 = vunpack.c.l.s4 1983009808
  %v8390 = vunpack.c.0.s8 %v8389
  %v8391 = vlaneseq
  %v8392 = vshrl.u32 %v8391, 7
  %v8393 = vsub.s32 %v8390, %v8392
  %v8394 = vrot.slane %v8386, %v8393
  %v8396 = vunpack.c.l.s4 1983009808
  %v8397 = vunpack.c.0.s8 %v8396
  %v8398 = vlaneseq
  %v8399 = vshrl.u32 %v8398, 7
  %v8400 = vsub.s32 %v8397, %v8399
  %v8401 = vrot.slane %v8387, %v8400
  %v8402 = vcombine.low %v8394, %v8401
  %v8403 = vcombine.low %v8206, %v8207
  %v8404 = vcombine.low %v8208, %v8209
  %v8406 = vunpack.c.l.s4 1983009808
  %v8407 = vunpack.c.0.s8 %v8406
  %v8408 = vlaneseq
  %v8409 = vshrl.u32 %v8408, 7
  %v8410 = vsub.s32 %v8407, %v8409
  %v8411 = vrot.slane %v8403, %v8410
  %v8413 = vunpack.c.l.s4 1983009808
  %v8414 = vunpack.c.0.s8 %v8413
  %v8415 = vlaneseq
  %v8416 = vshrl.u32 %v8415, 7
  %v8417 = vsub.s32 %v8414, %v8416
  %v8418 = vrot.slane %v8404, %v8417
  %v8419 = vcombine.low %v8411, %v8418
  %v8430 = vsel %vm515, %v8266, 0.0
  %8431 = vadd.xlane.f32.xlu0 %v8430
  %v8432 = vpop.xlane.xlu0 %8431
  %v8433 = vsel %vm515, %v8283, 0.0
  %8434 = vadd.xlane.f32.xlu0 %v8433
  %v8435 = vpop.xlane.xlu0 %8434
  %v8436 = vsel %vm515, %v8300, 0.0
  %8437 = vadd.xlane.f32.xlu0 %v8436
  %v8438 = vpop.xlane.xlu0 %8437
  %v8439 = vsel %vm515, %v8317, 0.0
  %8440 = vadd.xlane.f32.xlu0 %v8439
  %v8441 = vpop.xlane.xlu0 %8440
  %v8442 = vsel %vm515, %v8334, 0.0
  %8443 = vadd.xlane.f32.xlu0 %v8442
  %v8444 = vpop.xlane.xlu0 %8443
  %v8445 = vsel %vm515, %v8351, 0.0
  %8446 = vadd.xlane.f32.xlu0 %v8445
  %v8447 = vpop.xlane.xlu0 %8446
  %v8448 = vsel %vm515, %v8368, 0.0
  %8449 = vadd.xlane.f32.xlu0 %v8448
  %v8450 = vpop.xlane.xlu0 %8449
  %v8451 = vsel %vm515, %v8385, 0.0
  %8452 = vadd.xlane.f32.xlu0 %v8451
  %v8453 = vpop.xlane.xlu0 %8452
  %v8454 = vsel %vm515, %v8402, 0.0
  %8455 = vadd.xlane.f32.xlu0 %v8454
  %v8456 = vpop.xlane.xlu0 %8455
  %v8457 = vsel %vm515, %v8419, 0.0
  %8458 = vadd.xlane.f32.xlu0 %v8457
  %v8459 = vpop.xlane.xlu0 %8458
  %v8460 = vmul.f32 %v8432, %v546
  %v8461 = vmul.f32 %v8435, %v546
  %v8462 = vmul.f32 %v8438, %v546
  %v8463 = vmul.f32 %v8441, %v546
  %v8464 = vmul.f32 %v8444, %v546
  %v8465 = vmul.f32 %v8447, %v546
  %v8466 = vmul.f32 %v8450, %v546
  %v8467 = vmul.f32 %v8453, %v546
  %v8468 = vmul.f32 %v8456, %v546
  %v8469 = vmul.f32 %v8459, %v546
  %v8470 = vadd.f32 %v8460, 1e-05
  %v8471 = vadd.f32 %v8461, 1e-05
  %v8472 = vadd.f32 %v8462, 1e-05
  %v8473 = vadd.f32 %v8463, 1e-05
  %v8474 = vadd.f32 %v8464, 1e-05
  %v8475 = vadd.f32 %v8465, 1e-05
  %v8476 = vadd.f32 %v8466, 1e-05
  %v8477 = vadd.f32 %v8467, 1e-05
  %v8478 = vadd.f32 %v8468, 1e-05
  %v8479 = vadd.f32 %v8469, 1e-05
  %v8480 = vrsqrt.pop %v8470
  %v8481 = vrsqrt.pop %v8471
  %v8482 = vrsqrt.pop %v8472
  %v8483 = vrsqrt.pop %v8473
  %v8484 = vrsqrt.pop %v8474
  %v8485 = vrsqrt.pop %v8475
  %v8486 = vrsqrt.pop %v8476
  %v8487 = vrsqrt.pop %v8477
  %v8488 = vrsqrt.pop %v8478
  %v8489 = vrsqrt.pop %v8479
  %v8501 = vunpack.c.l.s4 269488144
  %v8502 = vunpack.c.0.s8 %v8501
  %v8503 = vlaneseq
  %v8504 = vshrl.u32 %v8503, 7
  %v8505 = vsub.s32 %v8502, %v8504
  %v8506 = vrot.slane %v8480, %v8505
  %v8508 = vunpack.c.l.s4 842150450
  %v8509 = vunpack.c.0.s8 %v8508
  %v8510 = vlaneseq
  %v8511 = vshrl.u32 %v8510, 7
  %v8512 = vsub.s32 %v8509, %v8511
  %v8513 = vrot.slane %v8480, %v8512
  %v8515 = vunpack.c.l.s4 1414812756
  %v8516 = vunpack.c.0.s8 %v8515
  %v8517 = vlaneseq
  %v8518 = vshrl.u32 %v8517, 7
  %v8519 = vsub.s32 %v8516, %v8518
  %v8520 = vrot.slane %v8480, %v8519
  %v8522 = vunpack.c.l.s4 1987475062
  %v8523 = vunpack.c.0.s8 %v8522
  %v8524 = vlaneseq
  %v8525 = vshrl.u32 %v8524, 7
  %v8526 = vsub.s32 %v8523, %v8525
  %v8527 = vrot.slane %v8480, %v8526
  %v8529 = vunpack.c.l.s4 269488144
  %v8530 = vunpack.c.0.s8 %v8529
  %v8531 = vlaneseq
  %v8532 = vshrl.u32 %v8531, 7
  %v8533 = vsub.s32 %v8530, %v8532
  %v8534 = vrot.slane %v8481, %v8533
  %v8536 = vunpack.c.l.s4 842150450
  %v8537 = vunpack.c.0.s8 %v8536
  %v8538 = vlaneseq
  %v8539 = vshrl.u32 %v8538, 7
  %v8540 = vsub.s32 %v8537, %v8539
  %v8541 = vrot.slane %v8481, %v8540
  %v8543 = vunpack.c.l.s4 1414812756
  %v8544 = vunpack.c.0.s8 %v8543
  %v8545 = vlaneseq
  %v8546 = vshrl.u32 %v8545, 7
  %v8547 = vsub.s32 %v8544, %v8546
  %v8548 = vrot.slane %v8481, %v8547
  %v8550 = vunpack.c.l.s4 1987475062
  %v8551 = vunpack.c.0.s8 %v8550
  %v8552 = vlaneseq
  %v8553 = vshrl.u32 %v8552, 7
  %v8554 = vsub.s32 %v8551, %v8553
  %v8555 = vrot.slane %v8481, %v8554
  %v8557 = vunpack.c.l.s4 269488144
  %v8558 = vunpack.c.0.s8 %v8557
  %v8559 = vlaneseq
  %v8560 = vshrl.u32 %v8559, 7
  %v8561 = vsub.s32 %v8558, %v8560
  %v8562 = vrot.slane %v8482, %v8561
  %v8564 = vunpack.c.l.s4 842150450
  %v8565 = vunpack.c.0.s8 %v8564
  %v8566 = vlaneseq
  %v8567 = vshrl.u32 %v8566, 7
  %v8568 = vsub.s32 %v8565, %v8567
  %v8569 = vrot.slane %v8482, %v8568
  %v8571 = vunpack.c.l.s4 1414812756
  %v8572 = vunpack.c.0.s8 %v8571
  %v8573 = vlaneseq
  %v8574 = vshrl.u32 %v8573, 7
  %v8575 = vsub.s32 %v8572, %v8574
  %v8576 = vrot.slane %v8482, %v8575
  %v8578 = vunpack.c.l.s4 1987475062
  %v8579 = vunpack.c.0.s8 %v8578
  %v8580 = vlaneseq
  %v8581 = vshrl.u32 %v8580, 7
  %v8582 = vsub.s32 %v8579, %v8581
  %v8583 = vrot.slane %v8482, %v8582
  %v8585 = vunpack.c.l.s4 269488144
  %v8586 = vunpack.c.0.s8 %v8585
  %v8587 = vlaneseq
  %v8588 = vshrl.u32 %v8587, 7
  %v8589 = vsub.s32 %v8586, %v8588
  %v8590 = vrot.slane %v8483, %v8589
  %v8592 = vunpack.c.l.s4 842150450
  %v8593 = vunpack.c.0.s8 %v8592
  %v8594 = vlaneseq
  %v8595 = vshrl.u32 %v8594, 7
  %v8596 = vsub.s32 %v8593, %v8595
  %v8597 = vrot.slane %v8483, %v8596
  %v8599 = vunpack.c.l.s4 1414812756
  %v8600 = vunpack.c.0.s8 %v8599
  %v8601 = vlaneseq
  %v8602 = vshrl.u32 %v8601, 7
  %v8603 = vsub.s32 %v8600, %v8602
  %v8604 = vrot.slane %v8483, %v8603
  %v8606 = vunpack.c.l.s4 1987475062
  %v8607 = vunpack.c.0.s8 %v8606
  %v8608 = vlaneseq
  %v8609 = vshrl.u32 %v8608, 7
  %v8610 = vsub.s32 %v8607, %v8609
  %v8611 = vrot.slane %v8483, %v8610
  %v8613 = vunpack.c.l.s4 269488144
  %v8614 = vunpack.c.0.s8 %v8613
  %v8615 = vlaneseq
  %v8616 = vshrl.u32 %v8615, 7
  %v8617 = vsub.s32 %v8614, %v8616
  %v8618 = vrot.slane %v8484, %v8617
  %v8620 = vunpack.c.l.s4 842150450
  %v8621 = vunpack.c.0.s8 %v8620
  %v8622 = vlaneseq
  %v8623 = vshrl.u32 %v8622, 7
  %v8624 = vsub.s32 %v8621, %v8623
  %v8625 = vrot.slane %v8484, %v8624
  %v8627 = vunpack.c.l.s4 1414812756
  %v8628 = vunpack.c.0.s8 %v8627
  %v8629 = vlaneseq
  %v8630 = vshrl.u32 %v8629, 7
  %v8631 = vsub.s32 %v8628, %v8630
  %v8632 = vrot.slane %v8484, %v8631
  %v8634 = vunpack.c.l.s4 1987475062
  %v8635 = vunpack.c.0.s8 %v8634
  %v8636 = vlaneseq
  %v8637 = vshrl.u32 %v8636, 7
  %v8638 = vsub.s32 %v8635, %v8637
  %v8639 = vrot.slane %v8484, %v8638
  %v8641 = vunpack.c.l.s4 269488144
  %v8642 = vunpack.c.0.s8 %v8641
  %v8643 = vlaneseq
  %v8644 = vshrl.u32 %v8643, 7
  %v8645 = vsub.s32 %v8642, %v8644
  %v8646 = vrot.slane %v8485, %v8645
  %v8648 = vunpack.c.l.s4 842150450
  %v8649 = vunpack.c.0.s8 %v8648
  %v8650 = vlaneseq
  %v8651 = vshrl.u32 %v8650, 7
  %v8652 = vsub.s32 %v8649, %v8651
  %v8653 = vrot.slane %v8485, %v8652
  %v8655 = vunpack.c.l.s4 1414812756
  %v8656 = vunpack.c.0.s8 %v8655
  %v8657 = vlaneseq
  %v8658 = vshrl.u32 %v8657, 7
  %v8659 = vsub.s32 %v8656, %v8658
  %v8660 = vrot.slane %v8485, %v8659
  %v8662 = vunpack.c.l.s4 1987475062
  %v8663 = vunpack.c.0.s8 %v8662
  %v8664 = vlaneseq
  %v8665 = vshrl.u32 %v8664, 7
  %v8666 = vsub.s32 %v8663, %v8665
  %v8667 = vrot.slane %v8485, %v8666
  %v8669 = vunpack.c.l.s4 269488144
  %v8670 = vunpack.c.0.s8 %v8669
  %v8671 = vlaneseq
  %v8672 = vshrl.u32 %v8671, 7
  %v8673 = vsub.s32 %v8670, %v8672
  %v8674 = vrot.slane %v8486, %v8673
  %v8676 = vunpack.c.l.s4 842150450
  %v8677 = vunpack.c.0.s8 %v8676
  %v8678 = vlaneseq
  %v8679 = vshrl.u32 %v8678, 7
  %v8680 = vsub.s32 %v8677, %v8679
  %v8681 = vrot.slane %v8486, %v8680
  %v8683 = vunpack.c.l.s4 1414812756
  %v8684 = vunpack.c.0.s8 %v8683
  %v8685 = vlaneseq
  %v8686 = vshrl.u32 %v8685, 7
  %v8687 = vsub.s32 %v8684, %v8686
  %v8688 = vrot.slane %v8486, %v8687
  %v8690 = vunpack.c.l.s4 1987475062
  %v8691 = vunpack.c.0.s8 %v8690
  %v8692 = vlaneseq
  %v8693 = vshrl.u32 %v8692, 7
  %v8694 = vsub.s32 %v8691, %v8693
  %v8695 = vrot.slane %v8486, %v8694
  %v8697 = vunpack.c.l.s4 269488144
  %v8698 = vunpack.c.0.s8 %v8697
  %v8699 = vlaneseq
  %v8700 = vshrl.u32 %v8699, 7
  %v8701 = vsub.s32 %v8698, %v8700
  %v8702 = vrot.slane %v8487, %v8701
  %v8704 = vunpack.c.l.s4 842150450
  %v8705 = vunpack.c.0.s8 %v8704
  %v8706 = vlaneseq
  %v8707 = vshrl.u32 %v8706, 7
  %v8708 = vsub.s32 %v8705, %v8707
  %v8709 = vrot.slane %v8487, %v8708
  %v8711 = vunpack.c.l.s4 1414812756
  %v8712 = vunpack.c.0.s8 %v8711
  %v8713 = vlaneseq
  %v8714 = vshrl.u32 %v8713, 7
  %v8715 = vsub.s32 %v8712, %v8714
  %v8716 = vrot.slane %v8487, %v8715
  %v8718 = vunpack.c.l.s4 1987475062
  %v8719 = vunpack.c.0.s8 %v8718
  %v8720 = vlaneseq
  %v8721 = vshrl.u32 %v8720, 7
  %v8722 = vsub.s32 %v8719, %v8721
  %v8723 = vrot.slane %v8487, %v8722
  %v8725 = vunpack.c.l.s4 269488144
  %v8726 = vunpack.c.0.s8 %v8725
  %v8727 = vlaneseq
  %v8728 = vshrl.u32 %v8727, 7
  %v8729 = vsub.s32 %v8726, %v8728
  %v8730 = vrot.slane %v8488, %v8729
  %v8732 = vunpack.c.l.s4 842150450
  %v8733 = vunpack.c.0.s8 %v8732
  %v8734 = vlaneseq
  %v8735 = vshrl.u32 %v8734, 7
  %v8736 = vsub.s32 %v8733, %v8735
  %v8737 = vrot.slane %v8488, %v8736
  %v8739 = vunpack.c.l.s4 1414812756
  %v8740 = vunpack.c.0.s8 %v8739
  %v8741 = vlaneseq
  %v8742 = vshrl.u32 %v8741, 7
  %v8743 = vsub.s32 %v8740, %v8742
  %v8744 = vrot.slane %v8488, %v8743
  %v8746 = vunpack.c.l.s4 1987475062
  %v8747 = vunpack.c.0.s8 %v8746
  %v8748 = vlaneseq
  %v8749 = vshrl.u32 %v8748, 7
  %v8750 = vsub.s32 %v8747, %v8749
  %v8751 = vrot.slane %v8488, %v8750
  %v8753 = vunpack.c.l.s4 269488144
  %v8754 = vunpack.c.0.s8 %v8753
  %v8755 = vlaneseq
  %v8756 = vshrl.u32 %v8755, 7
  %v8757 = vsub.s32 %v8754, %v8756
  %v8758 = vrot.slane %v8489, %v8757
  %v8760 = vunpack.c.l.s4 842150450
  %v8761 = vunpack.c.0.s8 %v8760
  %v8762 = vlaneseq
  %v8763 = vshrl.u32 %v8762, 7
  %v8764 = vsub.s32 %v8761, %v8763
  %v8765 = vrot.slane %v8489, %v8764
  %v8767 = vunpack.c.l.s4 1414812756
  %v8768 = vunpack.c.0.s8 %v8767
  %v8769 = vlaneseq
  %v8770 = vshrl.u32 %v8769, 7
  %v8771 = vsub.s32 %v8768, %v8770
  %v8772 = vrot.slane %v8489, %v8771
  %v8774 = vunpack.c.l.s4 1987475062
  %v8775 = vunpack.c.0.s8 %v8774
  %v8776 = vlaneseq
  %v8777 = vshrl.u32 %v8776, 7
  %v8778 = vsub.s32 %v8775, %v8777
  %v8779 = vrot.slane %v8489, %v8778
  %v8820 = vmul.f32 %v8130, %v8506
  %v8821 = vmul.f32 %v8131, %v8513
  %v8822 = vmul.f32 %v8132, %v8520
  %v8823 = vmul.f32 %v8133, %v8527
  %v8824 = vmul.f32 %v8134, %v8534
  %v8825 = vmul.f32 %v8135, %v8541
  %v8826 = vmul.f32 %v8136, %v8548
  %v8827 = vmul.f32 %v8137, %v8555
  %v8828 = vmul.f32 %v8138, %v8562
  %v8829 = vmul.f32 %v8139, %v8569
  %v8830 = vmul.f32 %v8140, %v8576
  %v8831 = vmul.f32 %v8141, %v8583
  %v8832 = vmul.f32 %v8142, %v8590
  %v8833 = vmul.f32 %v8143, %v8597
  %v8834 = vmul.f32 %v8144, %v8604
  %v8835 = vmul.f32 %v8145, %v8611
  %v8836 = vmul.f32 %v8146, %v8618
  %v8837 = vmul.f32 %v8147, %v8625
  %v8838 = vmul.f32 %v8148, %v8632
  %v8839 = vmul.f32 %v8149, %v8639
  %v8840 = vmul.f32 %v8150, %v8646
  %v8841 = vmul.f32 %v8151, %v8653
  %v8842 = vmul.f32 %v8152, %v8660
  %v8843 = vmul.f32 %v8153, %v8667
  %v8844 = vmul.f32 %v8154, %v8674
  %v8845 = vmul.f32 %v8155, %v8681
  %v8846 = vmul.f32 %v8156, %v8688
  %v8847 = vmul.f32 %v8157, %v8695
  %v8848 = vmul.f32 %v8158, %v8702
  %v8849 = vmul.f32 %v8159, %v8709
  %v8850 = vmul.f32 %v8160, %v8716
  %v8851 = vmul.f32 %v8161, %v8723
  %v8852 = vmul.f32 %v8162, %v8730
  %v8853 = vmul.f32 %v8163, %v8737
  %v8854 = vmul.f32 %v8164, %v8744
  %v8855 = vmul.f32 %v8165, %v8751
  %v8856 = vmul.f32 %v8166, %v8758
  %v8857 = vmul.f32 %v8167, %v8765
  %v8858 = vmul.f32 %v8168, %v8772
  %v8859 = vmul.f32 %v8169, %v8779
  %v8861 = vlaneseq
  %v8862 = vshrl.u32 %v8861, 7
  %v8863 = vsub.s32 0, %v8862
  %v8864 = vrot.slane %v7538, %v8863
  %v8865 = vcombine.high %v8864, %v8864
  %v8867 = vunpack.c.l.s4 1983009808
  %v8868 = vunpack.c.0.s8 %v8867
  %v8869 = vlaneseq
  %v8870 = vshrl.u32 %v8869, 7
  %v8871 = vsub.s32 %v8868, %v8870
  %v8872 = vrot.slane %v8864, %v8871
  %v8874 = vunpack.c.l.s4 1983009808
  %v8875 = vunpack.c.0.s8 %v8874
  %v8876 = vlaneseq
  %v8877 = vshrl.u32 %v8876, 7
  %v8878 = vsub.s32 %v8875, %v8877
  %v8879 = vrot.slane %v8865, %v8878
  %v8880 = vcombine.high %v8872, %v8872
  %v8881 = vcombine.high %v8879, %v8879
  %v8886 = vmul.f32 %v8820, %v8872
  %v8887 = vmul.f32 %v8821, %v8880
  %v8888 = vmul.f32 %v8822, %v8879
  %v8889 = vmul.f32 %v8823, %v8881
  %v8890 = vmul.f32 %v8824, %v8872
  %v8891 = vmul.f32 %v8825, %v8880
  %v8892 = vmul.f32 %v8826, %v8879
  %v8893 = vmul.f32 %v8827, %v8881
  %v8894 = vmul.f32 %v8828, %v8872
  %v8895 = vmul.f32 %v8829, %v8880
  %v8896 = vmul.f32 %v8830, %v8879
  %v8897 = vmul.f32 %v8831, %v8881
  %v8898 = vmul.f32 %v8832, %v8872
  %v8899 = vmul.f32 %v8833, %v8880
  %v8900 = vmul.f32 %v8834, %v8879
  %v8901 = vmul.f32 %v8835, %v8881
  %v8902 = vmul.f32 %v8836, %v8872
  %v8903 = vmul.f32 %v8837, %v8880
  %v8904 = vmul.f32 %v8838, %v8879
  %v8905 = vmul.f32 %v8839, %v8881
  %v8906 = vmul.f32 %v8840, %v8872
  %v8907 = vmul.f32 %v8841, %v8880
  %v8908 = vmul.f32 %v8842, %v8879
  %v8909 = vmul.f32 %v8843, %v8881
  %v8910 = vmul.f32 %v8844, %v8872
  %v8911 = vmul.f32 %v8845, %v8880
  %v8912 = vmul.f32 %v8846, %v8879
  %v8913 = vmul.f32 %v8847, %v8881
  %v8914 = vmul.f32 %v8848, %v8872
  %v8915 = vmul.f32 %v8849, %v8880
  %v8916 = vmul.f32 %v8850, %v8879
  %v8917 = vmul.f32 %v8851, %v8881
  %v8918 = vmul.f32 %v8852, %v8872
  %v8919 = vmul.f32 %v8853, %v8880
  %v8920 = vmul.f32 %v8854, %v8879
  %v8921 = vmul.f32 %v8855, %v8881
  %v8922 = vmul.f32 %v8856, %v8872
  %v8923 = vmul.f32 %v8857, %v8880
  %v8924 = vmul.f32 %v8858, %v8879
  %v8925 = vmul.f32 %v8859, %v8881
  %v8927 = vlaneseq
  %v8928 = vshrl.u32 %v8927, 7
  %v8929 = vsub.s32 0, %v8928
  %v8930 = vrot.slane %v7539, %v8929
  %v8931 = vcombine.high %v8930, %v8930
  %v8933 = vunpack.c.l.s4 1983009808
  %v8934 = vunpack.c.0.s8 %v8933
  %v8935 = vlaneseq
  %v8936 = vshrl.u32 %v8935, 7
  %v8937 = vsub.s32 %v8934, %v8936
  %v8938 = vrot.slane %v8930, %v8937
  %v8940 = vunpack.c.l.s4 1983009808
  %v8941 = vunpack.c.0.s8 %v8940
  %v8942 = vlaneseq
  %v8943 = vshrl.u32 %v8942, 7
  %v8944 = vsub.s32 %v8941, %v8943
  %v8945 = vrot.slane %v8931, %v8944
  %v8946 = vcombine.high %v8938, %v8938
  %v8947 = vcombine.high %v8945, %v8945
  %v8952 = vadd.f32 %v8886, %v8938
  %v8953 = vadd.f32 %v8887, %v8946
  %v8954 = vadd.f32 %v8888, %v8945
  %v8955 = vadd.f32 %v8889, %v8947
  %v8956 = vadd.f32 %v8890, %v8938
  %v8957 = vadd.f32 %v8891, %v8946
  %v8958 = vadd.f32 %v8892, %v8945
  %v8959 = vadd.f32 %v8893, %v8947
  %v8960 = vadd.f32 %v8894, %v8938
  %v8961 = vadd.f32 %v8895, %v8946
  %v8962 = vadd.f32 %v8896, %v8945
  %v8963 = vadd.f32 %v8897, %v8947
  %v8964 = vadd.f32 %v8898, %v8938
  %v8965 = vadd.f32 %v8899, %v8946
  %v8966 = vadd.f32 %v8900, %v8945
  %v8967 = vadd.f32 %v8901, %v8947
  %v8968 = vadd.f32 %v8902, %v8938
  %v8969 = vadd.f32 %v8903, %v8946
  %v8970 = vadd.f32 %v8904, %v8945
  %v8971 = vadd.f32 %v8905, %v8947
  %v8972 = vadd.f32 %v8906, %v8938
  %v8973 = vadd.f32 %v8907, %v8946
  %v8974 = vadd.f32 %v8908, %v8945
  %v8975 = vadd.f32 %v8909, %v8947
  %v8976 = vadd.f32 %v8910, %v8938
  %v8977 = vadd.f32 %v8911, %v8946
  %v8978 = vadd.f32 %v8912, %v8945
  %v8979 = vadd.f32 %v8913, %v8947
  %v8980 = vadd.f32 %v8914, %v8938
  %v8981 = vadd.f32 %v8915, %v8946
  %v8982 = vadd.f32 %v8916, %v8945
  %v8983 = vadd.f32 %v8917, %v8947
  %v8984 = vadd.f32 %v8918, %v8938
  %v8985 = vadd.f32 %v8919, %v8946
  %v8986 = vadd.f32 %v8920, %v8945
  %v8987 = vadd.f32 %v8921, %v8947
  %v8988 = vadd.f32 %v8922, %v8938
  %v8989 = vadd.f32 %v8923, %v8946
  %v8990 = vadd.f32 %v8924, %v8945
  %v8991 = vadd.f32 %v8925, %v8947
  %v9032 = vcombine.low %v8952, %v8953
  %v9033 = vcombine.low %v8954, %v8955
  %v9035 = vunpack.c.l.s4 1983009808
  %v9036 = vunpack.c.0.s8 %v9035
  %v9037 = vlaneseq
  %v9038 = vshrl.u32 %v9037, 7
  %v9039 = vsub.s32 %v9036, %v9038
  %v9040 = vrot.slane %v9032, %v9039
  %v9042 = vunpack.c.l.s4 1983009808
  %v9043 = vunpack.c.0.s8 %v9042
  %v9044 = vlaneseq
  %v9045 = vshrl.u32 %v9044, 7
  %v9046 = vsub.s32 %v9043, %v9045
  %v9047 = vrot.slane %v9033, %v9046
  %v9048 = vcombine.low %v9040, %v9047
  %v9050 = vunpack.c.l.s4 1983009808
  %v9051 = vunpack.c.0.s8 %v9050
  %v9052 = vlaneseq
  %v9053 = vshrl.u32 %v9052, 7
  %v9054 = vsub.s32 %v9051, %v9053
  %v9055 = vrot.slane %v8956, %v9054
  %v9056 = vcombine.low %v8957, %v8958
  %v9057 = vcombine.low %v8959, %v8960
  %v9059 = vunpack.c.l.s4 1983009808
  %v9060 = vunpack.c.0.s8 %v9059
  %v9061 = vlaneseq
  %v9062 = vshrl.u32 %v9061, 7
  %v9063 = vsub.s32 %v9060, %v9062
  %v9064 = vrot.slane %v9056, %v9063
  %v9066 = vunpack.c.l.s4 1983009808
  %v9067 = vunpack.c.0.s8 %v9066
  %v9068 = vlaneseq
  %v9069 = vshrl.u32 %v9068, 7
  %v9070 = vsub.s32 %v9067, %v9069
  %v9071 = vrot.slane %v9057, %v9070
  %v9072 = vcombine.low %v9064, %v9071
  %v9074 = vunpack.c.l.s4 1983009808
  %v9075 = vunpack.c.0.s8 %v9074
  %v9076 = vlaneseq
  %v9077 = vshrl.u32 %v9076, 7
  %v9078 = vsub.s32 %v9075, %v9077
  %v9079 = vrot.slane %v8961, %v9078
  %v9080 = vcombine.low %v8962, %v8963
  %v9081 = vcombine.low %v8964, %v8965
  %v9083 = vunpack.c.l.s4 1983009808
  %v9084 = vunpack.c.0.s8 %v9083
  %v9085 = vlaneseq
  %v9086 = vshrl.u32 %v9085, 7
  %v9087 = vsub.s32 %v9084, %v9086
  %v9088 = vrot.slane %v9080, %v9087
  %v9090 = vunpack.c.l.s4 1983009808
  %v9091 = vunpack.c.0.s8 %v9090
  %v9092 = vlaneseq
  %v9093 = vshrl.u32 %v9092, 7
  %v9094 = vsub.s32 %v9091, %v9093
  %v9095 = vrot.slane %v9081, %v9094
  %v9096 = vcombine.low %v9088, %v9095
  %v9098 = vunpack.c.l.s4 1983009808
  %v9099 = vunpack.c.0.s8 %v9098
  %v9100 = vlaneseq
  %v9101 = vshrl.u32 %v9100, 7
  %v9102 = vsub.s32 %v9099, %v9101
  %v9103 = vrot.slane %v8966, %v9102
  %v9104 = vcombine.low %v8967, %v8968
  %v9105 = vcombine.low %v8969, %v8970
  %v9107 = vunpack.c.l.s4 1983009808
  %v9108 = vunpack.c.0.s8 %v9107
  %v9109 = vlaneseq
  %v9110 = vshrl.u32 %v9109, 7
  %v9111 = vsub.s32 %v9108, %v9110
  %v9112 = vrot.slane %v9104, %v9111
  %v9114 = vunpack.c.l.s4 1983009808
  %v9115 = vunpack.c.0.s8 %v9114
  %v9116 = vlaneseq
  %v9117 = vshrl.u32 %v9116, 7
  %v9118 = vsub.s32 %v9115, %v9117
  %v9119 = vrot.slane %v9105, %v9118
  %v9120 = vcombine.low %v9112, %v9119
  %v9122 = vunpack.c.l.s4 1983009808
  %v9123 = vunpack.c.0.s8 %v9122
  %v9124 = vlaneseq
  %v9125 = vshrl.u32 %v9124, 7
  %v9126 = vsub.s32 %v9123, %v9125
  %v9127 = vrot.slane %v8971, %v9126
  %v9128 = vcombine.low %v8972, %v8973
  %v9129 = vcombine.low %v8974, %v8975
  %v9131 = vunpack.c.l.s4 1983009808
  %v9132 = vunpack.c.0.s8 %v9131
  %v9133 = vlaneseq
  %v9134 = vshrl.u32 %v9133, 7
  %v9135 = vsub.s32 %v9132, %v9134
  %v9136 = vrot.slane %v9128, %v9135
  %v9138 = vunpack.c.l.s4 1983009808
  %v9139 = vunpack.c.0.s8 %v9138
  %v9140 = vlaneseq
  %v9141 = vshrl.u32 %v9140, 7
  %v9142 = vsub.s32 %v9139, %v9141
  %v9143 = vrot.slane %v9129, %v9142
  %v9144 = vcombine.low %v9136, %v9143
  %v9146 = vunpack.c.l.s4 1983009808
  %v9147 = vunpack.c.0.s8 %v9146
  %v9148 = vlaneseq
  %v9149 = vshrl.u32 %v9148, 7
  %v9150 = vsub.s32 %v9147, %v9149
  %v9151 = vrot.slane %v8976, %v9150
  %v9152 = vcombine.low %v8977, %v8978
  %v9153 = vcombine.low %v8979, %v8980
  %v9155 = vunpack.c.l.s4 1983009808
  %v9156 = vunpack.c.0.s8 %v9155
  %v9157 = vlaneseq
  %v9158 = vshrl.u32 %v9157, 7
  %v9159 = vsub.s32 %v9156, %v9158
  %v9160 = vrot.slane %v9152, %v9159
  %v9162 = vunpack.c.l.s4 1983009808
  %v9163 = vunpack.c.0.s8 %v9162
  %v9164 = vlaneseq
  %v9165 = vshrl.u32 %v9164, 7
  %v9166 = vsub.s32 %v9163, %v9165
  %v9167 = vrot.slane %v9153, %v9166
  %v9168 = vcombine.low %v9160, %v9167
  %v9170 = vunpack.c.l.s4 1983009808
  %v9171 = vunpack.c.0.s8 %v9170
  %v9172 = vlaneseq
  %v9173 = vshrl.u32 %v9172, 7
  %v9174 = vsub.s32 %v9171, %v9173
  %v9175 = vrot.slane %v8981, %v9174
  %v9176 = vcombine.low %v8982, %v8983
  %v9177 = vcombine.low %v8984, %v8985
  %v9179 = vunpack.c.l.s4 1983009808
  %v9180 = vunpack.c.0.s8 %v9179
  %v9181 = vlaneseq
  %v9182 = vshrl.u32 %v9181, 7
  %v9183 = vsub.s32 %v9180, %v9182
  %v9184 = vrot.slane %v9176, %v9183
  %v9186 = vunpack.c.l.s4 1983009808
  %v9187 = vunpack.c.0.s8 %v9186
  %v9188 = vlaneseq
  %v9189 = vshrl.u32 %v9188, 7
  %v9190 = vsub.s32 %v9187, %v9189
  %v9191 = vrot.slane %v9177, %v9190
  %v9192 = vcombine.low %v9184, %v9191
  %v9194 = vunpack.c.l.s4 1983009808
  %v9195 = vunpack.c.0.s8 %v9194
  %v9196 = vlaneseq
  %v9197 = vshrl.u32 %v9196, 7
  %v9198 = vsub.s32 %v9195, %v9197
  %v9199 = vrot.slane %v8986, %v9198
  %v9200 = vcombine.low %v8987, %v8988
  %v9201 = vcombine.low %v8989, %v8990
  %v9203 = vunpack.c.l.s4 1983009808
  %v9204 = vunpack.c.0.s8 %v9203
  %v9205 = vlaneseq
  %v9206 = vshrl.u32 %v9205, 7
  %v9207 = vsub.s32 %v9204, %v9206
  %v9208 = vrot.slane %v9200, %v9207
  %v9210 = vunpack.c.l.s4 1983009808
  %v9211 = vunpack.c.0.s8 %v9210
  %v9212 = vlaneseq
  %v9213 = vshrl.u32 %v9212, 7
  %v9214 = vsub.s32 %v9211, %v9213
  %v9215 = vrot.slane %v9201, %v9214
  %v9216 = vcombine.low %v9208, %v9215
  %v9218 = vunpack.c.l.s4 1983009808
  %v9219 = vunpack.c.0.s8 %v9218
  %v9220 = vlaneseq
  %v9221 = vshrl.u32 %v9220, 7
  %v9222 = vsub.s32 %v9219, %v9221
  %v9223 = vrot.slane %v8991, %v9222
  %9240 = vst.msk [vmem:[%s15] sm:$0xff] %vm515, %v9048
  %vm9241 = vcmask 254976
  %9242 = vst.msk [vmem:[%s15 + $0x8] sm:$0x3] %vm9241, %v9055
  %9243 = vst.msk [vmem:[%s15 + $0x10] sm:$0xff] %vm515, %v9072
  %9244 = vst.msk [vmem:[%s15 + $0x18] sm:$0x3] %vm9241, %v9079
  %9245 = vst.msk [vmem:[%s15 + $0x20] sm:$0xff] %vm515, %v9096
  %9246 = vst.msk [vmem:[%s15 + $0x28] sm:$0x3] %vm9241, %v9103
  %9247 = vst.msk [vmem:[%s15 + $0x30] sm:$0xff] %vm515, %v9120
  %9248 = vst.msk [vmem:[%s15 + $0x38] sm:$0x3] %vm9241, %v9127
  %9249 = vst.msk [vmem:[%s15 + $0x40] sm:$0xff] %vm515, %v9144
  %9250 = vst.msk [vmem:[%s15 + $0x48] sm:$0x3] %vm9241, %v9151
  %9251 = vst.msk [vmem:[%s15 + $0x50] sm:$0xff] %vm515, %v9168
  %9252 = vst.msk [vmem:[%s15 + $0x58] sm:$0x3] %vm9241, %v9175
  %9253 = vst.msk [vmem:[%s15 + $0x60] sm:$0xff] %vm515, %v9192
  %9254 = vst.msk [vmem:[%s15 + $0x68] sm:$0x3] %vm9241, %v9199
  %9255 = vst.msk [vmem:[%s15 + $0x70] sm:$0xff] %vm515, %v9216
  %9256 = vst.msk [vmem:[%s15 + $0x78] sm:$0x3] %vm9241, %v9223
  // Predicated region
  $region62: #{_lambda_.3} parent=0 // pred_check
    _
  $region63: #{_lambda_.3} parent=0 // pred_check_branch
    %9258 = sbr.rel (0) target = $region65
  $region64: #{_lambda_.3} parent=0 // pred_region
    _
  $region65: #{_lambda_.3} parent=0 // pred_fallthru
    _
  // Predicated region
  $region66: #{_lambda_.3} parent=0 // pred_check
    _
  $region67: #{_lambda_.3} parent=0 // pred_check_branch
    %9260 = sbr.rel (0) target = $region69
  $region68: #{_lambda_.3} parent=0 // pred_region
    _
  $region69: #{_lambda_.3} parent=0 // pred_fallthru
    _

</llo_original>
